<compile_context>
chip_gen: v7x
topology: tpu7x:2x2x1
jax: 0.10.0
libtpu: 0.0.40
codegen_flags: <defaults>
</compile_context>

<pallas_src>
import functools
import math

import jax
import jax.numpy as jnp
from jax.experimental import pallas as pl
from jax.experimental.pallas import tpu as pltpu

LANE = 128


def _layer_norm(x, gamma, beta, eps=1e-5):
    # One-pass form: mean and E[x^2] are independent reduces (better ILP, one
    # fewer subtract pass than mean -> mean((x-mean)^2)).
    m = jnp.mean(x, axis=-1, keepdims=True)
    m2 = jnp.mean(x * x, axis=-1, keepdims=True)
    var = m2 - m * m
    return (x - m) * jax.lax.rsqrt(var + eps) * gamma + beta


# ----------------------------- kernel ----------------------------------------

def _disc_kernel(emp_ref, hist_ref, w_d_ref, w_h_ref, vec_ref, out_ref,
                 *, B_BLK, T, D, w_off, v_off):
    """Processes one block of B_BLK samples.

    emp_ref : (B_BLK, D)     bf16  employee embeddings
    hist_ref: (B_BLK, T, D)  bf16  game-history embeddings
    w_d_ref : (D, Wd)        bf16  column-packed weights with D input rows
                                   [wq|wk|wv|wo|w1|wc1a|wc1b], 128-lane aligned
    w_h_ref : (H, D)         bf16  FFN second weight (w2)
    vec_ref : (1, Wv)        f32   packed biases / LN params / row-vector weights
    out_ref : (1, 1, B_BLK)  f32   sigmoid scores (lane-dense store)
    """
    bf16, f32 = jnp.bfloat16, jnp.float32
    BT = B_BLK * T

    def wseg(name):
        o, w = w_off[name]
        return w_d_ref[:, o:o + w]

    def vseg(name):
        o, w = v_off[name]
        return vec_ref[:, o:o + w]

    h_bf = hist_ref[...].reshape(BT, D)                  # bf16 MXU operand
    h = h_bf.astype(f32)                                 # f32 residual stream

    # ---- RTransformer: self-attention block ----------------------------------
    # Fused Q|K|V projection over the contiguous 3*128-lane window (1/sqrt(D)
    # folded into wq/bq).  Each of q/k/v starts on a 128-lane boundary.
    q_lo = w_off["wq"][0]
    qkv_hi = w_off["wo"][0]
    qkv = jnp.dot(h_bf, w_d_ref[:, q_lo:qkv_hi],
                  preferred_element_type=f32)            # (BT, 3*128)

    def qkv_slice(name):
        o = w_off[name][0] - q_lo
        return qkv[:, o:o + D]

    q = (qkv_slice("wq") + vseg("bq")).reshape(B_BLK, T, D)   # f32, stays on VPU
    k = (qkv_slice("wk") + vseg("bk")).reshape(B_BLK, T, D)
    v = (qkv_slice("wv") + vseg("bv")).reshape(B_BLK, T, D)

    # Scores / context on the VPU+XLU: the per-sample (T=8, D=32) contractions are
    # far too small to keep the MXU busy (would be 2*B_BLK micro-matmul drains).
    s = jnp.sum(q[:, :, None, :] * k[:, None, :, :], axis=-1)       # (B, T, T)
    s = s - jnp.max(s, axis=-1, keepdims=True)
    e = jnp.exp(s)
    attn = e * pl.reciprocal(jnp.sum(e, axis=-1, keepdims=True), approx=True)
    ctx = jnp.sum(attn[:, :, :, None] * v[:, None, :, :], axis=2)   # (B, T, D)
    ctx = ctx.reshape(BT, D)

    proj = jnp.dot(ctx.astype(bf16), wseg("wo"),
                   preferred_element_type=f32) + vseg("bo")
    x1 = _layer_norm(h + proj, vseg("g1"), vseg("be1"))             # (BT, D)

    # ---- FFN + residual + LayerNorm -------------------------------------------
    f = jnp.dot(x1.astype(bf16), wseg("w1"), preferred_element_type=f32) + vseg("b1")
    f = jnp.maximum(f, 0.0)
    f = jnp.dot(f.astype(bf16), w_h_ref[...], preferred_element_type=f32) + vseg("b2")
    x2 = _layer_norm(x1 + f, vseg("g2"), vseg("be2"))               # (BT, D)

    # ---- SelfFusion: learned-query attention pooling over T (VPU + XLU) ------
    x2_3 = x2.reshape(B_BLK, T, D)
    sc = jnp.sum(x2_3 * vseg("qp"), axis=-1, keepdims=True)         # (B, T, 1)
    sc = sc - jnp.max(sc, axis=1, keepdims=True)
    ae = jnp.exp(sc)
    alpha = ae * pl.reciprocal(jnp.sum(ae, axis=1, keepdims=True), approx=True)
    pooled = jnp.sum(alpha * x2_3, axis=1)                          # (B, D)

    # ---- ConcatClassify: concat -> Linear -> ReLU -> Linear(1) -> sigmoid -----
    z = (jnp.dot(emp_ref[...], wseg("wc1a"), preferred_element_type=f32)
         + jnp.dot(pooled.astype(bf16), wseg("wc1b"), preferred_element_type=f32)
         + vseg("bc1"))
    z = jnp.maximum(z, 0.0)                                         # (B, D)

    # (1, D) x (B, D)^T -> (1, B): final scores land lane-dense for the store.
    logits = jax.lax.dot_general(
        vseg("wc2").astype(bf16), z.astype(bf16),
        (((1,), (1,)), ((), ())), preferred_element_type=f32) + vseg("bc2")
    out_ref[...] = jax.nn.sigmoid(logits).reshape(1, 1, B_BLK)


# ----------------------------- param packing ----------------------------------

def _pack_cols(parts, dtype):
    """Column-concat 2-D f32 arrays (same row count); each segment 128-lane aligned."""
    pieces, offs, off = [], {}, 0
    rows = int(parts[0][1].shape[0])
    for name, arr in parts:
        arr = jnp.asarray(arr, jnp.float32)
        assert arr.ndim == 2 and arr.shape[0] == rows, (name, arr.shape)
        w = int(arr.shape[1])
        pad = (-w) % LANE
        offs[name] = (off, w)
        pieces.append(arr)
        if pad:
            pieces.append(jnp.zeros((rows, pad), jnp.float32))
        off += w + pad
    return jnp.concatenate(pieces, axis=1).astype(dtype), offs


def _prepare_params(params, D):
    p = params
    scale = 1.0 / math.sqrt(D)
    # Fold the 1/sqrt(D) attention scale into wq/bq; wq/wk/wv are separate
    # 128-lane-aligned segments so the fused-QKV output slices at 0/128/256.
    w_d, w_off = _pack_cols(
        [("wq", p["wq"] * scale), ("wk", p["wk"]), ("wv", p["wv"]),
         ("wo", p["wo"]), ("w1", p["w1"]),
         ("wc1a", p["wc1"][:D, :]), ("wc1b", p["wc1"][D:, :])],
        jnp.bfloat16)                                   # bf16 MXU weight slab
    w_h = jnp.asarray(p["w2"], jnp.float32).astype(jnp.bfloat16)      # (H, D)
    vec, v_off = _pack_cols(
        [("bq", p["bq"] * scale), ("bk", p["bk"]), ("bv", p["bv"]),
         ("bo", p["bo"]), ("b1", p["b1"]), ("b2", p["b2"]),
         ("g1", p["g1"]), ("be1", p["be1"]), ("g2", p["g2"]), ("be2", p["be2"]),
         ("qp", p["qp"].T), ("bc1", p["bc1"]), ("wc2", p["wc2"].T), ("bc2", p["bc2"])],
        jnp.float32)                                    # f32 VPU vector slab
    return (w_d, w_h, vec), (w_off, v_off)


# ----------------------------- wrapper ----------------------------------------

def _round_up(x, m):
    return ((x + m - 1) // m) * m


def discriminator_forward(employee, historical_gen, params, *, block_b=None):
    B, T, D = historical_gen.shape
    assert employee.shape == (B, D)

    if block_b is None:
        if B <= 128:
            block_b = _round_up(B, 16)      # single block covering the batch
        else:
            # >= 2 blocks (keeps both v7x TensorCores busy), lane-dense
            # multiple-of-128 output stores, capped so per-step intermediates stay
            # comfortably inside scoped VMEM on every generation.
            block_b = min(256, _round_up(pl.cdiv(B, 2), 128))
    else:
        block_b = _round_up(block_b, 16)    # bf16 input sublane tiling
    n_blk = pl.cdiv(B, block_b)

    # bf16 activation DMA (halves the dominant HBM->VMEM stream).  No host-side
    # batch padding: Pallas clamps partial last-block reads; garbage rows are
    # per-sample-confined through LN/softmax and sliced off below.
    emp = employee.astype(jnp.bfloat16)
    hist = historical_gen.astype(jnp.bfloat16)

    (w_d, w_h, vec), (w_off, v_off) = _prepare_params(params, D)

    kernel = functools.partial(_disc_kernel, B_BLK=block_b, T=T, D=D,
                               w_off=w_off, v_off=v_off)

    out = pl.pallas_call(
        kernel,
        out_shape=jax.ShapeDtypeStruct((n_blk, 1, block_b), jnp.float32),
        grid_spec=pltpu.PrefetchScalarGridSpec(
            num_scalar_prefetch=0,
            grid=(n_blk,),
            in_specs=[
                pl.BlockSpec((block_b, D), lambda g: (g, 0)),          # employee
                # TODO(synk): if profiling shows this DMA exposed at large block_b,
                # add pipeline_mode=pl.Buffered(3) to the history spec.
                pl.BlockSpec((block_b, T, D), lambda g: (g, 0, 0)),    # history
                pl.BlockSpec(w_d.shape, lambda g: (0, 0)),             # weight slab
                pl.BlockSpec(w_h.shape, lambda g: (0, 0)),             # FFN w2
                pl.BlockSpec(vec.shape, lambda g: (0, 0)),             # bias/vector slab
            ],
            out_specs=pl.BlockSpec((1, 1, block_b), lambda g: (g, 0, 0)),
        ),
        compiler_params=pltpu.CompilerParams(
            dimension_semantics=("parallel",),          # batch blocks -> megacore
            vmem_limit_bytes=48 * 1024 * 1024),         # v5e default is only 16 MiB
    )(emp, hist, w_d, w_h, vec)

    return out.reshape(n_blk * block_b)[:B].reshape(B, 1)


# ----------------------------- pure-JAX reference ------------------------------

def reference_forward(employee, hist, params, *, mxu_dtype=None):
    """Pure-JAX reference. mxu_dtype=jnp.bfloat16 mirrors the kernel's policy
    (bf16 activation DMA + bf16 MXU operands with f32 accumulation, f32 VPU
    attention); None = exact f32 semantics of the original module."""
    p = params
    D = hist.shape[-1]
    scale = 1.0 / math.sqrt(D)

    if mxu_dtype is not None:
        # Mirror the bf16 activation DMA.
        employee = employee.astype(mxu_dtype).astype(jnp.float32)
        hist = hist.astype(mxu_dtype).astype(jnp.float32)

    def cast(x):
        return x if mxu_dtype is None else x.astype(mxu_dtype)

    def mm(a, b):
        return jnp.dot(cast(a), cast(b), preferred_element_type=jnp.float32)

    def one(emp, h):
        emp = emp[None, :]
        q = mm(h, p["wq"] * scale) + p["bq"] * scale
        k = mm(h, p["wk"]) + p["bk"]
        v = mm(h, p["wv"]) + p["bv"]
        attn = jax.nn.softmax(q @ k.T, axis=-1)       # f32 contraction (VPU path)
        o = mm(attn @ v, p["wo"]) + p["bo"]
        x1 = _layer_norm(h + o, p["g1"], p["be1"])
        f = jnp.maximum(mm(x1, p["w1"]) + p["b1"], 0.0)
        f = mm(f, p["w2"]) + p["b2"]
        x2 = _layer_norm(x1 + f, p["g2"], p["be2"])
        alpha = jax.nn.softmax(x2 @ p["qp"], axis=0)   # (T, 1), f32
        pooled = alpha.T @ x2                          # (1, D), f32
        z = jnp.maximum(mm(jnp.concatenate([emp, pooled], axis=-1), p["wc1"])
                        + p["bc1"], 0.0)
        return jax.nn.sigmoid(mm(z, p["wc2"]) + p["bc2"])[0]

    return jax.vmap(one)(employee, hist)


# ----------------------------- param init --------------------------------------

def init_params(key, D, hidden):
    ks = jax.random.split(key, 10)

    def w(k, shape, fan_in):
        return (jax.random.normal(k, shape) / math.sqrt(fan_in)).astype(jnp.float32)

    return {
        "wq": w(ks[0], (D, D), D), "bq": jnp.zeros((1, D), jnp.float32),
        "wk": w(ks[1], (D, D), D), "bk": jnp.zeros((1, D), jnp.float32),
        "wv": w(ks[2], (D, D), D), "bv": jnp.zeros((1, D), jnp.float32),
        "wo": w(ks[3], (D, D), D), "bo": jnp.zeros((1, D), jnp.float32),
        "g1": jnp.ones((1, D), jnp.float32), "be1": jnp.zeros((1, D), jnp.float32),
        "w1": w(ks[4], (D, hidden), D), "b1": jnp.zeros((1, hidden), jnp.float32),
        "w2": w(ks[5], (hidden, D), hidden), "b2": jnp.zeros((1, D), jnp.float32),
        "g2": jnp.ones((1, D), jnp.float32), "be2": jnp.zeros((1, D), jnp.float32),
        "qp": w(ks[6], (D, 1), D),
        "wc1": w(ks[7], (2 * D, D), 2 * D), "bc1": jnp.zeros((1, D), jnp.float32),
        "wc2": w(ks[8], (D, 1), D), "bc2": jnp.zeros((1, 1), jnp.float32),
    }


# ----------------------------- main ---------------------------------------------

if __name__ == "__main__":
    # his_dimensions = (batch=2, total_games_his=6, embed_dim=32), k=2 -> total_games=8
    B, T_HIS, D, K = 2, 6, 32, 2
    T = T_HIS + K
    EMPLOYEE_DIM = D          # SelfFusion output feeds ConcatClassify(employee_dim, employee_dim)
    HIDDEN = 4 * D

    key = jax.random.PRNGKey(0)
    k_emp, k_hist, k_param = jax.random.split(key, 3)
    employee = jax.random.normal(k_emp, (B, EMPLOYEE_DIM), dtype=jnp.float32)
    historical_gen = jax.random.normal(k_hist, (B, T, D), dtype=jnp.float32)
    params = init_params(k_param, D, HIDDEN)

    out = jax.block_until_ready(discriminator_forward(employee, historical_gen, params))
    assert out.shape == (B, 1), out.shape

    # Tight check vs. a reference mirroring the kernel's bf16 policy, plus a
    # loose sanity check vs. the exact-f32 semantics of the original module.
    ref_mxu = reference_forward(employee, historical_gen, params, mxu_dtype=jnp.bfloat16)
    ref_f32 = reference_forward(employee, historical_gen, params)
    assert jnp.allclose(out, ref_mxu, atol=1e-2, rtol=0), (out, ref_mxu)
    assert jnp.allclose(out, ref_f32, atol=1e-1, rtol=0), (out, ref_f32)

    # Exercise the multi-block (grid > 1) and partial-tail-block path as well.
    B2 = 20
    k_e2, k_h2 = jax.random.split(jax.random.PRNGKey(1), 2)
    emp2 = jax.random.normal(k_e2, (B2, EMPLOYEE_DIM), dtype=jnp.float32)
    hist2 = jax.random.normal(k_h2, (B2, T, D), dtype=jnp.float32)
    out2 = jax.block_until_ready(
        discriminator_forward(emp2, hist2, params, block_b=16))
    ref2 = reference_forward(emp2, hist2, params, mxu_dtype=jnp.bfloat16)
    assert out2.shape == (B2, 1), out2.shape
    assert jnp.allclose(out2, ref2, atol=1e-2, rtol=0), (out2, ref2)

    print("KERNEL_OK")
</pallas_src>

<mosaic_0001>
module attributes {stable_mosaic.version = 11 : i64} {
  func.func @_disc_kernel(%arg0: i32, %arg1: memref<16x32xbf16, #tpu.memory_space<vmem>>, %arg2: memref<16x8x32xbf16, #tpu.memory_space<vmem>>, %arg3: memref<32x896xbf16, #tpu.memory_space<vmem>>, %arg4: memref<128x32xbf16, #tpu.memory_space<vmem>>, %arg5: memref<1x1792xf32, #tpu.memory_space<vmem>>, %arg6: memref<1x1x16xf32, #tpu.memory_space<vmem>>) attributes {dimension_semantics = [#tpu.dimension_semantics<parallel>], iteration_bounds = array<i64: 1>, scalar_prefetch = 0 : i64, scratch_operands = 0 : i64, tpu.core_type = #tpu.core_type<tc>, window_params = [{transform_indices = @transform_0, window_bounds = array<i64: 16, 32>}, {transform_indices = @transform_1, window_bounds = array<i64: 16, 8, 32>}, {pipeline_mode = #tpu.pipeline_mode<synchronous>, transform_indices = @transform_2, window_bounds = array<i64: 32, 896>}, {pipeline_mode = #tpu.pipeline_mode<synchronous>, transform_indices = @transform_3, window_bounds = array<i64: 128, 32>}, {pipeline_mode = #tpu.pipeline_mode<synchronous>, transform_indices = @transform_4, window_bounds = array<i64: 1, 1792>}, {transform_indices = @transform_5, window_bounds = array<i64: 1, 1, 16>}]} {
    %c0 = arith.constant 0 : index
    %c0_0 = arith.constant 0 : index
    %c0_1 = arith.constant 0 : index
    %0 = vector.load %arg2[%c0, %c0_0, %c0_1] : memref<16x8x32xbf16, #tpu.memory_space<vmem>>, vector<16x8x32xbf16>
    %1 = vector.shape_cast %0 : vector<16x8x32xbf16> to vector<128x32xbf16>
    %2 = arith.extf %1 : vector<128x32xbf16> to vector<128x32xf32>
    %c0_2 = arith.constant 0 : index
    %c0_3 = arith.constant 0 : index
    %3 = vector.load %arg3[%c0_2, %c0_3] : memref<32x896xbf16, #tpu.memory_space<vmem>>, vector<32x384xbf16>
    %cst = arith.constant dense<0.000000e+00> : vector<128x384xf32>
    %4 = tpu.matmul %1, %3, %cst {dimension_numbers = #tpu.dot_dimension_numbers<[1], [0], [0], [1], [0, 0, 1, 1], [], []>} : vector<128x32xbf16>, vector<32x384xbf16>, vector<128x384xf32> -> vector<128x384xf32>
    %5 = vector.extract_strided_slice %4 {offsets = [0, 0], sizes = [128, 32], strides = [1, 1]} : vector<128x384xf32> to vector<128x32xf32>
    %c0_4 = arith.constant 0 : index
    %c0_5 = arith.constant 0 : index
    %6 = vector.load %arg5[%c0_4, %c0_5] : memref<1x1792xf32, #tpu.memory_space<vmem>>, vector<1x32xf32>
    %7 = vector.broadcast %6 : vector<1x32xf32> to vector<128x32xf32>
    %8 = arith.addf %5, %7 : vector<128x32xf32>
    %9 = vector.shape_cast %8 : vector<128x32xf32> to vector<16x8x32xf32>
    %10 = vector.extract_strided_slice %4 {offsets = [0, 128], sizes = [128, 32], strides = [1, 1]} : vector<128x384xf32> to vector<128x32xf32>
    %c0_6 = arith.constant 0 : index
    %c128 = arith.constant 128 : index
    %11 = vector.load %arg5[%c0_6, %c128] : memref<1x1792xf32, #tpu.memory_space<vmem>>, vector<1x32xf32>
    %12 = vector.broadcast %11 : vector<1x32xf32> to vector<128x32xf32>
    %13 = arith.addf %10, %12 : vector<128x32xf32>
    %14 = vector.shape_cast %13 : vector<128x32xf32> to vector<16x8x32xf32>
    %15 = vector.extract_strided_slice %4 {offsets = [0, 256], sizes = [128, 32], strides = [1, 1]} : vector<128x384xf32> to vector<128x32xf32>
    %c0_7 = arith.constant 0 : index
    %c256 = arith.constant 256 : index
    %16 = vector.load %arg5[%c0_7, %c256] : memref<1x1792xf32, #tpu.memory_space<vmem>>, vector<1x32xf32>
    %17 = vector.broadcast %16 : vector<1x32xf32> to vector<128x32xf32>
    %18 = arith.addf %15, %17 : vector<128x32xf32>
    %19 = vector.shape_cast %18 : vector<128x32xf32> to vector<16x8x32xf32>
    %20 = vector.shape_cast %9 : vector<16x8x32xf32> to vector<16x8x1x32xf32>
    %21 = vector.shape_cast %14 : vector<16x8x32xf32> to vector<16x1x8x32xf32>
    %22 = vector.broadcast %20 : vector<16x8x1x32xf32> to vector<16x8x8x32xf32>
    %23 = vector.broadcast %21 : vector<16x1x8x32xf32> to vector<16x8x8x32xf32>
    %24 = arith.mulf %22, %23 : vector<16x8x8x32xf32>
    %cst_8 = arith.constant dense<0.000000e+00> : vector<16x8x8xf32>
    %25 = vector.multi_reduction <add>, %24, %cst_8 [3] : vector<16x8x8x32xf32> to vector<16x8x8xf32>
    %cst_9 = arith.constant dense<0xFF800000> : vector<16x8xf32>
    %26 = vector.multi_reduction <maximumf>, %25, %cst_9 [2] : vector<16x8x8xf32> to vector<16x8xf32>
    %27 = vector.shape_cast %26 : vector<16x8xf32> to vector<16x8x1xf32>
    %28 = vector.broadcast %27 : vector<16x8x1xf32> to vector<16x8x8xf32>
    %29 = arith.subf %25, %28 : vector<16x8x8xf32>
    %30 = math.exp %29 : vector<16x8x8xf32>
    %cst_10 = arith.constant dense<0.000000e+00> : vector<16x8xf32>
    %31 = vector.multi_reduction <add>, %30, %cst_10 [2] : vector<16x8x8xf32> to vector<16x8xf32>
    %32 = vector.shape_cast %31 : vector<16x8xf32> to vector<16x8x1xf32>
    %33 = tpu.reciprocal %32 {approx = true} : vector<16x8x1xf32> -> vector<16x8x1xf32>
    %34 = vector.broadcast %33 : vector<16x8x1xf32> to vector<16x8x8xf32>
    %35 = arith.mulf %30, %34 : vector<16x8x8xf32>
    %36 = vector.shape_cast %35 : vector<16x8x8xf32> to vector<16x8x8x1xf32>
    %37 = vector.shape_cast %19 : vector<16x8x32xf32> to vector<16x1x8x32xf32>
    %38 = vector.broadcast %36 : vector<16x8x8x1xf32> to vector<16x8x8x32xf32>
    %39 = vector.broadcast %37 : vector<16x1x8x32xf32> to vector<16x8x8x32xf32>
    %40 = arith.mulf %38, %39 : vector<16x8x8x32xf32>
    %cst_11 = arith.constant dense<0.000000e+00> : vector<16x8x32xf32>
    %41 = vector.multi_reduction <add>, %40, %cst_11 [2] : vector<16x8x8x32xf32> to vector<16x8x32xf32>
    %42 = vector.shape_cast %41 : vector<16x8x32xf32> to vector<128x32xf32>
    %43 = arith.truncf %42 : vector<128x32xf32> to vector<128x32xbf16>
    %c0_12 = arith.constant 0 : index
    %c384 = arith.constant 384 : index
    %44 = vector.load %arg3[%c0_12, %c384] : memref<32x896xbf16, #tpu.memory_space<vmem>>, vector<32x32xbf16>
    %cst_13 = arith.constant dense<0.000000e+00> : vector<128x32xf32>
    %45 = tpu.matmul %43, %44, %cst_13 {dimension_numbers = #tpu.dot_dimension_numbers<[1], [0], [0], [1], [0, 0, 1, 1], [], []>} : vector<128x32xbf16>, vector<32x32xbf16>, vector<128x32xf32> -> vector<128x32xf32>
    %c0_14 = arith.constant 0 : index
    %c384_15 = arith.constant 384 : index
    %46 = vector.load %arg5[%c0_14, %c384_15] : memref<1x1792xf32, #tpu.memory_space<vmem>>, vector<1x32xf32>
    %47 = vector.broadcast %46 : vector<1x32xf32> to vector<128x32xf32>
    %48 = arith.addf %45, %47 : vector<128x32xf32>
    %49 = arith.addf %2, %48 : vector<128x32xf32>
    %c0_16 = arith.constant 0 : index
    %c768 = arith.constant 768 : index
    %50 = vector.load %arg5[%c0_16, %c768] : memref<1x1792xf32, #tpu.memory_space<vmem>>, vector<1x32xf32>
    %c0_17 = arith.constant 0 : index
    %c896 = arith.constant 896 : index
    %51 = vector.load %arg5[%c0_17, %c896] : memref<1x1792xf32, #tpu.memory_space<vmem>>, vector<1x32xf32>
    %cst_18 = arith.constant dense<0.000000e+00> : vector<128xf32>
    %52 = vector.multi_reduction <add>, %49, %cst_18 [1] : vector<128x32xf32> to vector<128xf32>
    %53 = vector.shape_cast %52 : vector<128xf32> to vector<128x1xf32>
    %cst_19 = arith.constant 3.200000e+01 : f32
    %54 = vector.broadcast %cst_19 : f32 to vector<128x1xf32>
    %55 = arith.divf %53, %54 : vector<128x1xf32>
    %56 = arith.mulf %49, %49 : vector<128x32xf32>
    %cst_20 = arith.constant dense<0.000000e+00> : vector<128xf32>
    %57 = vector.multi_reduction <add>, %56, %cst_20 [1] : vector<128x32xf32> to vector<128xf32>
    %58 = vector.shape_cast %57 : vector<128xf32> to vector<128x1xf32>
    %cst_21 = arith.constant 3.200000e+01 : f32
    %59 = vector.broadcast %cst_21 : f32 to vector<128x1xf32>
    %60 = arith.divf %58, %59 : vector<128x1xf32>
    %61 = arith.mulf %55, %55 : vector<128x1xf32>
    %62 = arith.subf %60, %61 : vector<128x1xf32>
    %63 = vector.broadcast %55 : vector<128x1xf32> to vector<128x32xf32>
    %64 = arith.subf %49, %63 : vector<128x32xf32>
    %cst_22 = arith.constant 9.99999974E-6 : f32
    %65 = vector.broadcast %cst_22 : f32 to vector<128x1xf32>
    %66 = arith.addf %62, %65 : vector<128x1xf32>
    %67 = math.rsqrt %66 : vector<128x1xf32>
    %68 = vector.broadcast %67 : vector<128x1xf32> to vector<128x32xf32>
    %69 = arith.mulf %64, %68 : vector<128x32xf32>
    %70 = vector.broadcast %50 : vector<1x32xf32> to vector<128x32xf32>
    %71 = arith.mulf %69, %70 : vector<128x32xf32>
    %72 = vector.broadcast %51 : vector<1x32xf32> to vector<128x32xf32>
    %73 = arith.addf %71, %72 : vector<128x32xf32>
    %74 = arith.truncf %73 : vector<128x32xf32> to vector<128x32xbf16>
    %c0_23 = arith.constant 0 : index
    %c512 = arith.constant 512 : index
    %75 = vector.load %arg3[%c0_23, %c512] : memref<32x896xbf16, #tpu.memory_space<vmem>>, vector<32x128xbf16>
    %cst_24 = arith.constant dense<0.000000e+00> : vector<128x128xf32>
    %76 = tpu.matmul %74, %75, %cst_24 {dimension_numbers = #tpu.dot_dimension_numbers<[1], [0], [0], [1], [0, 0, 1, 1], [], []>} : vector<128x32xbf16>, vector<32x128xbf16>, vector<128x128xf32> -> vector<128x128xf32>
    %c0_25 = arith.constant 0 : index
    %c512_26 = arith.constant 512 : index
    %77 = vector.load %arg5[%c0_25, %c512_26] : memref<1x1792xf32, #tpu.memory_space<vmem>>, vector<1x128xf32>
    %78 = vector.broadcast %77 : vector<1x128xf32> to vector<128x128xf32>
    %79 = arith.addf %76, %78 : vector<128x128xf32>
    %cst_27 = arith.constant 0.000000e+00 : f32
    %80 = vector.broadcast %cst_27 : f32 to vector<128x128xf32>
    %81 = arith.maximumf %79, %80 : vector<128x128xf32>
    %82 = arith.truncf %81 : vector<128x128xf32> to vector<128x128xbf16>
    %c0_28 = arith.constant 0 : index
    %c0_29 = arith.constant 0 : index
    %83 = vector.load %arg4[%c0_28, %c0_29] : memref<128x32xbf16, #tpu.memory_space<vmem>>, vector<128x32xbf16>
    %cst_30 = arith.constant dense<0.000000e+00> : vector<128x32xf32>
    %84 = tpu.matmul %82, %83, %cst_30 {dimension_numbers = #tpu.dot_dimension_numbers<[1], [0], [0], [1], [0, 0, 1, 1], [], []>} : vector<128x128xbf16>, vector<128x32xbf16>, vector<128x32xf32> -> vector<128x32xf32>
    %c0_31 = arith.constant 0 : index
    %c640 = arith.constant 640 : index
    %85 = vector.load %arg5[%c0_31, %c640] : memref<1x1792xf32, #tpu.memory_space<vmem>>, vector<1x32xf32>
    %86 = vector.broadcast %85 : vector<1x32xf32> to vector<128x32xf32>
    %87 = arith.addf %84, %86 : vector<128x32xf32>
    %88 = arith.addf %73, %87 : vector<128x32xf32>
    %c0_32 = arith.constant 0 : index
    %c1024 = arith.constant 1024 : index
    %89 = vector.load %arg5[%c0_32, %c1024] : memref<1x1792xf32, #tpu.memory_space<vmem>>, vector<1x32xf32>
    %c0_33 = arith.constant 0 : index
    %c1152 = arith.constant 1152 : index
    %90 = vector.load %arg5[%c0_33, %c1152] : memref<1x1792xf32, #tpu.memory_space<vmem>>, vector<1x32xf32>
    %cst_34 = arith.constant dense<0.000000e+00> : vector<128xf32>
    %91 = vector.multi_reduction <add>, %88, %cst_34 [1] : vector<128x32xf32> to vector<128xf32>
    %92 = vector.shape_cast %91 : vector<128xf32> to vector<128x1xf32>
    %cst_35 = arith.constant 3.200000e+01 : f32
    %93 = vector.broadcast %cst_35 : f32 to vector<128x1xf32>
    %94 = arith.divf %92, %93 : vector<128x1xf32>
    %95 = arith.mulf %88, %88 : vector<128x32xf32>
    %cst_36 = arith.constant dense<0.000000e+00> : vector<128xf32>
    %96 = vector.multi_reduction <add>, %95, %cst_36 [1] : vector<128x32xf32> to vector<128xf32>
    %97 = vector.shape_cast %96 : vector<128xf32> to vector<128x1xf32>
    %cst_37 = arith.constant 3.200000e+01 : f32
    %98 = vector.broadcast %cst_37 : f32 to vector<128x1xf32>
    %99 = arith.divf %97, %98 : vector<128x1xf32>
    %100 = arith.mulf %94, %94 : vector<128x1xf32>
    %101 = arith.subf %99, %100 : vector<128x1xf32>
    %102 = vector.broadcast %94 : vector<128x1xf32> to vector<128x32xf32>
    %103 = arith.subf %88, %102 : vector<128x32xf32>
    %cst_38 = arith.constant 9.99999974E-6 : f32
    %104 = vector.broadcast %cst_38 : f32 to vector<128x1xf32>
    %105 = arith.addf %101, %104 : vector<128x1xf32>
    %106 = math.rsqrt %105 : vector<128x1xf32>
    %107 = vector.broadcast %106 : vector<128x1xf32> to vector<128x32xf32>
    %108 = arith.mulf %103, %107 : vector<128x32xf32>
    %109 = vector.broadcast %89 : vector<1x32xf32> to vector<128x32xf32>
    %110 = arith.mulf %108, %109 : vector<128x32xf32>
    %111 = vector.broadcast %90 : vector<1x32xf32> to vector<128x32xf32>
    %112 = arith.addf %110, %111 : vector<128x32xf32>
    %113 = vector.shape_cast %112 : vector<128x32xf32> to vector<16x8x32xf32>
    %c0_39 = arith.constant 0 : index
    %c1280 = arith.constant 1280 : index
    %114 = vector.load %arg5[%c0_39, %c1280] : memref<1x1792xf32, #tpu.memory_space<vmem>>, vector<1x32xf32>
    %115 = vector.shape_cast %114 : vector<1x32xf32> to vector<1x1x32xf32>
    %116 = vector.broadcast %115 : vector<1x1x32xf32> to vector<16x8x32xf32>
    %117 = arith.mulf %113, %116 : vector<16x8x32xf32>
    %cst_40 = arith.constant dense<0.000000e+00> : vector<16x8xf32>
    %118 = vector.multi_reduction <add>, %117, %cst_40 [2] : vector<16x8x32xf32> to vector<16x8xf32>
    %119 = vector.shape_cast %118 : vector<16x8xf32> to vector<16x8x1xf32>
    %cst_41 = arith.constant dense<0xFF800000> : vector<16x1xf32>
    %120 = vector.multi_reduction <maximumf>, %119, %cst_41 [1] : vector<16x8x1xf32> to vector<16x1xf32>
    %121 = vector.shape_cast %120 : vector<16x1xf32> to vector<16x1x1xf32>
    %122 = vector.broadcast %121 : vector<16x1x1xf32> to vector<16x8x1xf32>
    %123 = arith.subf %119, %122 : vector<16x8x1xf32>
    %124 = math.exp %123 : vector<16x8x1xf32>
    %cst_42 = arith.constant dense<0.000000e+00> : vector<16x1xf32>
    %125 = vector.multi_reduction <add>, %124, %cst_42 [1] : vector<16x8x1xf32> to vector<16x1xf32>
    %126 = vector.shape_cast %125 : vector<16x1xf32> to vector<16x1x1xf32>
    %127 = tpu.reciprocal %126 {approx = true} : vector<16x1x1xf32> -> vector<16x1x1xf32>
    %128 = vector.broadcast %127 : vector<16x1x1xf32> to vector<16x8x1xf32>
    %129 = arith.mulf %124, %128 : vector<16x8x1xf32>
    %130 = vector.broadcast %129 : vector<16x8x1xf32> to vector<16x8x32xf32>
    %131 = arith.mulf %130, %113 : vector<16x8x32xf32>
    %cst_43 = arith.constant dense<0.000000e+00> : vector<16x32xf32>
    %132 = vector.multi_reduction <add>, %131, %cst_43 [1] : vector<16x8x32xf32> to vector<16x32xf32>
    %c0_44 = arith.constant 0 : index
    %c0_45 = arith.constant 0 : index
    %133 = vector.load %arg1[%c0_44, %c0_45] : memref<16x32xbf16, #tpu.memory_space<vmem>>, vector<16x32xbf16>
    %c0_46 = arith.constant 0 : index
    %c640_47 = arith.constant 640 : index
    %134 = vector.load %arg3[%c0_46, %c640_47] : memref<32x896xbf16, #tpu.memory_space<vmem>>, vector<32x32xbf16>
    %cst_48 = arith.constant dense<0.000000e+00> : vector<16x32xf32>
    %135 = tpu.matmul %133, %134, %cst_48 {dimension_numbers = #tpu.dot_dimension_numbers<[1], [0], [0], [1], [0, 0, 1, 1], [], []>} : vector<16x32xbf16>, vector<32x32xbf16>, vector<16x32xf32> -> vector<16x32xf32>
    %136 = arith.truncf %132 : vector<16x32xf32> to vector<16x32xbf16>
    %c0_49 = arith.constant 0 : index
    %c768_50 = arith.constant 768 : index
    %137 = vector.load %arg3[%c0_49, %c768_50] : memref<32x896xbf16, #tpu.memory_space<vmem>>, vector<32x32xbf16>
    %cst_51 = arith.constant dense<0.000000e+00> : vector<16x32xf32>
    %138 = tpu.matmul %136, %137, %cst_51 {dimension_numbers = #tpu.dot_dimension_numbers<[1], [0], [0], [1], [0, 0, 1, 1], [], []>} : vector<16x32xbf16>, vector<32x32xbf16>, vector<16x32xf32> -> vector<16x32xf32>
    %139 = arith.addf %135, %138 : vector<16x32xf32>
    %c0_52 = arith.constant 0 : index
    %c1408 = arith.constant 1408 : index
    %140 = vector.load %arg5[%c0_52, %c1408] : memref<1x1792xf32, #tpu.memory_space<vmem>>, vector<1x32xf32>
    %141 = vector.broadcast %140 : vector<1x32xf32> to vector<16x32xf32>
    %142 = arith.addf %139, %141 : vector<16x32xf32>
    %cst_53 = arith.constant 0.000000e+00 : f32
    %143 = vector.broadcast %cst_53 : f32 to vector<16x32xf32>
    %144 = arith.maximumf %142, %143 : vector<16x32xf32>
    %c0_54 = arith.constant 0 : index
    %c1536 = arith.constant 1536 : index
    %145 = vector.load %arg5[%c0_54, %c1536] : memref<1x1792xf32, #tpu.memory_space<vmem>>, vector<1x32xf32>
    %146 = arith.truncf %145 : vector<1x32xf32> to vector<1x32xbf16>
    %147 = arith.truncf %144 : vector<16x32xf32> to vector<16x32xbf16>
    %cst_55 = arith.constant dense<0.000000e+00> : vector<1x16xf32>
    %148 = tpu.matmul %146, %147, %cst_55 {dimension_numbers = #tpu.dot_dimension_numbers<[1], [1], [0], [0], [0, 0, 1, 0], [], []>} : vector<1x32xbf16>, vector<16x32xbf16>, vector<1x16xf32> -> vector<1x16xf32>
    %c0_56 = arith.constant 0 : index
    %c1664 = arith.constant 1664 : index
    %149 = vector.load %arg5[%c0_56, %c1664] : memref<1x1792xf32, #tpu.memory_space<vmem>>, vector<1x1xf32>
    %150 = vector.broadcast %149 : vector<1x1xf32> to vector<1x16xf32>
    %151 = arith.addf %148, %150 : vector<1x16xf32>
    %152 = arith.negf %151 : vector<1x16xf32>
    %153 = math.exp %152 : vector<1x16xf32>
    %cst_57 = arith.constant 1.000000e+00 : f32
    %154 = vector.broadcast %cst_57 : f32 to vector<1x16xf32>
    %155 = arith.addf %154, %153 : vector<1x16xf32>
    %156 = arith.divf %154, %155 : vector<1x16xf32>
    %157 = vector.shape_cast %156 : vector<1x16xf32> to vector<1x1x16xf32>
    %c0_58 = arith.constant 0 : index
    %c0_59 = arith.constant 0 : index
    %c0_60 = arith.constant 0 : index
    %158 = vector.load %arg6[%c0_58, %c0_59, %c0_60] : memref<1x1x16xf32, #tpu.memory_space<vmem>>, vector<1x1x16xf32>
    tpu.vector_store %arg6[%c0_58, %c0_59, %c0_60], %157 {strides = array<i32>} : memref<1x1x16xf32, #tpu.memory_space<vmem>>, vector<1x1x16xf32>,
    return
  }
  func.func @transform_0(%arg0: i32) -> (i32, i32) {
    %c0_i32 = arith.constant 0 : i32
    %c0_i32_0 = arith.constant 0 : i32
    return %arg0, %c0_i32 : i32, i32
  }
  func.func @transform_1(%arg0: i32) -> (i32, i32, i32) {
    %c0_i32 = arith.constant 0 : i32
    %c0_i32_0 = arith.constant 0 : i32
    %c0_i32_1 = arith.constant 0 : i32
    return %arg0, %c0_i32, %c0_i32_0 : i32, i32, i32
  }
  func.func @transform_2(%arg0: i32) -> (i32, i32) {
    %c0_i32 = arith.constant 0 : i32
    %c0_i32_0 = arith.constant 0 : i32
    %c0_i32_1 = arith.constant 0 : i32
    return %c0_i32, %c0_i32_0 : i32, i32
  }
  func.func @transform_3(%arg0: i32) -> (i32, i32) {
    %c0_i32 = arith.constant 0 : i32
    %c0_i32_0 = arith.constant 0 : i32
    %c0_i32_1 = arith.constant 0 : i32
    return %c0_i32, %c0_i32_0 : i32, i32
  }
  func.func @transform_4(%arg0: i32) -> (i32, i32) {
    %c0_i32 = arith.constant 0 : i32
    %c0_i32_0 = arith.constant 0 : i32
    %c0_i32_1 = arith.constant 0 : i32
    return %c0_i32, %c0_i32_0 : i32, i32
  }
  func.func @transform_5(%arg0: i32) -> (i32, i32, i32) {
    %c0_i32 = arith.constant 0 : i32
    %c0_i32_0 = arith.constant 0 : i32
    %c0_i32_1 = arith.constant 0 : i32
    return %arg0, %c0_i32, %c0_i32_0 : i32, i32, i32
  }
}

</mosaic_0001>

<llo_original>
// kernel: tpu_custom_call.1
$region0: #{tpu_custom_call.1}
  #allocation0 [shape = 'u32[]', space=smem, size = 0x4, offset = 0x4, fixed_abs, tag = 'smem constant byte address 0x4 - core index']
  #allocation1 [shape = 'u32[144,128]{1,0:T(1,128)}', space=vmem, size = 0x12000, scoped, tag = 'internal scratch']
  %s0 = inlined_call_operand.vmem [shape: bf16[2,32], index: 0, kind: input, shape index: {}]
  %s1 = inlined_call_operand.vmem [shape: bf16[2,8,32], index: 1, kind: input, shape index: {}]
  %s2 = inlined_call_operand.hbm [shape: bf16[32,896], index: 2, kind: input, shape index: {}]
  %s3 = inlined_call_operand.vmem [shape: bf16[128,32], index: 3, kind: input, shape index: {}]
  %s4 = inlined_call_operand.vmem [shape: f32[1,1792], index: 4, kind: input, shape index: {}]
  %s5 = inlined_call_operand.hbm [shape: f32[1,1,16], index: 5, kind: output, shape index: {}]
  %s6 = sld [smem:[#allocation0]]
  $region34: #{tpu_custom_call.1} parent=0
    _
  %s8 = ssub.s32 1, %s6
  %s9 = scalar_select 0, %s8, %s6
  $region1: #{tpu_custom_call.1} parent=0
    #allocation2 [shape = 'u8[57344]{0}', space=vmem, size = 0xe000, scoped, tag = 'input window, operand 2, single buffered']
    #allocation3 [shape = 's32[1]{0}', space=sflag, size = 0x4, scoped, tag = 'scoped memory for tpu_custom_call.1']
    #allocation4 [shape = 's32[1]{0}', space=sflag, size = 0x4, scoped, tag = 'scoped memory for tpu_custom_call.1']
    #allocation5 [shape = 'u8[512]{0}', space=vmem, size = 0x400, scoped, tag = 'output window, operand 0, single buffered']
    %10 = vsyncpa [#allocation3], 0
    %11 = vsyncpa [#allocation4], 0
    // Predicated region
    $region2: #{tpu_custom_call.1} parent=1 // pred_check
      _
    $region3: #{tpu_custom_call.1} parent=1 // pred_check_branch
      %13 = sbr.rel (0) target = $region5
    $region4: #{tpu_custom_call.1} parent=1 // pred_region
      _
    $region5: #{tpu_custom_call.1} parent=1 // pred_fallthru
      _
    // Predicated region
    $region6: #{tpu_custom_call.1} parent=1 // pred_check
      _
    $region7: #{tpu_custom_call.1} parent=1 // pred_check_branch
      %15 = sbr.rel (0) target = $region9
    $region8: #{tpu_custom_call.1} parent=1 // pred_region
      _
    $region9: #{tpu_custom_call.1} parent=1 // pred_fallthru
      _
    // Predicated region
    $region10: #{tpu_custom_call.1} parent=1 // pred_check
      _
    $region11: #{tpu_custom_call.1} parent=1 // pred_check_branch
      %17 = sbr.rel (0) target = $region13
    $region12: #{tpu_custom_call.1} parent=1 // pred_region
      %s19 = ssub.s32 1792, 1792
      %20 = vsyncadd [#allocation3], %s19
      %s21 = sshll.u32 [#allocation2], 4
      %s22 = int_to_ptr.vmem [resolvable:$true] %s21
      %27 = dma.hbm_to_vmem [thread:$0]  %s2, 1792, %s22, [#allocation3], 448, 448, 28
    $region13: #{tpu_custom_call.1} parent=1 // pred_fallthru
      _
    // Predicated region
    $region14: #{tpu_custom_call.1} parent=1 // pred_check
      _
    $region15: #{tpu_custom_call.1} parent=1 // pred_check_branch
      %29 = sbr.rel (0) target = $region17
    $region16: #{tpu_custom_call.1} parent=1 // pred_region
      _
    $region17: #{tpu_custom_call.1} parent=1 // pred_fallthru
      _
    // Predicated region
    $region18: #{tpu_custom_call.1} parent=1 // pred_check
      _
    $region19: #{tpu_custom_call.1} parent=1 // pred_check_branch
      %31 = sbr.rel (0) target = $region21
    $region20: #{tpu_custom_call.1} parent=1 // pred_region
      _
    $region21: #{tpu_custom_call.1} parent=1 // pred_fallthru
      _
    // Predicated region
    $region22: #{tpu_custom_call.1} parent=1 // pred_check
      _
    $region23: #{tpu_custom_call.1} parent=1 // pred_check_branch
      %33 = sbr.rel (0) target = $region25
    $region24: #{tpu_custom_call.1} parent=1 // pred_region
      %34 = dma.done [#allocation3], 1792
    $region25: #{tpu_custom_call.1} parent=1 // pred_fallthru
      _
    %v36 = vld [vmem:[%s1] sm:$0xf]
    %v37 = vld [vmem:[%s1 + $0x4] sm:$0xf]
    %v38 = vld [vmem:[%s1 + $0x8] sm:$0xf]
    %v39 = vld [vmem:[%s1 + $0xc] sm:$0xf]
    %v40 = vld [vmem:[%s1 + $0x10] sm:$0xf]
    %v41 = vld [vmem:[%s1 + $0x14] sm:$0xf]
    %v42 = vld [vmem:[%s1 + $0x18] sm:$0xf]
    %v43 = vld [vmem:[%s1 + $0x1c] sm:$0xf]
    %v44 = vld [vmem:[%s1 + $0x20] sm:$0xf]
    %v45 = vld [vmem:[%s1 + $0x24] sm:$0xf]
    %v46 = vld [vmem:[%s1 + $0x28] sm:$0xf]
    %v47 = vld [vmem:[%s1 + $0x2c] sm:$0xf]
    %v48 = vld [vmem:[%s1 + $0x30] sm:$0xf]
    %v49 = vld [vmem:[%s1 + $0x34] sm:$0xf]
    %v50 = vld [vmem:[%s1 + $0x38] sm:$0xf]
    %v51 = vld [vmem:[%s1 + $0x3c] sm:$0xf]
    %v52 = vunpack.c.l.bf16 %v36
    %v53 = vunpack.c.l.bf16 %v37
    %v54 = vunpack.c.l.bf16 %v38
    %v55 = vunpack.c.l.bf16 %v39
    %v56 = vunpack.c.l.bf16 %v40
    %v57 = vunpack.c.l.bf16 %v41
    %v58 = vunpack.c.l.bf16 %v42
    %v59 = vunpack.c.l.bf16 %v43
    %v60 = vunpack.c.l.bf16 %v44
    %v61 = vunpack.c.l.bf16 %v45
    %v62 = vunpack.c.l.bf16 %v46
    %v63 = vunpack.c.l.bf16 %v47
    %v64 = vunpack.c.l.bf16 %v48
    %v65 = vunpack.c.l.bf16 %v49
    %v66 = vunpack.c.l.bf16 %v50
    %v67 = vunpack.c.l.bf16 %v51
    %v68 = vld [vmem:[#allocation2] sm:$0xff]
    %v69 = vld [vmem:[#allocation2 + $0x8] sm:$0xf]
    %v70 = vld [vmem:[#allocation2 + $0x1c] sm:$0xff]
    %v71 = vld [vmem:[#allocation2 + $0x24] sm:$0xf]
    %v72 = vld [vmem:[#allocation2 + $0x38] sm:$0xff]
    %v73 = vld [vmem:[#allocation2 + $0x40] sm:$0xf]
    %v74 = vld [vmem:[#allocation2 + $0x54] sm:$0xff]
    %v75 = vld [vmem:[#allocation2 + $0x5c] sm:$0xf]
    %v92 = vunpack.c.l.b16 %v36
    %v93 = vunpack.c.l.b16 %v37
    %v94 = vunpack.c.l.b16 %v38
    %v95 = vunpack.c.l.b16 %v39
    %v96 = vunpack.c.l.b16 %v40
    %v97 = vunpack.c.l.b16 %v41
    %v98 = vunpack.c.l.b16 %v42
    %v99 = vunpack.c.l.b16 %v43
    %v100 = vunpack.c.l.b16 %v44
    %v101 = vunpack.c.l.b16 %v45
    %v102 = vunpack.c.l.b16 %v46
    %v103 = vunpack.c.l.b16 %v47
    %v104 = vunpack.c.l.b16 %v48
    %v105 = vunpack.c.l.b16 %v49
    %v106 = vunpack.c.l.b16 %v50
    %v107 = vunpack.c.l.b16 %v51
    %v108 = vpack.c.b16 %v93, %v92
    %v109 = vpack.c.b16 %v95, %v94
    %v110 = vpack.c.b16 %v97, %v96
    %v111 = vpack.c.b16 %v99, %v98
    %v112 = vpack.c.b16 %v101, %v100
    %v113 = vpack.c.b16 %v103, %v102
    %v114 = vpack.c.b16 %v105, %v104
    %v115 = vpack.c.b16 %v107, %v106
    %v124 = vunpack.c.l.b16 %v68
    %v125 = vunpack.c.h.b16 %v68
    %v126 = vunpack.c.l.b16 %v69
    %v127 = vunpack.c.l.b16 %v70
    %v128 = vunpack.c.h.b16 %v70
    %v129 = vunpack.c.l.b16 %v71
    %v130 = vunpack.c.l.b16 %v72
    %v131 = vunpack.c.h.b16 %v72
    %v132 = vunpack.c.l.b16 %v73
    %v133 = vunpack.c.l.b16 %v74
    %v134 = vunpack.c.h.b16 %v74
    %v135 = vunpack.c.l.b16 %v75
    %v136 = vpack.c.b16 %v127, %v124
    %v137 = vpack.c.b16 %v128, %v125
    %v138 = vpack.c.b16 %v129, %v126
    %v139 = vpack.c.b16 %v133, %v130
    %v140 = vpack.c.b16 %v134, %v131
    %v141 = vpack.c.b16 %v135, %v132
    %vm148 = vcmask 261120
    %v150 = vsel %vm148, %v108, 0
    %v153 = vsel %vm148, %v109, 0
    %v156 = vsel %vm148, %v110, 0
    %v159 = vsel %vm148, %v111, 0
    %v162 = vsel %vm148, %v112, 0
    %v165 = vsel %vm148, %v113, 0
    %v168 = vsel %vm148, %v114, 0
    %v171 = vsel %vm148, %v115, 0
    %173 = vmatprep.subr.bf16.mxu0 %v137
    %174 = vmatpush1.bf16.msra.mxu0 %v136
    %175 = vmatprep.subr.bf16.mxu0 %v140
    %176 = vmatpush1.bf16.msra.mxu0 %v139
    %177 = vmatprep.subr.bf16.mxu0 0
    %178 = vmatpush1.bf16.msra.mxu0 0
    %179 = vmatprep.subr.bf16.mxu0 0
    %180 = vmatpush1.bf16.msra.mxu0 0
    %181 = vmatprep.subr.bf16.mxu0 0
    %182 = vmatpush1.bf16.msra.mxu0 0
    %183 = vmatprep.subr.bf16.mxu0 0
    %184 = vmatpush1.bf16.msra.mxu0 0
    %185 = vmatprep.subr.bf16.mxu0 0
    %186 = vmatpush1.bf16.msra.mxu0 0
    %187 = vmatprep.subr.bf16.mxu0 0
    %188 = vmatpush1.bf16.msra.mxu0 0
    %189 = vmatprep.subr.bf16.mxu0 0
    %190 = vmatpush1.bf16.msra.mxu0 0
    %191 = vmatprep.subr.bf16.mxu0 0
    %192 = vmatpush1.bf16.msra.mxu0 0
    %193 = vmatprep.subr.bf16.mxu0 0
    %194 = vmatpush1.bf16.msra.mxu0 0
    %195 = vmatprep.subr.bf16.mxu0 0
    %196 = vmatpush1.bf16.msra.mxu0 0
    %197 = vmatprep.subr.bf16.mxu0 0
    %198 = vmatpush1.bf16.msra.mxu0 0
    %199 = vmatprep.subr.bf16.mxu0 0
    %200 = vmatpush1.bf16.msra.mxu0 0
    %201 = vmatprep.subr.bf16.mxu0 0
    %202 = vmatpush1.bf16.msra.mxu0 0
    %203 = vmatprep.subr.bf16.mxu0 0
    %204 = vmatpush1.bf16.msra.mxu0 0
    %205 = vmatprep.mubr.bf16.mxu0 0
    %206 = vmatmul.mubr.bf16.gmra.mrb[0].mxu0 %v150
    %v207 = vpop.f32.mrb[0].mxu0
    %v208 = vadd.f32 0.0, %v207
    %v209 = vpop.f32.mrb[0].mxu0
    %v210 = vadd.f32 0.0, %v209
    %v211 = vpop.f32.mrb[0].mxu0
    %v212 = vadd.f32 0.0, %v211
    %v213 = vpop.f32.mrb[0].mxu0
    %v214 = vadd.f32 0.0, %v213
    %215 = vmatprep.mubr.bf16.mxu0 0
    %216 = vmatmul.mubr.bf16.gmra.mrb[0].mxu0 %v153
    %v217 = vpop.f32.mrb[0].mxu0
    %v218 = vadd.f32 0.0, %v217
    %v219 = vpop.f32.mrb[0].mxu0
    %v220 = vadd.f32 0.0, %v219
    %v221 = vpop.f32.mrb[0].mxu0
    %v222 = vadd.f32 0.0, %v221
    %v223 = vpop.f32.mrb[0].mxu0
    %v224 = vadd.f32 0.0, %v223
    %225 = vmatprep.mubr.bf16.mxu0 0
    %226 = vmatmul.mubr.bf16.gmra.mrb[0].mxu0 %v156
    %v227 = vpop.f32.mrb[0].mxu0
    %v228 = vadd.f32 0.0, %v227
    %v229 = vpop.f32.mrb[0].mxu0
    %v230 = vadd.f32 0.0, %v229
    %v231 = vpop.f32.mrb[0].mxu0
    %v232 = vadd.f32 0.0, %v231
    %v233 = vpop.f32.mrb[0].mxu0
    %v234 = vadd.f32 0.0, %v233
    %235 = vmatprep.mubr.bf16.mxu0 0
    %236 = vmatmul.mubr.bf16.gmra.mrb[0].mxu0 %v159
    %v237 = vpop.f32.mrb[0].mxu0
    %v238 = vadd.f32 0.0, %v237
    %v239 = vpop.f32.mrb[0].mxu0
    %v240 = vadd.f32 0.0, %v239
    %v241 = vpop.f32.mrb[0].mxu0
    %v242 = vadd.f32 0.0, %v241
    %v243 = vpop.f32.mrb[0].mxu0
    %v244 = vadd.f32 0.0, %v243
    %245 = vmatprep.mubr.bf16.mxu0 0
    %246 = vmatmul.mubr.bf16.gmra.mrb[0].mxu0 %v162
    %v247 = vpop.f32.mrb[0].mxu0
    %v248 = vadd.f32 0.0, %v247
    %v249 = vpop.f32.mrb[0].mxu0
    %v250 = vadd.f32 0.0, %v249
    %v251 = vpop.f32.mrb[0].mxu0
    %v252 = vadd.f32 0.0, %v251
    %v253 = vpop.f32.mrb[0].mxu0
    %v254 = vadd.f32 0.0, %v253
    %255 = vmatprep.mubr.bf16.mxu0 0
    %256 = vmatmul.mubr.bf16.gmra.mrb[0].mxu0 %v165
    %v257 = vpop.f32.mrb[0].mxu0
    %v258 = vadd.f32 0.0, %v257
    %v259 = vpop.f32.mrb[0].mxu0
    %v260 = vadd.f32 0.0, %v259
    %v261 = vpop.f32.mrb[0].mxu0
    %v262 = vadd.f32 0.0, %v261
    %v263 = vpop.f32.mrb[0].mxu0
    %v264 = vadd.f32 0.0, %v263
    %265 = vmatprep.mubr.bf16.mxu0 0
    %266 = vmatmul.mubr.bf16.gmra.mrb[0].mxu0 %v168
    %v267 = vpop.f32.mrb[0].mxu0
    %v268 = vadd.f32 0.0, %v267
    %v269 = vpop.f32.mrb[0].mxu0
    %v270 = vadd.f32 0.0, %v269
    %v271 = vpop.f32.mrb[0].mxu0
    %v272 = vadd.f32 0.0, %v271
    %v273 = vpop.f32.mrb[0].mxu0
    %v274 = vadd.f32 0.0, %v273
    %275 = vmatprep.mubr.bf16.mxu0 0
    %276 = vmatmul.mubr.bf16.gmra.mrb[0].mxu0 %v171
    %v277 = vpop.f32.mrb[0].mxu0
    %v278 = vadd.f32 0.0, %v277
    %v279 = vpop.f32.mrb[0].mxu0
    %v280 = vadd.f32 0.0, %v279
    %v281 = vpop.f32.mrb[0].mxu0
    %v282 = vadd.f32 0.0, %v281
    %v283 = vpop.f32.mrb[0].mxu0
    %v284 = vadd.f32 0.0, %v283
    %285 = vdwg.mxu0
    %286 = vmatprep.subr.bf16.mxu0 0
    %287 = vmatpush1.bf16.msra.mxu0 %v138
    %288 = vmatprep.subr.bf16.mxu0 0
    %289 = vmatpush1.bf16.msra.mxu0 %v141
    %290 = vmatprep.subr.bf16.mxu0 0
    %291 = vmatpush1.bf16.msra.mxu0 0
    %292 = vmatprep.subr.bf16.mxu0 0
    %293 = vmatpush1.bf16.msra.mxu0 0
    %294 = vmatprep.subr.bf16.mxu0 0
    %295 = vmatpush1.bf16.msra.mxu0 0
    %296 = vmatprep.subr.bf16.mxu0 0
    %297 = vmatpush1.bf16.msra.mxu0 0
    %298 = vmatprep.subr.bf16.mxu0 0
    %299 = vmatpush1.bf16.msra.mxu0 0
    %300 = vmatprep.subr.bf16.mxu0 0
    %301 = vmatpush1.bf16.msra.mxu0 0
    %302 = vmatprep.subr.bf16.mxu0 0
    %303 = vmatpush1.bf16.msra.mxu0 0
    %304 = vmatprep.subr.bf16.mxu0 0
    %305 = vmatpush1.bf16.msra.mxu0 0
    %306 = vmatprep.subr.bf16.mxu0 0
    %307 = vmatpush1.bf16.msra.mxu0 0
    %308 = vmatprep.subr.bf16.mxu0 0
    %309 = vmatpush1.bf16.msra.mxu0 0
    %310 = vmatprep.subr.bf16.mxu0 0
    %311 = vmatpush1.bf16.msra.mxu0 0
    %312 = vmatprep.subr.bf16.mxu0 0
    %313 = vmatpush1.bf16.msra.mxu0 0
    %314 = vmatprep.subr.bf16.mxu0 0
    %315 = vmatpush1.bf16.msra.mxu0 0
    %316 = vmatprep.subr.bf16.mxu0 0
    %317 = vmatpush1.bf16.msra.mxu0 0
    %318 = vmatprep.mubr.bf16.mxu0 0
    %319 = vmatmul.mubr.bf16.gmra.mrb[0].mxu0 %v150
    %v320 = vpop.f32.mrb[0].mxu0
    %v321 = vadd.f32 0.0, %v320
    %v322 = vpop.f32.mrb[0].mxu0
    %v323 = vpop.f32.mrb[0].mxu0
    %v324 = vadd.f32 0.0, %v323
    %v325 = vpop.f32.mrb[0].mxu0
    %326 = vmatprep.mubr.bf16.mxu0 0
    %327 = vmatmul.mubr.bf16.gmra.mrb[0].mxu0 %v153
    %v328 = vpop.f32.mrb[0].mxu0
    %v329 = vadd.f32 0.0, %v328
    %v330 = vpop.f32.mrb[0].mxu0
    %v331 = vpop.f32.mrb[0].mxu0
    %v332 = vadd.f32 0.0, %v331
    %v333 = vpop.f32.mrb[0].mxu0
    %334 = vmatprep.mubr.bf16.mxu0 0
    %335 = vmatmul.mubr.bf16.gmra.mrb[0].mxu0 %v156
    %v336 = vpop.f32.mrb[0].mxu0
    %v337 = vadd.f32 0.0, %v336
    %v338 = vpop.f32.mrb[0].mxu0
    %v339 = vpop.f32.mrb[0].mxu0
    %v340 = vadd.f32 0.0, %v339
    %v341 = vpop.f32.mrb[0].mxu0
    %342 = vmatprep.mubr.bf16.mxu0 0
    %343 = vmatmul.mubr.bf16.gmra.mrb[0].mxu0 %v159
    %v344 = vpop.f32.mrb[0].mxu0
    %v345 = vadd.f32 0.0, %v344
    %v346 = vpop.f32.mrb[0].mxu0
    %v347 = vpop.f32.mrb[0].mxu0
    %v348 = vadd.f32 0.0, %v347
    %v349 = vpop.f32.mrb[0].mxu0
    %350 = vmatprep.mubr.bf16.mxu0 0
    %351 = vmatmul.mubr.bf16.gmra.mrb[0].mxu0 %v162
    %v352 = vpop.f32.mrb[0].mxu0
    %v353 = vadd.f32 0.0, %v352
    %v354 = vpop.f32.mrb[0].mxu0
    %v355 = vpop.f32.mrb[0].mxu0
    %v356 = vadd.f32 0.0, %v355
    %v357 = vpop.f32.mrb[0].mxu0
    %358 = vmatprep.mubr.bf16.mxu0 0
    %359 = vmatmul.mubr.bf16.gmra.mrb[0].mxu0 %v165
    %v360 = vpop.f32.mrb[0].mxu0
    %v361 = vadd.f32 0.0, %v360
    %v362 = vpop.f32.mrb[0].mxu0
    %v363 = vpop.f32.mrb[0].mxu0
    %v364 = vadd.f32 0.0, %v363
    %v365 = vpop.f32.mrb[0].mxu0
    %366 = vmatprep.mubr.bf16.mxu0 0
    %367 = vmatmul.mubr.bf16.gmra.mrb[0].mxu0 %v168
    %v368 = vpop.f32.mrb[0].mxu0
    %v369 = vadd.f32 0.0, %v368
    %v370 = vpop.f32.mrb[0].mxu0
    %v371 = vpop.f32.mrb[0].mxu0
    %v372 = vadd.f32 0.0, %v371
    %v373 = vpop.f32.mrb[0].mxu0
    %374 = vmatprep.mubr.bf16.mxu0 0
    %375 = vmatmul.mubr.bf16.gmra.mrb[0].mxu0 %v171
    %v376 = vpop.f32.mrb[0].mxu0
    %v377 = vadd.f32 0.0, %v376
    %v378 = vpop.f32.mrb[0].mxu0
    %v379 = vpop.f32.mrb[0].mxu0
    %v380 = vadd.f32 0.0, %v379
    %v381 = vpop.f32.mrb[0].mxu0
    %382 = vdwg.mxu0
    %v383 = vld [vmem:[%s4] sm:$0x1]
    %v385 = vlaneseq
    %v386 = vshrl.u32 %v385, 7
    %v387 = vsub.s32 0, %v386
    %v388 = vrot.slane %v383, %v387
    %v390 = vadd.f32 %v208, %v388
    %v391 = vadd.f32 %v212, %v388
    %v392 = vadd.f32 %v218, %v388
    %v393 = vadd.f32 %v222, %v388
    %v394 = vadd.f32 %v228, %v388
    %v395 = vadd.f32 %v232, %v388
    %v396 = vadd.f32 %v238, %v388
    %v397 = vadd.f32 %v242, %v388
    %v398 = vadd.f32 %v248, %v388
    %v399 = vadd.f32 %v252, %v388
    %v400 = vadd.f32 %v258, %v388
    %v401 = vadd.f32 %v262, %v388
    %v402 = vadd.f32 %v268, %v388
    %v403 = vadd.f32 %v272, %v388
    %v404 = vadd.f32 %v278, %v388
    %v405 = vadd.f32 %v282, %v388
    %v406 = vld [vmem:[%s4 + $0x1] sm:$0x1]
    %v408 = vlaneseq
    %v409 = vshrl.u32 %v408, 7
    %v410 = vsub.s32 0, %v409
    %v411 = vrot.slane %v406, %v410
    %v413 = vadd.f32 %v210, %v411
    %v414 = vadd.f32 %v214, %v411
    %v415 = vadd.f32 %v220, %v411
    %v416 = vadd.f32 %v224, %v411
    %v417 = vadd.f32 %v230, %v411
    %v418 = vadd.f32 %v234, %v411
    %v419 = vadd.f32 %v240, %v411
    %v420 = vadd.f32 %v244, %v411
    %v421 = vadd.f32 %v250, %v411
    %v422 = vadd.f32 %v254, %v411
    %v423 = vadd.f32 %v260, %v411
    %v424 = vadd.f32 %v264, %v411
    %v425 = vadd.f32 %v270, %v411
    %v426 = vadd.f32 %v274, %v411
    %v427 = vadd.f32 %v280, %v411
    %v428 = vadd.f32 %v284, %v411
    %v429 = vld [vmem:[%s4 + $0x2] sm:$0x1]
    %v431 = vlaneseq
    %v432 = vshrl.u32 %v431, 7
    %v433 = vsub.s32 0, %v432
    %v434 = vrot.slane %v429, %v433
    %v436 = vadd.f32 %v321, %v434
    %v437 = vadd.f32 %v324, %v434
    %v438 = vadd.f32 %v329, %v434
    %v439 = vadd.f32 %v332, %v434
    %v440 = vadd.f32 %v337, %v434
    %v441 = vadd.f32 %v340, %v434
    %v442 = vadd.f32 %v345, %v434
    %v443 = vadd.f32 %v348, %v434
    %v444 = vadd.f32 %v353, %v434
    %v445 = vadd.f32 %v356, %v434
    %v446 = vadd.f32 %v361, %v434
    %v447 = vadd.f32 %v364, %v434
    %v448 = vadd.f32 %v369, %v434
    %v449 = vadd.f32 %v372, %v434
    %v450 = vadd.f32 %v377, %v434
    %v451 = vadd.f32 %v380, %v434
    %v468 = vcombine.high %v390, %v390
    %v470 = vunpack.c.l.s4 1966171168
    %v471 = vunpack.c.0.s8 %v470
    %v472 = vlaneseq
    %v473 = vshrl.u32 %v472, 7
    %v474 = vsub.s32 %v471, %v473
    %v475 = vrot.slane %v390, %v474
    %v477 = vunpack.c.l.s4 1966171168
    %v478 = vunpack.c.0.s8 %v477
    %v479 = vlaneseq
    %v480 = vshrl.u32 %v479, 7
    %v481 = vsub.s32 %v478, %v480
    %v482 = vrot.slane %v468, %v481
    %v483 = vcombine.high %v475, %v475
    %v484 = vcombine.high %v482, %v482
    %v486 = vunpack.c.l.s4 1966171168
    %v487 = vunpack.c.0.s8 %v486
    %v488 = vlaneseq
    %v489 = vshrl.u32 %v488, 7
    %v490 = vsub.s32 %v487, %v489
    %v491 = vrot.slane %v475, %v490
    %v493 = vunpack.c.l.s4 1966171168
    %v494 = vunpack.c.0.s8 %v493
    %v495 = vlaneseq
    %v496 = vshrl.u32 %v495, 7
    %v497 = vsub.s32 %v494, %v496
    %v498 = vrot.slane %v482, %v497
    %v500 = vunpack.c.l.s4 1966171168
    %v501 = vunpack.c.0.s8 %v500
    %v502 = vlaneseq
    %v503 = vshrl.u32 %v502, 7
    %v504 = vsub.s32 %v501, %v503
    %v505 = vrot.slane %v483, %v504
    %v507 = vunpack.c.l.s4 1966171168
    %v508 = vunpack.c.0.s8 %v507
    %v509 = vlaneseq
    %v510 = vshrl.u32 %v509, 7
    %v511 = vsub.s32 %v508, %v510
    %v512 = vrot.slane %v484, %v511
    %v513 = vcombine.high %v491, %v491
    %v514 = vcombine.high %v498, %v498
    %v515 = vcombine.high %v505, %v505
    %v516 = vcombine.high %v512, %v512
    %v517 = vcombine.high %v391, %v391
    %v519 = vunpack.c.l.s4 1966171168
    %v520 = vunpack.c.0.s8 %v519
    %v521 = vlaneseq
    %v522 = vshrl.u32 %v521, 7
    %v523 = vsub.s32 %v520, %v522
    %v524 = vrot.slane %v391, %v523
    %v526 = vunpack.c.l.s4 1966171168
    %v527 = vunpack.c.0.s8 %v526
    %v528 = vlaneseq
    %v529 = vshrl.u32 %v528, 7
    %v530 = vsub.s32 %v527, %v529
    %v531 = vrot.slane %v517, %v530
    %v532 = vcombine.high %v524, %v524
    %v533 = vcombine.high %v531, %v531
    %v535 = vunpack.c.l.s4 1966171168
    %v536 = vunpack.c.0.s8 %v535
    %v537 = vlaneseq
    %v538 = vshrl.u32 %v537, 7
    %v539 = vsub.s32 %v536, %v538
    %v540 = vrot.slane %v524, %v539
    %v542 = vunpack.c.l.s4 1966171168
    %v543 = vunpack.c.0.s8 %v542
    %v544 = vlaneseq
    %v545 = vshrl.u32 %v544, 7
    %v546 = vsub.s32 %v543, %v545
    %v547 = vrot.slane %v531, %v546
    %v549 = vunpack.c.l.s4 1966171168
    %v550 = vunpack.c.0.s8 %v549
    %v551 = vlaneseq
    %v552 = vshrl.u32 %v551, 7
    %v553 = vsub.s32 %v550, %v552
    %v554 = vrot.slane %v532, %v553
    %v556 = vunpack.c.l.s4 1966171168
    %v557 = vunpack.c.0.s8 %v556
    %v558 = vlaneseq
    %v559 = vshrl.u32 %v558, 7
    %v560 = vsub.s32 %v557, %v559
    %v561 = vrot.slane %v533, %v560
    %v562 = vcombine.high %v540, %v540
    %v563 = vcombine.high %v547, %v547
    %v564 = vcombine.high %v554, %v554
    %v565 = vcombine.high %v561, %v561
    %v566 = vcombine.high %v392, %v392
    %v568 = vunpack.c.l.s4 1966171168
    %v569 = vunpack.c.0.s8 %v568
    %v570 = vlaneseq
    %v571 = vshrl.u32 %v570, 7
    %v572 = vsub.s32 %v569, %v571
    %v573 = vrot.slane %v392, %v572
    %v575 = vunpack.c.l.s4 1966171168
    %v576 = vunpack.c.0.s8 %v575
    %v577 = vlaneseq
    %v578 = vshrl.u32 %v577, 7
    %v579 = vsub.s32 %v576, %v578
    %v580 = vrot.slane %v566, %v579
    %v581 = vcombine.high %v573, %v573
    %v582 = vcombine.high %v580, %v580
    %v584 = vunpack.c.l.s4 1966171168
    %v585 = vunpack.c.0.s8 %v584
    %v586 = vlaneseq
    %v587 = vshrl.u32 %v586, 7
    %v588 = vsub.s32 %v585, %v587
    %v589 = vrot.slane %v573, %v588
    %v591 = vunpack.c.l.s4 1966171168
    %v592 = vunpack.c.0.s8 %v591
    %v593 = vlaneseq
    %v594 = vshrl.u32 %v593, 7
    %v595 = vsub.s32 %v592, %v594
    %v596 = vrot.slane %v580, %v595
    %v598 = vunpack.c.l.s4 1966171168
    %v599 = vunpack.c.0.s8 %v598
    %v600 = vlaneseq
    %v601 = vshrl.u32 %v600, 7
    %v602 = vsub.s32 %v599, %v601
    %v603 = vrot.slane %v581, %v602
    %v605 = vunpack.c.l.s4 1966171168
    %v606 = vunpack.c.0.s8 %v605
    %v607 = vlaneseq
    %v608 = vshrl.u32 %v607, 7
    %v609 = vsub.s32 %v606, %v608
    %v610 = vrot.slane %v582, %v609
    %v611 = vcombine.high %v589, %v589
    %v612 = vcombine.high %v596, %v596
    %v613 = vcombine.high %v603, %v603
    %v614 = vcombine.high %v610, %v610
    %v615 = vcombine.high %v393, %v393
    %v617 = vunpack.c.l.s4 1966171168
    %v618 = vunpack.c.0.s8 %v617
    %v619 = vlaneseq
    %v620 = vshrl.u32 %v619, 7
    %v621 = vsub.s32 %v618, %v620
    %v622 = vrot.slane %v393, %v621
    %v624 = vunpack.c.l.s4 1966171168
    %v625 = vunpack.c.0.s8 %v624
    %v626 = vlaneseq
    %v627 = vshrl.u32 %v626, 7
    %v628 = vsub.s32 %v625, %v627
    %v629 = vrot.slane %v615, %v628
    %v630 = vcombine.high %v622, %v622
    %v631 = vcombine.high %v629, %v629
    %v633 = vunpack.c.l.s4 1966171168
    %v634 = vunpack.c.0.s8 %v633
    %v635 = vlaneseq
    %v636 = vshrl.u32 %v635, 7
    %v637 = vsub.s32 %v634, %v636
    %v638 = vrot.slane %v622, %v637
    %v640 = vunpack.c.l.s4 1966171168
    %v641 = vunpack.c.0.s8 %v640
    %v642 = vlaneseq
    %v643 = vshrl.u32 %v642, 7
    %v644 = vsub.s32 %v641, %v643
    %v645 = vrot.slane %v629, %v644
    %v647 = vunpack.c.l.s4 1966171168
    %v648 = vunpack.c.0.s8 %v647
    %v649 = vlaneseq
    %v650 = vshrl.u32 %v649, 7
    %v651 = vsub.s32 %v648, %v650
    %v652 = vrot.slane %v630, %v651
    %v654 = vunpack.c.l.s4 1966171168
    %v655 = vunpack.c.0.s8 %v654
    %v656 = vlaneseq
    %v657 = vshrl.u32 %v656, 7
    %v658 = vsub.s32 %v655, %v657
    %v659 = vrot.slane %v631, %v658
    %v660 = vcombine.high %v638, %v638
    %v661 = vcombine.high %v645, %v645
    %v662 = vcombine.high %v652, %v652
    %v663 = vcombine.high %v659, %v659
    %v664 = vcombine.high %v394, %v394
    %v666 = vunpack.c.l.s4 1966171168
    %v667 = vunpack.c.0.s8 %v666
    %v668 = vlaneseq
    %v669 = vshrl.u32 %v668, 7
    %v670 = vsub.s32 %v667, %v669
    %v671 = vrot.slane %v394, %v670
    %v673 = vunpack.c.l.s4 1966171168
    %v674 = vunpack.c.0.s8 %v673
    %v675 = vlaneseq
    %v676 = vshrl.u32 %v675, 7
    %v677 = vsub.s32 %v674, %v676
    %v678 = vrot.slane %v664, %v677
    %v679 = vcombine.high %v671, %v671
    %v680 = vcombine.high %v678, %v678
    %v682 = vunpack.c.l.s4 1966171168
    %v683 = vunpack.c.0.s8 %v682
    %v684 = vlaneseq
    %v685 = vshrl.u32 %v684, 7
    %v686 = vsub.s32 %v683, %v685
    %v687 = vrot.slane %v671, %v686
    %v689 = vunpack.c.l.s4 1966171168
    %v690 = vunpack.c.0.s8 %v689
    %v691 = vlaneseq
    %v692 = vshrl.u32 %v691, 7
    %v693 = vsub.s32 %v690, %v692
    %v694 = vrot.slane %v678, %v693
    %v696 = vunpack.c.l.s4 1966171168
    %v697 = vunpack.c.0.s8 %v696
    %v698 = vlaneseq
    %v699 = vshrl.u32 %v698, 7
    %v700 = vsub.s32 %v697, %v699
    %v701 = vrot.slane %v679, %v700
    %v703 = vunpack.c.l.s4 1966171168
    %v704 = vunpack.c.0.s8 %v703
    %v705 = vlaneseq
    %v706 = vshrl.u32 %v705, 7
    %v707 = vsub.s32 %v704, %v706
    %v708 = vrot.slane %v680, %v707
    %v709 = vcombine.high %v687, %v687
    %v710 = vcombine.high %v694, %v694
    %v711 = vcombine.high %v701, %v701
    %v712 = vcombine.high %v708, %v708
    %v713 = vcombine.high %v395, %v395
    %v715 = vunpack.c.l.s4 1966171168
    %v716 = vunpack.c.0.s8 %v715
    %v717 = vlaneseq
    %v718 = vshrl.u32 %v717, 7
    %v719 = vsub.s32 %v716, %v718
    %v720 = vrot.slane %v395, %v719
    %v722 = vunpack.c.l.s4 1966171168
    %v723 = vunpack.c.0.s8 %v722
    %v724 = vlaneseq
    %v725 = vshrl.u32 %v724, 7
    %v726 = vsub.s32 %v723, %v725
    %v727 = vrot.slane %v713, %v726
    %v728 = vcombine.high %v720, %v720
    %v729 = vcombine.high %v727, %v727
    %v731 = vunpack.c.l.s4 1966171168
    %v732 = vunpack.c.0.s8 %v731
    %v733 = vlaneseq
    %v734 = vshrl.u32 %v733, 7
    %v735 = vsub.s32 %v732, %v734
    %v736 = vrot.slane %v720, %v735
    %v738 = vunpack.c.l.s4 1966171168
    %v739 = vunpack.c.0.s8 %v738
    %v740 = vlaneseq
    %v741 = vshrl.u32 %v740, 7
    %v742 = vsub.s32 %v739, %v741
    %v743 = vrot.slane %v727, %v742
    %v745 = vunpack.c.l.s4 1966171168
    %v746 = vunpack.c.0.s8 %v745
    %v747 = vlaneseq
    %v748 = vshrl.u32 %v747, 7
    %v749 = vsub.s32 %v746, %v748
    %v750 = vrot.slane %v728, %v749
    %v752 = vunpack.c.l.s4 1966171168
    %v753 = vunpack.c.0.s8 %v752
    %v754 = vlaneseq
    %v755 = vshrl.u32 %v754, 7
    %v756 = vsub.s32 %v753, %v755
    %v757 = vrot.slane %v729, %v756
    %v758 = vcombine.high %v736, %v736
    %v759 = vcombine.high %v743, %v743
    %v760 = vcombine.high %v750, %v750
    %v761 = vcombine.high %v757, %v757
    %v762 = vcombine.high %v396, %v396
    %v764 = vunpack.c.l.s4 1966171168
    %v765 = vunpack.c.0.s8 %v764
    %v766 = vlaneseq
    %v767 = vshrl.u32 %v766, 7
    %v768 = vsub.s32 %v765, %v767
    %v769 = vrot.slane %v396, %v768
    %v771 = vunpack.c.l.s4 1966171168
    %v772 = vunpack.c.0.s8 %v771
    %v773 = vlaneseq
    %v774 = vshrl.u32 %v773, 7
    %v775 = vsub.s32 %v772, %v774
    %v776 = vrot.slane %v762, %v775
    %v777 = vcombine.high %v769, %v769
    %v778 = vcombine.high %v776, %v776
    %v780 = vunpack.c.l.s4 1966171168
    %v781 = vunpack.c.0.s8 %v780
    %v782 = vlaneseq
    %v783 = vshrl.u32 %v782, 7
    %v784 = vsub.s32 %v781, %v783
    %v785 = vrot.slane %v769, %v784
    %v787 = vunpack.c.l.s4 1966171168
    %v788 = vunpack.c.0.s8 %v787
    %v789 = vlaneseq
    %v790 = vshrl.u32 %v789, 7
    %v791 = vsub.s32 %v788, %v790
    %v792 = vrot.slane %v776, %v791
    %v794 = vunpack.c.l.s4 1966171168
    %v795 = vunpack.c.0.s8 %v794
    %v796 = vlaneseq
    %v797 = vshrl.u32 %v796, 7
    %v798 = vsub.s32 %v795, %v797
    %v799 = vrot.slane %v777, %v798
    %v801 = vunpack.c.l.s4 1966171168
    %v802 = vunpack.c.0.s8 %v801
    %v803 = vlaneseq
    %v804 = vshrl.u32 %v803, 7
    %v805 = vsub.s32 %v802, %v804
    %v806 = vrot.slane %v778, %v805
    %v807 = vcombine.high %v785, %v785
    %v808 = vcombine.high %v792, %v792
    %v809 = vcombine.high %v799, %v799
    %v810 = vcombine.high %v806, %v806
    %v811 = vcombine.high %v397, %v397
    %v813 = vunpack.c.l.s4 1966171168
    %v814 = vunpack.c.0.s8 %v813
    %v815 = vlaneseq
    %v816 = vshrl.u32 %v815, 7
    %v817 = vsub.s32 %v814, %v816
    %v818 = vrot.slane %v397, %v817
    %v820 = vunpack.c.l.s4 1966171168
    %v821 = vunpack.c.0.s8 %v820
    %v822 = vlaneseq
    %v823 = vshrl.u32 %v822, 7
    %v824 = vsub.s32 %v821, %v823
    %v825 = vrot.slane %v811, %v824
    %v826 = vcombine.high %v818, %v818
    %v827 = vcombine.high %v825, %v825
    %v829 = vunpack.c.l.s4 1966171168
    %v830 = vunpack.c.0.s8 %v829
    %v831 = vlaneseq
    %v832 = vshrl.u32 %v831, 7
    %v833 = vsub.s32 %v830, %v832
    %v834 = vrot.slane %v818, %v833
    %v836 = vunpack.c.l.s4 1966171168
    %v837 = vunpack.c.0.s8 %v836
    %v838 = vlaneseq
    %v839 = vshrl.u32 %v838, 7
    %v840 = vsub.s32 %v837, %v839
    %v841 = vrot.slane %v825, %v840
    %v843 = vunpack.c.l.s4 1966171168
    %v844 = vunpack.c.0.s8 %v843
    %v845 = vlaneseq
    %v846 = vshrl.u32 %v845, 7
    %v847 = vsub.s32 %v844, %v846
    %v848 = vrot.slane %v826, %v847
    %v850 = vunpack.c.l.s4 1966171168
    %v851 = vunpack.c.0.s8 %v850
    %v852 = vlaneseq
    %v853 = vshrl.u32 %v852, 7
    %v854 = vsub.s32 %v851, %v853
    %v855 = vrot.slane %v827, %v854
    %v856 = vcombine.high %v834, %v834
    %v857 = vcombine.high %v841, %v841
    %v858 = vcombine.high %v848, %v848
    %v859 = vcombine.high %v855, %v855
    %v860 = vcombine.high %v398, %v398
    %v862 = vunpack.c.l.s4 1966171168
    %v863 = vunpack.c.0.s8 %v862
    %v864 = vlaneseq
    %v865 = vshrl.u32 %v864, 7
    %v866 = vsub.s32 %v863, %v865
    %v867 = vrot.slane %v398, %v866
    %v869 = vunpack.c.l.s4 1966171168
    %v870 = vunpack.c.0.s8 %v869
    %v871 = vlaneseq
    %v872 = vshrl.u32 %v871, 7
    %v873 = vsub.s32 %v870, %v872
    %v874 = vrot.slane %v860, %v873
    %v875 = vcombine.high %v867, %v867
    %v876 = vcombine.high %v874, %v874
    %v878 = vunpack.c.l.s4 1966171168
    %v879 = vunpack.c.0.s8 %v878
    %v880 = vlaneseq
    %v881 = vshrl.u32 %v880, 7
    %v882 = vsub.s32 %v879, %v881
    %v883 = vrot.slane %v867, %v882
    %v885 = vunpack.c.l.s4 1966171168
    %v886 = vunpack.c.0.s8 %v885
    %v887 = vlaneseq
    %v888 = vshrl.u32 %v887, 7
    %v889 = vsub.s32 %v886, %v888
    %v890 = vrot.slane %v874, %v889
    %v892 = vunpack.c.l.s4 1966171168
    %v893 = vunpack.c.0.s8 %v892
    %v894 = vlaneseq
    %v895 = vshrl.u32 %v894, 7
    %v896 = vsub.s32 %v893, %v895
    %v897 = vrot.slane %v875, %v896
    %v899 = vunpack.c.l.s4 1966171168
    %v900 = vunpack.c.0.s8 %v899
    %v901 = vlaneseq
    %v902 = vshrl.u32 %v901, 7
    %v903 = vsub.s32 %v900, %v902
    %v904 = vrot.slane %v876, %v903
    %v905 = vcombine.high %v883, %v883
    %v906 = vcombine.high %v890, %v890
    %v907 = vcombine.high %v897, %v897
    %v908 = vcombine.high %v904, %v904
    %v909 = vcombine.high %v399, %v399
    %v911 = vunpack.c.l.s4 1966171168
    %v912 = vunpack.c.0.s8 %v911
    %v913 = vlaneseq
    %v914 = vshrl.u32 %v913, 7
    %v915 = vsub.s32 %v912, %v914
    %v916 = vrot.slane %v399, %v915
    %v918 = vunpack.c.l.s4 1966171168
    %v919 = vunpack.c.0.s8 %v918
    %v920 = vlaneseq
    %v921 = vshrl.u32 %v920, 7
    %v922 = vsub.s32 %v919, %v921
    %v923 = vrot.slane %v909, %v922
    %v924 = vcombine.high %v916, %v916
    %v925 = vcombine.high %v923, %v923
    %v927 = vunpack.c.l.s4 1966171168
    %v928 = vunpack.c.0.s8 %v927
    %v929 = vlaneseq
    %v930 = vshrl.u32 %v929, 7
    %v931 = vsub.s32 %v928, %v930
    %v932 = vrot.slane %v916, %v931
    %v934 = vunpack.c.l.s4 1966171168
    %v935 = vunpack.c.0.s8 %v934
    %v936 = vlaneseq
    %v937 = vshrl.u32 %v936, 7
    %v938 = vsub.s32 %v935, %v937
    %v939 = vrot.slane %v923, %v938
    %v941 = vunpack.c.l.s4 1966171168
    %v942 = vunpack.c.0.s8 %v941
    %v943 = vlaneseq
    %v944 = vshrl.u32 %v943, 7
    %v945 = vsub.s32 %v942, %v944
    %v946 = vrot.slane %v924, %v945
    %v948 = vunpack.c.l.s4 1966171168
    %v949 = vunpack.c.0.s8 %v948
    %v950 = vlaneseq
    %v951 = vshrl.u32 %v950, 7
    %v952 = vsub.s32 %v949, %v951
    %v953 = vrot.slane %v925, %v952
    %v954 = vcombine.high %v932, %v932
    %v955 = vcombine.high %v939, %v939
    %v956 = vcombine.high %v946, %v946
    %v957 = vcombine.high %v953, %v953
    %v958 = vcombine.high %v400, %v400
    %v960 = vunpack.c.l.s4 1966171168
    %v961 = vunpack.c.0.s8 %v960
    %v962 = vlaneseq
    %v963 = vshrl.u32 %v962, 7
    %v964 = vsub.s32 %v961, %v963
    %v965 = vrot.slane %v400, %v964
    %v967 = vunpack.c.l.s4 1966171168
    %v968 = vunpack.c.0.s8 %v967
    %v969 = vlaneseq
    %v970 = vshrl.u32 %v969, 7
    %v971 = vsub.s32 %v968, %v970
    %v972 = vrot.slane %v958, %v971
    %v973 = vcombine.high %v965, %v965
    %v974 = vcombine.high %v972, %v972
    %v976 = vunpack.c.l.s4 1966171168
    %v977 = vunpack.c.0.s8 %v976
    %v978 = vlaneseq
    %v979 = vshrl.u32 %v978, 7
    %v980 = vsub.s32 %v977, %v979
    %v981 = vrot.slane %v965, %v980
    %v983 = vunpack.c.l.s4 1966171168
    %v984 = vunpack.c.0.s8 %v983
    %v985 = vlaneseq
    %v986 = vshrl.u32 %v985, 7
    %v987 = vsub.s32 %v984, %v986
    %v988 = vrot.slane %v972, %v987
    %v990 = vunpack.c.l.s4 1966171168
    %v991 = vunpack.c.0.s8 %v990
    %v992 = vlaneseq
    %v993 = vshrl.u32 %v992, 7
    %v994 = vsub.s32 %v991, %v993
    %v995 = vrot.slane %v973, %v994
    %v997 = vunpack.c.l.s4 1966171168
    %v998 = vunpack.c.0.s8 %v997
    %v999 = vlaneseq
    %v1000 = vshrl.u32 %v999, 7
    %v1001 = vsub.s32 %v998, %v1000
    %v1002 = vrot.slane %v974, %v1001
    %v1003 = vcombine.high %v981, %v981
    %v1004 = vcombine.high %v988, %v988
    %v1005 = vcombine.high %v995, %v995
    %v1006 = vcombine.high %v1002, %v1002
    %v1007 = vcombine.high %v401, %v401
    %v1009 = vunpack.c.l.s4 1966171168
    %v1010 = vunpack.c.0.s8 %v1009
    %v1011 = vlaneseq
    %v1012 = vshrl.u32 %v1011, 7
    %v1013 = vsub.s32 %v1010, %v1012
    %v1014 = vrot.slane %v401, %v1013
    %v1016 = vunpack.c.l.s4 1966171168
    %v1017 = vunpack.c.0.s8 %v1016
    %v1018 = vlaneseq
    %v1019 = vshrl.u32 %v1018, 7
    %v1020 = vsub.s32 %v1017, %v1019
    %v1021 = vrot.slane %v1007, %v1020
    %v1022 = vcombine.high %v1014, %v1014
    %v1023 = vcombine.high %v1021, %v1021
    %v1025 = vunpack.c.l.s4 1966171168
    %v1026 = vunpack.c.0.s8 %v1025
    %v1027 = vlaneseq
    %v1028 = vshrl.u32 %v1027, 7
    %v1029 = vsub.s32 %v1026, %v1028
    %v1030 = vrot.slane %v1014, %v1029
    %v1032 = vunpack.c.l.s4 1966171168
    %v1033 = vunpack.c.0.s8 %v1032
    %v1034 = vlaneseq
    %v1035 = vshrl.u32 %v1034, 7
    %v1036 = vsub.s32 %v1033, %v1035
    %v1037 = vrot.slane %v1021, %v1036
    %v1039 = vunpack.c.l.s4 1966171168
    %v1040 = vunpack.c.0.s8 %v1039
    %v1041 = vlaneseq
    %v1042 = vshrl.u32 %v1041, 7
    %v1043 = vsub.s32 %v1040, %v1042
    %v1044 = vrot.slane %v1022, %v1043
    %v1046 = vunpack.c.l.s4 1966171168
    %v1047 = vunpack.c.0.s8 %v1046
    %v1048 = vlaneseq
    %v1049 = vshrl.u32 %v1048, 7
    %v1050 = vsub.s32 %v1047, %v1049
    %v1051 = vrot.slane %v1023, %v1050
    %v1052 = vcombine.high %v1030, %v1030
    %v1053 = vcombine.high %v1037, %v1037
    %v1054 = vcombine.high %v1044, %v1044
    %v1055 = vcombine.high %v1051, %v1051
    %v1056 = vcombine.high %v402, %v402
    %v1058 = vunpack.c.l.s4 1966171168
    %v1059 = vunpack.c.0.s8 %v1058
    %v1060 = vlaneseq
    %v1061 = vshrl.u32 %v1060, 7
    %v1062 = vsub.s32 %v1059, %v1061
    %v1063 = vrot.slane %v402, %v1062
    %v1065 = vunpack.c.l.s4 1966171168
    %v1066 = vunpack.c.0.s8 %v1065
    %v1067 = vlaneseq
    %v1068 = vshrl.u32 %v1067, 7
    %v1069 = vsub.s32 %v1066, %v1068
    %v1070 = vrot.slane %v1056, %v1069
    %v1071 = vcombine.high %v1063, %v1063
    %v1072 = vcombine.high %v1070, %v1070
    %v1074 = vunpack.c.l.s4 1966171168
    %v1075 = vunpack.c.0.s8 %v1074
    %v1076 = vlaneseq
    %v1077 = vshrl.u32 %v1076, 7
    %v1078 = vsub.s32 %v1075, %v1077
    %v1079 = vrot.slane %v1063, %v1078
    %v1081 = vunpack.c.l.s4 1966171168
    %v1082 = vunpack.c.0.s8 %v1081
    %v1083 = vlaneseq
    %v1084 = vshrl.u32 %v1083, 7
    %v1085 = vsub.s32 %v1082, %v1084
    %v1086 = vrot.slane %v1070, %v1085
    %v1088 = vunpack.c.l.s4 1966171168
    %v1089 = vunpack.c.0.s8 %v1088
    %v1090 = vlaneseq
    %v1091 = vshrl.u32 %v1090, 7
    %v1092 = vsub.s32 %v1089, %v1091
    %v1093 = vrot.slane %v1071, %v1092
    %v1095 = vunpack.c.l.s4 1966171168
    %v1096 = vunpack.c.0.s8 %v1095
    %v1097 = vlaneseq
    %v1098 = vshrl.u32 %v1097, 7
    %v1099 = vsub.s32 %v1096, %v1098
    %v1100 = vrot.slane %v1072, %v1099
    %v1101 = vcombine.high %v1079, %v1079
    %v1102 = vcombine.high %v1086, %v1086
    %v1103 = vcombine.high %v1093, %v1093
    %v1104 = vcombine.high %v1100, %v1100
    %v1105 = vcombine.high %v403, %v403
    %v1107 = vunpack.c.l.s4 1966171168
    %v1108 = vunpack.c.0.s8 %v1107
    %v1109 = vlaneseq
    %v1110 = vshrl.u32 %v1109, 7
    %v1111 = vsub.s32 %v1108, %v1110
    %v1112 = vrot.slane %v403, %v1111
    %v1114 = vunpack.c.l.s4 1966171168
    %v1115 = vunpack.c.0.s8 %v1114
    %v1116 = vlaneseq
    %v1117 = vshrl.u32 %v1116, 7
    %v1118 = vsub.s32 %v1115, %v1117
    %v1119 = vrot.slane %v1105, %v1118
    %v1120 = vcombine.high %v1112, %v1112
    %v1121 = vcombine.high %v1119, %v1119
    %v1123 = vunpack.c.l.s4 1966171168
    %v1124 = vunpack.c.0.s8 %v1123
    %v1125 = vlaneseq
    %v1126 = vshrl.u32 %v1125, 7
    %v1127 = vsub.s32 %v1124, %v1126
    %v1128 = vrot.slane %v1112, %v1127
    %v1130 = vunpack.c.l.s4 1966171168
    %v1131 = vunpack.c.0.s8 %v1130
    %v1132 = vlaneseq
    %v1133 = vshrl.u32 %v1132, 7
    %v1134 = vsub.s32 %v1131, %v1133
    %v1135 = vrot.slane %v1119, %v1134
    %v1137 = vunpack.c.l.s4 1966171168
    %v1138 = vunpack.c.0.s8 %v1137
    %v1139 = vlaneseq
    %v1140 = vshrl.u32 %v1139, 7
    %v1141 = vsub.s32 %v1138, %v1140
    %v1142 = vrot.slane %v1120, %v1141
    %v1144 = vunpack.c.l.s4 1966171168
    %v1145 = vunpack.c.0.s8 %v1144
    %v1146 = vlaneseq
    %v1147 = vshrl.u32 %v1146, 7
    %v1148 = vsub.s32 %v1145, %v1147
    %v1149 = vrot.slane %v1121, %v1148
    %v1150 = vcombine.high %v1128, %v1128
    %v1151 = vcombine.high %v1135, %v1135
    %v1152 = vcombine.high %v1142, %v1142
    %v1153 = vcombine.high %v1149, %v1149
    %v1154 = vcombine.high %v404, %v404
    %v1156 = vunpack.c.l.s4 1966171168
    %v1157 = vunpack.c.0.s8 %v1156
    %v1158 = vlaneseq
    %v1159 = vshrl.u32 %v1158, 7
    %v1160 = vsub.s32 %v1157, %v1159
    %v1161 = vrot.slane %v404, %v1160
    %v1163 = vunpack.c.l.s4 1966171168
    %v1164 = vunpack.c.0.s8 %v1163
    %v1165 = vlaneseq
    %v1166 = vshrl.u32 %v1165, 7
    %v1167 = vsub.s32 %v1164, %v1166
    %v1168 = vrot.slane %v1154, %v1167
    %v1169 = vcombine.high %v1161, %v1161
    %v1170 = vcombine.high %v1168, %v1168
    %v1172 = vunpack.c.l.s4 1966171168
    %v1173 = vunpack.c.0.s8 %v1172
    %v1174 = vlaneseq
    %v1175 = vshrl.u32 %v1174, 7
    %v1176 = vsub.s32 %v1173, %v1175
    %v1177 = vrot.slane %v1161, %v1176
    %v1179 = vunpack.c.l.s4 1966171168
    %v1180 = vunpack.c.0.s8 %v1179
    %v1181 = vlaneseq
    %v1182 = vshrl.u32 %v1181, 7
    %v1183 = vsub.s32 %v1180, %v1182
    %v1184 = vrot.slane %v1168, %v1183
    %v1186 = vunpack.c.l.s4 1966171168
    %v1187 = vunpack.c.0.s8 %v1186
    %v1188 = vlaneseq
    %v1189 = vshrl.u32 %v1188, 7
    %v1190 = vsub.s32 %v1187, %v1189
    %v1191 = vrot.slane %v1169, %v1190
    %v1193 = vunpack.c.l.s4 1966171168
    %v1194 = vunpack.c.0.s8 %v1193
    %v1195 = vlaneseq
    %v1196 = vshrl.u32 %v1195, 7
    %v1197 = vsub.s32 %v1194, %v1196
    %v1198 = vrot.slane %v1170, %v1197
    %v1199 = vcombine.high %v1177, %v1177
    %v1200 = vcombine.high %v1184, %v1184
    %v1201 = vcombine.high %v1191, %v1191
    %v1202 = vcombine.high %v1198, %v1198
    %v1203 = vcombine.high %v405, %v405
    %v1205 = vunpack.c.l.s4 1966171168
    %v1206 = vunpack.c.0.s8 %v1205
    %v1207 = vlaneseq
    %v1208 = vshrl.u32 %v1207, 7
    %v1209 = vsub.s32 %v1206, %v1208
    %v1210 = vrot.slane %v405, %v1209
    %v1212 = vunpack.c.l.s4 1966171168
    %v1213 = vunpack.c.0.s8 %v1212
    %v1214 = vlaneseq
    %v1215 = vshrl.u32 %v1214, 7
    %v1216 = vsub.s32 %v1213, %v1215
    %v1217 = vrot.slane %v1203, %v1216
    %v1218 = vcombine.high %v1210, %v1210
    %v1219 = vcombine.high %v1217, %v1217
    %v1221 = vunpack.c.l.s4 1966171168
    %v1222 = vunpack.c.0.s8 %v1221
    %v1223 = vlaneseq
    %v1224 = vshrl.u32 %v1223, 7
    %v1225 = vsub.s32 %v1222, %v1224
    %v1226 = vrot.slane %v1210, %v1225
    %v1228 = vunpack.c.l.s4 1966171168
    %v1229 = vunpack.c.0.s8 %v1228
    %v1230 = vlaneseq
    %v1231 = vshrl.u32 %v1230, 7
    %v1232 = vsub.s32 %v1229, %v1231
    %v1233 = vrot.slane %v1217, %v1232
    %v1235 = vunpack.c.l.s4 1966171168
    %v1236 = vunpack.c.0.s8 %v1235
    %v1237 = vlaneseq
    %v1238 = vshrl.u32 %v1237, 7
    %v1239 = vsub.s32 %v1236, %v1238
    %v1240 = vrot.slane %v1218, %v1239
    %v1242 = vunpack.c.l.s4 1966171168
    %v1243 = vunpack.c.0.s8 %v1242
    %v1244 = vlaneseq
    %v1245 = vshrl.u32 %v1244, 7
    %v1246 = vsub.s32 %v1243, %v1245
    %v1247 = vrot.slane %v1219, %v1246
    %v1248 = vcombine.high %v1226, %v1226
    %v1249 = vcombine.high %v1233, %v1233
    %v1250 = vcombine.high %v1240, %v1240
    %v1251 = vcombine.high %v1247, %v1247
    %v1252 = vlaneseq
    %v1253 = vshrl.u32 %v1252, 7
    %v1254 = vsub.s32 0, %v1253
    %v1255 = vrot.slane %v491, %v1254
    %v1256 = vlaneseq
    %v1257 = vshrl.u32 %v1256, 7
    %v1258 = vsub.s32 0, %v1257
    %v1259 = vrot.slane %v505, %v1258
    %v1260 = vlaneseq
    %v1261 = vshrl.u32 %v1260, 7
    %v1262 = vsub.s32 0, %v1261
    %v1263 = vrot.slane %v513, %v1262
    %v1264 = vlaneseq
    %v1265 = vshrl.u32 %v1264, 7
    %v1266 = vsub.s32 0, %v1265
    %v1267 = vrot.slane %v515, %v1266
    %v1268 = vlaneseq
    %v1269 = vshrl.u32 %v1268, 7
    %v1270 = vsub.s32 0, %v1269
    %v1271 = vrot.slane %v498, %v1270
    %v1272 = vlaneseq
    %v1273 = vshrl.u32 %v1272, 7
    %v1274 = vsub.s32 0, %v1273
    %v1275 = vrot.slane %v512, %v1274
    %v1276 = vlaneseq
    %v1277 = vshrl.u32 %v1276, 7
    %v1278 = vsub.s32 0, %v1277
    %v1279 = vrot.slane %v514, %v1278
    %v1280 = vlaneseq
    %v1281 = vshrl.u32 %v1280, 7
    %v1282 = vsub.s32 0, %v1281
    %v1283 = vrot.slane %v516, %v1282
    %v1284 = vlaneseq
    %v1285 = vshrl.u32 %v1284, 7
    %v1286 = vsub.s32 0, %v1285
    %v1287 = vrot.slane %v540, %v1286
    %v1288 = vlaneseq
    %v1289 = vshrl.u32 %v1288, 7
    %v1290 = vsub.s32 0, %v1289
    %v1291 = vrot.slane %v554, %v1290
    %v1292 = vlaneseq
    %v1293 = vshrl.u32 %v1292, 7
    %v1294 = vsub.s32 0, %v1293
    %v1295 = vrot.slane %v562, %v1294
    %v1296 = vlaneseq
    %v1297 = vshrl.u32 %v1296, 7
    %v1298 = vsub.s32 0, %v1297
    %v1299 = vrot.slane %v564, %v1298
    %v1300 = vlaneseq
    %v1301 = vshrl.u32 %v1300, 7
    %v1302 = vsub.s32 0, %v1301
    %v1303 = vrot.slane %v547, %v1302
    %v1304 = vlaneseq
    %v1305 = vshrl.u32 %v1304, 7
    %v1306 = vsub.s32 0, %v1305
    %v1307 = vrot.slane %v561, %v1306
    %v1308 = vlaneseq
    %v1309 = vshrl.u32 %v1308, 7
    %v1310 = vsub.s32 0, %v1309
    %v1311 = vrot.slane %v563, %v1310
    %v1312 = vlaneseq
    %v1313 = vshrl.u32 %v1312, 7
    %v1314 = vsub.s32 0, %v1313
    %v1315 = vrot.slane %v565, %v1314
    %v1316 = vlaneseq
    %v1317 = vshrl.u32 %v1316, 7
    %v1318 = vsub.s32 0, %v1317
    %v1319 = vrot.slane %v589, %v1318
    %v1320 = vlaneseq
    %v1321 = vshrl.u32 %v1320, 7
    %v1322 = vsub.s32 0, %v1321
    %v1323 = vrot.slane %v603, %v1322
    %v1324 = vlaneseq
    %v1325 = vshrl.u32 %v1324, 7
    %v1326 = vsub.s32 0, %v1325
    %v1327 = vrot.slane %v611, %v1326
    %v1328 = vlaneseq
    %v1329 = vshrl.u32 %v1328, 7
    %v1330 = vsub.s32 0, %v1329
    %v1331 = vrot.slane %v613, %v1330
    %v1332 = vlaneseq
    %v1333 = vshrl.u32 %v1332, 7
    %v1334 = vsub.s32 0, %v1333
    %v1335 = vrot.slane %v596, %v1334
    %v1336 = vlaneseq
    %v1337 = vshrl.u32 %v1336, 7
    %v1338 = vsub.s32 0, %v1337
    %v1339 = vrot.slane %v610, %v1338
    %v1340 = vlaneseq
    %v1341 = vshrl.u32 %v1340, 7
    %v1342 = vsub.s32 0, %v1341
    %v1343 = vrot.slane %v612, %v1342
    %v1344 = vlaneseq
    %v1345 = vshrl.u32 %v1344, 7
    %v1346 = vsub.s32 0, %v1345
    %v1347 = vrot.slane %v614, %v1346
    %v1348 = vlaneseq
    %v1349 = vshrl.u32 %v1348, 7
    %v1350 = vsub.s32 0, %v1349
    %v1351 = vrot.slane %v638, %v1350
    %v1352 = vlaneseq
    %v1353 = vshrl.u32 %v1352, 7
    %v1354 = vsub.s32 0, %v1353
    %v1355 = vrot.slane %v652, %v1354
    %v1356 = vlaneseq
    %v1357 = vshrl.u32 %v1356, 7
    %v1358 = vsub.s32 0, %v1357
    %v1359 = vrot.slane %v660, %v1358
    %v1360 = vlaneseq
    %v1361 = vshrl.u32 %v1360, 7
    %v1362 = vsub.s32 0, %v1361
    %v1363 = vrot.slane %v662, %v1362
    %v1364 = vlaneseq
    %v1365 = vshrl.u32 %v1364, 7
    %v1366 = vsub.s32 0, %v1365
    %v1367 = vrot.slane %v645, %v1366
    %v1368 = vlaneseq
    %v1369 = vshrl.u32 %v1368, 7
    %v1370 = vsub.s32 0, %v1369
    %v1371 = vrot.slane %v659, %v1370
    %v1372 = vlaneseq
    %v1373 = vshrl.u32 %v1372, 7
    %v1374 = vsub.s32 0, %v1373
    %v1375 = vrot.slane %v661, %v1374
    %v1376 = vlaneseq
    %v1377 = vshrl.u32 %v1376, 7
    %v1378 = vsub.s32 0, %v1377
    %v1379 = vrot.slane %v663, %v1378
    %v1380 = vlaneseq
    %v1381 = vshrl.u32 %v1380, 7
    %v1382 = vsub.s32 0, %v1381
    %v1383 = vrot.slane %v687, %v1382
    %v1384 = vlaneseq
    %v1385 = vshrl.u32 %v1384, 7
    %v1386 = vsub.s32 0, %v1385
    %v1387 = vrot.slane %v701, %v1386
    %v1388 = vlaneseq
    %v1389 = vshrl.u32 %v1388, 7
    %v1390 = vsub.s32 0, %v1389
    %v1391 = vrot.slane %v709, %v1390
    %v1392 = vlaneseq
    %v1393 = vshrl.u32 %v1392, 7
    %v1394 = vsub.s32 0, %v1393
    %v1395 = vrot.slane %v711, %v1394
    %v1396 = vlaneseq
    %v1397 = vshrl.u32 %v1396, 7
    %v1398 = vsub.s32 0, %v1397
    %v1399 = vrot.slane %v694, %v1398
    %v1400 = vlaneseq
    %v1401 = vshrl.u32 %v1400, 7
    %v1402 = vsub.s32 0, %v1401
    %v1403 = vrot.slane %v708, %v1402
    %v1404 = vlaneseq
    %v1405 = vshrl.u32 %v1404, 7
    %v1406 = vsub.s32 0, %v1405
    %v1407 = vrot.slane %v710, %v1406
    %v1408 = vlaneseq
    %v1409 = vshrl.u32 %v1408, 7
    %v1410 = vsub.s32 0, %v1409
    %v1411 = vrot.slane %v712, %v1410
    %v1412 = vlaneseq
    %v1413 = vshrl.u32 %v1412, 7
    %v1414 = vsub.s32 0, %v1413
    %v1415 = vrot.slane %v736, %v1414
    %v1416 = vlaneseq
    %v1417 = vshrl.u32 %v1416, 7
    %v1418 = vsub.s32 0, %v1417
    %v1419 = vrot.slane %v750, %v1418
    %v1420 = vlaneseq
    %v1421 = vshrl.u32 %v1420, 7
    %v1422 = vsub.s32 0, %v1421
    %v1423 = vrot.slane %v758, %v1422
    %v1424 = vlaneseq
    %v1425 = vshrl.u32 %v1424, 7
    %v1426 = vsub.s32 0, %v1425
    %v1427 = vrot.slane %v760, %v1426
    %v1428 = vlaneseq
    %v1429 = vshrl.u32 %v1428, 7
    %v1430 = vsub.s32 0, %v1429
    %v1431 = vrot.slane %v743, %v1430
    %v1432 = vlaneseq
    %v1433 = vshrl.u32 %v1432, 7
    %v1434 = vsub.s32 0, %v1433
    %v1435 = vrot.slane %v757, %v1434
    %v1436 = vlaneseq
    %v1437 = vshrl.u32 %v1436, 7
    %v1438 = vsub.s32 0, %v1437
    %v1439 = vrot.slane %v759, %v1438
    %v1440 = vlaneseq
    %v1441 = vshrl.u32 %v1440, 7
    %v1442 = vsub.s32 0, %v1441
    %v1443 = vrot.slane %v761, %v1442
    %v1444 = vlaneseq
    %v1445 = vshrl.u32 %v1444, 7
    %v1446 = vsub.s32 0, %v1445
    %v1447 = vrot.slane %v785, %v1446
    %v1448 = vlaneseq
    %v1449 = vshrl.u32 %v1448, 7
    %v1450 = vsub.s32 0, %v1449
    %v1451 = vrot.slane %v799, %v1450
    %v1452 = vlaneseq
    %v1453 = vshrl.u32 %v1452, 7
    %v1454 = vsub.s32 0, %v1453
    %v1455 = vrot.slane %v807, %v1454
    %v1456 = vlaneseq
    %v1457 = vshrl.u32 %v1456, 7
    %v1458 = vsub.s32 0, %v1457
    %v1459 = vrot.slane %v809, %v1458
    %v1460 = vlaneseq
    %v1461 = vshrl.u32 %v1460, 7
    %v1462 = vsub.s32 0, %v1461
    %v1463 = vrot.slane %v792, %v1462
    %v1464 = vlaneseq
    %v1465 = vshrl.u32 %v1464, 7
    %v1466 = vsub.s32 0, %v1465
    %v1467 = vrot.slane %v806, %v1466
    %v1468 = vlaneseq
    %v1469 = vshrl.u32 %v1468, 7
    %v1470 = vsub.s32 0, %v1469
    %v1471 = vrot.slane %v808, %v1470
    %v1472 = vlaneseq
    %v1473 = vshrl.u32 %v1472, 7
    %v1474 = vsub.s32 0, %v1473
    %v1475 = vrot.slane %v810, %v1474
    %v1476 = vlaneseq
    %v1477 = vshrl.u32 %v1476, 7
    %v1478 = vsub.s32 0, %v1477
    %v1479 = vrot.slane %v834, %v1478
    %v1480 = vlaneseq
    %v1481 = vshrl.u32 %v1480, 7
    %v1482 = vsub.s32 0, %v1481
    %v1483 = vrot.slane %v848, %v1482
    %v1484 = vlaneseq
    %v1485 = vshrl.u32 %v1484, 7
    %v1486 = vsub.s32 0, %v1485
    %v1487 = vrot.slane %v856, %v1486
    %v1488 = vlaneseq
    %v1489 = vshrl.u32 %v1488, 7
    %v1490 = vsub.s32 0, %v1489
    %v1491 = vrot.slane %v858, %v1490
    %v1492 = vlaneseq
    %v1493 = vshrl.u32 %v1492, 7
    %v1494 = vsub.s32 0, %v1493
    %v1495 = vrot.slane %v841, %v1494
    %v1496 = vlaneseq
    %v1497 = vshrl.u32 %v1496, 7
    %v1498 = vsub.s32 0, %v1497
    %v1499 = vrot.slane %v855, %v1498
    %v1500 = vlaneseq
    %v1501 = vshrl.u32 %v1500, 7
    %v1502 = vsub.s32 0, %v1501
    %v1503 = vrot.slane %v857, %v1502
    %v1504 = vlaneseq
    %v1505 = vshrl.u32 %v1504, 7
    %v1506 = vsub.s32 0, %v1505
    %v1507 = vrot.slane %v859, %v1506
    %v1508 = vlaneseq
    %v1509 = vshrl.u32 %v1508, 7
    %v1510 = vsub.s32 0, %v1509
    %v1511 = vrot.slane %v883, %v1510
    %v1512 = vlaneseq
    %v1513 = vshrl.u32 %v1512, 7
    %v1514 = vsub.s32 0, %v1513
    %v1515 = vrot.slane %v897, %v1514
    %v1516 = vlaneseq
    %v1517 = vshrl.u32 %v1516, 7
    %v1518 = vsub.s32 0, %v1517
    %v1519 = vrot.slane %v905, %v1518
    %v1520 = vlaneseq
    %v1521 = vshrl.u32 %v1520, 7
    %v1522 = vsub.s32 0, %v1521
    %v1523 = vrot.slane %v907, %v1522
    %v1524 = vlaneseq
    %v1525 = vshrl.u32 %v1524, 7
    %v1526 = vsub.s32 0, %v1525
    %v1527 = vrot.slane %v890, %v1526
    %v1528 = vlaneseq
    %v1529 = vshrl.u32 %v1528, 7
    %v1530 = vsub.s32 0, %v1529
    %v1531 = vrot.slane %v904, %v1530
    %v1532 = vlaneseq
    %v1533 = vshrl.u32 %v1532, 7
    %v1534 = vsub.s32 0, %v1533
    %v1535 = vrot.slane %v906, %v1534
    %v1536 = vlaneseq
    %v1537 = vshrl.u32 %v1536, 7
    %v1538 = vsub.s32 0, %v1537
    %v1539 = vrot.slane %v908, %v1538
    %v1540 = vlaneseq
    %v1541 = vshrl.u32 %v1540, 7
    %v1542 = vsub.s32 0, %v1541
    %v1543 = vrot.slane %v932, %v1542
    %v1544 = vlaneseq
    %v1545 = vshrl.u32 %v1544, 7
    %v1546 = vsub.s32 0, %v1545
    %v1547 = vrot.slane %v946, %v1546
    %v1548 = vlaneseq
    %v1549 = vshrl.u32 %v1548, 7
    %v1550 = vsub.s32 0, %v1549
    %v1551 = vrot.slane %v954, %v1550
    %v1552 = vlaneseq
    %v1553 = vshrl.u32 %v1552, 7
    %v1554 = vsub.s32 0, %v1553
    %v1555 = vrot.slane %v956, %v1554
    %v1556 = vlaneseq
    %v1557 = vshrl.u32 %v1556, 7
    %v1558 = vsub.s32 0, %v1557
    %v1559 = vrot.slane %v939, %v1558
    %v1560 = vlaneseq
    %v1561 = vshrl.u32 %v1560, 7
    %v1562 = vsub.s32 0, %v1561
    %v1563 = vrot.slane %v953, %v1562
    %v1564 = vlaneseq
    %v1565 = vshrl.u32 %v1564, 7
    %v1566 = vsub.s32 0, %v1565
    %v1567 = vrot.slane %v955, %v1566
    %v1568 = vlaneseq
    %v1569 = vshrl.u32 %v1568, 7
    %v1570 = vsub.s32 0, %v1569
    %v1571 = vrot.slane %v957, %v1570
    %v1572 = vlaneseq
    %v1573 = vshrl.u32 %v1572, 7
    %v1574 = vsub.s32 0, %v1573
    %v1575 = vrot.slane %v981, %v1574
    %v1576 = vlaneseq
    %v1577 = vshrl.u32 %v1576, 7
    %v1578 = vsub.s32 0, %v1577
    %v1579 = vrot.slane %v995, %v1578
    %v1580 = vlaneseq
    %v1581 = vshrl.u32 %v1580, 7
    %v1582 = vsub.s32 0, %v1581
    %v1583 = vrot.slane %v1003, %v1582
    %v1584 = vlaneseq
    %v1585 = vshrl.u32 %v1584, 7
    %v1586 = vsub.s32 0, %v1585
    %v1587 = vrot.slane %v1005, %v1586
    %v1588 = vlaneseq
    %v1589 = vshrl.u32 %v1588, 7
    %v1590 = vsub.s32 0, %v1589
    %v1591 = vrot.slane %v988, %v1590
    %v1592 = vlaneseq
    %v1593 = vshrl.u32 %v1592, 7
    %v1594 = vsub.s32 0, %v1593
    %v1595 = vrot.slane %v1002, %v1594
    %v1596 = vlaneseq
    %v1597 = vshrl.u32 %v1596, 7
    %v1598 = vsub.s32 0, %v1597
    %v1599 = vrot.slane %v1004, %v1598
    %v1600 = vlaneseq
    %v1601 = vshrl.u32 %v1600, 7
    %v1602 = vsub.s32 0, %v1601
    %v1603 = vrot.slane %v1006, %v1602
    %v1604 = vlaneseq
    %v1605 = vshrl.u32 %v1604, 7
    %v1606 = vsub.s32 0, %v1605
    %v1607 = vrot.slane %v1030, %v1606
    %v1608 = vlaneseq
    %v1609 = vshrl.u32 %v1608, 7
    %v1610 = vsub.s32 0, %v1609
    %v1611 = vrot.slane %v1044, %v1610
    %v1612 = vlaneseq
    %v1613 = vshrl.u32 %v1612, 7
    %v1614 = vsub.s32 0, %v1613
    %v1615 = vrot.slane %v1052, %v1614
    %v1616 = vlaneseq
    %v1617 = vshrl.u32 %v1616, 7
    %v1618 = vsub.s32 0, %v1617
    %v1619 = vrot.slane %v1054, %v1618
    %v1620 = vlaneseq
    %v1621 = vshrl.u32 %v1620, 7
    %v1622 = vsub.s32 0, %v1621
    %v1623 = vrot.slane %v1037, %v1622
    %v1624 = vlaneseq
    %v1625 = vshrl.u32 %v1624, 7
    %v1626 = vsub.s32 0, %v1625
    %v1627 = vrot.slane %v1051, %v1626
    %v1628 = vlaneseq
    %v1629 = vshrl.u32 %v1628, 7
    %v1630 = vsub.s32 0, %v1629
    %v1631 = vrot.slane %v1053, %v1630
    %v1632 = vlaneseq
    %v1633 = vshrl.u32 %v1632, 7
    %v1634 = vsub.s32 0, %v1633
    %v1635 = vrot.slane %v1055, %v1634
    %v1636 = vlaneseq
    %v1637 = vshrl.u32 %v1636, 7
    %v1638 = vsub.s32 0, %v1637
    %v1639 = vrot.slane %v1079, %v1638
    %v1640 = vlaneseq
    %v1641 = vshrl.u32 %v1640, 7
    %v1642 = vsub.s32 0, %v1641
    %v1643 = vrot.slane %v1093, %v1642
    %v1644 = vlaneseq
    %v1645 = vshrl.u32 %v1644, 7
    %v1646 = vsub.s32 0, %v1645
    %v1647 = vrot.slane %v1101, %v1646
    %v1648 = vlaneseq
    %v1649 = vshrl.u32 %v1648, 7
    %v1650 = vsub.s32 0, %v1649
    %v1651 = vrot.slane %v1103, %v1650
    %v1652 = vlaneseq
    %v1653 = vshrl.u32 %v1652, 7
    %v1654 = vsub.s32 0, %v1653
    %v1655 = vrot.slane %v1086, %v1654
    %v1656 = vlaneseq
    %v1657 = vshrl.u32 %v1656, 7
    %v1658 = vsub.s32 0, %v1657
    %v1659 = vrot.slane %v1100, %v1658
    %v1660 = vlaneseq
    %v1661 = vshrl.u32 %v1660, 7
    %v1662 = vsub.s32 0, %v1661
    %v1663 = vrot.slane %v1102, %v1662
    %v1664 = vlaneseq
    %v1665 = vshrl.u32 %v1664, 7
    %v1666 = vsub.s32 0, %v1665
    %v1667 = vrot.slane %v1104, %v1666
    %v1668 = vlaneseq
    %v1669 = vshrl.u32 %v1668, 7
    %v1670 = vsub.s32 0, %v1669
    %v1671 = vrot.slane %v1128, %v1670
    %v1672 = vlaneseq
    %v1673 = vshrl.u32 %v1672, 7
    %v1674 = vsub.s32 0, %v1673
    %v1675 = vrot.slane %v1142, %v1674
    %v1676 = vlaneseq
    %v1677 = vshrl.u32 %v1676, 7
    %v1678 = vsub.s32 0, %v1677
    %v1679 = vrot.slane %v1150, %v1678
    %v1680 = vlaneseq
    %v1681 = vshrl.u32 %v1680, 7
    %v1682 = vsub.s32 0, %v1681
    %v1683 = vrot.slane %v1152, %v1682
    %v1684 = vlaneseq
    %v1685 = vshrl.u32 %v1684, 7
    %v1686 = vsub.s32 0, %v1685
    %v1687 = vrot.slane %v1135, %v1686
    %v1688 = vlaneseq
    %v1689 = vshrl.u32 %v1688, 7
    %v1690 = vsub.s32 0, %v1689
    %v1691 = vrot.slane %v1149, %v1690
    %v1692 = vlaneseq
    %v1693 = vshrl.u32 %v1692, 7
    %v1694 = vsub.s32 0, %v1693
    %v1695 = vrot.slane %v1151, %v1694
    %v1696 = vlaneseq
    %v1697 = vshrl.u32 %v1696, 7
    %v1698 = vsub.s32 0, %v1697
    %v1699 = vrot.slane %v1153, %v1698
    %v1700 = vlaneseq
    %v1701 = vshrl.u32 %v1700, 7
    %v1702 = vsub.s32 0, %v1701
    %v1703 = vrot.slane %v1177, %v1702
    %v1704 = vlaneseq
    %v1705 = vshrl.u32 %v1704, 7
    %v1706 = vsub.s32 0, %v1705
    %v1707 = vrot.slane %v1191, %v1706
    %v1708 = vlaneseq
    %v1709 = vshrl.u32 %v1708, 7
    %v1710 = vsub.s32 0, %v1709
    %v1711 = vrot.slane %v1199, %v1710
    %v1712 = vlaneseq
    %v1713 = vshrl.u32 %v1712, 7
    %v1714 = vsub.s32 0, %v1713
    %v1715 = vrot.slane %v1201, %v1714
    %v1716 = vlaneseq
    %v1717 = vshrl.u32 %v1716, 7
    %v1718 = vsub.s32 0, %v1717
    %v1719 = vrot.slane %v1184, %v1718
    %v1720 = vlaneseq
    %v1721 = vshrl.u32 %v1720, 7
    %v1722 = vsub.s32 0, %v1721
    %v1723 = vrot.slane %v1198, %v1722
    %v1724 = vlaneseq
    %v1725 = vshrl.u32 %v1724, 7
    %v1726 = vsub.s32 0, %v1725
    %v1727 = vrot.slane %v1200, %v1726
    %v1728 = vlaneseq
    %v1729 = vshrl.u32 %v1728, 7
    %v1730 = vsub.s32 0, %v1729
    %v1731 = vrot.slane %v1202, %v1730
    %v1732 = vlaneseq
    %v1733 = vshrl.u32 %v1732, 7
    %v1734 = vsub.s32 0, %v1733
    %v1735 = vrot.slane %v1226, %v1734
    %v1736 = vlaneseq
    %v1737 = vshrl.u32 %v1736, 7
    %v1738 = vsub.s32 0, %v1737
    %v1739 = vrot.slane %v1240, %v1738
    %v1740 = vlaneseq
    %v1741 = vshrl.u32 %v1740, 7
    %v1742 = vsub.s32 0, %v1741
    %v1743 = vrot.slane %v1248, %v1742
    %v1744 = vlaneseq
    %v1745 = vshrl.u32 %v1744, 7
    %v1746 = vsub.s32 0, %v1745
    %v1747 = vrot.slane %v1250, %v1746
    %v1748 = vlaneseq
    %v1749 = vshrl.u32 %v1748, 7
    %v1750 = vsub.s32 0, %v1749
    %v1751 = vrot.slane %v1233, %v1750
    %v1752 = vlaneseq
    %v1753 = vshrl.u32 %v1752, 7
    %v1754 = vsub.s32 0, %v1753
    %v1755 = vrot.slane %v1247, %v1754
    %v1756 = vlaneseq
    %v1757 = vshrl.u32 %v1756, 7
    %v1758 = vsub.s32 0, %v1757
    %v1759 = vrot.slane %v1249, %v1758
    %v1760 = vlaneseq
    %v1761 = vshrl.u32 %v1760, 7
    %v1762 = vsub.s32 0, %v1761
    %v1763 = vrot.slane %v1251, %v1762
    %v1892 = vmul.f32 %v1255, %v413
    %v1893 = vmul.f32 %v1259, %v413
    %v1894 = vmul.f32 %v1263, %v413
    %v1895 = vmul.f32 %v1267, %v413
    %v1896 = vmul.f32 %v1271, %v413
    %v1897 = vmul.f32 %v1275, %v413
    %v1898 = vmul.f32 %v1279, %v413
    %v1899 = vmul.f32 %v1283, %v413
    %v1900 = vmul.f32 %v1287, %v414
    %v1901 = vmul.f32 %v1291, %v414
    %v1902 = vmul.f32 %v1295, %v414
    %v1903 = vmul.f32 %v1299, %v414
    %v1904 = vmul.f32 %v1303, %v414
    %v1905 = vmul.f32 %v1307, %v414
    %v1906 = vmul.f32 %v1311, %v414
    %v1907 = vmul.f32 %v1315, %v414
    %v1908 = vmul.f32 %v1319, %v415
    %v1909 = vmul.f32 %v1323, %v415
    %v1910 = vmul.f32 %v1327, %v415
    %v1911 = vmul.f32 %v1331, %v415
    %v1912 = vmul.f32 %v1335, %v415
    %v1913 = vmul.f32 %v1339, %v415
    %v1914 = vmul.f32 %v1343, %v415
    %v1915 = vmul.f32 %v1347, %v415
    %v1916 = vmul.f32 %v1351, %v416
    %v1917 = vmul.f32 %v1355, %v416
    %v1918 = vmul.f32 %v1359, %v416
    %v1919 = vmul.f32 %v1363, %v416
    %v1920 = vmul.f32 %v1367, %v416
    %v1921 = vmul.f32 %v1371, %v416
    %v1922 = vmul.f32 %v1375, %v416
    %v1923 = vmul.f32 %v1379, %v416
    %v1924 = vmul.f32 %v1383, %v417
    %v1925 = vmul.f32 %v1387, %v417
    %v1926 = vmul.f32 %v1391, %v417
    %v1927 = vmul.f32 %v1395, %v417
    %v1928 = vmul.f32 %v1399, %v417
    %v1929 = vmul.f32 %v1403, %v417
    %v1930 = vmul.f32 %v1407, %v417
    %v1931 = vmul.f32 %v1411, %v417
    %v1932 = vmul.f32 %v1415, %v418
    %v1933 = vmul.f32 %v1419, %v418
    %v1934 = vmul.f32 %v1423, %v418
    %v1935 = vmul.f32 %v1427, %v418
    %v1936 = vmul.f32 %v1431, %v418
    %v1937 = vmul.f32 %v1435, %v418
    %v1938 = vmul.f32 %v1439, %v418
    %v1939 = vmul.f32 %v1443, %v418
    %v1940 = vmul.f32 %v1447, %v419
    %v1941 = vmul.f32 %v1451, %v419
    %v1942 = vmul.f32 %v1455, %v419
    %v1943 = vmul.f32 %v1459, %v419
    %v1944 = vmul.f32 %v1463, %v419
    %v1945 = vmul.f32 %v1467, %v419
    %v1946 = vmul.f32 %v1471, %v419
    %v1947 = vmul.f32 %v1475, %v419
    %v1948 = vmul.f32 %v1479, %v420
    %v1949 = vmul.f32 %v1483, %v420
    %v1950 = vmul.f32 %v1487, %v420
    %v1951 = vmul.f32 %v1491, %v420
    %v1952 = vmul.f32 %v1495, %v420
    %v1953 = vmul.f32 %v1499, %v420
    %v1954 = vmul.f32 %v1503, %v420
    %v1955 = vmul.f32 %v1507, %v420
    %v1956 = vmul.f32 %v1511, %v421
    %v1957 = vmul.f32 %v1515, %v421
    %v1958 = vmul.f32 %v1519, %v421
    %v1959 = vmul.f32 %v1523, %v421
    %v1960 = vmul.f32 %v1527, %v421
    %v1961 = vmul.f32 %v1531, %v421
    %v1962 = vmul.f32 %v1535, %v421
    %v1963 = vmul.f32 %v1539, %v421
    %v1964 = vmul.f32 %v1543, %v422
    %v1965 = vmul.f32 %v1547, %v422
    %v1966 = vmul.f32 %v1551, %v422
    %v1967 = vmul.f32 %v1555, %v422
    %v1968 = vmul.f32 %v1559, %v422
    %v1969 = vmul.f32 %v1563, %v422
    %v1970 = vmul.f32 %v1567, %v422
    %v1971 = vmul.f32 %v1571, %v422
    %v1972 = vmul.f32 %v1575, %v423
    %v1973 = vmul.f32 %v1579, %v423
    %v1974 = vmul.f32 %v1583, %v423
    %v1975 = vmul.f32 %v1587, %v423
    %v1976 = vmul.f32 %v1591, %v423
    %v1977 = vmul.f32 %v1595, %v423
    %v1978 = vmul.f32 %v1599, %v423
    %v1979 = vmul.f32 %v1603, %v423
    %v1980 = vmul.f32 %v1607, %v424
    %v1981 = vmul.f32 %v1611, %v424
    %v1982 = vmul.f32 %v1615, %v424
    %v1983 = vmul.f32 %v1619, %v424
    %v1984 = vmul.f32 %v1623, %v424
    %v1985 = vmul.f32 %v1627, %v424
    %v1986 = vmul.f32 %v1631, %v424
    %v1987 = vmul.f32 %v1635, %v424
    %v1988 = vmul.f32 %v1639, %v425
    %v1989 = vmul.f32 %v1643, %v425
    %v1990 = vmul.f32 %v1647, %v425
    %v1991 = vmul.f32 %v1651, %v425
    %v1992 = vmul.f32 %v1655, %v425
    %v1993 = vmul.f32 %v1659, %v425
    %v1994 = vmul.f32 %v1663, %v425
    %v1995 = vmul.f32 %v1667, %v425
    %v1996 = vmul.f32 %v1671, %v426
    %v1997 = vmul.f32 %v1675, %v426
    %v1998 = vmul.f32 %v1679, %v426
    %v1999 = vmul.f32 %v1683, %v426
    %v2000 = vmul.f32 %v1687, %v426
    %v2001 = vmul.f32 %v1691, %v426
    %v2002 = vmul.f32 %v1695, %v426
    %v2003 = vmul.f32 %v1699, %v426
    %v2004 = vmul.f32 %v1703, %v427
    %v2005 = vmul.f32 %v1707, %v427
    %v2006 = vmul.f32 %v1711, %v427
    %v2007 = vmul.f32 %v1715, %v427
    %v2008 = vmul.f32 %v1719, %v427
    %v2009 = vmul.f32 %v1723, %v427
    %v2010 = vmul.f32 %v1727, %v427
    %v2011 = vmul.f32 %v1731, %v427
    %v2012 = vmul.f32 %v1735, %v428
    %v2013 = vmul.f32 %v1739, %v428
    %v2014 = vmul.f32 %v1743, %v428
    %v2015 = vmul.f32 %v1747, %v428
    %v2016 = vmul.f32 %v1751, %v428
    %v2017 = vmul.f32 %v1755, %v428
    %v2018 = vmul.f32 %v1759, %v428
    %v2019 = vmul.f32 %v1763, %v428
    %v2020 = vsel %vm148, %v1892, 0.0
    %2021 = vadd.xlane.f32.xlu0 %v2020
    %v2022 = vpop.xlane.xlu0 %2021
    %v2023 = vsel %vm148, %v1893, 0.0
    %2024 = vadd.xlane.f32.xlu0 %v2023
    %v2025 = vpop.xlane.xlu0 %2024
    %v2026 = vsel %vm148, %v1894, 0.0
    %2027 = vadd.xlane.f32.xlu0 %v2026
    %v2028 = vpop.xlane.xlu0 %2027
    %v2029 = vsel %vm148, %v1895, 0.0
    %2030 = vadd.xlane.f32.xlu0 %v2029
    %v2031 = vpop.xlane.xlu0 %2030
    %v2032 = vsel %vm148, %v1896, 0.0
    %2033 = vadd.xlane.f32.xlu0 %v2032
    %v2034 = vpop.xlane.xlu0 %2033
    %v2035 = vsel %vm148, %v1897, 0.0
    %2036 = vadd.xlane.f32.xlu0 %v2035
    %v2037 = vpop.xlane.xlu0 %2036
    %v2038 = vsel %vm148, %v1898, 0.0
    %2039 = vadd.xlane.f32.xlu0 %v2038
    %v2040 = vpop.xlane.xlu0 %2039
    %v2041 = vsel %vm148, %v1899, 0.0
    %2042 = vadd.xlane.f32.xlu0 %v2041
    %v2043 = vpop.xlane.xlu0 %2042
    %v2044 = vsel %vm148, %v1900, 0.0
    %2045 = vadd.xlane.f32.xlu0 %v2044
    %v2046 = vpop.xlane.xlu0 %2045
    %v2047 = vsel %vm148, %v1901, 0.0
    %2048 = vadd.xlane.f32.xlu0 %v2047
    %v2049 = vpop.xlane.xlu0 %2048
    %v2050 = vsel %vm148, %v1902, 0.0
    %2051 = vadd.xlane.f32.xlu0 %v2050
    %v2052 = vpop.xlane.xlu0 %2051
    %v2053 = vsel %vm148, %v1903, 0.0
    %2054 = vadd.xlane.f32.xlu0 %v2053
    %v2055 = vpop.xlane.xlu0 %2054
    %v2056 = vsel %vm148, %v1904, 0.0
    %2057 = vadd.xlane.f32.xlu0 %v2056
    %v2058 = vpop.xlane.xlu0 %2057
    %v2059 = vsel %vm148, %v1905, 0.0
    %2060 = vadd.xlane.f32.xlu0 %v2059
    %v2061 = vpop.xlane.xlu0 %2060
    %v2062 = vsel %vm148, %v1906, 0.0
    %2063 = vadd.xlane.f32.xlu0 %v2062
    %v2064 = vpop.xlane.xlu0 %2063
    %v2065 = vsel %vm148, %v1907, 0.0
    %2066 = vadd.xlane.f32.xlu0 %v2065
    %v2067 = vpop.xlane.xlu0 %2066
    %v2068 = vsel %vm148, %v1908, 0.0
    %2069 = vadd.xlane.f32.xlu0 %v2068
    %v2070 = vpop.xlane.xlu0 %2069
    %v2071 = vsel %vm148, %v1909, 0.0
    %2072 = vadd.xlane.f32.xlu0 %v2071
    %v2073 = vpop.xlane.xlu0 %2072
    %v2074 = vsel %vm148, %v1910, 0.0
    %2075 = vadd.xlane.f32.xlu0 %v2074
    %v2076 = vpop.xlane.xlu0 %2075
    %v2077 = vsel %vm148, %v1911, 0.0
    %2078 = vadd.xlane.f32.xlu0 %v2077
    %v2079 = vpop.xlane.xlu0 %2078
    %v2080 = vsel %vm148, %v1912, 0.0
    %2081 = vadd.xlane.f32.xlu0 %v2080
    %v2082 = vpop.xlane.xlu0 %2081
    %v2083 = vsel %vm148, %v1913, 0.0
    %2084 = vadd.xlane.f32.xlu0 %v2083
    %v2085 = vpop.xlane.xlu0 %2084
    %v2086 = vsel %vm148, %v1914, 0.0
    %2087 = vadd.xlane.f32.xlu0 %v2086
    %v2088 = vpop.xlane.xlu0 %2087
    %v2089 = vsel %vm148, %v1915, 0.0
    %2090 = vadd.xlane.f32.xlu0 %v2089
    %v2091 = vpop.xlane.xlu0 %2090
    %v2092 = vsel %vm148, %v1916, 0.0
    %2093 = vadd.xlane.f32.xlu0 %v2092
    %v2094 = vpop.xlane.xlu0 %2093
    %v2095 = vsel %vm148, %v1917, 0.0
    %2096 = vadd.xlane.f32.xlu0 %v2095
    %v2097 = vpop.xlane.xlu0 %2096
    %v2098 = vsel %vm148, %v1918, 0.0
    %2099 = vadd.xlane.f32.xlu0 %v2098
    %v2100 = vpop.xlane.xlu0 %2099
    %v2101 = vsel %vm148, %v1919, 0.0
    %2102 = vadd.xlane.f32.xlu0 %v2101
    %v2103 = vpop.xlane.xlu0 %2102
    %v2104 = vsel %vm148, %v1920, 0.0
    %2105 = vadd.xlane.f32.xlu0 %v2104
    %v2106 = vpop.xlane.xlu0 %2105
    %v2107 = vsel %vm148, %v1921, 0.0
    %2108 = vadd.xlane.f32.xlu0 %v2107
    %v2109 = vpop.xlane.xlu0 %2108
    %v2110 = vsel %vm148, %v1922, 0.0
    %2111 = vadd.xlane.f32.xlu0 %v2110
    %v2112 = vpop.xlane.xlu0 %2111
    %v2113 = vsel %vm148, %v1923, 0.0
    %2114 = vadd.xlane.f32.xlu0 %v2113
    %v2115 = vpop.xlane.xlu0 %2114
    %v2116 = vsel %vm148, %v1924, 0.0
    %2117 = vadd.xlane.f32.xlu0 %v2116
    %v2118 = vpop.xlane.xlu0 %2117
    %v2119 = vsel %vm148, %v1925, 0.0
    %2120 = vadd.xlane.f32.xlu0 %v2119
    %v2121 = vpop.xlane.xlu0 %2120
    %v2122 = vsel %vm148, %v1926, 0.0
    %2123 = vadd.xlane.f32.xlu0 %v2122
    %v2124 = vpop.xlane.xlu0 %2123
    %v2125 = vsel %vm148, %v1927, 0.0
    %2126 = vadd.xlane.f32.xlu0 %v2125
    %v2127 = vpop.xlane.xlu0 %2126
    %v2128 = vsel %vm148, %v1928, 0.0
    %2129 = vadd.xlane.f32.xlu0 %v2128
    %v2130 = vpop.xlane.xlu0 %2129
    %v2131 = vsel %vm148, %v1929, 0.0
    %2132 = vadd.xlane.f32.xlu0 %v2131
    %v2133 = vpop.xlane.xlu0 %2132
    %v2134 = vsel %vm148, %v1930, 0.0
    %2135 = vadd.xlane.f32.xlu0 %v2134
    %v2136 = vpop.xlane.xlu0 %2135
    %v2137 = vsel %vm148, %v1931, 0.0
    %2138 = vadd.xlane.f32.xlu0 %v2137
    %v2139 = vpop.xlane.xlu0 %2138
    %v2140 = vsel %vm148, %v1932, 0.0
    %2141 = vadd.xlane.f32.xlu0 %v2140
    %v2142 = vpop.xlane.xlu0 %2141
    %v2143 = vsel %vm148, %v1933, 0.0
    %2144 = vadd.xlane.f32.xlu0 %v2143
    %v2145 = vpop.xlane.xlu0 %2144
    %v2146 = vsel %vm148, %v1934, 0.0
    %2147 = vadd.xlane.f32.xlu0 %v2146
    %v2148 = vpop.xlane.xlu0 %2147
    %v2149 = vsel %vm148, %v1935, 0.0
    %2150 = vadd.xlane.f32.xlu0 %v2149
    %v2151 = vpop.xlane.xlu0 %2150
    %v2152 = vsel %vm148, %v1936, 0.0
    %2153 = vadd.xlane.f32.xlu0 %v2152
    %v2154 = vpop.xlane.xlu0 %2153
    %v2155 = vsel %vm148, %v1937, 0.0
    %2156 = vadd.xlane.f32.xlu0 %v2155
    %v2157 = vpop.xlane.xlu0 %2156
    %v2158 = vsel %vm148, %v1938, 0.0
    %2159 = vadd.xlane.f32.xlu0 %v2158
    %v2160 = vpop.xlane.xlu0 %2159
    %v2161 = vsel %vm148, %v1939, 0.0
    %2162 = vadd.xlane.f32.xlu0 %v2161
    %v2163 = vpop.xlane.xlu0 %2162
    %v2164 = vsel %vm148, %v1940, 0.0
    %2165 = vadd.xlane.f32.xlu0 %v2164
    %v2166 = vpop.xlane.xlu0 %2165
    %v2167 = vsel %vm148, %v1941, 0.0
    %2168 = vadd.xlane.f32.xlu0 %v2167
    %v2169 = vpop.xlane.xlu0 %2168
    %v2170 = vsel %vm148, %v1942, 0.0
    %2171 = vadd.xlane.f32.xlu0 %v2170
    %v2172 = vpop.xlane.xlu0 %2171
    %v2173 = vsel %vm148, %v1943, 0.0
    %2174 = vadd.xlane.f32.xlu0 %v2173
    %v2175 = vpop.xlane.xlu0 %2174
    %v2176 = vsel %vm148, %v1944, 0.0
    %2177 = vadd.xlane.f32.xlu0 %v2176
    %v2178 = vpop.xlane.xlu0 %2177
    %v2179 = vsel %vm148, %v1945, 0.0
    %2180 = vadd.xlane.f32.xlu0 %v2179
    %v2181 = vpop.xlane.xlu0 %2180
    %v2182 = vsel %vm148, %v1946, 0.0
    %2183 = vadd.xlane.f32.xlu0 %v2182
    %v2184 = vpop.xlane.xlu0 %2183
    %v2185 = vsel %vm148, %v1947, 0.0
    %2186 = vadd.xlane.f32.xlu0 %v2185
    %v2187 = vpop.xlane.xlu0 %2186
    %v2188 = vsel %vm148, %v1948, 0.0
    %2189 = vadd.xlane.f32.xlu0 %v2188
    %v2190 = vpop.xlane.xlu0 %2189
    %v2191 = vsel %vm148, %v1949, 0.0
    %2192 = vadd.xlane.f32.xlu0 %v2191
    %v2193 = vpop.xlane.xlu0 %2192
    %v2194 = vsel %vm148, %v1950, 0.0
    %2195 = vadd.xlane.f32.xlu0 %v2194
    %v2196 = vpop.xlane.xlu0 %2195
    %v2197 = vsel %vm148, %v1951, 0.0
    %2198 = vadd.xlane.f32.xlu0 %v2197
    %v2199 = vpop.xlane.xlu0 %2198
    %v2200 = vsel %vm148, %v1952, 0.0
    %2201 = vadd.xlane.f32.xlu0 %v2200
    %v2202 = vpop.xlane.xlu0 %2201
    %v2203 = vsel %vm148, %v1953, 0.0
    %2204 = vadd.xlane.f32.xlu0 %v2203
    %v2205 = vpop.xlane.xlu0 %2204
    %v2206 = vsel %vm148, %v1954, 0.0
    %2207 = vadd.xlane.f32.xlu0 %v2206
    %v2208 = vpop.xlane.xlu0 %2207
    %v2209 = vsel %vm148, %v1955, 0.0
    %2210 = vadd.xlane.f32.xlu0 %v2209
    %v2211 = vpop.xlane.xlu0 %2210
    %v2212 = vsel %vm148, %v1956, 0.0
    %2213 = vadd.xlane.f32.xlu0 %v2212
    %v2214 = vpop.xlane.xlu0 %2213
    %v2215 = vsel %vm148, %v1957, 0.0
    %2216 = vadd.xlane.f32.xlu0 %v2215
    %v2217 = vpop.xlane.xlu0 %2216
    %v2218 = vsel %vm148, %v1958, 0.0
    %2219 = vadd.xlane.f32.xlu0 %v2218
    %v2220 = vpop.xlane.xlu0 %2219
    %v2221 = vsel %vm148, %v1959, 0.0
    %2222 = vadd.xlane.f32.xlu0 %v2221
    %v2223 = vpop.xlane.xlu0 %2222
    %v2224 = vsel %vm148, %v1960, 0.0
    %2225 = vadd.xlane.f32.xlu0 %v2224
    %v2226 = vpop.xlane.xlu0 %2225
    %v2227 = vsel %vm148, %v1961, 0.0
    %2228 = vadd.xlane.f32.xlu0 %v2227
    %v2229 = vpop.xlane.xlu0 %2228
    %v2230 = vsel %vm148, %v1962, 0.0
    %2231 = vadd.xlane.f32.xlu0 %v2230
    %v2232 = vpop.xlane.xlu0 %2231
    %v2233 = vsel %vm148, %v1963, 0.0
    %2234 = vadd.xlane.f32.xlu0 %v2233
    %v2235 = vpop.xlane.xlu0 %2234
    %v2236 = vsel %vm148, %v1964, 0.0
    %2237 = vadd.xlane.f32.xlu0 %v2236
    %v2238 = vpop.xlane.xlu0 %2237
    %v2239 = vsel %vm148, %v1965, 0.0
    %2240 = vadd.xlane.f32.xlu0 %v2239
    %v2241 = vpop.xlane.xlu0 %2240
    %v2242 = vsel %vm148, %v1966, 0.0
    %2243 = vadd.xlane.f32.xlu0 %v2242
    %v2244 = vpop.xlane.xlu0 %2243
    %v2245 = vsel %vm148, %v1967, 0.0
    %2246 = vadd.xlane.f32.xlu0 %v2245
    %v2247 = vpop.xlane.xlu0 %2246
    %v2248 = vsel %vm148, %v1968, 0.0
    %2249 = vadd.xlane.f32.xlu0 %v2248
    %v2250 = vpop.xlane.xlu0 %2249
    %v2251 = vsel %vm148, %v1969, 0.0
    %2252 = vadd.xlane.f32.xlu0 %v2251
    %v2253 = vpop.xlane.xlu0 %2252
    %v2254 = vsel %vm148, %v1970, 0.0
    %2255 = vadd.xlane.f32.xlu0 %v2254
    %v2256 = vpop.xlane.xlu0 %2255
    %v2257 = vsel %vm148, %v1971, 0.0
    %2258 = vadd.xlane.f32.xlu0 %v2257
    %v2259 = vpop.xlane.xlu0 %2258
    %v2260 = vsel %vm148, %v1972, 0.0
    %2261 = vadd.xlane.f32.xlu0 %v2260
    %v2262 = vpop.xlane.xlu0 %2261
    %v2263 = vsel %vm148, %v1973, 0.0
    %2264 = vadd.xlane.f32.xlu0 %v2263
    %v2265 = vpop.xlane.xlu0 %2264
    %v2266 = vsel %vm148, %v1974, 0.0
    %2267 = vadd.xlane.f32.xlu0 %v2266
    %v2268 = vpop.xlane.xlu0 %2267
    %v2269 = vsel %vm148, %v1975, 0.0
    %2270 = vadd.xlane.f32.xlu0 %v2269
    %v2271 = vpop.xlane.xlu0 %2270
    %v2272 = vsel %vm148, %v1976, 0.0
    %2273 = vadd.xlane.f32.xlu0 %v2272
    %v2274 = vpop.xlane.xlu0 %2273
    %v2275 = vsel %vm148, %v1977, 0.0
    %2276 = vadd.xlane.f32.xlu0 %v2275
    %v2277 = vpop.xlane.xlu0 %2276
    %v2278 = vsel %vm148, %v1978, 0.0
    %2279 = vadd.xlane.f32.xlu0 %v2278
    %v2280 = vpop.xlane.xlu0 %2279
    %v2281 = vsel %vm148, %v1979, 0.0
    %2282 = vadd.xlane.f32.xlu0 %v2281
    %v2283 = vpop.xlane.xlu0 %2282
    %v2284 = vsel %vm148, %v1980, 0.0
    %2285 = vadd.xlane.f32.xlu0 %v2284
    %v2286 = vpop.xlane.xlu0 %2285
    %v2287 = vsel %vm148, %v1981, 0.0
    %2288 = vadd.xlane.f32.xlu0 %v2287
    %v2289 = vpop.xlane.xlu0 %2288
    %v2290 = vsel %vm148, %v1982, 0.0
    %2291 = vadd.xlane.f32.xlu0 %v2290
    %v2292 = vpop.xlane.xlu0 %2291
    %v2293 = vsel %vm148, %v1983, 0.0
    %2294 = vadd.xlane.f32.xlu0 %v2293
    %v2295 = vpop.xlane.xlu0 %2294
    %v2296 = vsel %vm148, %v1984, 0.0
    %2297 = vadd.xlane.f32.xlu0 %v2296
    %v2298 = vpop.xlane.xlu0 %2297
    %v2299 = vsel %vm148, %v1985, 0.0
    %2300 = vadd.xlane.f32.xlu0 %v2299
    %v2301 = vpop.xlane.xlu0 %2300
    %v2302 = vsel %vm148, %v1986, 0.0
    %2303 = vadd.xlane.f32.xlu0 %v2302
    %v2304 = vpop.xlane.xlu0 %2303
    %v2305 = vsel %vm148, %v1987, 0.0
    %2306 = vadd.xlane.f32.xlu0 %v2305
    %v2307 = vpop.xlane.xlu0 %2306
    %v2308 = vsel %vm148, %v1988, 0.0
    %2309 = vadd.xlane.f32.xlu0 %v2308
    %v2310 = vpop.xlane.xlu0 %2309
    %v2311 = vsel %vm148, %v1989, 0.0
    %2312 = vadd.xlane.f32.xlu0 %v2311
    %v2313 = vpop.xlane.xlu0 %2312
    %v2314 = vsel %vm148, %v1990, 0.0
    %2315 = vadd.xlane.f32.xlu0 %v2314
    %v2316 = vpop.xlane.xlu0 %2315
    %v2317 = vsel %vm148, %v1991, 0.0
    %2318 = vadd.xlane.f32.xlu0 %v2317
    %v2319 = vpop.xlane.xlu0 %2318
    %v2320 = vsel %vm148, %v1992, 0.0
    %2321 = vadd.xlane.f32.xlu0 %v2320
    %v2322 = vpop.xlane.xlu0 %2321
    %v2323 = vsel %vm148, %v1993, 0.0
    %2324 = vadd.xlane.f32.xlu0 %v2323
    %v2325 = vpop.xlane.xlu0 %2324
    %v2326 = vsel %vm148, %v1994, 0.0
    %2327 = vadd.xlane.f32.xlu0 %v2326
    %v2328 = vpop.xlane.xlu0 %2327
    %v2329 = vsel %vm148, %v1995, 0.0
    %2330 = vadd.xlane.f32.xlu0 %v2329
    %v2331 = vpop.xlane.xlu0 %2330
    %v2332 = vsel %vm148, %v1996, 0.0
    %2333 = vadd.xlane.f32.xlu0 %v2332
    %v2334 = vpop.xlane.xlu0 %2333
    %v2335 = vsel %vm148, %v1997, 0.0
    %2336 = vadd.xlane.f32.xlu0 %v2335
    %v2337 = vpop.xlane.xlu0 %2336
    %v2338 = vsel %vm148, %v1998, 0.0
    %2339 = vadd.xlane.f32.xlu0 %v2338
    %v2340 = vpop.xlane.xlu0 %2339
    %v2341 = vsel %vm148, %v1999, 0.0
    %2342 = vadd.xlane.f32.xlu0 %v2341
    %v2343 = vpop.xlane.xlu0 %2342
    %v2344 = vsel %vm148, %v2000, 0.0
    %2345 = vadd.xlane.f32.xlu0 %v2344
    %v2346 = vpop.xlane.xlu0 %2345
    %v2347 = vsel %vm148, %v2001, 0.0
    %2348 = vadd.xlane.f32.xlu0 %v2347
    %v2349 = vpop.xlane.xlu0 %2348
    %v2350 = vsel %vm148, %v2002, 0.0
    %2351 = vadd.xlane.f32.xlu0 %v2350
    %v2352 = vpop.xlane.xlu0 %2351
    %v2353 = vsel %vm148, %v2003, 0.0
    %2354 = vadd.xlane.f32.xlu0 %v2353
    %v2355 = vpop.xlane.xlu0 %2354
    %v2356 = vsel %vm148, %v2004, 0.0
    %2357 = vadd.xlane.f32.xlu0 %v2356
    %v2358 = vpop.xlane.xlu0 %2357
    %v2359 = vsel %vm148, %v2005, 0.0
    %2360 = vadd.xlane.f32.xlu0 %v2359
    %v2361 = vpop.xlane.xlu0 %2360
    %v2362 = vsel %vm148, %v2006, 0.0
    %2363 = vadd.xlane.f32.xlu0 %v2362
    %v2364 = vpop.xlane.xlu0 %2363
    %v2365 = vsel %vm148, %v2007, 0.0
    %2366 = vadd.xlane.f32.xlu0 %v2365
    %v2367 = vpop.xlane.xlu0 %2366
    %v2368 = vsel %vm148, %v2008, 0.0
    %2369 = vadd.xlane.f32.xlu0 %v2368
    %v2370 = vpop.xlane.xlu0 %2369
    %v2371 = vsel %vm148, %v2009, 0.0
    %2372 = vadd.xlane.f32.xlu0 %v2371
    %v2373 = vpop.xlane.xlu0 %2372
    %v2374 = vsel %vm148, %v2010, 0.0
    %2375 = vadd.xlane.f32.xlu0 %v2374
    %v2376 = vpop.xlane.xlu0 %2375
    %v2377 = vsel %vm148, %v2011, 0.0
    %2378 = vadd.xlane.f32.xlu0 %v2377
    %v2379 = vpop.xlane.xlu0 %2378
    %v2380 = vsel %vm148, %v2012, 0.0
    %2381 = vadd.xlane.f32.xlu0 %v2380
    %v2382 = vpop.xlane.xlu0 %2381
    %v2383 = vsel %vm148, %v2013, 0.0
    %2384 = vadd.xlane.f32.xlu0 %v2383
    %v2385 = vpop.xlane.xlu0 %2384
    %v2386 = vsel %vm148, %v2014, 0.0
    %2387 = vadd.xlane.f32.xlu0 %v2386
    %v2388 = vpop.xlane.xlu0 %2387
    %v2389 = vsel %vm148, %v2015, 0.0
    %2390 = vadd.xlane.f32.xlu0 %v2389
    %v2391 = vpop.xlane.xlu0 %2390
    %v2392 = vsel %vm148, %v2016, 0.0
    %2393 = vadd.xlane.f32.xlu0 %v2392
    %v2394 = vpop.xlane.xlu0 %2393
    %v2395 = vsel %vm148, %v2017, 0.0
    %2396 = vadd.xlane.f32.xlu0 %v2395
    %v2397 = vpop.xlane.xlu0 %2396
    %v2398 = vsel %vm148, %v2018, 0.0
    %2399 = vadd.xlane.f32.xlu0 %v2398
    %v2400 = vpop.xlane.xlu0 %2399
    %v2401 = vsel %vm148, %v2019, 0.0
    %2402 = vadd.xlane.f32.xlu0 %v2401
    %v2403 = vpop.xlane.xlu0 %2402
    %v2532 = vlaneseq
    %v2533 = vand.u32 %v2532, 127
    %v2534 = vlaneseq
    %v2535 = vshrl.u32 %v2534, 7
    %v2536 = vsub.s32 %v2533, %v2535
    %v2537 = vrot.slane %v2022, %v2536
    %v2538 = vlaneseq
    %v2539 = vshrl.u32 %v2538, 7
    %v2540 = vsub.s32 %v2533, %v2539
    %v2541 = vrot.slane %v2025, %v2540
    %v2542 = vlaneseq
    %v2543 = vshrl.u32 %v2542, 7
    %v2544 = vsub.s32 %v2533, %v2543
    %v2545 = vrot.slane %v2028, %v2544
    %v2546 = vlaneseq
    %v2547 = vshrl.u32 %v2546, 7
    %v2548 = vsub.s32 %v2533, %v2547
    %v2549 = vrot.slane %v2031, %v2548
    %v2550 = vlaneseq
    %v2551 = vshrl.u32 %v2550, 7
    %v2552 = vsub.s32 %v2533, %v2551
    %v2553 = vrot.slane %v2034, %v2552
    %v2554 = vlaneseq
    %v2555 = vshrl.u32 %v2554, 7
    %v2556 = vsub.s32 %v2533, %v2555
    %v2557 = vrot.slane %v2037, %v2556
    %v2558 = vlaneseq
    %v2559 = vshrl.u32 %v2558, 7
    %v2560 = vsub.s32 %v2533, %v2559
    %v2561 = vrot.slane %v2040, %v2560
    %v2562 = vlaneseq
    %v2563 = vshrl.u32 %v2562, 7
    %v2564 = vsub.s32 %v2533, %v2563
    %v2565 = vrot.slane %v2043, %v2564
    %v2566 = vlaneseq
    %v2567 = vshrl.u32 %v2566, 7
    %v2568 = vsub.s32 %v2533, %v2567
    %v2569 = vrot.slane %v2046, %v2568
    %v2570 = vlaneseq
    %v2571 = vshrl.u32 %v2570, 7
    %v2572 = vsub.s32 %v2533, %v2571
    %v2573 = vrot.slane %v2049, %v2572
    %v2574 = vlaneseq
    %v2575 = vshrl.u32 %v2574, 7
    %v2576 = vsub.s32 %v2533, %v2575
    %v2577 = vrot.slane %v2052, %v2576
    %v2578 = vlaneseq
    %v2579 = vshrl.u32 %v2578, 7
    %v2580 = vsub.s32 %v2533, %v2579
    %v2581 = vrot.slane %v2055, %v2580
    %v2582 = vlaneseq
    %v2583 = vshrl.u32 %v2582, 7
    %v2584 = vsub.s32 %v2533, %v2583
    %v2585 = vrot.slane %v2058, %v2584
    %v2586 = vlaneseq
    %v2587 = vshrl.u32 %v2586, 7
    %v2588 = vsub.s32 %v2533, %v2587
    %v2589 = vrot.slane %v2061, %v2588
    %v2590 = vlaneseq
    %v2591 = vshrl.u32 %v2590, 7
    %v2592 = vsub.s32 %v2533, %v2591
    %v2593 = vrot.slane %v2064, %v2592
    %v2594 = vlaneseq
    %v2595 = vshrl.u32 %v2594, 7
    %v2596 = vsub.s32 %v2533, %v2595
    %v2597 = vrot.slane %v2067, %v2596
    %v2598 = vlaneseq
    %v2599 = vshrl.u32 %v2598, 7
    %v2600 = vsub.s32 %v2533, %v2599
    %v2601 = vrot.slane %v2070, %v2600
    %v2602 = vlaneseq
    %v2603 = vshrl.u32 %v2602, 7
    %v2604 = vsub.s32 %v2533, %v2603
    %v2605 = vrot.slane %v2073, %v2604
    %v2606 = vlaneseq
    %v2607 = vshrl.u32 %v2606, 7
    %v2608 = vsub.s32 %v2533, %v2607
    %v2609 = vrot.slane %v2076, %v2608
    %v2610 = vlaneseq
    %v2611 = vshrl.u32 %v2610, 7
    %v2612 = vsub.s32 %v2533, %v2611
    %v2613 = vrot.slane %v2079, %v2612
    %v2614 = vlaneseq
    %v2615 = vshrl.u32 %v2614, 7
    %v2616 = vsub.s32 %v2533, %v2615
    %v2617 = vrot.slane %v2082, %v2616
    %v2618 = vlaneseq
    %v2619 = vshrl.u32 %v2618, 7
    %v2620 = vsub.s32 %v2533, %v2619
    %v2621 = vrot.slane %v2085, %v2620
    %v2622 = vlaneseq
    %v2623 = vshrl.u32 %v2622, 7
    %v2624 = vsub.s32 %v2533, %v2623
    %v2625 = vrot.slane %v2088, %v2624
    %v2626 = vlaneseq
    %v2627 = vshrl.u32 %v2626, 7
    %v2628 = vsub.s32 %v2533, %v2627
    %v2629 = vrot.slane %v2091, %v2628
    %v2630 = vlaneseq
    %v2631 = vshrl.u32 %v2630, 7
    %v2632 = vsub.s32 %v2533, %v2631
    %v2633 = vrot.slane %v2094, %v2632
    %v2634 = vlaneseq
    %v2635 = vshrl.u32 %v2634, 7
    %v2636 = vsub.s32 %v2533, %v2635
    %v2637 = vrot.slane %v2097, %v2636
    %v2638 = vlaneseq
    %v2639 = vshrl.u32 %v2638, 7
    %v2640 = vsub.s32 %v2533, %v2639
    %v2641 = vrot.slane %v2100, %v2640
    %v2642 = vlaneseq
    %v2643 = vshrl.u32 %v2642, 7
    %v2644 = vsub.s32 %v2533, %v2643
    %v2645 = vrot.slane %v2103, %v2644
    %v2646 = vlaneseq
    %v2647 = vshrl.u32 %v2646, 7
    %v2648 = vsub.s32 %v2533, %v2647
    %v2649 = vrot.slane %v2106, %v2648
    %v2650 = vlaneseq
    %v2651 = vshrl.u32 %v2650, 7
    %v2652 = vsub.s32 %v2533, %v2651
    %v2653 = vrot.slane %v2109, %v2652
    %v2654 = vlaneseq
    %v2655 = vshrl.u32 %v2654, 7
    %v2656 = vsub.s32 %v2533, %v2655
    %v2657 = vrot.slane %v2112, %v2656
    %v2658 = vlaneseq
    %v2659 = vshrl.u32 %v2658, 7
    %v2660 = vsub.s32 %v2533, %v2659
    %v2661 = vrot.slane %v2115, %v2660
    %v2662 = vlaneseq
    %v2663 = vshrl.u32 %v2662, 7
    %v2664 = vsub.s32 %v2533, %v2663
    %v2665 = vrot.slane %v2118, %v2664
    %v2666 = vlaneseq
    %v2667 = vshrl.u32 %v2666, 7
    %v2668 = vsub.s32 %v2533, %v2667
    %v2669 = vrot.slane %v2121, %v2668
    %v2670 = vlaneseq
    %v2671 = vshrl.u32 %v2670, 7
    %v2672 = vsub.s32 %v2533, %v2671
    %v2673 = vrot.slane %v2124, %v2672
    %v2674 = vlaneseq
    %v2675 = vshrl.u32 %v2674, 7
    %v2676 = vsub.s32 %v2533, %v2675
    %v2677 = vrot.slane %v2127, %v2676
    %v2678 = vlaneseq
    %v2679 = vshrl.u32 %v2678, 7
    %v2680 = vsub.s32 %v2533, %v2679
    %v2681 = vrot.slane %v2130, %v2680
    %v2682 = vlaneseq
    %v2683 = vshrl.u32 %v2682, 7
    %v2684 = vsub.s32 %v2533, %v2683
    %v2685 = vrot.slane %v2133, %v2684
    %v2686 = vlaneseq
    %v2687 = vshrl.u32 %v2686, 7
    %v2688 = vsub.s32 %v2533, %v2687
    %v2689 = vrot.slane %v2136, %v2688
    %v2690 = vlaneseq
    %v2691 = vshrl.u32 %v2690, 7
    %v2692 = vsub.s32 %v2533, %v2691
    %v2693 = vrot.slane %v2139, %v2692
    %v2694 = vlaneseq
    %v2695 = vshrl.u32 %v2694, 7
    %v2696 = vsub.s32 %v2533, %v2695
    %v2697 = vrot.slane %v2142, %v2696
    %v2698 = vlaneseq
    %v2699 = vshrl.u32 %v2698, 7
    %v2700 = vsub.s32 %v2533, %v2699
    %v2701 = vrot.slane %v2145, %v2700
    %v2702 = vlaneseq
    %v2703 = vshrl.u32 %v2702, 7
    %v2704 = vsub.s32 %v2533, %v2703
    %v2705 = vrot.slane %v2148, %v2704
    %v2706 = vlaneseq
    %v2707 = vshrl.u32 %v2706, 7
    %v2708 = vsub.s32 %v2533, %v2707
    %v2709 = vrot.slane %v2151, %v2708
    %v2710 = vlaneseq
    %v2711 = vshrl.u32 %v2710, 7
    %v2712 = vsub.s32 %v2533, %v2711
    %v2713 = vrot.slane %v2154, %v2712
    %v2714 = vlaneseq
    %v2715 = vshrl.u32 %v2714, 7
    %v2716 = vsub.s32 %v2533, %v2715
    %v2717 = vrot.slane %v2157, %v2716
    %v2718 = vlaneseq
    %v2719 = vshrl.u32 %v2718, 7
    %v2720 = vsub.s32 %v2533, %v2719
    %v2721 = vrot.slane %v2160, %v2720
    %v2722 = vlaneseq
    %v2723 = vshrl.u32 %v2722, 7
    %v2724 = vsub.s32 %v2533, %v2723
    %v2725 = vrot.slane %v2163, %v2724
    %v2726 = vlaneseq
    %v2727 = vshrl.u32 %v2726, 7
    %v2728 = vsub.s32 %v2533, %v2727
    %v2729 = vrot.slane %v2166, %v2728
    %v2730 = vlaneseq
    %v2731 = vshrl.u32 %v2730, 7
    %v2732 = vsub.s32 %v2533, %v2731
    %v2733 = vrot.slane %v2169, %v2732
    %v2734 = vlaneseq
    %v2735 = vshrl.u32 %v2734, 7
    %v2736 = vsub.s32 %v2533, %v2735
    %v2737 = vrot.slane %v2172, %v2736
    %v2738 = vlaneseq
    %v2739 = vshrl.u32 %v2738, 7
    %v2740 = vsub.s32 %v2533, %v2739
    %v2741 = vrot.slane %v2175, %v2740
    %v2742 = vlaneseq
    %v2743 = vshrl.u32 %v2742, 7
    %v2744 = vsub.s32 %v2533, %v2743
    %v2745 = vrot.slane %v2178, %v2744
    %v2746 = vlaneseq
    %v2747 = vshrl.u32 %v2746, 7
    %v2748 = vsub.s32 %v2533, %v2747
    %v2749 = vrot.slane %v2181, %v2748
    %v2750 = vlaneseq
    %v2751 = vshrl.u32 %v2750, 7
    %v2752 = vsub.s32 %v2533, %v2751
    %v2753 = vrot.slane %v2184, %v2752
    %v2754 = vlaneseq
    %v2755 = vshrl.u32 %v2754, 7
    %v2756 = vsub.s32 %v2533, %v2755
    %v2757 = vrot.slane %v2187, %v2756
    %v2758 = vlaneseq
    %v2759 = vshrl.u32 %v2758, 7
    %v2760 = vsub.s32 %v2533, %v2759
    %v2761 = vrot.slane %v2190, %v2760
    %v2762 = vlaneseq
    %v2763 = vshrl.u32 %v2762, 7
    %v2764 = vsub.s32 %v2533, %v2763
    %v2765 = vrot.slane %v2193, %v2764
    %v2766 = vlaneseq
    %v2767 = vshrl.u32 %v2766, 7
    %v2768 = vsub.s32 %v2533, %v2767
    %v2769 = vrot.slane %v2196, %v2768
    %v2770 = vlaneseq
    %v2771 = vshrl.u32 %v2770, 7
    %v2772 = vsub.s32 %v2533, %v2771
    %v2773 = vrot.slane %v2199, %v2772
    %v2774 = vlaneseq
    %v2775 = vshrl.u32 %v2774, 7
    %v2776 = vsub.s32 %v2533, %v2775
    %v2777 = vrot.slane %v2202, %v2776
    %v2778 = vlaneseq
    %v2779 = vshrl.u32 %v2778, 7
    %v2780 = vsub.s32 %v2533, %v2779
    %v2781 = vrot.slane %v2205, %v2780
    %v2782 = vlaneseq
    %v2783 = vshrl.u32 %v2782, 7
    %v2784 = vsub.s32 %v2533, %v2783
    %v2785 = vrot.slane %v2208, %v2784
    %v2786 = vlaneseq
    %v2787 = vshrl.u32 %v2786, 7
    %v2788 = vsub.s32 %v2533, %v2787
    %v2789 = vrot.slane %v2211, %v2788
    %v2790 = vlaneseq
    %v2791 = vshrl.u32 %v2790, 7
    %v2792 = vsub.s32 %v2533, %v2791
    %v2793 = vrot.slane %v2214, %v2792
    %v2794 = vlaneseq
    %v2795 = vshrl.u32 %v2794, 7
    %v2796 = vsub.s32 %v2533, %v2795
    %v2797 = vrot.slane %v2217, %v2796
    %v2798 = vlaneseq
    %v2799 = vshrl.u32 %v2798, 7
    %v2800 = vsub.s32 %v2533, %v2799
    %v2801 = vrot.slane %v2220, %v2800
    %v2802 = vlaneseq
    %v2803 = vshrl.u32 %v2802, 7
    %v2804 = vsub.s32 %v2533, %v2803
    %v2805 = vrot.slane %v2223, %v2804
    %v2806 = vlaneseq
    %v2807 = vshrl.u32 %v2806, 7
    %v2808 = vsub.s32 %v2533, %v2807
    %v2809 = vrot.slane %v2226, %v2808
    %v2810 = vlaneseq
    %v2811 = vshrl.u32 %v2810, 7
    %v2812 = vsub.s32 %v2533, %v2811
    %v2813 = vrot.slane %v2229, %v2812
    %v2814 = vlaneseq
    %v2815 = vshrl.u32 %v2814, 7
    %v2816 = vsub.s32 %v2533, %v2815
    %v2817 = vrot.slane %v2232, %v2816
    %v2818 = vlaneseq
    %v2819 = vshrl.u32 %v2818, 7
    %v2820 = vsub.s32 %v2533, %v2819
    %v2821 = vrot.slane %v2235, %v2820
    %v2822 = vlaneseq
    %v2823 = vshrl.u32 %v2822, 7
    %v2824 = vsub.s32 %v2533, %v2823
    %v2825 = vrot.slane %v2238, %v2824
    %v2826 = vlaneseq
    %v2827 = vshrl.u32 %v2826, 7
    %v2828 = vsub.s32 %v2533, %v2827
    %v2829 = vrot.slane %v2241, %v2828
    %v2830 = vlaneseq
    %v2831 = vshrl.u32 %v2830, 7
    %v2832 = vsub.s32 %v2533, %v2831
    %v2833 = vrot.slane %v2244, %v2832
    %v2834 = vlaneseq
    %v2835 = vshrl.u32 %v2834, 7
    %v2836 = vsub.s32 %v2533, %v2835
    %v2837 = vrot.slane %v2247, %v2836
    %v2838 = vlaneseq
    %v2839 = vshrl.u32 %v2838, 7
    %v2840 = vsub.s32 %v2533, %v2839
    %v2841 = vrot.slane %v2250, %v2840
    %v2842 = vlaneseq
    %v2843 = vshrl.u32 %v2842, 7
    %v2844 = vsub.s32 %v2533, %v2843
    %v2845 = vrot.slane %v2253, %v2844
    %v2846 = vlaneseq
    %v2847 = vshrl.u32 %v2846, 7
    %v2848 = vsub.s32 %v2533, %v2847
    %v2849 = vrot.slane %v2256, %v2848
    %v2850 = vlaneseq
    %v2851 = vshrl.u32 %v2850, 7
    %v2852 = vsub.s32 %v2533, %v2851
    %v2853 = vrot.slane %v2259, %v2852
    %v2854 = vlaneseq
    %v2855 = vshrl.u32 %v2854, 7
    %v2856 = vsub.s32 %v2533, %v2855
    %v2857 = vrot.slane %v2262, %v2856
    %v2858 = vlaneseq
    %v2859 = vshrl.u32 %v2858, 7
    %v2860 = vsub.s32 %v2533, %v2859
    %v2861 = vrot.slane %v2265, %v2860
    %v2862 = vlaneseq
    %v2863 = vshrl.u32 %v2862, 7
    %v2864 = vsub.s32 %v2533, %v2863
    %v2865 = vrot.slane %v2268, %v2864
    %v2866 = vlaneseq
    %v2867 = vshrl.u32 %v2866, 7
    %v2868 = vsub.s32 %v2533, %v2867
    %v2869 = vrot.slane %v2271, %v2868
    %v2870 = vlaneseq
    %v2871 = vshrl.u32 %v2870, 7
    %v2872 = vsub.s32 %v2533, %v2871
    %v2873 = vrot.slane %v2274, %v2872
    %v2874 = vlaneseq
    %v2875 = vshrl.u32 %v2874, 7
    %v2876 = vsub.s32 %v2533, %v2875
    %v2877 = vrot.slane %v2277, %v2876
    %v2878 = vlaneseq
    %v2879 = vshrl.u32 %v2878, 7
    %v2880 = vsub.s32 %v2533, %v2879
    %v2881 = vrot.slane %v2280, %v2880
    %v2882 = vlaneseq
    %v2883 = vshrl.u32 %v2882, 7
    %v2884 = vsub.s32 %v2533, %v2883
    %v2885 = vrot.slane %v2283, %v2884
    %v2886 = vlaneseq
    %v2887 = vshrl.u32 %v2886, 7
    %v2888 = vsub.s32 %v2533, %v2887
    %v2889 = vrot.slane %v2286, %v2888
    %v2890 = vlaneseq
    %v2891 = vshrl.u32 %v2890, 7
    %v2892 = vsub.s32 %v2533, %v2891
    %v2893 = vrot.slane %v2289, %v2892
    %v2894 = vlaneseq
    %v2895 = vshrl.u32 %v2894, 7
    %v2896 = vsub.s32 %v2533, %v2895
    %v2897 = vrot.slane %v2292, %v2896
    %v2898 = vlaneseq
    %v2899 = vshrl.u32 %v2898, 7
    %v2900 = vsub.s32 %v2533, %v2899
    %v2901 = vrot.slane %v2295, %v2900
    %v2902 = vlaneseq
    %v2903 = vshrl.u32 %v2902, 7
    %v2904 = vsub.s32 %v2533, %v2903
    %v2905 = vrot.slane %v2298, %v2904
    %v2906 = vlaneseq
    %v2907 = vshrl.u32 %v2906, 7
    %v2908 = vsub.s32 %v2533, %v2907
    %v2909 = vrot.slane %v2301, %v2908
    %v2910 = vlaneseq
    %v2911 = vshrl.u32 %v2910, 7
    %v2912 = vsub.s32 %v2533, %v2911
    %v2913 = vrot.slane %v2304, %v2912
    %v2914 = vlaneseq
    %v2915 = vshrl.u32 %v2914, 7
    %v2916 = vsub.s32 %v2533, %v2915
    %v2917 = vrot.slane %v2307, %v2916
    %v2918 = vlaneseq
    %v2919 = vshrl.u32 %v2918, 7
    %v2920 = vsub.s32 %v2533, %v2919
    %v2921 = vrot.slane %v2310, %v2920
    %v2922 = vlaneseq
    %v2923 = vshrl.u32 %v2922, 7
    %v2924 = vsub.s32 %v2533, %v2923
    %v2925 = vrot.slane %v2313, %v2924
    %v2926 = vlaneseq
    %v2927 = vshrl.u32 %v2926, 7
    %v2928 = vsub.s32 %v2533, %v2927
    %v2929 = vrot.slane %v2316, %v2928
    %v2930 = vlaneseq
    %v2931 = vshrl.u32 %v2930, 7
    %v2932 = vsub.s32 %v2533, %v2931
    %v2933 = vrot.slane %v2319, %v2932
    %v2934 = vlaneseq
    %v2935 = vshrl.u32 %v2934, 7
    %v2936 = vsub.s32 %v2533, %v2935
    %v2937 = vrot.slane %v2322, %v2936
    %v2938 = vlaneseq
    %v2939 = vshrl.u32 %v2938, 7
    %v2940 = vsub.s32 %v2533, %v2939
    %v2941 = vrot.slane %v2325, %v2940
    %v2942 = vlaneseq
    %v2943 = vshrl.u32 %v2942, 7
    %v2944 = vsub.s32 %v2533, %v2943
    %v2945 = vrot.slane %v2328, %v2944
    %v2946 = vlaneseq
    %v2947 = vshrl.u32 %v2946, 7
    %v2948 = vsub.s32 %v2533, %v2947
    %v2949 = vrot.slane %v2331, %v2948
    %v2950 = vlaneseq
    %v2951 = vshrl.u32 %v2950, 7
    %v2952 = vsub.s32 %v2533, %v2951
    %v2953 = vrot.slane %v2334, %v2952
    %v2954 = vlaneseq
    %v2955 = vshrl.u32 %v2954, 7
    %v2956 = vsub.s32 %v2533, %v2955
    %v2957 = vrot.slane %v2337, %v2956
    %v2958 = vlaneseq
    %v2959 = vshrl.u32 %v2958, 7
    %v2960 = vsub.s32 %v2533, %v2959
    %v2961 = vrot.slane %v2340, %v2960
    %v2962 = vlaneseq
    %v2963 = vshrl.u32 %v2962, 7
    %v2964 = vsub.s32 %v2533, %v2963
    %v2965 = vrot.slane %v2343, %v2964
    %v2966 = vlaneseq
    %v2967 = vshrl.u32 %v2966, 7
    %v2968 = vsub.s32 %v2533, %v2967
    %v2969 = vrot.slane %v2346, %v2968
    %v2970 = vlaneseq
    %v2971 = vshrl.u32 %v2970, 7
    %v2972 = vsub.s32 %v2533, %v2971
    %v2973 = vrot.slane %v2349, %v2972
    %v2974 = vlaneseq
    %v2975 = vshrl.u32 %v2974, 7
    %v2976 = vsub.s32 %v2533, %v2975
    %v2977 = vrot.slane %v2352, %v2976
    %v2978 = vlaneseq
    %v2979 = vshrl.u32 %v2978, 7
    %v2980 = vsub.s32 %v2533, %v2979
    %v2981 = vrot.slane %v2355, %v2980
    %v2982 = vlaneseq
    %v2983 = vshrl.u32 %v2982, 7
    %v2984 = vsub.s32 %v2533, %v2983
    %v2985 = vrot.slane %v2358, %v2984
    %v2986 = vlaneseq
    %v2987 = vshrl.u32 %v2986, 7
    %v2988 = vsub.s32 %v2533, %v2987
    %v2989 = vrot.slane %v2361, %v2988
    %v2990 = vlaneseq
    %v2991 = vshrl.u32 %v2990, 7
    %v2992 = vsub.s32 %v2533, %v2991
    %v2993 = vrot.slane %v2364, %v2992
    %v2994 = vlaneseq
    %v2995 = vshrl.u32 %v2994, 7
    %v2996 = vsub.s32 %v2533, %v2995
    %v2997 = vrot.slane %v2367, %v2996
    %v2998 = vlaneseq
    %v2999 = vshrl.u32 %v2998, 7
    %v3000 = vsub.s32 %v2533, %v2999
    %v3001 = vrot.slane %v2370, %v3000
    %v3002 = vlaneseq
    %v3003 = vshrl.u32 %v3002, 7
    %v3004 = vsub.s32 %v2533, %v3003
    %v3005 = vrot.slane %v2373, %v3004
    %v3006 = vlaneseq
    %v3007 = vshrl.u32 %v3006, 7
    %v3008 = vsub.s32 %v2533, %v3007
    %v3009 = vrot.slane %v2376, %v3008
    %v3010 = vlaneseq
    %v3011 = vshrl.u32 %v3010, 7
    %v3012 = vsub.s32 %v2533, %v3011
    %v3013 = vrot.slane %v2379, %v3012
    %v3014 = vlaneseq
    %v3015 = vshrl.u32 %v3014, 7
    %v3016 = vsub.s32 %v2533, %v3015
    %v3017 = vrot.slane %v2382, %v3016
    %v3018 = vlaneseq
    %v3019 = vshrl.u32 %v3018, 7
    %v3020 = vsub.s32 %v2533, %v3019
    %v3021 = vrot.slane %v2385, %v3020
    %v3022 = vlaneseq
    %v3023 = vshrl.u32 %v3022, 7
    %v3024 = vsub.s32 %v2533, %v3023
    %v3025 = vrot.slane %v2388, %v3024
    %v3026 = vlaneseq
    %v3027 = vshrl.u32 %v3026, 7
    %v3028 = vsub.s32 %v2533, %v3027
    %v3029 = vrot.slane %v2391, %v3028
    %v3030 = vlaneseq
    %v3031 = vshrl.u32 %v3030, 7
    %v3032 = vsub.s32 %v2533, %v3031
    %v3033 = vrot.slane %v2394, %v3032
    %v3034 = vlaneseq
    %v3035 = vshrl.u32 %v3034, 7
    %v3036 = vsub.s32 %v2533, %v3035
    %v3037 = vrot.slane %v2397, %v3036
    %v3038 = vlaneseq
    %v3039 = vshrl.u32 %v3038, 7
    %v3040 = vsub.s32 %v2533, %v3039
    %v3041 = vrot.slane %v2400, %v3040
    %v3042 = vlaneseq
    %v3043 = vshrl.u32 %v3042, 7
    %v3044 = vsub.s32 %v2533, %v3043
    %v3045 = vrot.slane %v2403, %v3044
    %vm3046 = vcmask 1041409
    %v3047 = vsel %vm3046, %v2541, %v2537
    %vm3048 = vcmask 1042434
    %v3049 = vsel %vm3048, %v2545, %v3047
    %vm3050 = vcmask 1043459
    %v3051 = vsel %vm3050, %v2549, %v3049
    %vm3052 = vcmask 1044484
    %v3053 = vsel %vm3052, %v2553, %v3051
    %vm3054 = vcmask 1045509
    %v3055 = vsel %vm3054, %v2557, %v3053
    %vm3056 = vcmask 1046534
    %v3057 = vsel %vm3056, %v2561, %v3055
    %vm3058 = vcmask 1047559
    %v3059 = vsel %vm3058, %v2565, %v3057
    %v3060 = vsel %vm3046, %v2573, %v2569
    %v3061 = vsel %vm3048, %v2577, %v3060
    %v3062 = vsel %vm3050, %v2581, %v3061
    %v3063 = vsel %vm3052, %v2585, %v3062
    %v3064 = vsel %vm3054, %v2589, %v3063
    %v3065 = vsel %vm3056, %v2593, %v3064
    %v3066 = vsel %vm3058, %v2597, %v3065
    %v3067 = vsel %vm3046, %v2605, %v2601
    %v3068 = vsel %vm3048, %v2609, %v3067
    %v3069 = vsel %vm3050, %v2613, %v3068
    %v3070 = vsel %vm3052, %v2617, %v3069
    %v3071 = vsel %vm3054, %v2621, %v3070
    %v3072 = vsel %vm3056, %v2625, %v3071
    %v3073 = vsel %vm3058, %v2629, %v3072
    %v3074 = vsel %vm3046, %v2637, %v2633
    %v3075 = vsel %vm3048, %v2641, %v3074
    %v3076 = vsel %vm3050, %v2645, %v3075
    %v3077 = vsel %vm3052, %v2649, %v3076
    %v3078 = vsel %vm3054, %v2653, %v3077
    %v3079 = vsel %vm3056, %v2657, %v3078
    %v3080 = vsel %vm3058, %v2661, %v3079
    %v3081 = vsel %vm3046, %v2669, %v2665
    %v3082 = vsel %vm3048, %v2673, %v3081
    %v3083 = vsel %vm3050, %v2677, %v3082
    %v3084 = vsel %vm3052, %v2681, %v3083
    %v3085 = vsel %vm3054, %v2685, %v3084
    %v3086 = vsel %vm3056, %v2689, %v3085
    %v3087 = vsel %vm3058, %v2693, %v3086
    %v3088 = vsel %vm3046, %v2701, %v2697
    %v3089 = vsel %vm3048, %v2705, %v3088
    %v3090 = vsel %vm3050, %v2709, %v3089
    %v3091 = vsel %vm3052, %v2713, %v3090
    %v3092 = vsel %vm3054, %v2717, %v3091
    %v3093 = vsel %vm3056, %v2721, %v3092
    %v3094 = vsel %vm3058, %v2725, %v3093
    %v3095 = vsel %vm3046, %v2733, %v2729
    %v3096 = vsel %vm3048, %v2737, %v3095
    %v3097 = vsel %vm3050, %v2741, %v3096
    %v3098 = vsel %vm3052, %v2745, %v3097
    %v3099 = vsel %vm3054, %v2749, %v3098
    %v3100 = vsel %vm3056, %v2753, %v3099
    %v3101 = vsel %vm3058, %v2757, %v3100
    %v3102 = vsel %vm3046, %v2765, %v2761
    %v3103 = vsel %vm3048, %v2769, %v3102
    %v3104 = vsel %vm3050, %v2773, %v3103
    %v3105 = vsel %vm3052, %v2777, %v3104
    %v3106 = vsel %vm3054, %v2781, %v3105
    %v3107 = vsel %vm3056, %v2785, %v3106
    %v3108 = vsel %vm3058, %v2789, %v3107
    %v3109 = vsel %vm3046, %v2797, %v2793
    %v3110 = vsel %vm3048, %v2801, %v3109
    %v3111 = vsel %vm3050, %v2805, %v3110
    %v3112 = vsel %vm3052, %v2809, %v3111
    %v3113 = vsel %vm3054, %v2813, %v3112
    %v3114 = vsel %vm3056, %v2817, %v3113
    %v3115 = vsel %vm3058, %v2821, %v3114
    %v3116 = vsel %vm3046, %v2829, %v2825
    %v3117 = vsel %vm3048, %v2833, %v3116
    %v3118 = vsel %vm3050, %v2837, %v3117
    %v3119 = vsel %vm3052, %v2841, %v3118
    %v3120 = vsel %vm3054, %v2845, %v3119
    %v3121 = vsel %vm3056, %v2849, %v3120
    %v3122 = vsel %vm3058, %v2853, %v3121
    %v3123 = vsel %vm3046, %v2861, %v2857
    %v3124 = vsel %vm3048, %v2865, %v3123
    %v3125 = vsel %vm3050, %v2869, %v3124
    %v3126 = vsel %vm3052, %v2873, %v3125
    %v3127 = vsel %vm3054, %v2877, %v3126
    %v3128 = vsel %vm3056, %v2881, %v3127
    %v3129 = vsel %vm3058, %v2885, %v3128
    %v3130 = vsel %vm3046, %v2893, %v2889
    %v3131 = vsel %vm3048, %v2897, %v3130
    %v3132 = vsel %vm3050, %v2901, %v3131
    %v3133 = vsel %vm3052, %v2905, %v3132
    %v3134 = vsel %vm3054, %v2909, %v3133
    %v3135 = vsel %vm3056, %v2913, %v3134
    %v3136 = vsel %vm3058, %v2917, %v3135
    %v3137 = vsel %vm3046, %v2925, %v2921
    %v3138 = vsel %vm3048, %v2929, %v3137
    %v3139 = vsel %vm3050, %v2933, %v3138
    %v3140 = vsel %vm3052, %v2937, %v3139
    %v3141 = vsel %vm3054, %v2941, %v3140
    %v3142 = vsel %vm3056, %v2945, %v3141
    %v3143 = vsel %vm3058, %v2949, %v3142
    %v3144 = vsel %vm3046, %v2957, %v2953
    %v3145 = vsel %vm3048, %v2961, %v3144
    %v3146 = vsel %vm3050, %v2965, %v3145
    %v3147 = vsel %vm3052, %v2969, %v3146
    %v3148 = vsel %vm3054, %v2973, %v3147
    %v3149 = vsel %vm3056, %v2977, %v3148
    %v3150 = vsel %vm3058, %v2981, %v3149
    %v3151 = vsel %vm3046, %v2989, %v2985
    %v3152 = vsel %vm3048, %v2993, %v3151
    %v3153 = vsel %vm3050, %v2997, %v3152
    %v3154 = vsel %vm3052, %v3001, %v3153
    %v3155 = vsel %vm3054, %v3005, %v3154
    %v3156 = vsel %vm3056, %v3009, %v3155
    %v3157 = vsel %vm3058, %v3013, %v3156
    %v3158 = vsel %vm3046, %v3021, %v3017
    %v3159 = vsel %vm3048, %v3025, %v3158
    %v3160 = vsel %vm3050, %v3029, %v3159
    %v3161 = vsel %vm3052, %v3033, %v3160
    %v3162 = vsel %vm3054, %v3037, %v3161
    %v3163 = vsel %vm3056, %v3041, %v3162
    %v3164 = vsel %vm3058, %v3045, %v3163
    %vm3181 = vcmask 64512
    %v3182 = vsel %vm3181, %v3059, -inf
    %3183 = vmax.xlane.f32.xlu0 %v3182
    %v3184 = vpop.xlane.xlu0 %3183
    %v3185 = vsel %vm3181, %v3066, -inf
    %3186 = vmax.xlane.f32.xlu0 %v3185
    %v3187 = vpop.xlane.xlu0 %3186
    %v3188 = vsel %vm3181, %v3073, -inf
    %3189 = vmax.xlane.f32.xlu0 %v3188
    %v3190 = vpop.xlane.xlu0 %3189
    %v3191 = vsel %vm3181, %v3080, -inf
    %3192 = vmax.xlane.f32.xlu0 %v3191
    %v3193 = vpop.xlane.xlu0 %3192
    %v3194 = vsel %vm3181, %v3087, -inf
    %3195 = vmax.xlane.f32.xlu0 %v3194
    %v3196 = vpop.xlane.xlu0 %3195
    %v3197 = vsel %vm3181, %v3094, -inf
    %3198 = vmax.xlane.f32.xlu0 %v3197
    %v3199 = vpop.xlane.xlu0 %3198
    %v3200 = vsel %vm3181, %v3101, -inf
    %3201 = vmax.xlane.f32.xlu0 %v3200
    %v3202 = vpop.xlane.xlu0 %3201
    %v3203 = vsel %vm3181, %v3108, -inf
    %3204 = vmax.xlane.f32.xlu0 %v3203
    %v3205 = vpop.xlane.xlu0 %3204
    %v3206 = vsel %vm3181, %v3115, -inf
    %3207 = vmax.xlane.f32.xlu0 %v3206
    %v3208 = vpop.xlane.xlu0 %3207
    %v3209 = vsel %vm3181, %v3122, -inf
    %3210 = vmax.xlane.f32.xlu0 %v3209
    %v3211 = vpop.xlane.xlu0 %3210
    %v3212 = vsel %vm3181, %v3129, -inf
    %3213 = vmax.xlane.f32.xlu0 %v3212
    %v3214 = vpop.xlane.xlu0 %3213
    %v3215 = vsel %vm3181, %v3136, -inf
    %3216 = vmax.xlane.f32.xlu0 %v3215
    %v3217 = vpop.xlane.xlu0 %3216
    %v3218 = vsel %vm3181, %v3143, -inf
    %3219 = vmax.xlane.f32.xlu0 %v3218
    %v3220 = vpop.xlane.xlu0 %3219
    %v3221 = vsel %vm3181, %v3150, -inf
    %3222 = vmax.xlane.f32.xlu0 %v3221
    %v3223 = vpop.xlane.xlu0 %3222
    %v3224 = vsel %vm3181, %v3157, -inf
    %3225 = vmax.xlane.f32.xlu0 %v3224
    %v3226 = vpop.xlane.xlu0 %3225
    %v3227 = vsel %vm3181, %v3164, -inf
    %3228 = vmax.xlane.f32.xlu0 %v3227
    %v3229 = vpop.xlane.xlu0 %3228
    %v3246 = vlaneseq
    %v3247 = vshrl.u32 %v3246, 7
    %v3248 = vsub.s32 0, %v3247
    %v3249 = vrot.slane %v3184, %v3248
    %v3250 = vlaneseq
    %v3251 = vshrl.u32 %v3250, 7
    %v3252 = vsub.s32 1, %v3251
    %v3253 = vrot.slane %v3184, %v3252
    %v3254 = vlaneseq
    %v3255 = vshrl.u32 %v3254, 7
    %v3256 = vsub.s32 2, %v3255
    %v3257 = vrot.slane %v3184, %v3256
    %v3258 = vlaneseq
    %v3259 = vshrl.u32 %v3258, 7
    %v3260 = vsub.s32 3, %v3259
    %v3261 = vrot.slane %v3184, %v3260
    %v3262 = vlaneseq
    %v3263 = vshrl.u32 %v3262, 7
    %v3264 = vsub.s32 4, %v3263
    %v3265 = vrot.slane %v3184, %v3264
    %v3266 = vlaneseq
    %v3267 = vshrl.u32 %v3266, 7
    %v3268 = vsub.s32 5, %v3267
    %v3269 = vrot.slane %v3184, %v3268
    %v3270 = vlaneseq
    %v3271 = vshrl.u32 %v3270, 7
    %v3272 = vsub.s32 6, %v3271
    %v3273 = vrot.slane %v3184, %v3272
    %v3274 = vlaneseq
    %v3275 = vshrl.u32 %v3274, 7
    %v3276 = vsub.s32 7, %v3275
    %v3277 = vrot.slane %v3184, %v3276
    %v3278 = vlaneseq
    %v3279 = vshrl.u32 %v3278, 7
    %v3280 = vsub.s32 0, %v3279
    %v3281 = vrot.slane %v3187, %v3280
    %v3282 = vlaneseq
    %v3283 = vshrl.u32 %v3282, 7
    %v3284 = vsub.s32 1, %v3283
    %v3285 = vrot.slane %v3187, %v3284
    %v3286 = vlaneseq
    %v3287 = vshrl.u32 %v3286, 7
    %v3288 = vsub.s32 2, %v3287
    %v3289 = vrot.slane %v3187, %v3288
    %v3290 = vlaneseq
    %v3291 = vshrl.u32 %v3290, 7
    %v3292 = vsub.s32 3, %v3291
    %v3293 = vrot.slane %v3187, %v3292
    %v3294 = vlaneseq
    %v3295 = vshrl.u32 %v3294, 7
    %v3296 = vsub.s32 4, %v3295
    %v3297 = vrot.slane %v3187, %v3296
    %v3298 = vlaneseq
    %v3299 = vshrl.u32 %v3298, 7
    %v3300 = vsub.s32 5, %v3299
    %v3301 = vrot.slane %v3187, %v3300
    %v3302 = vlaneseq
    %v3303 = vshrl.u32 %v3302, 7
    %v3304 = vsub.s32 6, %v3303
    %v3305 = vrot.slane %v3187, %v3304
    %v3306 = vlaneseq
    %v3307 = vshrl.u32 %v3306, 7
    %v3308 = vsub.s32 7, %v3307
    %v3309 = vrot.slane %v3187, %v3308
    %v3310 = vlaneseq
    %v3311 = vshrl.u32 %v3310, 7
    %v3312 = vsub.s32 0, %v3311
    %v3313 = vrot.slane %v3190, %v3312
    %v3314 = vlaneseq
    %v3315 = vshrl.u32 %v3314, 7
    %v3316 = vsub.s32 1, %v3315
    %v3317 = vrot.slane %v3190, %v3316
    %v3318 = vlaneseq
    %v3319 = vshrl.u32 %v3318, 7
    %v3320 = vsub.s32 2, %v3319
    %v3321 = vrot.slane %v3190, %v3320
    %v3322 = vlaneseq
    %v3323 = vshrl.u32 %v3322, 7
    %v3324 = vsub.s32 3, %v3323
    %v3325 = vrot.slane %v3190, %v3324
    %v3326 = vlaneseq
    %v3327 = vshrl.u32 %v3326, 7
    %v3328 = vsub.s32 4, %v3327
    %v3329 = vrot.slane %v3190, %v3328
    %v3330 = vlaneseq
    %v3331 = vshrl.u32 %v3330, 7
    %v3332 = vsub.s32 5, %v3331
    %v3333 = vrot.slane %v3190, %v3332
    %v3334 = vlaneseq
    %v3335 = vshrl.u32 %v3334, 7
    %v3336 = vsub.s32 6, %v3335
    %v3337 = vrot.slane %v3190, %v3336
    %v3338 = vlaneseq
    %v3339 = vshrl.u32 %v3338, 7
    %v3340 = vsub.s32 7, %v3339
    %v3341 = vrot.slane %v3190, %v3340
    %v3342 = vlaneseq
    %v3343 = vshrl.u32 %v3342, 7
    %v3344 = vsub.s32 0, %v3343
    %v3345 = vrot.slane %v3193, %v3344
    %v3346 = vlaneseq
    %v3347 = vshrl.u32 %v3346, 7
    %v3348 = vsub.s32 1, %v3347
    %v3349 = vrot.slane %v3193, %v3348
    %v3350 = vlaneseq
    %v3351 = vshrl.u32 %v3350, 7
    %v3352 = vsub.s32 2, %v3351
    %v3353 = vrot.slane %v3193, %v3352
    %v3354 = vlaneseq
    %v3355 = vshrl.u32 %v3354, 7
    %v3356 = vsub.s32 3, %v3355
    %v3357 = vrot.slane %v3193, %v3356
    %v3358 = vlaneseq
    %v3359 = vshrl.u32 %v3358, 7
    %v3360 = vsub.s32 4, %v3359
    %v3361 = vrot.slane %v3193, %v3360
    %v3362 = vlaneseq
    %v3363 = vshrl.u32 %v3362, 7
    %v3364 = vsub.s32 5, %v3363
    %v3365 = vrot.slane %v3193, %v3364
    %v3366 = vlaneseq
    %v3367 = vshrl.u32 %v3366, 7
    %v3368 = vsub.s32 6, %v3367
    %v3369 = vrot.slane %v3193, %v3368
    %v3370 = vlaneseq
    %v3371 = vshrl.u32 %v3370, 7
    %v3372 = vsub.s32 7, %v3371
    %v3373 = vrot.slane %v3193, %v3372
    %v3374 = vlaneseq
    %v3375 = vshrl.u32 %v3374, 7
    %v3376 = vsub.s32 0, %v3375
    %v3377 = vrot.slane %v3196, %v3376
    %v3378 = vlaneseq
    %v3379 = vshrl.u32 %v3378, 7
    %v3380 = vsub.s32 1, %v3379
    %v3381 = vrot.slane %v3196, %v3380
    %v3382 = vlaneseq
    %v3383 = vshrl.u32 %v3382, 7
    %v3384 = vsub.s32 2, %v3383
    %v3385 = vrot.slane %v3196, %v3384
    %v3386 = vlaneseq
    %v3387 = vshrl.u32 %v3386, 7
    %v3388 = vsub.s32 3, %v3387
    %v3389 = vrot.slane %v3196, %v3388
    %v3390 = vlaneseq
    %v3391 = vshrl.u32 %v3390, 7
    %v3392 = vsub.s32 4, %v3391
    %v3393 = vrot.slane %v3196, %v3392
    %v3394 = vlaneseq
    %v3395 = vshrl.u32 %v3394, 7
    %v3396 = vsub.s32 5, %v3395
    %v3397 = vrot.slane %v3196, %v3396
    %v3398 = vlaneseq
    %v3399 = vshrl.u32 %v3398, 7
    %v3400 = vsub.s32 6, %v3399
    %v3401 = vrot.slane %v3196, %v3400
    %v3402 = vlaneseq
    %v3403 = vshrl.u32 %v3402, 7
    %v3404 = vsub.s32 7, %v3403
    %v3405 = vrot.slane %v3196, %v3404
    %v3406 = vlaneseq
    %v3407 = vshrl.u32 %v3406, 7
    %v3408 = vsub.s32 0, %v3407
    %v3409 = vrot.slane %v3199, %v3408
    %v3410 = vlaneseq
    %v3411 = vshrl.u32 %v3410, 7
    %v3412 = vsub.s32 1, %v3411
    %v3413 = vrot.slane %v3199, %v3412
    %v3414 = vlaneseq
    %v3415 = vshrl.u32 %v3414, 7
    %v3416 = vsub.s32 2, %v3415
    %v3417 = vrot.slane %v3199, %v3416
    %v3418 = vlaneseq
    %v3419 = vshrl.u32 %v3418, 7
    %v3420 = vsub.s32 3, %v3419
    %v3421 = vrot.slane %v3199, %v3420
    %v3422 = vlaneseq
    %v3423 = vshrl.u32 %v3422, 7
    %v3424 = vsub.s32 4, %v3423
    %v3425 = vrot.slane %v3199, %v3424
    %v3426 = vlaneseq
    %v3427 = vshrl.u32 %v3426, 7
    %v3428 = vsub.s32 5, %v3427
    %v3429 = vrot.slane %v3199, %v3428
    %v3430 = vlaneseq
    %v3431 = vshrl.u32 %v3430, 7
    %v3432 = vsub.s32 6, %v3431
    %v3433 = vrot.slane %v3199, %v3432
    %v3434 = vlaneseq
    %v3435 = vshrl.u32 %v3434, 7
    %v3436 = vsub.s32 7, %v3435
    %v3437 = vrot.slane %v3199, %v3436
    %v3438 = vlaneseq
    %v3439 = vshrl.u32 %v3438, 7
    %v3440 = vsub.s32 0, %v3439
    %v3441 = vrot.slane %v3202, %v3440
    %v3442 = vlaneseq
    %v3443 = vshrl.u32 %v3442, 7
    %v3444 = vsub.s32 1, %v3443
    %v3445 = vrot.slane %v3202, %v3444
    %v3446 = vlaneseq
    %v3447 = vshrl.u32 %v3446, 7
    %v3448 = vsub.s32 2, %v3447
    %v3449 = vrot.slane %v3202, %v3448
    %v3450 = vlaneseq
    %v3451 = vshrl.u32 %v3450, 7
    %v3452 = vsub.s32 3, %v3451
    %v3453 = vrot.slane %v3202, %v3452
    %v3454 = vlaneseq
    %v3455 = vshrl.u32 %v3454, 7
    %v3456 = vsub.s32 4, %v3455
    %v3457 = vrot.slane %v3202, %v3456
    %v3458 = vlaneseq
    %v3459 = vshrl.u32 %v3458, 7
    %v3460 = vsub.s32 5, %v3459
    %v3461 = vrot.slane %v3202, %v3460
    %v3462 = vlaneseq
    %v3463 = vshrl.u32 %v3462, 7
    %v3464 = vsub.s32 6, %v3463
    %v3465 = vrot.slane %v3202, %v3464
    %v3466 = vlaneseq
    %v3467 = vshrl.u32 %v3466, 7
    %v3468 = vsub.s32 7, %v3467
    %v3469 = vrot.slane %v3202, %v3468
    %v3470 = vlaneseq
    %v3471 = vshrl.u32 %v3470, 7
    %v3472 = vsub.s32 0, %v3471
    %v3473 = vrot.slane %v3205, %v3472
    %v3474 = vlaneseq
    %v3475 = vshrl.u32 %v3474, 7
    %v3476 = vsub.s32 1, %v3475
    %v3477 = vrot.slane %v3205, %v3476
    %v3478 = vlaneseq
    %v3479 = vshrl.u32 %v3478, 7
    %v3480 = vsub.s32 2, %v3479
    %v3481 = vrot.slane %v3205, %v3480
    %v3482 = vlaneseq
    %v3483 = vshrl.u32 %v3482, 7
    %v3484 = vsub.s32 3, %v3483
    %v3485 = vrot.slane %v3205, %v3484
    %v3486 = vlaneseq
    %v3487 = vshrl.u32 %v3486, 7
    %v3488 = vsub.s32 4, %v3487
    %v3489 = vrot.slane %v3205, %v3488
    %v3490 = vlaneseq
    %v3491 = vshrl.u32 %v3490, 7
    %v3492 = vsub.s32 5, %v3491
    %v3493 = vrot.slane %v3205, %v3492
    %v3494 = vlaneseq
    %v3495 = vshrl.u32 %v3494, 7
    %v3496 = vsub.s32 6, %v3495
    %v3497 = vrot.slane %v3205, %v3496
    %v3498 = vlaneseq
    %v3499 = vshrl.u32 %v3498, 7
    %v3500 = vsub.s32 7, %v3499
    %v3501 = vrot.slane %v3205, %v3500
    %v3502 = vlaneseq
    %v3503 = vshrl.u32 %v3502, 7
    %v3504 = vsub.s32 0, %v3503
    %v3505 = vrot.slane %v3208, %v3504
    %v3506 = vlaneseq
    %v3507 = vshrl.u32 %v3506, 7
    %v3508 = vsub.s32 1, %v3507
    %v3509 = vrot.slane %v3208, %v3508
    %v3510 = vlaneseq
    %v3511 = vshrl.u32 %v3510, 7
    %v3512 = vsub.s32 2, %v3511
    %v3513 = vrot.slane %v3208, %v3512
    %v3514 = vlaneseq
    %v3515 = vshrl.u32 %v3514, 7
    %v3516 = vsub.s32 3, %v3515
    %v3517 = vrot.slane %v3208, %v3516
    %v3518 = vlaneseq
    %v3519 = vshrl.u32 %v3518, 7
    %v3520 = vsub.s32 4, %v3519
    %v3521 = vrot.slane %v3208, %v3520
    %v3522 = vlaneseq
    %v3523 = vshrl.u32 %v3522, 7
    %v3524 = vsub.s32 5, %v3523
    %v3525 = vrot.slane %v3208, %v3524
    %v3526 = vlaneseq
    %v3527 = vshrl.u32 %v3526, 7
    %v3528 = vsub.s32 6, %v3527
    %v3529 = vrot.slane %v3208, %v3528
    %v3530 = vlaneseq
    %v3531 = vshrl.u32 %v3530, 7
    %v3532 = vsub.s32 7, %v3531
    %v3533 = vrot.slane %v3208, %v3532
    %v3534 = vlaneseq
    %v3535 = vshrl.u32 %v3534, 7
    %v3536 = vsub.s32 0, %v3535
    %v3537 = vrot.slane %v3211, %v3536
    %v3538 = vlaneseq
    %v3539 = vshrl.u32 %v3538, 7
    %v3540 = vsub.s32 1, %v3539
    %v3541 = vrot.slane %v3211, %v3540
    %v3542 = vlaneseq
    %v3543 = vshrl.u32 %v3542, 7
    %v3544 = vsub.s32 2, %v3543
    %v3545 = vrot.slane %v3211, %v3544
    %v3546 = vlaneseq
    %v3547 = vshrl.u32 %v3546, 7
    %v3548 = vsub.s32 3, %v3547
    %v3549 = vrot.slane %v3211, %v3548
    %v3550 = vlaneseq
    %v3551 = vshrl.u32 %v3550, 7
    %v3552 = vsub.s32 4, %v3551
    %v3553 = vrot.slane %v3211, %v3552
    %v3554 = vlaneseq
    %v3555 = vshrl.u32 %v3554, 7
    %v3556 = vsub.s32 5, %v3555
    %v3557 = vrot.slane %v3211, %v3556
    %v3558 = vlaneseq
    %v3559 = vshrl.u32 %v3558, 7
    %v3560 = vsub.s32 6, %v3559
    %v3561 = vrot.slane %v3211, %v3560
    %v3562 = vlaneseq
    %v3563 = vshrl.u32 %v3562, 7
    %v3564 = vsub.s32 7, %v3563
    %v3565 = vrot.slane %v3211, %v3564
    %v3566 = vlaneseq
    %v3567 = vshrl.u32 %v3566, 7
    %v3568 = vsub.s32 0, %v3567
    %v3569 = vrot.slane %v3214, %v3568
    %v3570 = vlaneseq
    %v3571 = vshrl.u32 %v3570, 7
    %v3572 = vsub.s32 1, %v3571
    %v3573 = vrot.slane %v3214, %v3572
    %v3574 = vlaneseq
    %v3575 = vshrl.u32 %v3574, 7
    %v3576 = vsub.s32 2, %v3575
    %v3577 = vrot.slane %v3214, %v3576
    %v3578 = vlaneseq
    %v3579 = vshrl.u32 %v3578, 7
    %v3580 = vsub.s32 3, %v3579
    %v3581 = vrot.slane %v3214, %v3580
    %v3582 = vlaneseq
    %v3583 = vshrl.u32 %v3582, 7
    %v3584 = vsub.s32 4, %v3583
    %v3585 = vrot.slane %v3214, %v3584
    %v3586 = vlaneseq
    %v3587 = vshrl.u32 %v3586, 7
    %v3588 = vsub.s32 5, %v3587
    %v3589 = vrot.slane %v3214, %v3588
    %v3590 = vlaneseq
    %v3591 = vshrl.u32 %v3590, 7
    %v3592 = vsub.s32 6, %v3591
    %v3593 = vrot.slane %v3214, %v3592
    %v3594 = vlaneseq
    %v3595 = vshrl.u32 %v3594, 7
    %v3596 = vsub.s32 7, %v3595
    %v3597 = vrot.slane %v3214, %v3596
    %v3598 = vlaneseq
    %v3599 = vshrl.u32 %v3598, 7
    %v3600 = vsub.s32 0, %v3599
    %v3601 = vrot.slane %v3217, %v3600
    %v3602 = vlaneseq
    %v3603 = vshrl.u32 %v3602, 7
    %v3604 = vsub.s32 1, %v3603
    %v3605 = vrot.slane %v3217, %v3604
    %v3606 = vlaneseq
    %v3607 = vshrl.u32 %v3606, 7
    %v3608 = vsub.s32 2, %v3607
    %v3609 = vrot.slane %v3217, %v3608
    %v3610 = vlaneseq
    %v3611 = vshrl.u32 %v3610, 7
    %v3612 = vsub.s32 3, %v3611
    %v3613 = vrot.slane %v3217, %v3612
    %v3614 = vlaneseq
    %v3615 = vshrl.u32 %v3614, 7
    %v3616 = vsub.s32 4, %v3615
    %v3617 = vrot.slane %v3217, %v3616
    %v3618 = vlaneseq
    %v3619 = vshrl.u32 %v3618, 7
    %v3620 = vsub.s32 5, %v3619
    %v3621 = vrot.slane %v3217, %v3620
    %v3622 = vlaneseq
    %v3623 = vshrl.u32 %v3622, 7
    %v3624 = vsub.s32 6, %v3623
    %v3625 = vrot.slane %v3217, %v3624
    %v3626 = vlaneseq
    %v3627 = vshrl.u32 %v3626, 7
    %v3628 = vsub.s32 7, %v3627
    %v3629 = vrot.slane %v3217, %v3628
    %v3630 = vlaneseq
    %v3631 = vshrl.u32 %v3630, 7
    %v3632 = vsub.s32 0, %v3631
    %v3633 = vrot.slane %v3220, %v3632
    %v3634 = vlaneseq
    %v3635 = vshrl.u32 %v3634, 7
    %v3636 = vsub.s32 1, %v3635
    %v3637 = vrot.slane %v3220, %v3636
    %v3638 = vlaneseq
    %v3639 = vshrl.u32 %v3638, 7
    %v3640 = vsub.s32 2, %v3639
    %v3641 = vrot.slane %v3220, %v3640
    %v3642 = vlaneseq
    %v3643 = vshrl.u32 %v3642, 7
    %v3644 = vsub.s32 3, %v3643
    %v3645 = vrot.slane %v3220, %v3644
    %v3646 = vlaneseq
    %v3647 = vshrl.u32 %v3646, 7
    %v3648 = vsub.s32 4, %v3647
    %v3649 = vrot.slane %v3220, %v3648
    %v3650 = vlaneseq
    %v3651 = vshrl.u32 %v3650, 7
    %v3652 = vsub.s32 5, %v3651
    %v3653 = vrot.slane %v3220, %v3652
    %v3654 = vlaneseq
    %v3655 = vshrl.u32 %v3654, 7
    %v3656 = vsub.s32 6, %v3655
    %v3657 = vrot.slane %v3220, %v3656
    %v3658 = vlaneseq
    %v3659 = vshrl.u32 %v3658, 7
    %v3660 = vsub.s32 7, %v3659
    %v3661 = vrot.slane %v3220, %v3660
    %v3662 = vlaneseq
    %v3663 = vshrl.u32 %v3662, 7
    %v3664 = vsub.s32 0, %v3663
    %v3665 = vrot.slane %v3223, %v3664
    %v3666 = vlaneseq
    %v3667 = vshrl.u32 %v3666, 7
    %v3668 = vsub.s32 1, %v3667
    %v3669 = vrot.slane %v3223, %v3668
    %v3670 = vlaneseq
    %v3671 = vshrl.u32 %v3670, 7
    %v3672 = vsub.s32 2, %v3671
    %v3673 = vrot.slane %v3223, %v3672
    %v3674 = vlaneseq
    %v3675 = vshrl.u32 %v3674, 7
    %v3676 = vsub.s32 3, %v3675
    %v3677 = vrot.slane %v3223, %v3676
    %v3678 = vlaneseq
    %v3679 = vshrl.u32 %v3678, 7
    %v3680 = vsub.s32 4, %v3679
    %v3681 = vrot.slane %v3223, %v3680
    %v3682 = vlaneseq
    %v3683 = vshrl.u32 %v3682, 7
    %v3684 = vsub.s32 5, %v3683
    %v3685 = vrot.slane %v3223, %v3684
    %v3686 = vlaneseq
    %v3687 = vshrl.u32 %v3686, 7
    %v3688 = vsub.s32 6, %v3687
    %v3689 = vrot.slane %v3223, %v3688
    %v3690 = vlaneseq
    %v3691 = vshrl.u32 %v3690, 7
    %v3692 = vsub.s32 7, %v3691
    %v3693 = vrot.slane %v3223, %v3692
    %v3694 = vlaneseq
    %v3695 = vshrl.u32 %v3694, 7
    %v3696 = vsub.s32 0, %v3695
    %v3697 = vrot.slane %v3226, %v3696
    %v3698 = vlaneseq
    %v3699 = vshrl.u32 %v3698, 7
    %v3700 = vsub.s32 1, %v3699
    %v3701 = vrot.slane %v3226, %v3700
    %v3702 = vlaneseq
    %v3703 = vshrl.u32 %v3702, 7
    %v3704 = vsub.s32 2, %v3703
    %v3705 = vrot.slane %v3226, %v3704
    %v3706 = vlaneseq
    %v3707 = vshrl.u32 %v3706, 7
    %v3708 = vsub.s32 3, %v3707
    %v3709 = vrot.slane %v3226, %v3708
    %v3710 = vlaneseq
    %v3711 = vshrl.u32 %v3710, 7
    %v3712 = vsub.s32 4, %v3711
    %v3713 = vrot.slane %v3226, %v3712
    %v3714 = vlaneseq
    %v3715 = vshrl.u32 %v3714, 7
    %v3716 = vsub.s32 5, %v3715
    %v3717 = vrot.slane %v3226, %v3716
    %v3718 = vlaneseq
    %v3719 = vshrl.u32 %v3718, 7
    %v3720 = vsub.s32 6, %v3719
    %v3721 = vrot.slane %v3226, %v3720
    %v3722 = vlaneseq
    %v3723 = vshrl.u32 %v3722, 7
    %v3724 = vsub.s32 7, %v3723
    %v3725 = vrot.slane %v3226, %v3724
    %v3726 = vlaneseq
    %v3727 = vshrl.u32 %v3726, 7
    %v3728 = vsub.s32 0, %v3727
    %v3729 = vrot.slane %v3229, %v3728
    %v3730 = vlaneseq
    %v3731 = vshrl.u32 %v3730, 7
    %v3732 = vsub.s32 1, %v3731
    %v3733 = vrot.slane %v3229, %v3732
    %v3734 = vlaneseq
    %v3735 = vshrl.u32 %v3734, 7
    %v3736 = vsub.s32 2, %v3735
    %v3737 = vrot.slane %v3229, %v3736
    %v3738 = vlaneseq
    %v3739 = vshrl.u32 %v3738, 7
    %v3740 = vsub.s32 3, %v3739
    %v3741 = vrot.slane %v3229, %v3740
    %v3742 = vlaneseq
    %v3743 = vshrl.u32 %v3742, 7
    %v3744 = vsub.s32 4, %v3743
    %v3745 = vrot.slane %v3229, %v3744
    %v3746 = vlaneseq
    %v3747 = vshrl.u32 %v3746, 7
    %v3748 = vsub.s32 5, %v3747
    %v3749 = vrot.slane %v3229, %v3748
    %v3750 = vlaneseq
    %v3751 = vshrl.u32 %v3750, 7
    %v3752 = vsub.s32 6, %v3751
    %v3753 = vrot.slane %v3229, %v3752
    %v3754 = vlaneseq
    %v3755 = vshrl.u32 %v3754, 7
    %v3756 = vsub.s32 7, %v3755
    %v3757 = vrot.slane %v3229, %v3756
    %v3886 = vsub.f32 %v2022, %v3249
    %v3887 = vsub.f32 %v2025, %v3253
    %v3888 = vsub.f32 %v2028, %v3257
    %v3889 = vsub.f32 %v2031, %v3261
    %v3890 = vsub.f32 %v2034, %v3265
    %v3891 = vsub.f32 %v2037, %v3269
    %v3892 = vsub.f32 %v2040, %v3273
    %v3893 = vsub.f32 %v2043, %v3277
    %v3894 = vsub.f32 %v2046, %v3281
    %v3895 = vsub.f32 %v2049, %v3285
    %v3896 = vsub.f32 %v2052, %v3289
    %v3897 = vsub.f32 %v2055, %v3293
    %v3898 = vsub.f32 %v2058, %v3297
    %v3899 = vsub.f32 %v2061, %v3301
    %v3900 = vsub.f32 %v2064, %v3305
    %v3901 = vsub.f32 %v2067, %v3309
    %v3902 = vsub.f32 %v2070, %v3313
    %v3903 = vsub.f32 %v2073, %v3317
    %v3904 = vsub.f32 %v2076, %v3321
    %v3905 = vsub.f32 %v2079, %v3325
    %v3906 = vsub.f32 %v2082, %v3329
    %v3907 = vsub.f32 %v2085, %v3333
    %v3908 = vsub.f32 %v2088, %v3337
    %v3909 = vsub.f32 %v2091, %v3341
    %v3910 = vsub.f32 %v2094, %v3345
    %v3911 = vsub.f32 %v2097, %v3349
    %v3912 = vsub.f32 %v2100, %v3353
    %v3913 = vsub.f32 %v2103, %v3357
    %v3914 = vsub.f32 %v2106, %v3361
    %v3915 = vsub.f32 %v2109, %v3365
    %v3916 = vsub.f32 %v2112, %v3369
    %v3917 = vsub.f32 %v2115, %v3373
    %v3918 = vsub.f32 %v2118, %v3377
    %v3919 = vsub.f32 %v2121, %v3381
    %v3920 = vsub.f32 %v2124, %v3385
    %v3921 = vsub.f32 %v2127, %v3389
    %v3922 = vsub.f32 %v2130, %v3393
    %v3923 = vsub.f32 %v2133, %v3397
    %v3924 = vsub.f32 %v2136, %v3401
    %v3925 = vsub.f32 %v2139, %v3405
    %v3926 = vsub.f32 %v2142, %v3409
    %v3927 = vsub.f32 %v2145, %v3413
    %v3928 = vsub.f32 %v2148, %v3417
    %v3929 = vsub.f32 %v2151, %v3421
    %v3930 = vsub.f32 %v2154, %v3425
    %v3931 = vsub.f32 %v2157, %v3429
    %v3932 = vsub.f32 %v2160, %v3433
    %v3933 = vsub.f32 %v2163, %v3437
    %v3934 = vsub.f32 %v2166, %v3441
    %v3935 = vsub.f32 %v2169, %v3445
    %v3936 = vsub.f32 %v2172, %v3449
    %v3937 = vsub.f32 %v2175, %v3453
    %v3938 = vsub.f32 %v2178, %v3457
    %v3939 = vsub.f32 %v2181, %v3461
    %v3940 = vsub.f32 %v2184, %v3465
    %v3941 = vsub.f32 %v2187, %v3469
    %v3942 = vsub.f32 %v2190, %v3473
    %v3943 = vsub.f32 %v2193, %v3477
    %v3944 = vsub.f32 %v2196, %v3481
    %v3945 = vsub.f32 %v2199, %v3485
    %v3946 = vsub.f32 %v2202, %v3489
    %v3947 = vsub.f32 %v2205, %v3493
    %v3948 = vsub.f32 %v2208, %v3497
    %v3949 = vsub.f32 %v2211, %v3501
    %v3950 = vsub.f32 %v2214, %v3505
    %v3951 = vsub.f32 %v2217, %v3509
    %v3952 = vsub.f32 %v2220, %v3513
    %v3953 = vsub.f32 %v2223, %v3517
    %v3954 = vsub.f32 %v2226, %v3521
    %v3955 = vsub.f32 %v2229, %v3525
    %v3956 = vsub.f32 %v2232, %v3529
    %v3957 = vsub.f32 %v2235, %v3533
    %v3958 = vsub.f32 %v2238, %v3537
    %v3959 = vsub.f32 %v2241, %v3541
    %v3960 = vsub.f32 %v2244, %v3545
    %v3961 = vsub.f32 %v2247, %v3549
    %v3962 = vsub.f32 %v2250, %v3553
    %v3963 = vsub.f32 %v2253, %v3557
    %v3964 = vsub.f32 %v2256, %v3561
    %v3965 = vsub.f32 %v2259, %v3565
    %v3966 = vsub.f32 %v2262, %v3569
    %v3967 = vsub.f32 %v2265, %v3573
    %v3968 = vsub.f32 %v2268, %v3577
    %v3969 = vsub.f32 %v2271, %v3581
    %v3970 = vsub.f32 %v2274, %v3585
    %v3971 = vsub.f32 %v2277, %v3589
    %v3972 = vsub.f32 %v2280, %v3593
    %v3973 = vsub.f32 %v2283, %v3597
    %v3974 = vsub.f32 %v2286, %v3601
    %v3975 = vsub.f32 %v2289, %v3605
    %v3976 = vsub.f32 %v2292, %v3609
    %v3977 = vsub.f32 %v2295, %v3613
    %v3978 = vsub.f32 %v2298, %v3617
    %v3979 = vsub.f32 %v2301, %v3621
    %v3980 = vsub.f32 %v2304, %v3625
    %v3981 = vsub.f32 %v2307, %v3629
    %v3982 = vsub.f32 %v2310, %v3633
    %v3983 = vsub.f32 %v2313, %v3637
    %v3984 = vsub.f32 %v2316, %v3641
    %v3985 = vsub.f32 %v2319, %v3645
    %v3986 = vsub.f32 %v2322, %v3649
    %v3987 = vsub.f32 %v2325, %v3653
    %v3988 = vsub.f32 %v2328, %v3657
    %v3989 = vsub.f32 %v2331, %v3661
    %v3990 = vsub.f32 %v2334, %v3665
    %v3991 = vsub.f32 %v2337, %v3669
    %v3992 = vsub.f32 %v2340, %v3673
    %v3993 = vsub.f32 %v2343, %v3677
    %v3994 = vsub.f32 %v2346, %v3681
    %v3995 = vsub.f32 %v2349, %v3685
    %v3996 = vsub.f32 %v2352, %v3689
    %v3997 = vsub.f32 %v2355, %v3693
    %v3998 = vsub.f32 %v2358, %v3697
    %v3999 = vsub.f32 %v2361, %v3701
    %v4000 = vsub.f32 %v2364, %v3705
    %v4001 = vsub.f32 %v2367, %v3709
    %v4002 = vsub.f32 %v2370, %v3713
    %v4003 = vsub.f32 %v2373, %v3717
    %v4004 = vsub.f32 %v2376, %v3721
    %v4005 = vsub.f32 %v2379, %v3725
    %v4006 = vsub.f32 %v2382, %v3729
    %v4007 = vsub.f32 %v2385, %v3733
    %v4008 = vsub.f32 %v2388, %v3737
    %v4009 = vsub.f32 %v2391, %v3741
    %v4010 = vsub.f32 %v2394, %v3745
    %v4011 = vsub.f32 %v2397, %v3749
    %v4012 = vsub.f32 %v2400, %v3753
    %v4013 = vsub.f32 %v2403, %v3757
    %v4014 = vmul.f32 %v3886, 1.442695
    %v4015 = vpow.pop %v4014
    %v4016 = vmul.f32 %v3887, 1.442695
    %v4017 = vpow.pop %v4016
    %v4018 = vmul.f32 %v3888, 1.442695
    %v4019 = vpow.pop %v4018
    %v4020 = vmul.f32 %v3889, 1.442695
    %v4021 = vpow.pop %v4020
    %v4022 = vmul.f32 %v3890, 1.442695
    %v4023 = vpow.pop %v4022
    %v4024 = vmul.f32 %v3891, 1.442695
    %v4025 = vpow.pop %v4024
    %v4026 = vmul.f32 %v3892, 1.442695
    %v4027 = vpow.pop %v4026
    %v4028 = vmul.f32 %v3893, 1.442695
    %v4029 = vpow.pop %v4028
    %v4030 = vmul.f32 %v3894, 1.442695
    %v4031 = vpow.pop %v4030
    %v4032 = vmul.f32 %v3895, 1.442695
    %v4033 = vpow.pop %v4032
    %v4034 = vmul.f32 %v3896, 1.442695
    %v4035 = vpow.pop %v4034
    %v4036 = vmul.f32 %v3897, 1.442695
    %v4037 = vpow.pop %v4036
    %v4038 = vmul.f32 %v3898, 1.442695
    %v4039 = vpow.pop %v4038
    %v4040 = vmul.f32 %v3899, 1.442695
    %v4041 = vpow.pop %v4040
    %v4042 = vmul.f32 %v3900, 1.442695
    %v4043 = vpow.pop %v4042
    %v4044 = vmul.f32 %v3901, 1.442695
    %v4045 = vpow.pop %v4044
    %v4046 = vmul.f32 %v3902, 1.442695
    %v4047 = vpow.pop %v4046
    %v4048 = vmul.f32 %v3903, 1.442695
    %v4049 = vpow.pop %v4048
    %v4050 = vmul.f32 %v3904, 1.442695
    %v4051 = vpow.pop %v4050
    %v4052 = vmul.f32 %v3905, 1.442695
    %v4053 = vpow.pop %v4052
    %v4054 = vmul.f32 %v3906, 1.442695
    %v4055 = vpow.pop %v4054
    %v4056 = vmul.f32 %v3907, 1.442695
    %v4057 = vpow.pop %v4056
    %v4058 = vmul.f32 %v3908, 1.442695
    %v4059 = vpow.pop %v4058
    %v4060 = vmul.f32 %v3909, 1.442695
    %v4061 = vpow.pop %v4060
    %v4062 = vmul.f32 %v3910, 1.442695
    %v4063 = vpow.pop %v4062
    %v4064 = vmul.f32 %v3911, 1.442695
    %v4065 = vpow.pop %v4064
    %v4066 = vmul.f32 %v3912, 1.442695
    %v4067 = vpow.pop %v4066
    %v4068 = vmul.f32 %v3913, 1.442695
    %v4069 = vpow.pop %v4068
    %v4070 = vmul.f32 %v3914, 1.442695
    %v4071 = vpow.pop %v4070
    %v4072 = vmul.f32 %v3915, 1.442695
    %v4073 = vpow.pop %v4072
    %v4074 = vmul.f32 %v3916, 1.442695
    %v4075 = vpow.pop %v4074
    %v4076 = vmul.f32 %v3917, 1.442695
    %v4077 = vpow.pop %v4076
    %v4078 = vmul.f32 %v3918, 1.442695
    %v4079 = vpow.pop %v4078
    %v4080 = vmul.f32 %v3919, 1.442695
    %v4081 = vpow.pop %v4080
    %v4082 = vmul.f32 %v3920, 1.442695
    %v4083 = vpow.pop %v4082
    %v4084 = vmul.f32 %v3921, 1.442695
    %v4085 = vpow.pop %v4084
    %v4086 = vmul.f32 %v3922, 1.442695
    %v4087 = vpow.pop %v4086
    %v4088 = vmul.f32 %v3923, 1.442695
    %v4089 = vpow.pop %v4088
    %v4090 = vmul.f32 %v3924, 1.442695
    %v4091 = vpow.pop %v4090
    %v4092 = vmul.f32 %v3925, 1.442695
    %v4093 = vpow.pop %v4092
    %v4094 = vmul.f32 %v3926, 1.442695
    %v4095 = vpow.pop %v4094
    %v4096 = vmul.f32 %v3927, 1.442695
    %v4097 = vpow.pop %v4096
    %v4098 = vmul.f32 %v3928, 1.442695
    %v4099 = vpow.pop %v4098
    %v4100 = vmul.f32 %v3929, 1.442695
    %v4101 = vpow.pop %v4100
    %v4102 = vmul.f32 %v3930, 1.442695
    %v4103 = vpow.pop %v4102
    %v4104 = vmul.f32 %v3931, 1.442695
    %v4105 = vpow.pop %v4104
    %v4106 = vmul.f32 %v3932, 1.442695
    %v4107 = vpow.pop %v4106
    %v4108 = vmul.f32 %v3933, 1.442695
    %v4109 = vpow.pop %v4108
    %v4110 = vmul.f32 %v3934, 1.442695
    %v4111 = vpow.pop %v4110
    %v4112 = vmul.f32 %v3935, 1.442695
    %v4113 = vpow.pop %v4112
    %v4114 = vmul.f32 %v3936, 1.442695
    %v4115 = vpow.pop %v4114
    %v4116 = vmul.f32 %v3937, 1.442695
    %v4117 = vpow.pop %v4116
    %v4118 = vmul.f32 %v3938, 1.442695
    %v4119 = vpow.pop %v4118
    %v4120 = vmul.f32 %v3939, 1.442695
    %v4121 = vpow.pop %v4120
    %v4122 = vmul.f32 %v3940, 1.442695
    %v4123 = vpow.pop %v4122
    %v4124 = vmul.f32 %v3941, 1.442695
    %v4125 = vpow.pop %v4124
    %v4126 = vmul.f32 %v3942, 1.442695
    %v4127 = vpow.pop %v4126
    %v4128 = vmul.f32 %v3943, 1.442695
    %v4129 = vpow.pop %v4128
    %v4130 = vmul.f32 %v3944, 1.442695
    %v4131 = vpow.pop %v4130
    %v4132 = vmul.f32 %v3945, 1.442695
    %v4133 = vpow.pop %v4132
    %v4134 = vmul.f32 %v3946, 1.442695
    %v4135 = vpow.pop %v4134
    %v4136 = vmul.f32 %v3947, 1.442695
    %v4137 = vpow.pop %v4136
    %v4138 = vmul.f32 %v3948, 1.442695
    %v4139 = vpow.pop %v4138
    %v4140 = vmul.f32 %v3949, 1.442695
    %v4141 = vpow.pop %v4140
    %v4142 = vmul.f32 %v3950, 1.442695
    %v4143 = vpow.pop %v4142
    %v4144 = vmul.f32 %v3951, 1.442695
    %v4145 = vpow.pop %v4144
    %v4146 = vmul.f32 %v3952, 1.442695
    %v4147 = vpow.pop %v4146
    %v4148 = vmul.f32 %v3953, 1.442695
    %v4149 = vpow.pop %v4148
    %v4150 = vmul.f32 %v3954, 1.442695
    %v4151 = vpow.pop %v4150
    %v4152 = vmul.f32 %v3955, 1.442695
    %v4153 = vpow.pop %v4152
    %v4154 = vmul.f32 %v3956, 1.442695
    %v4155 = vpow.pop %v4154
    %v4156 = vmul.f32 %v3957, 1.442695
    %v4157 = vpow.pop %v4156
    %v4158 = vmul.f32 %v3958, 1.442695
    %v4159 = vpow.pop %v4158
    %v4160 = vmul.f32 %v3959, 1.442695
    %v4161 = vpow.pop %v4160
    %v4162 = vmul.f32 %v3960, 1.442695
    %v4163 = vpow.pop %v4162
    %v4164 = vmul.f32 %v3961, 1.442695
    %v4165 = vpow.pop %v4164
    %v4166 = vmul.f32 %v3962, 1.442695
    %v4167 = vpow.pop %v4166
    %v4168 = vmul.f32 %v3963, 1.442695
    %v4169 = vpow.pop %v4168
    %v4170 = vmul.f32 %v3964, 1.442695
    %v4171 = vpow.pop %v4170
    %v4172 = vmul.f32 %v3965, 1.442695
    %v4173 = vpow.pop %v4172
    %v4174 = vmul.f32 %v3966, 1.442695
    %v4175 = vpow.pop %v4174
    %v4176 = vmul.f32 %v3967, 1.442695
    %v4177 = vpow.pop %v4176
    %v4178 = vmul.f32 %v3968, 1.442695
    %v4179 = vpow.pop %v4178
    %v4180 = vmul.f32 %v3969, 1.442695
    %v4181 = vpow.pop %v4180
    %v4182 = vmul.f32 %v3970, 1.442695
    %v4183 = vpow.pop %v4182
    %v4184 = vmul.f32 %v3971, 1.442695
    %v4185 = vpow.pop %v4184
    %v4186 = vmul.f32 %v3972, 1.442695
    %v4187 = vpow.pop %v4186
    %v4188 = vmul.f32 %v3973, 1.442695
    %v4189 = vpow.pop %v4188
    %v4190 = vmul.f32 %v3974, 1.442695
    %v4191 = vpow.pop %v4190
    %v4192 = vmul.f32 %v3975, 1.442695
    %v4193 = vpow.pop %v4192
    %v4194 = vmul.f32 %v3976, 1.442695
    %v4195 = vpow.pop %v4194
    %v4196 = vmul.f32 %v3977, 1.442695
    %v4197 = vpow.pop %v4196
    %v4198 = vmul.f32 %v3978, 1.442695
    %v4199 = vpow.pop %v4198
    %v4200 = vmul.f32 %v3979, 1.442695
    %v4201 = vpow.pop %v4200
    %v4202 = vmul.f32 %v3980, 1.442695
    %v4203 = vpow.pop %v4202
    %v4204 = vmul.f32 %v3981, 1.442695
    %v4205 = vpow.pop %v4204
    %v4206 = vmul.f32 %v3982, 1.442695
    %v4207 = vpow.pop %v4206
    %v4208 = vmul.f32 %v3983, 1.442695
    %v4209 = vpow.pop %v4208
    %v4210 = vmul.f32 %v3984, 1.442695
    %v4211 = vpow.pop %v4210
    %v4212 = vmul.f32 %v3985, 1.442695
    %v4213 = vpow.pop %v4212
    %v4214 = vmul.f32 %v3986, 1.442695
    %v4215 = vpow.pop %v4214
    %v4216 = vmul.f32 %v3987, 1.442695
    %v4217 = vpow.pop %v4216
    %v4218 = vmul.f32 %v3988, 1.442695
    %v4219 = vpow.pop %v4218
    %v4220 = vmul.f32 %v3989, 1.442695
    %v4221 = vpow.pop %v4220
    %v4222 = vmul.f32 %v3990, 1.442695
    %v4223 = vpow.pop %v4222
    %v4224 = vmul.f32 %v3991, 1.442695
    %v4225 = vpow.pop %v4224
    %v4226 = vmul.f32 %v3992, 1.442695
    %v4227 = vpow.pop %v4226
    %v4228 = vmul.f32 %v3993, 1.442695
    %v4229 = vpow.pop %v4228
    %v4230 = vmul.f32 %v3994, 1.442695
    %v4231 = vpow.pop %v4230
    %v4232 = vmul.f32 %v3995, 1.442695
    %v4233 = vpow.pop %v4232
    %v4234 = vmul.f32 %v3996, 1.442695
    %v4235 = vpow.pop %v4234
    %v4236 = vmul.f32 %v3997, 1.442695
    %v4237 = vpow.pop %v4236
    %v4238 = vmul.f32 %v3998, 1.442695
    %v4239 = vpow.pop %v4238
    %v4240 = vmul.f32 %v3999, 1.442695
    %v4241 = vpow.pop %v4240
    %v4242 = vmul.f32 %v4000, 1.442695
    %v4243 = vpow.pop %v4242
    %v4244 = vmul.f32 %v4001, 1.442695
    %v4245 = vpow.pop %v4244
    %v4246 = vmul.f32 %v4002, 1.442695
    %v4247 = vpow.pop %v4246
    %v4248 = vmul.f32 %v4003, 1.442695
    %v4249 = vpow.pop %v4248
    %v4250 = vmul.f32 %v4004, 1.442695
    %v4251 = vpow.pop %v4250
    %v4252 = vmul.f32 %v4005, 1.442695
    %v4253 = vpow.pop %v4252
    %v4254 = vmul.f32 %v4006, 1.442695
    %v4255 = vpow.pop %v4254
    %v4256 = vmul.f32 %v4007, 1.442695
    %v4257 = vpow.pop %v4256
    %v4258 = vmul.f32 %v4008, 1.442695
    %v4259 = vpow.pop %v4258
    %v4260 = vmul.f32 %v4009, 1.442695
    %v4261 = vpow.pop %v4260
    %v4262 = vmul.f32 %v4010, 1.442695
    %v4263 = vpow.pop %v4262
    %v4264 = vmul.f32 %v4011, 1.442695
    %v4265 = vpow.pop %v4264
    %v4266 = vmul.f32 %v4012, 1.442695
    %v4267 = vpow.pop %v4266
    %v4268 = vmul.f32 %v4013, 1.442695
    %v4269 = vpow.pop %v4268
    %4398 = vset.pattern.permute.xlu0 0
    %4399 = vperm.xlu0 %4398, %v4015
    %v4400 = vpop.permute.xlu0 %4399
    %4401 = vset.pattern.permute.xlu0 0
    %4402 = vperm.xlu0 %4401, %v4017
    %v4403 = vpop.permute.xlu0 %4402
    %4404 = vset.pattern.permute.xlu0 0
    %4405 = vperm.xlu0 %4404, %v4019
    %v4406 = vpop.permute.xlu0 %4405
    %4407 = vset.pattern.permute.xlu0 0
    %4408 = vperm.xlu0 %4407, %v4021
    %v4409 = vpop.permute.xlu0 %4408
    %4410 = vset.pattern.permute.xlu0 0
    %4411 = vperm.xlu0 %4410, %v4023
    %v4412 = vpop.permute.xlu0 %4411
    %4413 = vset.pattern.permute.xlu0 0
    %4414 = vperm.xlu0 %4413, %v4025
    %v4415 = vpop.permute.xlu0 %4414
    %4416 = vset.pattern.permute.xlu0 0
    %4417 = vperm.xlu0 %4416, %v4027
    %v4418 = vpop.permute.xlu0 %4417
    %4419 = vset.pattern.permute.xlu0 0
    %4420 = vperm.xlu0 %4419, %v4029
    %v4421 = vpop.permute.xlu0 %4420
    %4422 = vset.pattern.permute.xlu0 0
    %4423 = vperm.xlu0 %4422, %v4031
    %v4424 = vpop.permute.xlu0 %4423
    %4425 = vset.pattern.permute.xlu0 0
    %4426 = vperm.xlu0 %4425, %v4033
    %v4427 = vpop.permute.xlu0 %4426
    %4428 = vset.pattern.permute.xlu0 0
    %4429 = vperm.xlu0 %4428, %v4035
    %v4430 = vpop.permute.xlu0 %4429
    %4431 = vset.pattern.permute.xlu0 0
    %4432 = vperm.xlu0 %4431, %v4037
    %v4433 = vpop.permute.xlu0 %4432
    %4434 = vset.pattern.permute.xlu0 0
    %4435 = vperm.xlu0 %4434, %v4039
    %v4436 = vpop.permute.xlu0 %4435
    %4437 = vset.pattern.permute.xlu0 0
    %4438 = vperm.xlu0 %4437, %v4041
    %v4439 = vpop.permute.xlu0 %4438
    %4440 = vset.pattern.permute.xlu0 0
    %4441 = vperm.xlu0 %4440, %v4043
    %v4442 = vpop.permute.xlu0 %4441
    %4443 = vset.pattern.permute.xlu0 0
    %4444 = vperm.xlu0 %4443, %v4045
    %v4445 = vpop.permute.xlu0 %4444
    %4446 = vset.pattern.permute.xlu0 0
    %4447 = vperm.xlu0 %4446, %v4047
    %v4448 = vpop.permute.xlu0 %4447
    %4449 = vset.pattern.permute.xlu0 0
    %4450 = vperm.xlu0 %4449, %v4049
    %v4451 = vpop.permute.xlu0 %4450
    %4452 = vset.pattern.permute.xlu0 0
    %4453 = vperm.xlu0 %4452, %v4051
    %v4454 = vpop.permute.xlu0 %4453
    %4455 = vset.pattern.permute.xlu0 0
    %4456 = vperm.xlu0 %4455, %v4053
    %v4457 = vpop.permute.xlu0 %4456
    %4458 = vset.pattern.permute.xlu0 0
    %4459 = vperm.xlu0 %4458, %v4055
    %v4460 = vpop.permute.xlu0 %4459
    %4461 = vset.pattern.permute.xlu0 0
    %4462 = vperm.xlu0 %4461, %v4057
    %v4463 = vpop.permute.xlu0 %4462
    %4464 = vset.pattern.permute.xlu0 0
    %4465 = vperm.xlu0 %4464, %v4059
    %v4466 = vpop.permute.xlu0 %4465
    %4467 = vset.pattern.permute.xlu0 0
    %4468 = vperm.xlu0 %4467, %v4061
    %v4469 = vpop.permute.xlu0 %4468
    %4470 = vset.pattern.permute.xlu0 0
    %4471 = vperm.xlu0 %4470, %v4063
    %v4472 = vpop.permute.xlu0 %4471
    %4473 = vset.pattern.permute.xlu0 0
    %4474 = vperm.xlu0 %4473, %v4065
    %v4475 = vpop.permute.xlu0 %4474
    %4476 = vset.pattern.permute.xlu0 0
    %4477 = vperm.xlu0 %4476, %v4067
    %v4478 = vpop.permute.xlu0 %4477
    %4479 = vset.pattern.permute.xlu0 0
    %4480 = vperm.xlu0 %4479, %v4069
    %v4481 = vpop.permute.xlu0 %4480
    %4482 = vset.pattern.permute.xlu0 0
    %4483 = vperm.xlu0 %4482, %v4071
    %v4484 = vpop.permute.xlu0 %4483
    %4485 = vset.pattern.permute.xlu0 0
    %4486 = vperm.xlu0 %4485, %v4073
    %v4487 = vpop.permute.xlu0 %4486
    %4488 = vset.pattern.permute.xlu0 0
    %4489 = vperm.xlu0 %4488, %v4075
    %v4490 = vpop.permute.xlu0 %4489
    %4491 = vset.pattern.permute.xlu0 0
    %4492 = vperm.xlu0 %4491, %v4077
    %v4493 = vpop.permute.xlu0 %4492
    %4494 = vset.pattern.permute.xlu0 0
    %4495 = vperm.xlu0 %4494, %v4079
    %v4496 = vpop.permute.xlu0 %4495
    %4497 = vset.pattern.permute.xlu0 0
    %4498 = vperm.xlu0 %4497, %v4081
    %v4499 = vpop.permute.xlu0 %4498
    %4500 = vset.pattern.permute.xlu0 0
    %4501 = vperm.xlu0 %4500, %v4083
    %v4502 = vpop.permute.xlu0 %4501
    %4503 = vset.pattern.permute.xlu0 0
    %4504 = vperm.xlu0 %4503, %v4085
    %v4505 = vpop.permute.xlu0 %4504
    %4506 = vset.pattern.permute.xlu0 0
    %4507 = vperm.xlu0 %4506, %v4087
    %v4508 = vpop.permute.xlu0 %4507
    %4509 = vset.pattern.permute.xlu0 0
    %4510 = vperm.xlu0 %4509, %v4089
    %v4511 = vpop.permute.xlu0 %4510
    %4512 = vset.pattern.permute.xlu0 0
    %4513 = vperm.xlu0 %4512, %v4091
    %v4514 = vpop.permute.xlu0 %4513
    %4515 = vset.pattern.permute.xlu0 0
    %4516 = vperm.xlu0 %4515, %v4093
    %v4517 = vpop.permute.xlu0 %4516
    %4518 = vset.pattern.permute.xlu0 0
    %4519 = vperm.xlu0 %4518, %v4095
    %v4520 = vpop.permute.xlu0 %4519
    %4521 = vset.pattern.permute.xlu0 0
    %4522 = vperm.xlu0 %4521, %v4097
    %v4523 = vpop.permute.xlu0 %4522
    %4524 = vset.pattern.permute.xlu0 0
    %4525 = vperm.xlu0 %4524, %v4099
    %v4526 = vpop.permute.xlu0 %4525
    %4527 = vset.pattern.permute.xlu0 0
    %4528 = vperm.xlu0 %4527, %v4101
    %v4529 = vpop.permute.xlu0 %4528
    %4530 = vset.pattern.permute.xlu0 0
    %4531 = vperm.xlu0 %4530, %v4103
    %v4532 = vpop.permute.xlu0 %4531
    %4533 = vset.pattern.permute.xlu0 0
    %4534 = vperm.xlu0 %4533, %v4105
    %v4535 = vpop.permute.xlu0 %4534
    %4536 = vset.pattern.permute.xlu0 0
    %4537 = vperm.xlu0 %4536, %v4107
    %v4538 = vpop.permute.xlu0 %4537
    %4539 = vset.pattern.permute.xlu0 0
    %4540 = vperm.xlu0 %4539, %v4109
    %v4541 = vpop.permute.xlu0 %4540
    %4542 = vset.pattern.permute.xlu0 0
    %4543 = vperm.xlu0 %4542, %v4111
    %v4544 = vpop.permute.xlu0 %4543
    %4545 = vset.pattern.permute.xlu0 0
    %4546 = vperm.xlu0 %4545, %v4113
    %v4547 = vpop.permute.xlu0 %4546
    %4548 = vset.pattern.permute.xlu0 0
    %4549 = vperm.xlu0 %4548, %v4115
    %v4550 = vpop.permute.xlu0 %4549
    %4551 = vset.pattern.permute.xlu0 0
    %4552 = vperm.xlu0 %4551, %v4117
    %v4553 = vpop.permute.xlu0 %4552
    %4554 = vset.pattern.permute.xlu0 0
    %4555 = vperm.xlu0 %4554, %v4119
    %v4556 = vpop.permute.xlu0 %4555
    %4557 = vset.pattern.permute.xlu0 0
    %4558 = vperm.xlu0 %4557, %v4121
    %v4559 = vpop.permute.xlu0 %4558
    %4560 = vset.pattern.permute.xlu0 0
    %4561 = vperm.xlu0 %4560, %v4123
    %v4562 = vpop.permute.xlu0 %4561
    %4563 = vset.pattern.permute.xlu0 0
    %4564 = vperm.xlu0 %4563, %v4125
    %v4565 = vpop.permute.xlu0 %4564
    %4566 = vset.pattern.permute.xlu0 0
    %4567 = vperm.xlu0 %4566, %v4127
    %v4568 = vpop.permute.xlu0 %4567
    %4569 = vset.pattern.permute.xlu0 0
    %4570 = vperm.xlu0 %4569, %v4129
    %v4571 = vpop.permute.xlu0 %4570
    %4572 = vset.pattern.permute.xlu0 0
    %4573 = vperm.xlu0 %4572, %v4131
    %v4574 = vpop.permute.xlu0 %4573
    %4575 = vset.pattern.permute.xlu0 0
    %4576 = vperm.xlu0 %4575, %v4133
    %v4577 = vpop.permute.xlu0 %4576
    %4578 = vset.pattern.permute.xlu0 0
    %4579 = vperm.xlu0 %4578, %v4135
    %v4580 = vpop.permute.xlu0 %4579
    %4581 = vset.pattern.permute.xlu0 0
    %4582 = vperm.xlu0 %4581, %v4137
    %v4583 = vpop.permute.xlu0 %4582
    %4584 = vset.pattern.permute.xlu0 0
    %4585 = vperm.xlu0 %4584, %v4139
    %v4586 = vpop.permute.xlu0 %4585
    %4587 = vset.pattern.permute.xlu0 0
    %4588 = vperm.xlu0 %4587, %v4141
    %v4589 = vpop.permute.xlu0 %4588
    %4590 = vset.pattern.permute.xlu0 0
    %4591 = vperm.xlu0 %4590, %v4143
    %v4592 = vpop.permute.xlu0 %4591
    %4593 = vset.pattern.permute.xlu0 0
    %4594 = vperm.xlu0 %4593, %v4145
    %v4595 = vpop.permute.xlu0 %4594
    %4596 = vset.pattern.permute.xlu0 0
    %4597 = vperm.xlu0 %4596, %v4147
    %v4598 = vpop.permute.xlu0 %4597
    %4599 = vset.pattern.permute.xlu0 0
    %4600 = vperm.xlu0 %4599, %v4149
    %v4601 = vpop.permute.xlu0 %4600
    %4602 = vset.pattern.permute.xlu0 0
    %4603 = vperm.xlu0 %4602, %v4151
    %v4604 = vpop.permute.xlu0 %4603
    %4605 = vset.pattern.permute.xlu0 0
    %4606 = vperm.xlu0 %4605, %v4153
    %v4607 = vpop.permute.xlu0 %4606
    %4608 = vset.pattern.permute.xlu0 0
    %4609 = vperm.xlu0 %4608, %v4155
    %v4610 = vpop.permute.xlu0 %4609
    %4611 = vset.pattern.permute.xlu0 0
    %4612 = vperm.xlu0 %4611, %v4157
    %v4613 = vpop.permute.xlu0 %4612
    %4614 = vset.pattern.permute.xlu0 0
    %4615 = vperm.xlu0 %4614, %v4159
    %v4616 = vpop.permute.xlu0 %4615
    %4617 = vset.pattern.permute.xlu0 0
    %4618 = vperm.xlu0 %4617, %v4161
    %v4619 = vpop.permute.xlu0 %4618
    %4620 = vset.pattern.permute.xlu0 0
    %4621 = vperm.xlu0 %4620, %v4163
    %v4622 = vpop.permute.xlu0 %4621
    %4623 = vset.pattern.permute.xlu0 0
    %4624 = vperm.xlu0 %4623, %v4165
    %v4625 = vpop.permute.xlu0 %4624
    %4626 = vset.pattern.permute.xlu0 0
    %4627 = vperm.xlu0 %4626, %v4167
    %v4628 = vpop.permute.xlu0 %4627
    %4629 = vset.pattern.permute.xlu0 0
    %4630 = vperm.xlu0 %4629, %v4169
    %v4631 = vpop.permute.xlu0 %4630
    %4632 = vset.pattern.permute.xlu0 0
    %4633 = vperm.xlu0 %4632, %v4171
    %v4634 = vpop.permute.xlu0 %4633
    %4635 = vset.pattern.permute.xlu0 0
    %4636 = vperm.xlu0 %4635, %v4173
    %v4637 = vpop.permute.xlu0 %4636
    %4638 = vset.pattern.permute.xlu0 0
    %4639 = vperm.xlu0 %4638, %v4175
    %v4640 = vpop.permute.xlu0 %4639
    %4641 = vset.pattern.permute.xlu0 0
    %4642 = vperm.xlu0 %4641, %v4177
    %v4643 = vpop.permute.xlu0 %4642
    %4644 = vset.pattern.permute.xlu0 0
    %4645 = vperm.xlu0 %4644, %v4179
    %v4646 = vpop.permute.xlu0 %4645
    %4647 = vset.pattern.permute.xlu0 0
    %4648 = vperm.xlu0 %4647, %v4181
    %v4649 = vpop.permute.xlu0 %4648
    %4650 = vset.pattern.permute.xlu0 0
    %4651 = vperm.xlu0 %4650, %v4183
    %v4652 = vpop.permute.xlu0 %4651
    %4653 = vset.pattern.permute.xlu0 0
    %4654 = vperm.xlu0 %4653, %v4185
    %v4655 = vpop.permute.xlu0 %4654
    %4656 = vset.pattern.permute.xlu0 0
    %4657 = vperm.xlu0 %4656, %v4187
    %v4658 = vpop.permute.xlu0 %4657
    %4659 = vset.pattern.permute.xlu0 0
    %4660 = vperm.xlu0 %4659, %v4189
    %v4661 = vpop.permute.xlu0 %4660
    %4662 = vset.pattern.permute.xlu0 0
    %4663 = vperm.xlu0 %4662, %v4191
    %v4664 = vpop.permute.xlu0 %4663
    %4665 = vset.pattern.permute.xlu0 0
    %4666 = vperm.xlu0 %4665, %v4193
    %v4667 = vpop.permute.xlu0 %4666
    %4668 = vset.pattern.permute.xlu0 0
    %4669 = vperm.xlu0 %4668, %v4195
    %v4670 = vpop.permute.xlu0 %4669
    %4671 = vset.pattern.permute.xlu0 0
    %4672 = vperm.xlu0 %4671, %v4197
    %v4673 = vpop.permute.xlu0 %4672
    %4674 = vset.pattern.permute.xlu0 0
    %4675 = vperm.xlu0 %4674, %v4199
    %v4676 = vpop.permute.xlu0 %4675
    %4677 = vset.pattern.permute.xlu0 0
    %4678 = vperm.xlu0 %4677, %v4201
    %v4679 = vpop.permute.xlu0 %4678
    %4680 = vset.pattern.permute.xlu0 0
    %4681 = vperm.xlu0 %4680, %v4203
    %v4682 = vpop.permute.xlu0 %4681
    %4683 = vset.pattern.permute.xlu0 0
    %4684 = vperm.xlu0 %4683, %v4205
    %v4685 = vpop.permute.xlu0 %4684
    %4686 = vset.pattern.permute.xlu0 0
    %4687 = vperm.xlu0 %4686, %v4207
    %v4688 = vpop.permute.xlu0 %4687
    %4689 = vset.pattern.permute.xlu0 0
    %4690 = vperm.xlu0 %4689, %v4209
    %v4691 = vpop.permute.xlu0 %4690
    %4692 = vset.pattern.permute.xlu0 0
    %4693 = vperm.xlu0 %4692, %v4211
    %v4694 = vpop.permute.xlu0 %4693
    %4695 = vset.pattern.permute.xlu0 0
    %4696 = vperm.xlu0 %4695, %v4213
    %v4697 = vpop.permute.xlu0 %4696
    %4698 = vset.pattern.permute.xlu0 0
    %4699 = vperm.xlu0 %4698, %v4215
    %v4700 = vpop.permute.xlu0 %4699
    %4701 = vset.pattern.permute.xlu0 0
    %4702 = vperm.xlu0 %4701, %v4217
    %v4703 = vpop.permute.xlu0 %4702
    %4704 = vset.pattern.permute.xlu0 0
    %4705 = vperm.xlu0 %4704, %v4219
    %v4706 = vpop.permute.xlu0 %4705
    %4707 = vset.pattern.permute.xlu0 0
    %4708 = vperm.xlu0 %4707, %v4221
    %v4709 = vpop.permute.xlu0 %4708
    %4710 = vset.pattern.permute.xlu0 0
    %4711 = vperm.xlu0 %4710, %v4223
    %v4712 = vpop.permute.xlu0 %4711
    %4713 = vset.pattern.permute.xlu0 0
    %4714 = vperm.xlu0 %4713, %v4225
    %v4715 = vpop.permute.xlu0 %4714
    %4716 = vset.pattern.permute.xlu0 0
    %4717 = vperm.xlu0 %4716, %v4227
    %v4718 = vpop.permute.xlu0 %4717
    %4719 = vset.pattern.permute.xlu0 0
    %4720 = vperm.xlu0 %4719, %v4229
    %v4721 = vpop.permute.xlu0 %4720
    %4722 = vset.pattern.permute.xlu0 0
    %4723 = vperm.xlu0 %4722, %v4231
    %v4724 = vpop.permute.xlu0 %4723
    %4725 = vset.pattern.permute.xlu0 0
    %4726 = vperm.xlu0 %4725, %v4233
    %v4727 = vpop.permute.xlu0 %4726
    %4728 = vset.pattern.permute.xlu0 0
    %4729 = vperm.xlu0 %4728, %v4235
    %v4730 = vpop.permute.xlu0 %4729
    %4731 = vset.pattern.permute.xlu0 0
    %4732 = vperm.xlu0 %4731, %v4237
    %v4733 = vpop.permute.xlu0 %4732
    %4734 = vset.pattern.permute.xlu0 0
    %4735 = vperm.xlu0 %4734, %v4239
    %v4736 = vpop.permute.xlu0 %4735
    %4737 = vset.pattern.permute.xlu0 0
    %4738 = vperm.xlu0 %4737, %v4241
    %v4739 = vpop.permute.xlu0 %4738
    %4740 = vset.pattern.permute.xlu0 0
    %4741 = vperm.xlu0 %4740, %v4243
    %v4742 = vpop.permute.xlu0 %4741
    %4743 = vset.pattern.permute.xlu0 0
    %4744 = vperm.xlu0 %4743, %v4245
    %v4745 = vpop.permute.xlu0 %4744
    %4746 = vset.pattern.permute.xlu0 0
    %4747 = vperm.xlu0 %4746, %v4247
    %v4748 = vpop.permute.xlu0 %4747
    %4749 = vset.pattern.permute.xlu0 0
    %4750 = vperm.xlu0 %4749, %v4249
    %v4751 = vpop.permute.xlu0 %4750
    %4752 = vset.pattern.permute.xlu0 0
    %4753 = vperm.xlu0 %4752, %v4251
    %v4754 = vpop.permute.xlu0 %4753
    %4755 = vset.pattern.permute.xlu0 0
    %4756 = vperm.xlu0 %4755, %v4253
    %v4757 = vpop.permute.xlu0 %4756
    %4758 = vset.pattern.permute.xlu0 0
    %4759 = vperm.xlu0 %4758, %v4255
    %v4760 = vpop.permute.xlu0 %4759
    %4761 = vset.pattern.permute.xlu0 0
    %4762 = vperm.xlu0 %4761, %v4257
    %v4763 = vpop.permute.xlu0 %4762
    %4764 = vset.pattern.permute.xlu0 0
    %4765 = vperm.xlu0 %4764, %v4259
    %v4766 = vpop.permute.xlu0 %4765
    %4767 = vset.pattern.permute.xlu0 0
    %4768 = vperm.xlu0 %4767, %v4261
    %v4769 = vpop.permute.xlu0 %4768
    %4770 = vset.pattern.permute.xlu0 0
    %4771 = vperm.xlu0 %4770, %v4263
    %v4772 = vpop.permute.xlu0 %4771
    %4773 = vset.pattern.permute.xlu0 0
    %4774 = vperm.xlu0 %4773, %v4265
    %v4775 = vpop.permute.xlu0 %4774
    %4776 = vset.pattern.permute.xlu0 0
    %4777 = vperm.xlu0 %4776, %v4267
    %v4778 = vpop.permute.xlu0 %4777
    %4779 = vset.pattern.permute.xlu0 0
    %4780 = vperm.xlu0 %4779, %v4269
    %v4781 = vpop.permute.xlu0 %4780
    %v4782 = vlaneseq
    %v4783 = vshrl.u32 %v4782, 7
    %v4784 = vsub.s32 %v2533, %v4783
    %v4785 = vrot.slane %v4400, %v4784
    %v4786 = vlaneseq
    %v4787 = vshrl.u32 %v4786, 7
    %v4788 = vsub.s32 %v2533, %v4787
    %v4789 = vrot.slane %v4403, %v4788
    %v4790 = vlaneseq
    %v4791 = vshrl.u32 %v4790, 7
    %v4792 = vsub.s32 %v2533, %v4791
    %v4793 = vrot.slane %v4406, %v4792
    %v4794 = vlaneseq
    %v4795 = vshrl.u32 %v4794, 7
    %v4796 = vsub.s32 %v2533, %v4795
    %v4797 = vrot.slane %v4409, %v4796
    %v4798 = vlaneseq
    %v4799 = vshrl.u32 %v4798, 7
    %v4800 = vsub.s32 %v2533, %v4799
    %v4801 = vrot.slane %v4412, %v4800
    %v4802 = vlaneseq
    %v4803 = vshrl.u32 %v4802, 7
    %v4804 = vsub.s32 %v2533, %v4803
    %v4805 = vrot.slane %v4415, %v4804
    %v4806 = vlaneseq
    %v4807 = vshrl.u32 %v4806, 7
    %v4808 = vsub.s32 %v2533, %v4807
    %v4809 = vrot.slane %v4418, %v4808
    %v4810 = vlaneseq
    %v4811 = vshrl.u32 %v4810, 7
    %v4812 = vsub.s32 %v2533, %v4811
    %v4813 = vrot.slane %v4421, %v4812
    %v4814 = vlaneseq
    %v4815 = vshrl.u32 %v4814, 7
    %v4816 = vsub.s32 %v2533, %v4815
    %v4817 = vrot.slane %v4424, %v4816
    %v4818 = vlaneseq
    %v4819 = vshrl.u32 %v4818, 7
    %v4820 = vsub.s32 %v2533, %v4819
    %v4821 = vrot.slane %v4427, %v4820
    %v4822 = vlaneseq
    %v4823 = vshrl.u32 %v4822, 7
    %v4824 = vsub.s32 %v2533, %v4823
    %v4825 = vrot.slane %v4430, %v4824
    %v4826 = vlaneseq
    %v4827 = vshrl.u32 %v4826, 7
    %v4828 = vsub.s32 %v2533, %v4827
    %v4829 = vrot.slane %v4433, %v4828
    %v4830 = vlaneseq
    %v4831 = vshrl.u32 %v4830, 7
    %v4832 = vsub.s32 %v2533, %v4831
    %v4833 = vrot.slane %v4436, %v4832
    %v4834 = vlaneseq
    %v4835 = vshrl.u32 %v4834, 7
    %v4836 = vsub.s32 %v2533, %v4835
    %v4837 = vrot.slane %v4439, %v4836
    %v4838 = vlaneseq
    %v4839 = vshrl.u32 %v4838, 7
    %v4840 = vsub.s32 %v2533, %v4839
    %v4841 = vrot.slane %v4442, %v4840
    %v4842 = vlaneseq
    %v4843 = vshrl.u32 %v4842, 7
    %v4844 = vsub.s32 %v2533, %v4843
    %v4845 = vrot.slane %v4445, %v4844
    %v4846 = vlaneseq
    %v4847 = vshrl.u32 %v4846, 7
    %v4848 = vsub.s32 %v2533, %v4847
    %v4849 = vrot.slane %v4448, %v4848
    %v4850 = vlaneseq
    %v4851 = vshrl.u32 %v4850, 7
    %v4852 = vsub.s32 %v2533, %v4851
    %v4853 = vrot.slane %v4451, %v4852
    %v4854 = vlaneseq
    %v4855 = vshrl.u32 %v4854, 7
    %v4856 = vsub.s32 %v2533, %v4855
    %v4857 = vrot.slane %v4454, %v4856
    %v4858 = vlaneseq
    %v4859 = vshrl.u32 %v4858, 7
    %v4860 = vsub.s32 %v2533, %v4859
    %v4861 = vrot.slane %v4457, %v4860
    %v4862 = vlaneseq
    %v4863 = vshrl.u32 %v4862, 7
    %v4864 = vsub.s32 %v2533, %v4863
    %v4865 = vrot.slane %v4460, %v4864
    %v4866 = vlaneseq
    %v4867 = vshrl.u32 %v4866, 7
    %v4868 = vsub.s32 %v2533, %v4867
    %v4869 = vrot.slane %v4463, %v4868
    %v4870 = vlaneseq
    %v4871 = vshrl.u32 %v4870, 7
    %v4872 = vsub.s32 %v2533, %v4871
    %v4873 = vrot.slane %v4466, %v4872
    %v4874 = vlaneseq
    %v4875 = vshrl.u32 %v4874, 7
    %v4876 = vsub.s32 %v2533, %v4875
    %v4877 = vrot.slane %v4469, %v4876
    %v4878 = vlaneseq
    %v4879 = vshrl.u32 %v4878, 7
    %v4880 = vsub.s32 %v2533, %v4879
    %v4881 = vrot.slane %v4472, %v4880
    %v4882 = vlaneseq
    %v4883 = vshrl.u32 %v4882, 7
    %v4884 = vsub.s32 %v2533, %v4883
    %v4885 = vrot.slane %v4475, %v4884
    %v4886 = vlaneseq
    %v4887 = vshrl.u32 %v4886, 7
    %v4888 = vsub.s32 %v2533, %v4887
    %v4889 = vrot.slane %v4478, %v4888
    %v4890 = vlaneseq
    %v4891 = vshrl.u32 %v4890, 7
    %v4892 = vsub.s32 %v2533, %v4891
    %v4893 = vrot.slane %v4481, %v4892
    %v4894 = vlaneseq
    %v4895 = vshrl.u32 %v4894, 7
    %v4896 = vsub.s32 %v2533, %v4895
    %v4897 = vrot.slane %v4484, %v4896
    %v4898 = vlaneseq
    %v4899 = vshrl.u32 %v4898, 7
    %v4900 = vsub.s32 %v2533, %v4899
    %v4901 = vrot.slane %v4487, %v4900
    %v4902 = vlaneseq
    %v4903 = vshrl.u32 %v4902, 7
    %v4904 = vsub.s32 %v2533, %v4903
    %v4905 = vrot.slane %v4490, %v4904
    %v4906 = vlaneseq
    %v4907 = vshrl.u32 %v4906, 7
    %v4908 = vsub.s32 %v2533, %v4907
    %v4909 = vrot.slane %v4493, %v4908
    %v4910 = vlaneseq
    %v4911 = vshrl.u32 %v4910, 7
    %v4912 = vsub.s32 %v2533, %v4911
    %v4913 = vrot.slane %v4496, %v4912
    %v4914 = vlaneseq
    %v4915 = vshrl.u32 %v4914, 7
    %v4916 = vsub.s32 %v2533, %v4915
    %v4917 = vrot.slane %v4499, %v4916
    %v4918 = vlaneseq
    %v4919 = vshrl.u32 %v4918, 7
    %v4920 = vsub.s32 %v2533, %v4919
    %v4921 = vrot.slane %v4502, %v4920
    %v4922 = vlaneseq
    %v4923 = vshrl.u32 %v4922, 7
    %v4924 = vsub.s32 %v2533, %v4923
    %v4925 = vrot.slane %v4505, %v4924
    %v4926 = vlaneseq
    %v4927 = vshrl.u32 %v4926, 7
    %v4928 = vsub.s32 %v2533, %v4927
    %v4929 = vrot.slane %v4508, %v4928
    %v4930 = vlaneseq
    %v4931 = vshrl.u32 %v4930, 7
    %v4932 = vsub.s32 %v2533, %v4931
    %v4933 = vrot.slane %v4511, %v4932
    %v4934 = vlaneseq
    %v4935 = vshrl.u32 %v4934, 7
    %v4936 = vsub.s32 %v2533, %v4935
    %v4937 = vrot.slane %v4514, %v4936
    %v4938 = vlaneseq
    %v4939 = vshrl.u32 %v4938, 7
    %v4940 = vsub.s32 %v2533, %v4939
    %v4941 = vrot.slane %v4517, %v4940
    %v4942 = vlaneseq
    %v4943 = vshrl.u32 %v4942, 7
    %v4944 = vsub.s32 %v2533, %v4943
    %v4945 = vrot.slane %v4520, %v4944
    %v4946 = vlaneseq
    %v4947 = vshrl.u32 %v4946, 7
    %v4948 = vsub.s32 %v2533, %v4947
    %v4949 = vrot.slane %v4523, %v4948
    %v4950 = vlaneseq
    %v4951 = vshrl.u32 %v4950, 7
    %v4952 = vsub.s32 %v2533, %v4951
    %v4953 = vrot.slane %v4526, %v4952
    %v4954 = vlaneseq
    %v4955 = vshrl.u32 %v4954, 7
    %v4956 = vsub.s32 %v2533, %v4955
    %v4957 = vrot.slane %v4529, %v4956
    %v4958 = vlaneseq
    %v4959 = vshrl.u32 %v4958, 7
    %v4960 = vsub.s32 %v2533, %v4959
    %v4961 = vrot.slane %v4532, %v4960
    %v4962 = vlaneseq
    %v4963 = vshrl.u32 %v4962, 7
    %v4964 = vsub.s32 %v2533, %v4963
    %v4965 = vrot.slane %v4535, %v4964
    %v4966 = vlaneseq
    %v4967 = vshrl.u32 %v4966, 7
    %v4968 = vsub.s32 %v2533, %v4967
    %v4969 = vrot.slane %v4538, %v4968
    %v4970 = vlaneseq
    %v4971 = vshrl.u32 %v4970, 7
    %v4972 = vsub.s32 %v2533, %v4971
    %v4973 = vrot.slane %v4541, %v4972
    %v4974 = vlaneseq
    %v4975 = vshrl.u32 %v4974, 7
    %v4976 = vsub.s32 %v2533, %v4975
    %v4977 = vrot.slane %v4544, %v4976
    %v4978 = vlaneseq
    %v4979 = vshrl.u32 %v4978, 7
    %v4980 = vsub.s32 %v2533, %v4979
    %v4981 = vrot.slane %v4547, %v4980
    %v4982 = vlaneseq
    %v4983 = vshrl.u32 %v4982, 7
    %v4984 = vsub.s32 %v2533, %v4983
    %v4985 = vrot.slane %v4550, %v4984
    %v4986 = vlaneseq
    %v4987 = vshrl.u32 %v4986, 7
    %v4988 = vsub.s32 %v2533, %v4987
    %v4989 = vrot.slane %v4553, %v4988
    %v4990 = vlaneseq
    %v4991 = vshrl.u32 %v4990, 7
    %v4992 = vsub.s32 %v2533, %v4991
    %v4993 = vrot.slane %v4556, %v4992
    %v4994 = vlaneseq
    %v4995 = vshrl.u32 %v4994, 7
    %v4996 = vsub.s32 %v2533, %v4995
    %v4997 = vrot.slane %v4559, %v4996
    %v4998 = vlaneseq
    %v4999 = vshrl.u32 %v4998, 7
    %v5000 = vsub.s32 %v2533, %v4999
    %v5001 = vrot.slane %v4562, %v5000
    %v5002 = vlaneseq
    %v5003 = vshrl.u32 %v5002, 7
    %v5004 = vsub.s32 %v2533, %v5003
    %v5005 = vrot.slane %v4565, %v5004
    %v5006 = vlaneseq
    %v5007 = vshrl.u32 %v5006, 7
    %v5008 = vsub.s32 %v2533, %v5007
    %v5009 = vrot.slane %v4568, %v5008
    %v5010 = vlaneseq
    %v5011 = vshrl.u32 %v5010, 7
    %v5012 = vsub.s32 %v2533, %v5011
    %v5013 = vrot.slane %v4571, %v5012
    %v5014 = vlaneseq
    %v5015 = vshrl.u32 %v5014, 7
    %v5016 = vsub.s32 %v2533, %v5015
    %v5017 = vrot.slane %v4574, %v5016
    %v5018 = vlaneseq
    %v5019 = vshrl.u32 %v5018, 7
    %v5020 = vsub.s32 %v2533, %v5019
    %v5021 = vrot.slane %v4577, %v5020
    %v5022 = vlaneseq
    %v5023 = vshrl.u32 %v5022, 7
    %v5024 = vsub.s32 %v2533, %v5023
    %v5025 = vrot.slane %v4580, %v5024
    %v5026 = vlaneseq
    %v5027 = vshrl.u32 %v5026, 7
    %v5028 = vsub.s32 %v2533, %v5027
    %v5029 = vrot.slane %v4583, %v5028
    %v5030 = vlaneseq
    %v5031 = vshrl.u32 %v5030, 7
    %v5032 = vsub.s32 %v2533, %v5031
    %v5033 = vrot.slane %v4586, %v5032
    %v5034 = vlaneseq
    %v5035 = vshrl.u32 %v5034, 7
    %v5036 = vsub.s32 %v2533, %v5035
    %v5037 = vrot.slane %v4589, %v5036
    %v5038 = vlaneseq
    %v5039 = vshrl.u32 %v5038, 7
    %v5040 = vsub.s32 %v2533, %v5039
    %v5041 = vrot.slane %v4592, %v5040
    %v5042 = vlaneseq
    %v5043 = vshrl.u32 %v5042, 7
    %v5044 = vsub.s32 %v2533, %v5043
    %v5045 = vrot.slane %v4595, %v5044
    %v5046 = vlaneseq
    %v5047 = vshrl.u32 %v5046, 7
    %v5048 = vsub.s32 %v2533, %v5047
    %v5049 = vrot.slane %v4598, %v5048
    %v5050 = vlaneseq
    %v5051 = vshrl.u32 %v5050, 7
    %v5052 = vsub.s32 %v2533, %v5051
    %v5053 = vrot.slane %v4601, %v5052
    %v5054 = vlaneseq
    %v5055 = vshrl.u32 %v5054, 7
    %v5056 = vsub.s32 %v2533, %v5055
    %v5057 = vrot.slane %v4604, %v5056
    %v5058 = vlaneseq
    %v5059 = vshrl.u32 %v5058, 7
    %v5060 = vsub.s32 %v2533, %v5059
    %v5061 = vrot.slane %v4607, %v5060
    %v5062 = vlaneseq
    %v5063 = vshrl.u32 %v5062, 7
    %v5064 = vsub.s32 %v2533, %v5063
    %v5065 = vrot.slane %v4610, %v5064
    %v5066 = vlaneseq
    %v5067 = vshrl.u32 %v5066, 7
    %v5068 = vsub.s32 %v2533, %v5067
    %v5069 = vrot.slane %v4613, %v5068
    %v5070 = vlaneseq
    %v5071 = vshrl.u32 %v5070, 7
    %v5072 = vsub.s32 %v2533, %v5071
    %v5073 = vrot.slane %v4616, %v5072
    %v5074 = vlaneseq
    %v5075 = vshrl.u32 %v5074, 7
    %v5076 = vsub.s32 %v2533, %v5075
    %v5077 = vrot.slane %v4619, %v5076
    %v5078 = vlaneseq
    %v5079 = vshrl.u32 %v5078, 7
    %v5080 = vsub.s32 %v2533, %v5079
    %v5081 = vrot.slane %v4622, %v5080
    %v5082 = vlaneseq
    %v5083 = vshrl.u32 %v5082, 7
    %v5084 = vsub.s32 %v2533, %v5083
    %v5085 = vrot.slane %v4625, %v5084
    %v5086 = vlaneseq
    %v5087 = vshrl.u32 %v5086, 7
    %v5088 = vsub.s32 %v2533, %v5087
    %v5089 = vrot.slane %v4628, %v5088
    %v5090 = vlaneseq
    %v5091 = vshrl.u32 %v5090, 7
    %v5092 = vsub.s32 %v2533, %v5091
    %v5093 = vrot.slane %v4631, %v5092
    %v5094 = vlaneseq
    %v5095 = vshrl.u32 %v5094, 7
    %v5096 = vsub.s32 %v2533, %v5095
    %v5097 = vrot.slane %v4634, %v5096
    %v5098 = vlaneseq
    %v5099 = vshrl.u32 %v5098, 7
    %v5100 = vsub.s32 %v2533, %v5099
    %v5101 = vrot.slane %v4637, %v5100
    %v5102 = vlaneseq
    %v5103 = vshrl.u32 %v5102, 7
    %v5104 = vsub.s32 %v2533, %v5103
    %v5105 = vrot.slane %v4640, %v5104
    %v5106 = vlaneseq
    %v5107 = vshrl.u32 %v5106, 7
    %v5108 = vsub.s32 %v2533, %v5107
    %v5109 = vrot.slane %v4643, %v5108
    %v5110 = vlaneseq
    %v5111 = vshrl.u32 %v5110, 7
    %v5112 = vsub.s32 %v2533, %v5111
    %v5113 = vrot.slane %v4646, %v5112
    %v5114 = vlaneseq
    %v5115 = vshrl.u32 %v5114, 7
    %v5116 = vsub.s32 %v2533, %v5115
    %v5117 = vrot.slane %v4649, %v5116
    %v5118 = vlaneseq
    %v5119 = vshrl.u32 %v5118, 7
    %v5120 = vsub.s32 %v2533, %v5119
    %v5121 = vrot.slane %v4652, %v5120
    %v5122 = vlaneseq
    %v5123 = vshrl.u32 %v5122, 7
    %v5124 = vsub.s32 %v2533, %v5123
    %v5125 = vrot.slane %v4655, %v5124
    %v5126 = vlaneseq
    %v5127 = vshrl.u32 %v5126, 7
    %v5128 = vsub.s32 %v2533, %v5127
    %v5129 = vrot.slane %v4658, %v5128
    %v5130 = vlaneseq
    %v5131 = vshrl.u32 %v5130, 7
    %v5132 = vsub.s32 %v2533, %v5131
    %v5133 = vrot.slane %v4661, %v5132
    %v5134 = vlaneseq
    %v5135 = vshrl.u32 %v5134, 7
    %v5136 = vsub.s32 %v2533, %v5135
    %v5137 = vrot.slane %v4664, %v5136
    %v5138 = vlaneseq
    %v5139 = vshrl.u32 %v5138, 7
    %v5140 = vsub.s32 %v2533, %v5139
    %v5141 = vrot.slane %v4667, %v5140
    %v5142 = vlaneseq
    %v5143 = vshrl.u32 %v5142, 7
    %v5144 = vsub.s32 %v2533, %v5143
    %v5145 = vrot.slane %v4670, %v5144
    %v5146 = vlaneseq
    %v5147 = vshrl.u32 %v5146, 7
    %v5148 = vsub.s32 %v2533, %v5147
    %v5149 = vrot.slane %v4673, %v5148
    %v5150 = vlaneseq
    %v5151 = vshrl.u32 %v5150, 7
    %v5152 = vsub.s32 %v2533, %v5151
    %v5153 = vrot.slane %v4676, %v5152
    %v5154 = vlaneseq
    %v5155 = vshrl.u32 %v5154, 7
    %v5156 = vsub.s32 %v2533, %v5155
    %v5157 = vrot.slane %v4679, %v5156
    %v5158 = vlaneseq
    %v5159 = vshrl.u32 %v5158, 7
    %v5160 = vsub.s32 %v2533, %v5159
    %v5161 = vrot.slane %v4682, %v5160
    %v5162 = vlaneseq
    %v5163 = vshrl.u32 %v5162, 7
    %v5164 = vsub.s32 %v2533, %v5163
    %v5165 = vrot.slane %v4685, %v5164
    %v5166 = vlaneseq
    %v5167 = vshrl.u32 %v5166, 7
    %v5168 = vsub.s32 %v2533, %v5167
    %v5169 = vrot.slane %v4688, %v5168
    %v5170 = vlaneseq
    %v5171 = vshrl.u32 %v5170, 7
    %v5172 = vsub.s32 %v2533, %v5171
    %v5173 = vrot.slane %v4691, %v5172
    %v5174 = vlaneseq
    %v5175 = vshrl.u32 %v5174, 7
    %v5176 = vsub.s32 %v2533, %v5175
    %v5177 = vrot.slane %v4694, %v5176
    %v5178 = vlaneseq
    %v5179 = vshrl.u32 %v5178, 7
    %v5180 = vsub.s32 %v2533, %v5179
    %v5181 = vrot.slane %v4697, %v5180
    %v5182 = vlaneseq
    %v5183 = vshrl.u32 %v5182, 7
    %v5184 = vsub.s32 %v2533, %v5183
    %v5185 = vrot.slane %v4700, %v5184
    %v5186 = vlaneseq
    %v5187 = vshrl.u32 %v5186, 7
    %v5188 = vsub.s32 %v2533, %v5187
    %v5189 = vrot.slane %v4703, %v5188
    %v5190 = vlaneseq
    %v5191 = vshrl.u32 %v5190, 7
    %v5192 = vsub.s32 %v2533, %v5191
    %v5193 = vrot.slane %v4706, %v5192
    %v5194 = vlaneseq
    %v5195 = vshrl.u32 %v5194, 7
    %v5196 = vsub.s32 %v2533, %v5195
    %v5197 = vrot.slane %v4709, %v5196
    %v5198 = vlaneseq
    %v5199 = vshrl.u32 %v5198, 7
    %v5200 = vsub.s32 %v2533, %v5199
    %v5201 = vrot.slane %v4712, %v5200
    %v5202 = vlaneseq
    %v5203 = vshrl.u32 %v5202, 7
    %v5204 = vsub.s32 %v2533, %v5203
    %v5205 = vrot.slane %v4715, %v5204
    %v5206 = vlaneseq
    %v5207 = vshrl.u32 %v5206, 7
    %v5208 = vsub.s32 %v2533, %v5207
    %v5209 = vrot.slane %v4718, %v5208
    %v5210 = vlaneseq
    %v5211 = vshrl.u32 %v5210, 7
    %v5212 = vsub.s32 %v2533, %v5211
    %v5213 = vrot.slane %v4721, %v5212
    %v5214 = vlaneseq
    %v5215 = vshrl.u32 %v5214, 7
    %v5216 = vsub.s32 %v2533, %v5215
    %v5217 = vrot.slane %v4724, %v5216
    %v5218 = vlaneseq
    %v5219 = vshrl.u32 %v5218, 7
    %v5220 = vsub.s32 %v2533, %v5219
    %v5221 = vrot.slane %v4727, %v5220
    %v5222 = vlaneseq
    %v5223 = vshrl.u32 %v5222, 7
    %v5224 = vsub.s32 %v2533, %v5223
    %v5225 = vrot.slane %v4730, %v5224
    %v5226 = vlaneseq
    %v5227 = vshrl.u32 %v5226, 7
    %v5228 = vsub.s32 %v2533, %v5227
    %v5229 = vrot.slane %v4733, %v5228
    %v5230 = vlaneseq
    %v5231 = vshrl.u32 %v5230, 7
    %v5232 = vsub.s32 %v2533, %v5231
    %v5233 = vrot.slane %v4736, %v5232
    %v5234 = vlaneseq
    %v5235 = vshrl.u32 %v5234, 7
    %v5236 = vsub.s32 %v2533, %v5235
    %v5237 = vrot.slane %v4739, %v5236
    %v5238 = vlaneseq
    %v5239 = vshrl.u32 %v5238, 7
    %v5240 = vsub.s32 %v2533, %v5239
    %v5241 = vrot.slane %v4742, %v5240
    %v5242 = vlaneseq
    %v5243 = vshrl.u32 %v5242, 7
    %v5244 = vsub.s32 %v2533, %v5243
    %v5245 = vrot.slane %v4745, %v5244
    %v5246 = vlaneseq
    %v5247 = vshrl.u32 %v5246, 7
    %v5248 = vsub.s32 %v2533, %v5247
    %v5249 = vrot.slane %v4748, %v5248
    %v5250 = vlaneseq
    %v5251 = vshrl.u32 %v5250, 7
    %v5252 = vsub.s32 %v2533, %v5251
    %v5253 = vrot.slane %v4751, %v5252
    %v5254 = vlaneseq
    %v5255 = vshrl.u32 %v5254, 7
    %v5256 = vsub.s32 %v2533, %v5255
    %v5257 = vrot.slane %v4754, %v5256
    %v5258 = vlaneseq
    %v5259 = vshrl.u32 %v5258, 7
    %v5260 = vsub.s32 %v2533, %v5259
    %v5261 = vrot.slane %v4757, %v5260
    %v5262 = vlaneseq
    %v5263 = vshrl.u32 %v5262, 7
    %v5264 = vsub.s32 %v2533, %v5263
    %v5265 = vrot.slane %v4760, %v5264
    %v5266 = vlaneseq
    %v5267 = vshrl.u32 %v5266, 7
    %v5268 = vsub.s32 %v2533, %v5267
    %v5269 = vrot.slane %v4763, %v5268
    %v5270 = vlaneseq
    %v5271 = vshrl.u32 %v5270, 7
    %v5272 = vsub.s32 %v2533, %v5271
    %v5273 = vrot.slane %v4766, %v5272
    %v5274 = vlaneseq
    %v5275 = vshrl.u32 %v5274, 7
    %v5276 = vsub.s32 %v2533, %v5275
    %v5277 = vrot.slane %v4769, %v5276
    %v5278 = vlaneseq
    %v5279 = vshrl.u32 %v5278, 7
    %v5280 = vsub.s32 %v2533, %v5279
    %v5281 = vrot.slane %v4772, %v5280
    %v5282 = vlaneseq
    %v5283 = vshrl.u32 %v5282, 7
    %v5284 = vsub.s32 %v2533, %v5283
    %v5285 = vrot.slane %v4775, %v5284
    %v5286 = vlaneseq
    %v5287 = vshrl.u32 %v5286, 7
    %v5288 = vsub.s32 %v2533, %v5287
    %v5289 = vrot.slane %v4778, %v5288
    %v5290 = vlaneseq
    %v5291 = vshrl.u32 %v5290, 7
    %v5292 = vsub.s32 %v2533, %v5291
    %v5293 = vrot.slane %v4781, %v5292
    %v5294 = vsel %vm3046, %v4789, %v4785
    %v5295 = vsel %vm3048, %v4793, %v5294
    %v5296 = vsel %vm3050, %v4797, %v5295
    %v5297 = vsel %vm3052, %v4801, %v5296
    %v5298 = vsel %vm3054, %v4805, %v5297
    %v5299 = vsel %vm3056, %v4809, %v5298
    %v5300 = vsel %vm3058, %v4813, %v5299
    %v5301 = vsel %vm3046, %v4821, %v4817
    %v5302 = vsel %vm3048, %v4825, %v5301
    %v5303 = vsel %vm3050, %v4829, %v5302
    %v5304 = vsel %vm3052, %v4833, %v5303
    %v5305 = vsel %vm3054, %v4837, %v5304
    %v5306 = vsel %vm3056, %v4841, %v5305
    %v5307 = vsel %vm3058, %v4845, %v5306
    %v5308 = vsel %vm3046, %v4853, %v4849
    %v5309 = vsel %vm3048, %v4857, %v5308
    %v5310 = vsel %vm3050, %v4861, %v5309
    %v5311 = vsel %vm3052, %v4865, %v5310
    %v5312 = vsel %vm3054, %v4869, %v5311
    %v5313 = vsel %vm3056, %v4873, %v5312
    %v5314 = vsel %vm3058, %v4877, %v5313
    %v5315 = vsel %vm3046, %v4885, %v4881
    %v5316 = vsel %vm3048, %v4889, %v5315
    %v5317 = vsel %vm3050, %v4893, %v5316
    %v5318 = vsel %vm3052, %v4897, %v5317
    %v5319 = vsel %vm3054, %v4901, %v5318
    %v5320 = vsel %vm3056, %v4905, %v5319
    %v5321 = vsel %vm3058, %v4909, %v5320
    %v5322 = vsel %vm3046, %v4917, %v4913
    %v5323 = vsel %vm3048, %v4921, %v5322
    %v5324 = vsel %vm3050, %v4925, %v5323
    %v5325 = vsel %vm3052, %v4929, %v5324
    %v5326 = vsel %vm3054, %v4933, %v5325
    %v5327 = vsel %vm3056, %v4937, %v5326
    %v5328 = vsel %vm3058, %v4941, %v5327
    %v5329 = vsel %vm3046, %v4949, %v4945
    %v5330 = vsel %vm3048, %v4953, %v5329
    %v5331 = vsel %vm3050, %v4957, %v5330
    %v5332 = vsel %vm3052, %v4961, %v5331
    %v5333 = vsel %vm3054, %v4965, %v5332
    %v5334 = vsel %vm3056, %v4969, %v5333
    %v5335 = vsel %vm3058, %v4973, %v5334
    %v5336 = vsel %vm3046, %v4981, %v4977
    %v5337 = vsel %vm3048, %v4985, %v5336
    %v5338 = vsel %vm3050, %v4989, %v5337
    %v5339 = vsel %vm3052, %v4993, %v5338
    %v5340 = vsel %vm3054, %v4997, %v5339
    %v5341 = vsel %vm3056, %v5001, %v5340
    %v5342 = vsel %vm3058, %v5005, %v5341
    %v5343 = vsel %vm3046, %v5013, %v5009
    %v5344 = vsel %vm3048, %v5017, %v5343
    %v5345 = vsel %vm3050, %v5021, %v5344
    %v5346 = vsel %vm3052, %v5025, %v5345
    %v5347 = vsel %vm3054, %v5029, %v5346
    %v5348 = vsel %vm3056, %v5033, %v5347
    %v5349 = vsel %vm3058, %v5037, %v5348
    %v5350 = vsel %vm3046, %v5045, %v5041
    %v5351 = vsel %vm3048, %v5049, %v5350
    %v5352 = vsel %vm3050, %v5053, %v5351
    %v5353 = vsel %vm3052, %v5057, %v5352
    %v5354 = vsel %vm3054, %v5061, %v5353
    %v5355 = vsel %vm3056, %v5065, %v5354
    %v5356 = vsel %vm3058, %v5069, %v5355
    %v5357 = vsel %vm3046, %v5077, %v5073
    %v5358 = vsel %vm3048, %v5081, %v5357
    %v5359 = vsel %vm3050, %v5085, %v5358
    %v5360 = vsel %vm3052, %v5089, %v5359
    %v5361 = vsel %vm3054, %v5093, %v5360
    %v5362 = vsel %vm3056, %v5097, %v5361
    %v5363 = vsel %vm3058, %v5101, %v5362
    %v5364 = vsel %vm3046, %v5109, %v5105
    %v5365 = vsel %vm3048, %v5113, %v5364
    %v5366 = vsel %vm3050, %v5117, %v5365
    %v5367 = vsel %vm3052, %v5121, %v5366
    %v5368 = vsel %vm3054, %v5125, %v5367
    %v5369 = vsel %vm3056, %v5129, %v5368
    %v5370 = vsel %vm3058, %v5133, %v5369
    %v5371 = vsel %vm3046, %v5141, %v5137
    %v5372 = vsel %vm3048, %v5145, %v5371
    %v5373 = vsel %vm3050, %v5149, %v5372
    %v5374 = vsel %vm3052, %v5153, %v5373
    %v5375 = vsel %vm3054, %v5157, %v5374
    %v5376 = vsel %vm3056, %v5161, %v5375
    %v5377 = vsel %vm3058, %v5165, %v5376
    %v5378 = vsel %vm3046, %v5173, %v5169
    %v5379 = vsel %vm3048, %v5177, %v5378
    %v5380 = vsel %vm3050, %v5181, %v5379
    %v5381 = vsel %vm3052, %v5185, %v5380
    %v5382 = vsel %vm3054, %v5189, %v5381
    %v5383 = vsel %vm3056, %v5193, %v5382
    %v5384 = vsel %vm3058, %v5197, %v5383
    %v5385 = vsel %vm3046, %v5205, %v5201
    %v5386 = vsel %vm3048, %v5209, %v5385
    %v5387 = vsel %vm3050, %v5213, %v5386
    %v5388 = vsel %vm3052, %v5217, %v5387
    %v5389 = vsel %vm3054, %v5221, %v5388
    %v5390 = vsel %vm3056, %v5225, %v5389
    %v5391 = vsel %vm3058, %v5229, %v5390
    %v5392 = vsel %vm3046, %v5237, %v5233
    %v5393 = vsel %vm3048, %v5241, %v5392
    %v5394 = vsel %vm3050, %v5245, %v5393
    %v5395 = vsel %vm3052, %v5249, %v5394
    %v5396 = vsel %vm3054, %v5253, %v5395
    %v5397 = vsel %vm3056, %v5257, %v5396
    %v5398 = vsel %vm3058, %v5261, %v5397
    %v5399 = vsel %vm3046, %v5269, %v5265
    %v5400 = vsel %vm3048, %v5273, %v5399
    %v5401 = vsel %vm3050, %v5277, %v5400
    %v5402 = vsel %vm3052, %v5281, %v5401
    %v5403 = vsel %vm3054, %v5285, %v5402
    %v5404 = vsel %vm3056, %v5289, %v5403
    %v5405 = vsel %vm3058, %v5293, %v5404
    %v5422 = vsel %vm3181, %v5300, 0.0
    %5423 = vadd.xlane.f32.xlu0 %v5422
    %v5424 = vpop.xlane.xlu0 %5423
    %v5425 = vsel %vm3181, %v5307, 0.0
    %5426 = vadd.xlane.f32.xlu0 %v5425
    %v5427 = vpop.xlane.xlu0 %5426
    %v5428 = vsel %vm3181, %v5314, 0.0
    %5429 = vadd.xlane.f32.xlu0 %v5428
    %v5430 = vpop.xlane.xlu0 %5429
    %v5431 = vsel %vm3181, %v5321, 0.0
    %5432 = vadd.xlane.f32.xlu0 %v5431
    %v5433 = vpop.xlane.xlu0 %5432
    %v5434 = vsel %vm3181, %v5328, 0.0
    %5435 = vadd.xlane.f32.xlu0 %v5434
    %v5436 = vpop.xlane.xlu0 %5435
    %v5437 = vsel %vm3181, %v5335, 0.0
    %5438 = vadd.xlane.f32.xlu0 %v5437
    %v5439 = vpop.xlane.xlu0 %5438
    %v5440 = vsel %vm3181, %v5342, 0.0
    %5441 = vadd.xlane.f32.xlu0 %v5440
    %v5442 = vpop.xlane.xlu0 %5441
    %v5443 = vsel %vm3181, %v5349, 0.0
    %5444 = vadd.xlane.f32.xlu0 %v5443
    %v5445 = vpop.xlane.xlu0 %5444
    %v5446 = vsel %vm3181, %v5356, 0.0
    %5447 = vadd.xlane.f32.xlu0 %v5446
    %v5448 = vpop.xlane.xlu0 %5447
    %v5449 = vsel %vm3181, %v5363, 0.0
    %5450 = vadd.xlane.f32.xlu0 %v5449
    %v5451 = vpop.xlane.xlu0 %5450
    %v5452 = vsel %vm3181, %v5370, 0.0
    %5453 = vadd.xlane.f32.xlu0 %v5452
    %v5454 = vpop.xlane.xlu0 %5453
    %v5455 = vsel %vm3181, %v5377, 0.0
    %5456 = vadd.xlane.f32.xlu0 %v5455
    %v5457 = vpop.xlane.xlu0 %5456
    %v5458 = vsel %vm3181, %v5384, 0.0
    %5459 = vadd.xlane.f32.xlu0 %v5458
    %v5460 = vpop.xlane.xlu0 %5459
    %v5461 = vsel %vm3181, %v5391, 0.0
    %5462 = vadd.xlane.f32.xlu0 %v5461
    %v5463 = vpop.xlane.xlu0 %5462
    %v5464 = vsel %vm3181, %v5398, 0.0
    %5465 = vadd.xlane.f32.xlu0 %v5464
    %v5466 = vpop.xlane.xlu0 %5465
    %v5467 = vsel %vm3181, %v5405, 0.0
    %5468 = vadd.xlane.f32.xlu0 %v5467
    %v5469 = vpop.xlane.xlu0 %5468
    %v5470 = vrcp.pop %v5424
    %v5471 = vrcp.pop %v5427
    %v5472 = vrcp.pop %v5430
    %v5473 = vrcp.pop %v5433
    %v5474 = vrcp.pop %v5436
    %v5475 = vrcp.pop %v5439
    %v5476 = vrcp.pop %v5442
    %v5477 = vrcp.pop %v5445
    %v5478 = vrcp.pop %v5448
    %v5479 = vrcp.pop %v5451
    %v5480 = vrcp.pop %v5454
    %v5481 = vrcp.pop %v5457
    %v5482 = vrcp.pop %v5460
    %v5483 = vrcp.pop %v5463
    %v5484 = vrcp.pop %v5466
    %v5485 = vrcp.pop %v5469
    %v5502 = vlaneseq
    %v5503 = vshrl.u32 %v5502, 7
    %v5504 = vsub.s32 0, %v5503
    %v5505 = vrot.slane %v5470, %v5504
    %v5506 = vlaneseq
    %v5507 = vshrl.u32 %v5506, 7
    %v5508 = vsub.s32 1, %v5507
    %v5509 = vrot.slane %v5470, %v5508
    %v5510 = vlaneseq
    %v5511 = vshrl.u32 %v5510, 7
    %v5512 = vsub.s32 2, %v5511
    %v5513 = vrot.slane %v5470, %v5512
    %v5514 = vlaneseq
    %v5515 = vshrl.u32 %v5514, 7
    %v5516 = vsub.s32 3, %v5515
    %v5517 = vrot.slane %v5470, %v5516
    %v5518 = vlaneseq
    %v5519 = vshrl.u32 %v5518, 7
    %v5520 = vsub.s32 4, %v5519
    %v5521 = vrot.slane %v5470, %v5520
    %v5522 = vlaneseq
    %v5523 = vshrl.u32 %v5522, 7
    %v5524 = vsub.s32 5, %v5523
    %v5525 = vrot.slane %v5470, %v5524
    %v5526 = vlaneseq
    %v5527 = vshrl.u32 %v5526, 7
    %v5528 = vsub.s32 6, %v5527
    %v5529 = vrot.slane %v5470, %v5528
    %v5530 = vlaneseq
    %v5531 = vshrl.u32 %v5530, 7
    %v5532 = vsub.s32 7, %v5531
    %v5533 = vrot.slane %v5470, %v5532
    %v5534 = vlaneseq
    %v5535 = vshrl.u32 %v5534, 7
    %v5536 = vsub.s32 0, %v5535
    %v5537 = vrot.slane %v5471, %v5536
    %v5538 = vlaneseq
    %v5539 = vshrl.u32 %v5538, 7
    %v5540 = vsub.s32 1, %v5539
    %v5541 = vrot.slane %v5471, %v5540
    %v5542 = vlaneseq
    %v5543 = vshrl.u32 %v5542, 7
    %v5544 = vsub.s32 2, %v5543
    %v5545 = vrot.slane %v5471, %v5544
    %v5546 = vlaneseq
    %v5547 = vshrl.u32 %v5546, 7
    %v5548 = vsub.s32 3, %v5547
    %v5549 = vrot.slane %v5471, %v5548
    %v5550 = vlaneseq
    %v5551 = vshrl.u32 %v5550, 7
    %v5552 = vsub.s32 4, %v5551
    %v5553 = vrot.slane %v5471, %v5552
    %v5554 = vlaneseq
    %v5555 = vshrl.u32 %v5554, 7
    %v5556 = vsub.s32 5, %v5555
    %v5557 = vrot.slane %v5471, %v5556
    %v5558 = vlaneseq
    %v5559 = vshrl.u32 %v5558, 7
    %v5560 = vsub.s32 6, %v5559
    %v5561 = vrot.slane %v5471, %v5560
    %v5562 = vlaneseq
    %v5563 = vshrl.u32 %v5562, 7
    %v5564 = vsub.s32 7, %v5563
    %v5565 = vrot.slane %v5471, %v5564
    %v5566 = vlaneseq
    %v5567 = vshrl.u32 %v5566, 7
    %v5568 = vsub.s32 0, %v5567
    %v5569 = vrot.slane %v5472, %v5568
    %v5570 = vlaneseq
    %v5571 = vshrl.u32 %v5570, 7
    %v5572 = vsub.s32 1, %v5571
    %v5573 = vrot.slane %v5472, %v5572
    %v5574 = vlaneseq
    %v5575 = vshrl.u32 %v5574, 7
    %v5576 = vsub.s32 2, %v5575
    %v5577 = vrot.slane %v5472, %v5576
    %v5578 = vlaneseq
    %v5579 = vshrl.u32 %v5578, 7
    %v5580 = vsub.s32 3, %v5579
    %v5581 = vrot.slane %v5472, %v5580
    %v5582 = vlaneseq
    %v5583 = vshrl.u32 %v5582, 7
    %v5584 = vsub.s32 4, %v5583
    %v5585 = vrot.slane %v5472, %v5584
    %v5586 = vlaneseq
    %v5587 = vshrl.u32 %v5586, 7
    %v5588 = vsub.s32 5, %v5587
    %v5589 = vrot.slane %v5472, %v5588
    %v5590 = vlaneseq
    %v5591 = vshrl.u32 %v5590, 7
    %v5592 = vsub.s32 6, %v5591
    %v5593 = vrot.slane %v5472, %v5592
    %v5594 = vlaneseq
    %v5595 = vshrl.u32 %v5594, 7
    %v5596 = vsub.s32 7, %v5595
    %v5597 = vrot.slane %v5472, %v5596
    %v5598 = vlaneseq
    %v5599 = vshrl.u32 %v5598, 7
    %v5600 = vsub.s32 0, %v5599
    %v5601 = vrot.slane %v5473, %v5600
    %v5602 = vlaneseq
    %v5603 = vshrl.u32 %v5602, 7
    %v5604 = vsub.s32 1, %v5603
    %v5605 = vrot.slane %v5473, %v5604
    %v5606 = vlaneseq
    %v5607 = vshrl.u32 %v5606, 7
    %v5608 = vsub.s32 2, %v5607
    %v5609 = vrot.slane %v5473, %v5608
    %v5610 = vlaneseq
    %v5611 = vshrl.u32 %v5610, 7
    %v5612 = vsub.s32 3, %v5611
    %v5613 = vrot.slane %v5473, %v5612
    %v5614 = vlaneseq
    %v5615 = vshrl.u32 %v5614, 7
    %v5616 = vsub.s32 4, %v5615
    %v5617 = vrot.slane %v5473, %v5616
    %v5618 = vlaneseq
    %v5619 = vshrl.u32 %v5618, 7
    %v5620 = vsub.s32 5, %v5619
    %v5621 = vrot.slane %v5473, %v5620
    %v5622 = vlaneseq
    %v5623 = vshrl.u32 %v5622, 7
    %v5624 = vsub.s32 6, %v5623
    %v5625 = vrot.slane %v5473, %v5624
    %v5626 = vlaneseq
    %v5627 = vshrl.u32 %v5626, 7
    %v5628 = vsub.s32 7, %v5627
    %v5629 = vrot.slane %v5473, %v5628
    %v5630 = vlaneseq
    %v5631 = vshrl.u32 %v5630, 7
    %v5632 = vsub.s32 0, %v5631
    %v5633 = vrot.slane %v5474, %v5632
    %v5634 = vlaneseq
    %v5635 = vshrl.u32 %v5634, 7
    %v5636 = vsub.s32 1, %v5635
    %v5637 = vrot.slane %v5474, %v5636
    %v5638 = vlaneseq
    %v5639 = vshrl.u32 %v5638, 7
    %v5640 = vsub.s32 2, %v5639
    %v5641 = vrot.slane %v5474, %v5640
    %v5642 = vlaneseq
    %v5643 = vshrl.u32 %v5642, 7
    %v5644 = vsub.s32 3, %v5643
    %v5645 = vrot.slane %v5474, %v5644
    %v5646 = vlaneseq
    %v5647 = vshrl.u32 %v5646, 7
    %v5648 = vsub.s32 4, %v5647
    %v5649 = vrot.slane %v5474, %v5648
    %v5650 = vlaneseq
    %v5651 = vshrl.u32 %v5650, 7
    %v5652 = vsub.s32 5, %v5651
    %v5653 = vrot.slane %v5474, %v5652
    %v5654 = vlaneseq
    %v5655 = vshrl.u32 %v5654, 7
    %v5656 = vsub.s32 6, %v5655
    %v5657 = vrot.slane %v5474, %v5656
    %v5658 = vlaneseq
    %v5659 = vshrl.u32 %v5658, 7
    %v5660 = vsub.s32 7, %v5659
    %v5661 = vrot.slane %v5474, %v5660
    %v5662 = vlaneseq
    %v5663 = vshrl.u32 %v5662, 7
    %v5664 = vsub.s32 0, %v5663
    %v5665 = vrot.slane %v5475, %v5664
    %v5666 = vlaneseq
    %v5667 = vshrl.u32 %v5666, 7
    %v5668 = vsub.s32 1, %v5667
    %v5669 = vrot.slane %v5475, %v5668
    %v5670 = vlaneseq
    %v5671 = vshrl.u32 %v5670, 7
    %v5672 = vsub.s32 2, %v5671
    %v5673 = vrot.slane %v5475, %v5672
    %v5674 = vlaneseq
    %v5675 = vshrl.u32 %v5674, 7
    %v5676 = vsub.s32 3, %v5675
    %v5677 = vrot.slane %v5475, %v5676
    %v5678 = vlaneseq
    %v5679 = vshrl.u32 %v5678, 7
    %v5680 = vsub.s32 4, %v5679
    %v5681 = vrot.slane %v5475, %v5680
    %v5682 = vlaneseq
    %v5683 = vshrl.u32 %v5682, 7
    %v5684 = vsub.s32 5, %v5683
    %v5685 = vrot.slane %v5475, %v5684
    %v5686 = vlaneseq
    %v5687 = vshrl.u32 %v5686, 7
    %v5688 = vsub.s32 6, %v5687
    %v5689 = vrot.slane %v5475, %v5688
    %v5690 = vlaneseq
    %v5691 = vshrl.u32 %v5690, 7
    %v5692 = vsub.s32 7, %v5691
    %v5693 = vrot.slane %v5475, %v5692
    %v5694 = vlaneseq
    %v5695 = vshrl.u32 %v5694, 7
    %v5696 = vsub.s32 0, %v5695
    %v5697 = vrot.slane %v5476, %v5696
    %v5698 = vlaneseq
    %v5699 = vshrl.u32 %v5698, 7
    %v5700 = vsub.s32 1, %v5699
    %v5701 = vrot.slane %v5476, %v5700
    %v5702 = vlaneseq
    %v5703 = vshrl.u32 %v5702, 7
    %v5704 = vsub.s32 2, %v5703
    %v5705 = vrot.slane %v5476, %v5704
    %v5706 = vlaneseq
    %v5707 = vshrl.u32 %v5706, 7
    %v5708 = vsub.s32 3, %v5707
    %v5709 = vrot.slane %v5476, %v5708
    %v5710 = vlaneseq
    %v5711 = vshrl.u32 %v5710, 7
    %v5712 = vsub.s32 4, %v5711
    %v5713 = vrot.slane %v5476, %v5712
    %v5714 = vlaneseq
    %v5715 = vshrl.u32 %v5714, 7
    %v5716 = vsub.s32 5, %v5715
    %v5717 = vrot.slane %v5476, %v5716
    %v5718 = vlaneseq
    %v5719 = vshrl.u32 %v5718, 7
    %v5720 = vsub.s32 6, %v5719
    %v5721 = vrot.slane %v5476, %v5720
    %v5722 = vlaneseq
    %v5723 = vshrl.u32 %v5722, 7
    %v5724 = vsub.s32 7, %v5723
    %v5725 = vrot.slane %v5476, %v5724
    %v5726 = vlaneseq
    %v5727 = vshrl.u32 %v5726, 7
    %v5728 = vsub.s32 0, %v5727
    %v5729 = vrot.slane %v5477, %v5728
    %v5730 = vlaneseq
    %v5731 = vshrl.u32 %v5730, 7
    %v5732 = vsub.s32 1, %v5731
    %v5733 = vrot.slane %v5477, %v5732
    %v5734 = vlaneseq
    %v5735 = vshrl.u32 %v5734, 7
    %v5736 = vsub.s32 2, %v5735
    %v5737 = vrot.slane %v5477, %v5736
    %v5738 = vlaneseq
    %v5739 = vshrl.u32 %v5738, 7
    %v5740 = vsub.s32 3, %v5739
    %v5741 = vrot.slane %v5477, %v5740
    %v5742 = vlaneseq
    %v5743 = vshrl.u32 %v5742, 7
    %v5744 = vsub.s32 4, %v5743
    %v5745 = vrot.slane %v5477, %v5744
    %v5746 = vlaneseq
    %v5747 = vshrl.u32 %v5746, 7
    %v5748 = vsub.s32 5, %v5747
    %v5749 = vrot.slane %v5477, %v5748
    %v5750 = vlaneseq
    %v5751 = vshrl.u32 %v5750, 7
    %v5752 = vsub.s32 6, %v5751
    %v5753 = vrot.slane %v5477, %v5752
    %v5754 = vlaneseq
    %v5755 = vshrl.u32 %v5754, 7
    %v5756 = vsub.s32 7, %v5755
    %v5757 = vrot.slane %v5477, %v5756
    %v5758 = vlaneseq
    %v5759 = vshrl.u32 %v5758, 7
    %v5760 = vsub.s32 0, %v5759
    %v5761 = vrot.slane %v5478, %v5760
    %v5762 = vlaneseq
    %v5763 = vshrl.u32 %v5762, 7
    %v5764 = vsub.s32 1, %v5763
    %v5765 = vrot.slane %v5478, %v5764
    %v5766 = vlaneseq
    %v5767 = vshrl.u32 %v5766, 7
    %v5768 = vsub.s32 2, %v5767
    %v5769 = vrot.slane %v5478, %v5768
    %v5770 = vlaneseq
    %v5771 = vshrl.u32 %v5770, 7
    %v5772 = vsub.s32 3, %v5771
    %v5773 = vrot.slane %v5478, %v5772
    %v5774 = vlaneseq
    %v5775 = vshrl.u32 %v5774, 7
    %v5776 = vsub.s32 4, %v5775
    %v5777 = vrot.slane %v5478, %v5776
    %v5778 = vlaneseq
    %v5779 = vshrl.u32 %v5778, 7
    %v5780 = vsub.s32 5, %v5779
    %v5781 = vrot.slane %v5478, %v5780
    %v5782 = vlaneseq
    %v5783 = vshrl.u32 %v5782, 7
    %v5784 = vsub.s32 6, %v5783
    %v5785 = vrot.slane %v5478, %v5784
    %v5786 = vlaneseq
    %v5787 = vshrl.u32 %v5786, 7
    %v5788 = vsub.s32 7, %v5787
    %v5789 = vrot.slane %v5478, %v5788
    %v5790 = vlaneseq
    %v5791 = vshrl.u32 %v5790, 7
    %v5792 = vsub.s32 0, %v5791
    %v5793 = vrot.slane %v5479, %v5792
    %v5794 = vlaneseq
    %v5795 = vshrl.u32 %v5794, 7
    %v5796 = vsub.s32 1, %v5795
    %v5797 = vrot.slane %v5479, %v5796
    %v5798 = vlaneseq
    %v5799 = vshrl.u32 %v5798, 7
    %v5800 = vsub.s32 2, %v5799
    %v5801 = vrot.slane %v5479, %v5800
    %v5802 = vlaneseq
    %v5803 = vshrl.u32 %v5802, 7
    %v5804 = vsub.s32 3, %v5803
    %v5805 = vrot.slane %v5479, %v5804
    %v5806 = vlaneseq
    %v5807 = vshrl.u32 %v5806, 7
    %v5808 = vsub.s32 4, %v5807
    %v5809 = vrot.slane %v5479, %v5808
    %v5810 = vlaneseq
    %v5811 = vshrl.u32 %v5810, 7
    %v5812 = vsub.s32 5, %v5811
    %v5813 = vrot.slane %v5479, %v5812
    %v5814 = vlaneseq
    %v5815 = vshrl.u32 %v5814, 7
    %v5816 = vsub.s32 6, %v5815
    %v5817 = vrot.slane %v5479, %v5816
    %v5818 = vlaneseq
    %v5819 = vshrl.u32 %v5818, 7
    %v5820 = vsub.s32 7, %v5819
    %v5821 = vrot.slane %v5479, %v5820
    %v5822 = vlaneseq
    %v5823 = vshrl.u32 %v5822, 7
    %v5824 = vsub.s32 0, %v5823
    %v5825 = vrot.slane %v5480, %v5824
    %v5826 = vlaneseq
    %v5827 = vshrl.u32 %v5826, 7
    %v5828 = vsub.s32 1, %v5827
    %v5829 = vrot.slane %v5480, %v5828
    %v5830 = vlaneseq
    %v5831 = vshrl.u32 %v5830, 7
    %v5832 = vsub.s32 2, %v5831
    %v5833 = vrot.slane %v5480, %v5832
    %v5834 = vlaneseq
    %v5835 = vshrl.u32 %v5834, 7
    %v5836 = vsub.s32 3, %v5835
    %v5837 = vrot.slane %v5480, %v5836
    %v5838 = vlaneseq
    %v5839 = vshrl.u32 %v5838, 7
    %v5840 = vsub.s32 4, %v5839
    %v5841 = vrot.slane %v5480, %v5840
    %v5842 = vlaneseq
    %v5843 = vshrl.u32 %v5842, 7
    %v5844 = vsub.s32 5, %v5843
    %v5845 = vrot.slane %v5480, %v5844
    %v5846 = vlaneseq
    %v5847 = vshrl.u32 %v5846, 7
    %v5848 = vsub.s32 6, %v5847
    %v5849 = vrot.slane %v5480, %v5848
    %v5850 = vlaneseq
    %v5851 = vshrl.u32 %v5850, 7
    %v5852 = vsub.s32 7, %v5851
    %v5853 = vrot.slane %v5480, %v5852
    %v5854 = vlaneseq
    %v5855 = vshrl.u32 %v5854, 7
    %v5856 = vsub.s32 0, %v5855
    %v5857 = vrot.slane %v5481, %v5856
    %v5858 = vlaneseq
    %v5859 = vshrl.u32 %v5858, 7
    %v5860 = vsub.s32 1, %v5859
    %v5861 = vrot.slane %v5481, %v5860
    %v5862 = vlaneseq
    %v5863 = vshrl.u32 %v5862, 7
    %v5864 = vsub.s32 2, %v5863
    %v5865 = vrot.slane %v5481, %v5864
    %v5866 = vlaneseq
    %v5867 = vshrl.u32 %v5866, 7
    %v5868 = vsub.s32 3, %v5867
    %v5869 = vrot.slane %v5481, %v5868
    %v5870 = vlaneseq
    %v5871 = vshrl.u32 %v5870, 7
    %v5872 = vsub.s32 4, %v5871
    %v5873 = vrot.slane %v5481, %v5872
    %v5874 = vlaneseq
    %v5875 = vshrl.u32 %v5874, 7
    %v5876 = vsub.s32 5, %v5875
    %v5877 = vrot.slane %v5481, %v5876
    %v5878 = vlaneseq
    %v5879 = vshrl.u32 %v5878, 7
    %v5880 = vsub.s32 6, %v5879
    %v5881 = vrot.slane %v5481, %v5880
    %v5882 = vlaneseq
    %v5883 = vshrl.u32 %v5882, 7
    %v5884 = vsub.s32 7, %v5883
    %v5885 = vrot.slane %v5481, %v5884
    %v5886 = vlaneseq
    %v5887 = vshrl.u32 %v5886, 7
    %v5888 = vsub.s32 0, %v5887
    %v5889 = vrot.slane %v5482, %v5888
    %v5890 = vlaneseq
    %v5891 = vshrl.u32 %v5890, 7
    %v5892 = vsub.s32 1, %v5891
    %v5893 = vrot.slane %v5482, %v5892
    %v5894 = vlaneseq
    %v5895 = vshrl.u32 %v5894, 7
    %v5896 = vsub.s32 2, %v5895
    %v5897 = vrot.slane %v5482, %v5896
    %v5898 = vlaneseq
    %v5899 = vshrl.u32 %v5898, 7
    %v5900 = vsub.s32 3, %v5899
    %v5901 = vrot.slane %v5482, %v5900
    %v5902 = vlaneseq
    %v5903 = vshrl.u32 %v5902, 7
    %v5904 = vsub.s32 4, %v5903
    %v5905 = vrot.slane %v5482, %v5904
    %v5906 = vlaneseq
    %v5907 = vshrl.u32 %v5906, 7
    %v5908 = vsub.s32 5, %v5907
    %v5909 = vrot.slane %v5482, %v5908
    %v5910 = vlaneseq
    %v5911 = vshrl.u32 %v5910, 7
    %v5912 = vsub.s32 6, %v5911
    %v5913 = vrot.slane %v5482, %v5912
    %v5914 = vlaneseq
    %v5915 = vshrl.u32 %v5914, 7
    %v5916 = vsub.s32 7, %v5915
    %v5917 = vrot.slane %v5482, %v5916
    %v5918 = vlaneseq
    %v5919 = vshrl.u32 %v5918, 7
    %v5920 = vsub.s32 0, %v5919
    %v5921 = vrot.slane %v5483, %v5920
    %v5922 = vlaneseq
    %v5923 = vshrl.u32 %v5922, 7
    %v5924 = vsub.s32 1, %v5923
    %v5925 = vrot.slane %v5483, %v5924
    %v5926 = vlaneseq
    %v5927 = vshrl.u32 %v5926, 7
    %v5928 = vsub.s32 2, %v5927
    %v5929 = vrot.slane %v5483, %v5928
    %v5930 = vlaneseq
    %v5931 = vshrl.u32 %v5930, 7
    %v5932 = vsub.s32 3, %v5931
    %v5933 = vrot.slane %v5483, %v5932
    %v5934 = vlaneseq
    %v5935 = vshrl.u32 %v5934, 7
    %v5936 = vsub.s32 4, %v5935
    %v5937 = vrot.slane %v5483, %v5936
    %v5938 = vlaneseq
    %v5939 = vshrl.u32 %v5938, 7
    %v5940 = vsub.s32 5, %v5939
    %v5941 = vrot.slane %v5483, %v5940
    %v5942 = vlaneseq
    %v5943 = vshrl.u32 %v5942, 7
    %v5944 = vsub.s32 6, %v5943
    %v5945 = vrot.slane %v5483, %v5944
    %v5946 = vlaneseq
    %v5947 = vshrl.u32 %v5946, 7
    %v5948 = vsub.s32 7, %v5947
    %v5949 = vrot.slane %v5483, %v5948
    %v5950 = vlaneseq
    %v5951 = vshrl.u32 %v5950, 7
    %v5952 = vsub.s32 0, %v5951
    %v5953 = vrot.slane %v5484, %v5952
    %v5954 = vlaneseq
    %v5955 = vshrl.u32 %v5954, 7
    %v5956 = vsub.s32 1, %v5955
    %v5957 = vrot.slane %v5484, %v5956
    %v5958 = vlaneseq
    %v5959 = vshrl.u32 %v5958, 7
    %v5960 = vsub.s32 2, %v5959
    %v5961 = vrot.slane %v5484, %v5960
    %v5962 = vlaneseq
    %v5963 = vshrl.u32 %v5962, 7
    %v5964 = vsub.s32 3, %v5963
    %v5965 = vrot.slane %v5484, %v5964
    %v5966 = vlaneseq
    %v5967 = vshrl.u32 %v5966, 7
    %v5968 = vsub.s32 4, %v5967
    %v5969 = vrot.slane %v5484, %v5968
    %v5970 = vlaneseq
    %v5971 = vshrl.u32 %v5970, 7
    %v5972 = vsub.s32 5, %v5971
    %v5973 = vrot.slane %v5484, %v5972
    %v5974 = vlaneseq
    %v5975 = vshrl.u32 %v5974, 7
    %v5976 = vsub.s32 6, %v5975
    %v5977 = vrot.slane %v5484, %v5976
    %v5978 = vlaneseq
    %v5979 = vshrl.u32 %v5978, 7
    %v5980 = vsub.s32 7, %v5979
    %v5981 = vrot.slane %v5484, %v5980
    %v5982 = vlaneseq
    %v5983 = vshrl.u32 %v5982, 7
    %v5984 = vsub.s32 0, %v5983
    %v5985 = vrot.slane %v5485, %v5984
    %v5986 = vlaneseq
    %v5987 = vshrl.u32 %v5986, 7
    %v5988 = vsub.s32 1, %v5987
    %v5989 = vrot.slane %v5485, %v5988
    %v5990 = vlaneseq
    %v5991 = vshrl.u32 %v5990, 7
    %v5992 = vsub.s32 2, %v5991
    %v5993 = vrot.slane %v5485, %v5992
    %v5994 = vlaneseq
    %v5995 = vshrl.u32 %v5994, 7
    %v5996 = vsub.s32 3, %v5995
    %v5997 = vrot.slane %v5485, %v5996
    %v5998 = vlaneseq
    %v5999 = vshrl.u32 %v5998, 7
    %v6000 = vsub.s32 4, %v5999
    %v6001 = vrot.slane %v5485, %v6000
    %v6002 = vlaneseq
    %v6003 = vshrl.u32 %v6002, 7
    %v6004 = vsub.s32 5, %v6003
    %v6005 = vrot.slane %v5485, %v6004
    %v6006 = vlaneseq
    %v6007 = vshrl.u32 %v6006, 7
    %v6008 = vsub.s32 6, %v6007
    %v6009 = vrot.slane %v5485, %v6008
    %v6010 = vlaneseq
    %v6011 = vshrl.u32 %v6010, 7
    %v6012 = vsub.s32 7, %v6011
    %v6013 = vrot.slane %v5485, %v6012
    %v6142 = vmul.f32 %v4015, %v5505
    %v6143 = vmul.f32 %v4017, %v5509
    %v6144 = vmul.f32 %v4019, %v5513
    %v6145 = vmul.f32 %v4021, %v5517
    %v6146 = vmul.f32 %v4023, %v5521
    %v6147 = vmul.f32 %v4025, %v5525
    %v6148 = vmul.f32 %v4027, %v5529
    %v6149 = vmul.f32 %v4029, %v5533
    %v6150 = vmul.f32 %v4031, %v5537
    %v6151 = vmul.f32 %v4033, %v5541
    %v6152 = vmul.f32 %v4035, %v5545
    %v6153 = vmul.f32 %v4037, %v5549
    %v6154 = vmul.f32 %v4039, %v5553
    %v6155 = vmul.f32 %v4041, %v5557
    %v6156 = vmul.f32 %v4043, %v5561
    %v6157 = vmul.f32 %v4045, %v5565
    %v6158 = vmul.f32 %v4047, %v5569
    %v6159 = vmul.f32 %v4049, %v5573
    %v6160 = vmul.f32 %v4051, %v5577
    %v6161 = vmul.f32 %v4053, %v5581
    %v6162 = vmul.f32 %v4055, %v5585
    %v6163 = vmul.f32 %v4057, %v5589
    %v6164 = vmul.f32 %v4059, %v5593
    %v6165 = vmul.f32 %v4061, %v5597
    %v6166 = vmul.f32 %v4063, %v5601
    %v6167 = vmul.f32 %v4065, %v5605
    %v6168 = vmul.f32 %v4067, %v5609
    %v6169 = vmul.f32 %v4069, %v5613
    %v6170 = vmul.f32 %v4071, %v5617
    %v6171 = vmul.f32 %v4073, %v5621
    %v6172 = vmul.f32 %v4075, %v5625
    %v6173 = vmul.f32 %v4077, %v5629
    %v6174 = vmul.f32 %v4079, %v5633
    %v6175 = vmul.f32 %v4081, %v5637
    %v6176 = vmul.f32 %v4083, %v5641
    %v6177 = vmul.f32 %v4085, %v5645
    %v6178 = vmul.f32 %v4087, %v5649
    %v6179 = vmul.f32 %v4089, %v5653
    %v6180 = vmul.f32 %v4091, %v5657
    %v6181 = vmul.f32 %v4093, %v5661
    %v6182 = vmul.f32 %v4095, %v5665
    %v6183 = vmul.f32 %v4097, %v5669
    %v6184 = vmul.f32 %v4099, %v5673
    %v6185 = vmul.f32 %v4101, %v5677
    %v6186 = vmul.f32 %v4103, %v5681
    %v6187 = vmul.f32 %v4105, %v5685
    %v6188 = vmul.f32 %v4107, %v5689
    %v6189 = vmul.f32 %v4109, %v5693
    %v6190 = vmul.f32 %v4111, %v5697
    %v6191 = vmul.f32 %v4113, %v5701
    %v6192 = vmul.f32 %v4115, %v5705
    %v6193 = vmul.f32 %v4117, %v5709
    %v6194 = vmul.f32 %v4119, %v5713
    %v6195 = vmul.f32 %v4121, %v5717
    %v6196 = vmul.f32 %v4123, %v5721
    %v6197 = vmul.f32 %v4125, %v5725
    %v6198 = vmul.f32 %v4127, %v5729
    %v6199 = vmul.f32 %v4129, %v5733
    %v6200 = vmul.f32 %v4131, %v5737
    %v6201 = vmul.f32 %v4133, %v5741
    %v6202 = vmul.f32 %v4135, %v5745
    %v6203 = vmul.f32 %v4137, %v5749
    %v6204 = vmul.f32 %v4139, %v5753
    %v6205 = vmul.f32 %v4141, %v5757
    %v6206 = vmul.f32 %v4143, %v5761
    %v6207 = vmul.f32 %v4145, %v5765
    %v6208 = vmul.f32 %v4147, %v5769
    %v6209 = vmul.f32 %v4149, %v5773
    %v6210 = vmul.f32 %v4151, %v5777
    %v6211 = vmul.f32 %v4153, %v5781
    %v6212 = vmul.f32 %v4155, %v5785
    %v6213 = vmul.f32 %v4157, %v5789
    %v6214 = vmul.f32 %v4159, %v5793
    %v6215 = vmul.f32 %v4161, %v5797
    %v6216 = vmul.f32 %v4163, %v5801
    %v6217 = vmul.f32 %v4165, %v5805
    %v6218 = vmul.f32 %v4167, %v5809
    %v6219 = vmul.f32 %v4169, %v5813
    %v6220 = vmul.f32 %v4171, %v5817
    %v6221 = vmul.f32 %v4173, %v5821
    %v6222 = vmul.f32 %v4175, %v5825
    %v6223 = vmul.f32 %v4177, %v5829
    %v6224 = vmul.f32 %v4179, %v5833
    %v6225 = vmul.f32 %v4181, %v5837
    %v6226 = vmul.f32 %v4183, %v5841
    %v6227 = vmul.f32 %v4185, %v5845
    %v6228 = vmul.f32 %v4187, %v5849
    %v6229 = vmul.f32 %v4189, %v5853
    %v6230 = vmul.f32 %v4191, %v5857
    %v6231 = vmul.f32 %v4193, %v5861
    %v6232 = vmul.f32 %v4195, %v5865
    %v6233 = vmul.f32 %v4197, %v5869
    %v6234 = vmul.f32 %v4199, %v5873
    %v6235 = vmul.f32 %v4201, %v5877
    %v6236 = vmul.f32 %v4203, %v5881
    %v6237 = vmul.f32 %v4205, %v5885
    %v6238 = vmul.f32 %v4207, %v5889
    %v6239 = vmul.f32 %v4209, %v5893
    %v6240 = vmul.f32 %v4211, %v5897
    %v6241 = vmul.f32 %v4213, %v5901
    %v6242 = vmul.f32 %v4215, %v5905
    %v6243 = vmul.f32 %v4217, %v5909
    %v6244 = vmul.f32 %v4219, %v5913
    %v6245 = vmul.f32 %v4221, %v5917
    %v6246 = vmul.f32 %v4223, %v5921
    %v6247 = vmul.f32 %v4225, %v5925
    %v6248 = vmul.f32 %v4227, %v5929
    %v6249 = vmul.f32 %v4229, %v5933
    %v6250 = vmul.f32 %v4231, %v5937
    %v6251 = vmul.f32 %v4233, %v5941
    %v6252 = vmul.f32 %v4235, %v5945
    %v6253 = vmul.f32 %v4237, %v5949
    %v6254 = vmul.f32 %v4239, %v5953
    %v6255 = vmul.f32 %v4241, %v5957
    %v6256 = vmul.f32 %v4243, %v5961
    %v6257 = vmul.f32 %v4245, %v5965
    %v6258 = vmul.f32 %v4247, %v5969
    %v6259 = vmul.f32 %v4249, %v5973
    %v6260 = vmul.f32 %v4251, %v5977
    %v6261 = vmul.f32 %v4253, %v5981
    %v6262 = vmul.f32 %v4255, %v5985
    %v6263 = vmul.f32 %v4257, %v5989
    %v6264 = vmul.f32 %v4259, %v5993
    %v6265 = vmul.f32 %v4261, %v5997
    %v6266 = vmul.f32 %v4263, %v6001
    %v6267 = vmul.f32 %v4265, %v6005
    %v6268 = vmul.f32 %v4267, %v6009
    %v6269 = vmul.f32 %v4269, %v6013
    %6271 = vset.pattern.permute.xlu0 0
    %6272 = vperm.xlu0 %6271, %v6142
    %v6273 = vpop.permute.xlu0 %6272
    %6276 = vset.pattern.permute.xlu0 0
    %6277 = vperm.xlu0 %6276, %v6143
    %v6278 = vpop.permute.xlu0 %6277
    %6281 = vset.pattern.permute.xlu0 0
    %6282 = vperm.xlu0 %6281, %v6144
    %v6283 = vpop.permute.xlu0 %6282
    %6286 = vset.pattern.permute.xlu0 0
    %6287 = vperm.xlu0 %6286, %v6145
    %v6288 = vpop.permute.xlu0 %6287
    %6291 = vset.pattern.permute.xlu0 0
    %6292 = vperm.xlu0 %6291, %v6146
    %v6293 = vpop.permute.xlu0 %6292
    %6296 = vset.pattern.permute.xlu0 0
    %6297 = vperm.xlu0 %6296, %v6147
    %v6298 = vpop.permute.xlu0 %6297
    %6301 = vset.pattern.permute.xlu0 0
    %6302 = vperm.xlu0 %6301, %v6148
    %v6303 = vpop.permute.xlu0 %6302
    %6306 = vset.pattern.permute.xlu0 0
    %6307 = vperm.xlu0 %6306, %v6149
    %v6308 = vpop.permute.xlu0 %6307
    %6311 = vset.pattern.permute.xlu0 0
    %6312 = vperm.xlu0 %6311, %v6150
    %v6313 = vpop.permute.xlu0 %6312
    %6316 = vset.pattern.permute.xlu0 0
    %6317 = vperm.xlu0 %6316, %v6151
    %v6318 = vpop.permute.xlu0 %6317
    %6321 = vset.pattern.permute.xlu0 0
    %6322 = vperm.xlu0 %6321, %v6152
    %v6323 = vpop.permute.xlu0 %6322
    %6326 = vset.pattern.permute.xlu0 0
    %6327 = vperm.xlu0 %6326, %v6153
    %v6328 = vpop.permute.xlu0 %6327
    %6331 = vset.pattern.permute.xlu0 0
    %6332 = vperm.xlu0 %6331, %v6154
    %v6333 = vpop.permute.xlu0 %6332
    %6336 = vset.pattern.permute.xlu0 0
    %6337 = vperm.xlu0 %6336, %v6155
    %v6338 = vpop.permute.xlu0 %6337
    %6341 = vset.pattern.permute.xlu0 0
    %6342 = vperm.xlu0 %6341, %v6156
    %v6343 = vpop.permute.xlu0 %6342
    %6346 = vset.pattern.permute.xlu0 0
    %6347 = vperm.xlu0 %6346, %v6157
    %v6348 = vpop.permute.xlu0 %6347
    %6351 = vset.pattern.permute.xlu0 0
    %6352 = vperm.xlu0 %6351, %v6158
    %v6353 = vpop.permute.xlu0 %6352
    %6356 = vset.pattern.permute.xlu0 0
    %6357 = vperm.xlu0 %6356, %v6159
    %v6358 = vpop.permute.xlu0 %6357
    %6361 = vset.pattern.permute.xlu0 0
    %6362 = vperm.xlu0 %6361, %v6160
    %v6363 = vpop.permute.xlu0 %6362
    %6366 = vset.pattern.permute.xlu0 0
    %6367 = vperm.xlu0 %6366, %v6161
    %v6368 = vpop.permute.xlu0 %6367
    %6371 = vset.pattern.permute.xlu0 0
    %6372 = vperm.xlu0 %6371, %v6162
    %v6373 = vpop.permute.xlu0 %6372
    %6376 = vset.pattern.permute.xlu0 0
    %6377 = vperm.xlu0 %6376, %v6163
    %v6378 = vpop.permute.xlu0 %6377
    %6381 = vset.pattern.permute.xlu0 0
    %6382 = vperm.xlu0 %6381, %v6164
    %v6383 = vpop.permute.xlu0 %6382
    %6386 = vset.pattern.permute.xlu0 0
    %6387 = vperm.xlu0 %6386, %v6165
    %v6388 = vpop.permute.xlu0 %6387
    %6391 = vset.pattern.permute.xlu0 0
    %6392 = vperm.xlu0 %6391, %v6166
    %v6393 = vpop.permute.xlu0 %6392
    %6396 = vset.pattern.permute.xlu0 0
    %6397 = vperm.xlu0 %6396, %v6167
    %v6398 = vpop.permute.xlu0 %6397
    %6401 = vset.pattern.permute.xlu0 0
    %6402 = vperm.xlu0 %6401, %v6168
    %v6403 = vpop.permute.xlu0 %6402
    %6406 = vset.pattern.permute.xlu0 0
    %6407 = vperm.xlu0 %6406, %v6169
    %v6408 = vpop.permute.xlu0 %6407
    %6411 = vset.pattern.permute.xlu0 0
    %6412 = vperm.xlu0 %6411, %v6170
    %v6413 = vpop.permute.xlu0 %6412
    %6416 = vset.pattern.permute.xlu0 0
    %6417 = vperm.xlu0 %6416, %v6171
    %v6418 = vpop.permute.xlu0 %6417
    %6421 = vset.pattern.permute.xlu0 0
    %6422 = vperm.xlu0 %6421, %v6172
    %v6423 = vpop.permute.xlu0 %6422
    %6426 = vset.pattern.permute.xlu0 0
    %6427 = vperm.xlu0 %6426, %v6173
    %v6428 = vpop.permute.xlu0 %6427
    %6431 = vset.pattern.permute.xlu0 0
    %6432 = vperm.xlu0 %6431, %v6174
    %v6433 = vpop.permute.xlu0 %6432
    %6436 = vset.pattern.permute.xlu0 0
    %6437 = vperm.xlu0 %6436, %v6175
    %v6438 = vpop.permute.xlu0 %6437
    %6441 = vset.pattern.permute.xlu0 0
    %6442 = vperm.xlu0 %6441, %v6176
    %v6443 = vpop.permute.xlu0 %6442
    %6446 = vset.pattern.permute.xlu0 0
    %6447 = vperm.xlu0 %6446, %v6177
    %v6448 = vpop.permute.xlu0 %6447
    %6451 = vset.pattern.permute.xlu0 0
    %6452 = vperm.xlu0 %6451, %v6178
    %v6453 = vpop.permute.xlu0 %6452
    %6456 = vset.pattern.permute.xlu0 0
    %6457 = vperm.xlu0 %6456, %v6179
    %v6458 = vpop.permute.xlu0 %6457
    %6461 = vset.pattern.permute.xlu0 0
    %6462 = vperm.xlu0 %6461, %v6180
    %v6463 = vpop.permute.xlu0 %6462
    %6466 = vset.pattern.permute.xlu0 0
    %6467 = vperm.xlu0 %6466, %v6181
    %v6468 = vpop.permute.xlu0 %6467
    %6471 = vset.pattern.permute.xlu0 0
    %6472 = vperm.xlu0 %6471, %v6182
    %v6473 = vpop.permute.xlu0 %6472
    %6476 = vset.pattern.permute.xlu0 0
    %6477 = vperm.xlu0 %6476, %v6183
    %v6478 = vpop.permute.xlu0 %6477
    %6481 = vset.pattern.permute.xlu0 0
    %6482 = vperm.xlu0 %6481, %v6184
    %v6483 = vpop.permute.xlu0 %6482
    %6486 = vset.pattern.permute.xlu0 0
    %6487 = vperm.xlu0 %6486, %v6185
    %v6488 = vpop.permute.xlu0 %6487
    %6491 = vset.pattern.permute.xlu0 0
    %6492 = vperm.xlu0 %6491, %v6186
    %v6493 = vpop.permute.xlu0 %6492
    %6496 = vset.pattern.permute.xlu0 0
    %6497 = vperm.xlu0 %6496, %v6187
    %v6498 = vpop.permute.xlu0 %6497
    %6501 = vset.pattern.permute.xlu0 0
    %6502 = vperm.xlu0 %6501, %v6188
    %v6503 = vpop.permute.xlu0 %6502
    %6506 = vset.pattern.permute.xlu0 0
    %6507 = vperm.xlu0 %6506, %v6189
    %v6508 = vpop.permute.xlu0 %6507
    %6511 = vset.pattern.permute.xlu0 0
    %6512 = vperm.xlu0 %6511, %v6190
    %v6513 = vpop.permute.xlu0 %6512
    %6516 = vset.pattern.permute.xlu0 0
    %6517 = vperm.xlu0 %6516, %v6191
    %v6518 = vpop.permute.xlu0 %6517
    %6521 = vset.pattern.permute.xlu0 0
    %6522 = vperm.xlu0 %6521, %v6192
    %v6523 = vpop.permute.xlu0 %6522
    %6526 = vset.pattern.permute.xlu0 0
    %6527 = vperm.xlu0 %6526, %v6193
    %v6528 = vpop.permute.xlu0 %6527
    %6531 = vset.pattern.permute.xlu0 0
    %6532 = vperm.xlu0 %6531, %v6194
    %v6533 = vpop.permute.xlu0 %6532
    %6536 = vset.pattern.permute.xlu0 0
    %6537 = vperm.xlu0 %6536, %v6195
    %v6538 = vpop.permute.xlu0 %6537
    %6541 = vset.pattern.permute.xlu0 0
    %6542 = vperm.xlu0 %6541, %v6196
    %v6543 = vpop.permute.xlu0 %6542
    %6546 = vset.pattern.permute.xlu0 0
    %6547 = vperm.xlu0 %6546, %v6197
    %v6548 = vpop.permute.xlu0 %6547
    %6551 = vset.pattern.permute.xlu0 0
    %6552 = vperm.xlu0 %6551, %v6198
    %v6553 = vpop.permute.xlu0 %6552
    %6556 = vset.pattern.permute.xlu0 0
    %6557 = vperm.xlu0 %6556, %v6199
    %v6558 = vpop.permute.xlu0 %6557
    %6561 = vset.pattern.permute.xlu0 0
    %6562 = vperm.xlu0 %6561, %v6200
    %v6563 = vpop.permute.xlu0 %6562
    %6566 = vset.pattern.permute.xlu0 0
    %6567 = vperm.xlu0 %6566, %v6201
    %v6568 = vpop.permute.xlu0 %6567
    %6571 = vset.pattern.permute.xlu0 0
    %6572 = vperm.xlu0 %6571, %v6202
    %v6573 = vpop.permute.xlu0 %6572
    %6576 = vset.pattern.permute.xlu0 0
    %6577 = vperm.xlu0 %6576, %v6203
    %v6578 = vpop.permute.xlu0 %6577
    %6581 = vset.pattern.permute.xlu0 0
    %6582 = vperm.xlu0 %6581, %v6204
    %v6583 = vpop.permute.xlu0 %6582
    %6586 = vset.pattern.permute.xlu0 0
    %6587 = vperm.xlu0 %6586, %v6205
    %v6588 = vpop.permute.xlu0 %6587
    %6591 = vset.pattern.permute.xlu0 0
    %6592 = vperm.xlu0 %6591, %v6206
    %v6593 = vpop.permute.xlu0 %6592
    %6596 = vset.pattern.permute.xlu0 0
    %6597 = vperm.xlu0 %6596, %v6207
    %v6598 = vpop.permute.xlu0 %6597
    %6601 = vset.pattern.permute.xlu0 0
    %6602 = vperm.xlu0 %6601, %v6208
    %v6603 = vpop.permute.xlu0 %6602
    %6606 = vset.pattern.permute.xlu0 0
    %6607 = vperm.xlu0 %6606, %v6209
    %v6608 = vpop.permute.xlu0 %6607
    %6611 = vset.pattern.permute.xlu0 0
    %6612 = vperm.xlu0 %6611, %v6210
    %v6613 = vpop.permute.xlu0 %6612
    %6616 = vset.pattern.permute.xlu0 0
    %6617 = vperm.xlu0 %6616, %v6211
    %v6618 = vpop.permute.xlu0 %6617
    %6621 = vset.pattern.permute.xlu0 0
    %6622 = vperm.xlu0 %6621, %v6212
    %v6623 = vpop.permute.xlu0 %6622
    %6626 = vset.pattern.permute.xlu0 0
    %6627 = vperm.xlu0 %6626, %v6213
    %v6628 = vpop.permute.xlu0 %6627
    %6631 = vset.pattern.permute.xlu0 0
    %6632 = vperm.xlu0 %6631, %v6214
    %v6633 = vpop.permute.xlu0 %6632
    %6636 = vset.pattern.permute.xlu0 0
    %6637 = vperm.xlu0 %6636, %v6215
    %v6638 = vpop.permute.xlu0 %6637
    %6641 = vset.pattern.permute.xlu0 0
    %6642 = vperm.xlu0 %6641, %v6216
    %v6643 = vpop.permute.xlu0 %6642
    %6646 = vset.pattern.permute.xlu0 0
    %6647 = vperm.xlu0 %6646, %v6217
    %v6648 = vpop.permute.xlu0 %6647
    %6651 = vset.pattern.permute.xlu0 0
    %6652 = vperm.xlu0 %6651, %v6218
    %v6653 = vpop.permute.xlu0 %6652
    %6656 = vset.pattern.permute.xlu0 0
    %6657 = vperm.xlu0 %6656, %v6219
    %v6658 = vpop.permute.xlu0 %6657
    %6661 = vset.pattern.permute.xlu0 0
    %6662 = vperm.xlu0 %6661, %v6220
    %v6663 = vpop.permute.xlu0 %6662
    %6666 = vset.pattern.permute.xlu0 0
    %6667 = vperm.xlu0 %6666, %v6221
    %v6668 = vpop.permute.xlu0 %6667
    %6671 = vset.pattern.permute.xlu0 0
    %6672 = vperm.xlu0 %6671, %v6222
    %v6673 = vpop.permute.xlu0 %6672
    %6676 = vset.pattern.permute.xlu0 0
    %6677 = vperm.xlu0 %6676, %v6223
    %v6678 = vpop.permute.xlu0 %6677
    %6681 = vset.pattern.permute.xlu0 0
    %6682 = vperm.xlu0 %6681, %v6224
    %v6683 = vpop.permute.xlu0 %6682
    %6686 = vset.pattern.permute.xlu0 0
    %6687 = vperm.xlu0 %6686, %v6225
    %v6688 = vpop.permute.xlu0 %6687
    %6691 = vset.pattern.permute.xlu0 0
    %6692 = vperm.xlu0 %6691, %v6226
    %v6693 = vpop.permute.xlu0 %6692
    %6696 = vset.pattern.permute.xlu0 0
    %6697 = vperm.xlu0 %6696, %v6227
    %v6698 = vpop.permute.xlu0 %6697
    %6701 = vset.pattern.permute.xlu0 0
    %6702 = vperm.xlu0 %6701, %v6228
    %v6703 = vpop.permute.xlu0 %6702
    %6706 = vset.pattern.permute.xlu0 0
    %6707 = vperm.xlu0 %6706, %v6229
    %v6708 = vpop.permute.xlu0 %6707
    %6711 = vset.pattern.permute.xlu0 0
    %6712 = vperm.xlu0 %6711, %v6230
    %v6713 = vpop.permute.xlu0 %6712
    %6716 = vset.pattern.permute.xlu0 0
    %6717 = vperm.xlu0 %6716, %v6231
    %v6718 = vpop.permute.xlu0 %6717
    %6721 = vset.pattern.permute.xlu0 0
    %6722 = vperm.xlu0 %6721, %v6232
    %v6723 = vpop.permute.xlu0 %6722
    %6726 = vset.pattern.permute.xlu0 0
    %6727 = vperm.xlu0 %6726, %v6233
    %v6728 = vpop.permute.xlu0 %6727
    %6731 = vset.pattern.permute.xlu0 0
    %6732 = vperm.xlu0 %6731, %v6234
    %v6733 = vpop.permute.xlu0 %6732
    %6736 = vset.pattern.permute.xlu0 0
    %6737 = vperm.xlu0 %6736, %v6235
    %v6738 = vpop.permute.xlu0 %6737
    %6741 = vset.pattern.permute.xlu0 0
    %6742 = vperm.xlu0 %6741, %v6236
    %v6743 = vpop.permute.xlu0 %6742
    %6746 = vset.pattern.permute.xlu0 0
    %6747 = vperm.xlu0 %6746, %v6237
    %v6748 = vpop.permute.xlu0 %6747
    %6751 = vset.pattern.permute.xlu0 0
    %6752 = vperm.xlu0 %6751, %v6238
    %v6753 = vpop.permute.xlu0 %6752
    %6756 = vset.pattern.permute.xlu0 0
    %6757 = vperm.xlu0 %6756, %v6239
    %v6758 = vpop.permute.xlu0 %6757
    %6761 = vset.pattern.permute.xlu0 0
    %6762 = vperm.xlu0 %6761, %v6240
    %v6763 = vpop.permute.xlu0 %6762
    %6766 = vset.pattern.permute.xlu0 0
    %6767 = vperm.xlu0 %6766, %v6241
    %v6768 = vpop.permute.xlu0 %6767
    %6771 = vset.pattern.permute.xlu0 0
    %6772 = vperm.xlu0 %6771, %v6242
    %v6773 = vpop.permute.xlu0 %6772
    %6776 = vset.pattern.permute.xlu0 0
    %6777 = vperm.xlu0 %6776, %v6243
    %v6778 = vpop.permute.xlu0 %6777
    %6781 = vset.pattern.permute.xlu0 0
    %6782 = vperm.xlu0 %6781, %v6244
    %v6783 = vpop.permute.xlu0 %6782
    %6786 = vset.pattern.permute.xlu0 0
    %6787 = vperm.xlu0 %6786, %v6245
    %v6788 = vpop.permute.xlu0 %6787
    %6791 = vset.pattern.permute.xlu0 0
    %6792 = vperm.xlu0 %6791, %v6246
    %v6793 = vpop.permute.xlu0 %6792
    %6796 = vset.pattern.permute.xlu0 0
    %6797 = vperm.xlu0 %6796, %v6247
    %v6798 = vpop.permute.xlu0 %6797
    %6801 = vset.pattern.permute.xlu0 0
    %6802 = vperm.xlu0 %6801, %v6248
    %v6803 = vpop.permute.xlu0 %6802
    %6806 = vset.pattern.permute.xlu0 0
    %6807 = vperm.xlu0 %6806, %v6249
    %v6808 = vpop.permute.xlu0 %6807
    %6811 = vset.pattern.permute.xlu0 0
    %6812 = vperm.xlu0 %6811, %v6250
    %v6813 = vpop.permute.xlu0 %6812
    %6816 = vset.pattern.permute.xlu0 0
    %6817 = vperm.xlu0 %6816, %v6251
    %v6818 = vpop.permute.xlu0 %6817
    %6821 = vset.pattern.permute.xlu0 0
    %6822 = vperm.xlu0 %6821, %v6252
    %v6823 = vpop.permute.xlu0 %6822
    %6826 = vset.pattern.permute.xlu0 0
    %6827 = vperm.xlu0 %6826, %v6253
    %v6828 = vpop.permute.xlu0 %6827
    %6831 = vset.pattern.permute.xlu0 0
    %6832 = vperm.xlu0 %6831, %v6254
    %v6833 = vpop.permute.xlu0 %6832
    %6836 = vset.pattern.permute.xlu0 0
    %6837 = vperm.xlu0 %6836, %v6255
    %v6838 = vpop.permute.xlu0 %6837
    %6841 = vset.pattern.permute.xlu0 0
    %6842 = vperm.xlu0 %6841, %v6256
    %v6843 = vpop.permute.xlu0 %6842
    %6846 = vset.pattern.permute.xlu0 0
    %6847 = vperm.xlu0 %6846, %v6257
    %v6848 = vpop.permute.xlu0 %6847
    %6851 = vset.pattern.permute.xlu0 0
    %6852 = vperm.xlu0 %6851, %v6258
    %v6853 = vpop.permute.xlu0 %6852
    %6856 = vset.pattern.permute.xlu0 0
    %6857 = vperm.xlu0 %6856, %v6259
    %v6858 = vpop.permute.xlu0 %6857
    %6861 = vset.pattern.permute.xlu0 0
    %6862 = vperm.xlu0 %6861, %v6260
    %v6863 = vpop.permute.xlu0 %6862
    %6866 = vset.pattern.permute.xlu0 0
    %6867 = vperm.xlu0 %6866, %v6261
    %v6868 = vpop.permute.xlu0 %6867
    %6871 = vset.pattern.permute.xlu0 0
    %6872 = vperm.xlu0 %6871, %v6262
    %v6873 = vpop.permute.xlu0 %6872
    %6876 = vset.pattern.permute.xlu0 0
    %6877 = vperm.xlu0 %6876, %v6263
    %v6878 = vpop.permute.xlu0 %6877
    %6881 = vset.pattern.permute.xlu0 0
    %6882 = vperm.xlu0 %6881, %v6264
    %v6883 = vpop.permute.xlu0 %6882
    %6886 = vset.pattern.permute.xlu0 0
    %6887 = vperm.xlu0 %6886, %v6265
    %v6888 = vpop.permute.xlu0 %6887
    %6891 = vset.pattern.permute.xlu0 0
    %6892 = vperm.xlu0 %6891, %v6266
    %v6893 = vpop.permute.xlu0 %6892
    %6896 = vset.pattern.permute.xlu0 0
    %6897 = vperm.xlu0 %6896, %v6267
    %v6898 = vpop.permute.xlu0 %6897
    %6901 = vset.pattern.permute.xlu0 0
    %6902 = vperm.xlu0 %6901, %v6268
    %v6903 = vpop.permute.xlu0 %6902
    %6906 = vset.pattern.permute.xlu0 0
    %6907 = vperm.xlu0 %6906, %v6269
    %v6908 = vpop.permute.xlu0 %6907
    %v6910 = vmul.f32 %v6273, %v436
    %v6911 = vmul.f32 %v6278, %v436
    %v6912 = vmul.f32 %v6283, %v436
    %v6913 = vmul.f32 %v6288, %v436
    %v6914 = vmul.f32 %v6293, %v436
    %v6915 = vmul.f32 %v6298, %v436
    %v6916 = vmul.f32 %v6303, %v436
    %v6917 = vmul.f32 %v6308, %v436
    %v6918 = vmul.f32 %v6313, %v437
    %v6919 = vmul.f32 %v6318, %v437
    %v6920 = vmul.f32 %v6323, %v437
    %v6921 = vmul.f32 %v6328, %v437
    %v6922 = vmul.f32 %v6333, %v437
    %v6923 = vmul.f32 %v6338, %v437
    %v6924 = vmul.f32 %v6343, %v437
    %v6925 = vmul.f32 %v6348, %v437
    %v6926 = vmul.f32 %v6353, %v438
    %v6927 = vmul.f32 %v6358, %v438
    %v6928 = vmul.f32 %v6363, %v438
    %v6929 = vmul.f32 %v6368, %v438
    %v6930 = vmul.f32 %v6373, %v438
    %v6931 = vmul.f32 %v6378, %v438
    %v6932 = vmul.f32 %v6383, %v438
    %v6933 = vmul.f32 %v6388, %v438
    %v6934 = vmul.f32 %v6393, %v439
    %v6935 = vmul.f32 %v6398, %v439
    %v6936 = vmul.f32 %v6403, %v439
    %v6937 = vmul.f32 %v6408, %v439
    %v6938 = vmul.f32 %v6413, %v439
    %v6939 = vmul.f32 %v6418, %v439
    %v6940 = vmul.f32 %v6423, %v439
    %v6941 = vmul.f32 %v6428, %v439
    %v6942 = vmul.f32 %v6433, %v440
    %v6943 = vmul.f32 %v6438, %v440
    %v6944 = vmul.f32 %v6443, %v440
    %v6945 = vmul.f32 %v6448, %v440
    %v6946 = vmul.f32 %v6453, %v440
    %v6947 = vmul.f32 %v6458, %v440
    %v6948 = vmul.f32 %v6463, %v440
    %v6949 = vmul.f32 %v6468, %v440
    %v6950 = vmul.f32 %v6473, %v441
    %v6951 = vmul.f32 %v6478, %v441
    %v6952 = vmul.f32 %v6483, %v441
    %v6953 = vmul.f32 %v6488, %v441
    %v6954 = vmul.f32 %v6493, %v441
    %v6955 = vmul.f32 %v6498, %v441
    %v6956 = vmul.f32 %v6503, %v441
    %v6957 = vmul.f32 %v6508, %v441
    %v6958 = vmul.f32 %v6513, %v442
    %v6959 = vmul.f32 %v6518, %v442
    %v6960 = vmul.f32 %v6523, %v442
    %v6961 = vmul.f32 %v6528, %v442
    %v6962 = vmul.f32 %v6533, %v442
    %v6963 = vmul.f32 %v6538, %v442
    %v6964 = vmul.f32 %v6543, %v442
    %v6965 = vmul.f32 %v6548, %v442
    %v6966 = vmul.f32 %v6553, %v443
    %v6967 = vmul.f32 %v6558, %v443
    %v6968 = vmul.f32 %v6563, %v443
    %v6969 = vmul.f32 %v6568, %v443
    %v6970 = vmul.f32 %v6573, %v443
    %v6971 = vmul.f32 %v6578, %v443
    %v6972 = vmul.f32 %v6583, %v443
    %v6973 = vmul.f32 %v6588, %v443
    %v6974 = vmul.f32 %v6593, %v444
    %v6975 = vmul.f32 %v6598, %v444
    %v6976 = vmul.f32 %v6603, %v444
    %v6977 = vmul.f32 %v6608, %v444
    %v6978 = vmul.f32 %v6613, %v444
    %v6979 = vmul.f32 %v6618, %v444
    %v6980 = vmul.f32 %v6623, %v444
    %v6981 = vmul.f32 %v6628, %v444
    %v6982 = vmul.f32 %v6633, %v445
    %v6983 = vmul.f32 %v6638, %v445
    %v6984 = vmul.f32 %v6643, %v445
    %v6985 = vmul.f32 %v6648, %v445
    %v6986 = vmul.f32 %v6653, %v445
    %v6987 = vmul.f32 %v6658, %v445
    %v6988 = vmul.f32 %v6663, %v445
    %v6989 = vmul.f32 %v6668, %v445
    %v6990 = vmul.f32 %v6673, %v446
    %v6991 = vmul.f32 %v6678, %v446
    %v6992 = vmul.f32 %v6683, %v446
    %v6993 = vmul.f32 %v6688, %v446
    %v6994 = vmul.f32 %v6693, %v446
    %v6995 = vmul.f32 %v6698, %v446
    %v6996 = vmul.f32 %v6703, %v446
    %v6997 = vmul.f32 %v6708, %v446
    %v6998 = vmul.f32 %v6713, %v447
    %v6999 = vmul.f32 %v6718, %v447
    %v7000 = vmul.f32 %v6723, %v447
    %v7001 = vmul.f32 %v6728, %v447
    %v7002 = vmul.f32 %v6733, %v447
    %v7003 = vmul.f32 %v6738, %v447
    %v7004 = vmul.f32 %v6743, %v447
    %v7005 = vmul.f32 %v6748, %v447
    %v7006 = vmul.f32 %v6753, %v448
    %v7007 = vmul.f32 %v6758, %v448
    %v7008 = vmul.f32 %v6763, %v448
    %v7009 = vmul.f32 %v6768, %v448
    %v7010 = vmul.f32 %v6773, %v448
    %v7011 = vmul.f32 %v6778, %v448
    %v7012 = vmul.f32 %v6783, %v448
    %v7013 = vmul.f32 %v6788, %v448
    %v7014 = vmul.f32 %v6793, %v449
    %v7015 = vmul.f32 %v6798, %v449
    %v7016 = vmul.f32 %v6803, %v449
    %v7017 = vmul.f32 %v6808, %v449
    %v7018 = vmul.f32 %v6813, %v449
    %v7019 = vmul.f32 %v6818, %v449
    %v7020 = vmul.f32 %v6823, %v449
    %v7021 = vmul.f32 %v6828, %v449
    %v7022 = vmul.f32 %v6833, %v450
    %v7023 = vmul.f32 %v6838, %v450
    %v7024 = vmul.f32 %v6843, %v450
    %v7025 = vmul.f32 %v6848, %v450
    %v7026 = vmul.f32 %v6853, %v450
    %v7027 = vmul.f32 %v6858, %v450
    %v7028 = vmul.f32 %v6863, %v450
    %v7029 = vmul.f32 %v6868, %v450
    %v7030 = vmul.f32 %v6873, %v451
    %v7031 = vmul.f32 %v6878, %v451
    %v7032 = vmul.f32 %v6883, %v451
    %v7033 = vmul.f32 %v6888, %v451
    %v7034 = vmul.f32 %v6893, %v451
    %v7035 = vmul.f32 %v6898, %v451
    %v7036 = vmul.f32 %v6903, %v451
    %v7037 = vmul.f32 %v6908, %v451
    %v7038 = vsel %vm148, %v6910, 0.0
    %v7039 = vrot.slane %v7038, 4
    %v7040 = vadd.f32 %v7038, %v7039
    %v7041 = vrot.slane %v7040, 2
    %v7042 = vadd.f32 %v7040, %v7041
    %v7043 = vrot.slane %v7042, 1
    %v7044 = vadd.f32 %v7042, %v7043
    %v7045 = vsel %vm148, %v6911, 0.0
    %v7046 = vrot.slane %v7045, 4
    %v7047 = vadd.f32 %v7045, %v7046
    %v7048 = vrot.slane %v7047, 2
    %v7049 = vadd.f32 %v7047, %v7048
    %v7050 = vrot.slane %v7049, 1
    %v7051 = vadd.f32 %v7049, %v7050
    %v7052 = vsel %vm148, %v6912, 0.0
    %v7053 = vrot.slane %v7052, 4
    %v7054 = vadd.f32 %v7052, %v7053
    %v7055 = vrot.slane %v7054, 2
    %v7056 = vadd.f32 %v7054, %v7055
    %v7057 = vrot.slane %v7056, 1
    %v7058 = vadd.f32 %v7056, %v7057
    %v7059 = vsel %vm148, %v6913, 0.0
    %v7060 = vrot.slane %v7059, 4
    %v7061 = vadd.f32 %v7059, %v7060
    %v7062 = vrot.slane %v7061, 2
    %v7063 = vadd.f32 %v7061, %v7062
    %v7064 = vrot.slane %v7063, 1
    %v7065 = vadd.f32 %v7063, %v7064
    %v7066 = vsel %vm148, %v6914, 0.0
    %v7067 = vrot.slane %v7066, 4
    %v7068 = vadd.f32 %v7066, %v7067
    %v7069 = vrot.slane %v7068, 2
    %v7070 = vadd.f32 %v7068, %v7069
    %v7071 = vrot.slane %v7070, 1
    %v7072 = vadd.f32 %v7070, %v7071
    %v7073 = vsel %vm148, %v6915, 0.0
    %v7074 = vrot.slane %v7073, 4
    %v7075 = vadd.f32 %v7073, %v7074
    %v7076 = vrot.slane %v7075, 2
    %v7077 = vadd.f32 %v7075, %v7076
    %v7078 = vrot.slane %v7077, 1
    %v7079 = vadd.f32 %v7077, %v7078
    %v7080 = vsel %vm148, %v6916, 0.0
    %v7081 = vrot.slane %v7080, 4
    %v7082 = vadd.f32 %v7080, %v7081
    %v7083 = vrot.slane %v7082, 2
    %v7084 = vadd.f32 %v7082, %v7083
    %v7085 = vrot.slane %v7084, 1
    %v7086 = vadd.f32 %v7084, %v7085
    %v7087 = vsel %vm148, %v6917, 0.0
    %v7088 = vrot.slane %v7087, 4
    %v7089 = vadd.f32 %v7087, %v7088
    %v7090 = vrot.slane %v7089, 2
    %v7091 = vadd.f32 %v7089, %v7090
    %v7092 = vrot.slane %v7091, 1
    %v7093 = vadd.f32 %v7091, %v7092
    %v7094 = vsel %vm148, %v6918, 0.0
    %v7095 = vrot.slane %v7094, 4
    %v7096 = vadd.f32 %v7094, %v7095
    %v7097 = vrot.slane %v7096, 2
    %v7098 = vadd.f32 %v7096, %v7097
    %v7099 = vrot.slane %v7098, 1
    %v7100 = vadd.f32 %v7098, %v7099
    %v7101 = vsel %vm148, %v6919, 0.0
    %v7102 = vrot.slane %v7101, 4
    %v7103 = vadd.f32 %v7101, %v7102
    %v7104 = vrot.slane %v7103, 2
    %v7105 = vadd.f32 %v7103, %v7104
    %v7106 = vrot.slane %v7105, 1
    %v7107 = vadd.f32 %v7105, %v7106
    %v7108 = vsel %vm148, %v6920, 0.0
    %v7109 = vrot.slane %v7108, 4
    %v7110 = vadd.f32 %v7108, %v7109
    %v7111 = vrot.slane %v7110, 2
    %v7112 = vadd.f32 %v7110, %v7111
    %v7113 = vrot.slane %v7112, 1
    %v7114 = vadd.f32 %v7112, %v7113
    %v7115 = vsel %vm148, %v6921, 0.0
    %v7116 = vrot.slane %v7115, 4
    %v7117 = vadd.f32 %v7115, %v7116
    %v7118 = vrot.slane %v7117, 2
    %v7119 = vadd.f32 %v7117, %v7118
    %v7120 = vrot.slane %v7119, 1
    %v7121 = vadd.f32 %v7119, %v7120
    %v7122 = vsel %vm148, %v6922, 0.0
    %v7123 = vrot.slane %v7122, 4
    %v7124 = vadd.f32 %v7122, %v7123
    %v7125 = vrot.slane %v7124, 2
    %v7126 = vadd.f32 %v7124, %v7125
    %v7127 = vrot.slane %v7126, 1
    %v7128 = vadd.f32 %v7126, %v7127
    %v7129 = vsel %vm148, %v6923, 0.0
    %v7130 = vrot.slane %v7129, 4
    %v7131 = vadd.f32 %v7129, %v7130
    %v7132 = vrot.slane %v7131, 2
    %v7133 = vadd.f32 %v7131, %v7132
    %v7134 = vrot.slane %v7133, 1
    %v7135 = vadd.f32 %v7133, %v7134
    %v7136 = vsel %vm148, %v6924, 0.0
    %v7137 = vrot.slane %v7136, 4
    %v7138 = vadd.f32 %v7136, %v7137
    %v7139 = vrot.slane %v7138, 2
    %v7140 = vadd.f32 %v7138, %v7139
    %v7141 = vrot.slane %v7140, 1
    %v7142 = vadd.f32 %v7140, %v7141
    %v7143 = vsel %vm148, %v6925, 0.0
    %v7144 = vrot.slane %v7143, 4
    %v7145 = vadd.f32 %v7143, %v7144
    %v7146 = vrot.slane %v7145, 2
    %v7147 = vadd.f32 %v7145, %v7146
    %v7148 = vrot.slane %v7147, 1
    %v7149 = vadd.f32 %v7147, %v7148
    %v7150 = vsel %vm148, %v6926, 0.0
    %v7151 = vrot.slane %v7150, 4
    %v7152 = vadd.f32 %v7150, %v7151
    %v7153 = vrot.slane %v7152, 2
    %v7154 = vadd.f32 %v7152, %v7153
    %v7155 = vrot.slane %v7154, 1
    %v7156 = vadd.f32 %v7154, %v7155
    %v7157 = vsel %vm148, %v6927, 0.0
    %v7158 = vrot.slane %v7157, 4
    %v7159 = vadd.f32 %v7157, %v7158
    %v7160 = vrot.slane %v7159, 2
    %v7161 = vadd.f32 %v7159, %v7160
    %v7162 = vrot.slane %v7161, 1
    %v7163 = vadd.f32 %v7161, %v7162
    %v7164 = vsel %vm148, %v6928, 0.0
    %v7165 = vrot.slane %v7164, 4
    %v7166 = vadd.f32 %v7164, %v7165
    %v7167 = vrot.slane %v7166, 2
    %v7168 = vadd.f32 %v7166, %v7167
    %v7169 = vrot.slane %v7168, 1
    %v7170 = vadd.f32 %v7168, %v7169
    %v7171 = vsel %vm148, %v6929, 0.0
    %v7172 = vrot.slane %v7171, 4
    %v7173 = vadd.f32 %v7171, %v7172
    %v7174 = vrot.slane %v7173, 2
    %v7175 = vadd.f32 %v7173, %v7174
    %v7176 = vrot.slane %v7175, 1
    %v7177 = vadd.f32 %v7175, %v7176
    %v7178 = vsel %vm148, %v6930, 0.0
    %v7179 = vrot.slane %v7178, 4
    %v7180 = vadd.f32 %v7178, %v7179
    %v7181 = vrot.slane %v7180, 2
    %v7182 = vadd.f32 %v7180, %v7181
    %v7183 = vrot.slane %v7182, 1
    %v7184 = vadd.f32 %v7182, %v7183
    %v7185 = vsel %vm148, %v6931, 0.0
    %v7186 = vrot.slane %v7185, 4
    %v7187 = vadd.f32 %v7185, %v7186
    %v7188 = vrot.slane %v7187, 2
    %v7189 = vadd.f32 %v7187, %v7188
    %v7190 = vrot.slane %v7189, 1
    %v7191 = vadd.f32 %v7189, %v7190
    %v7192 = vsel %vm148, %v6932, 0.0
    %v7193 = vrot.slane %v7192, 4
    %v7194 = vadd.f32 %v7192, %v7193
    %v7195 = vrot.slane %v7194, 2
    %v7196 = vadd.f32 %v7194, %v7195
    %v7197 = vrot.slane %v7196, 1
    %v7198 = vadd.f32 %v7196, %v7197
    %v7199 = vsel %vm148, %v6933, 0.0
    %v7200 = vrot.slane %v7199, 4
    %v7201 = vadd.f32 %v7199, %v7200
    %v7202 = vrot.slane %v7201, 2
    %v7203 = vadd.f32 %v7201, %v7202
    %v7204 = vrot.slane %v7203, 1
    %v7205 = vadd.f32 %v7203, %v7204
    %v7206 = vsel %vm148, %v6934, 0.0
    %v7207 = vrot.slane %v7206, 4
    %v7208 = vadd.f32 %v7206, %v7207
    %v7209 = vrot.slane %v7208, 2
    %v7210 = vadd.f32 %v7208, %v7209
    %v7211 = vrot.slane %v7210, 1
    %v7212 = vadd.f32 %v7210, %v7211
    %v7213 = vsel %vm148, %v6935, 0.0
    %v7214 = vrot.slane %v7213, 4
    %v7215 = vadd.f32 %v7213, %v7214
    %v7216 = vrot.slane %v7215, 2
    %v7217 = vadd.f32 %v7215, %v7216
    %v7218 = vrot.slane %v7217, 1
    %v7219 = vadd.f32 %v7217, %v7218
    %v7220 = vsel %vm148, %v6936, 0.0
    %v7221 = vrot.slane %v7220, 4
    %v7222 = vadd.f32 %v7220, %v7221
    %v7223 = vrot.slane %v7222, 2
    %v7224 = vadd.f32 %v7222, %v7223
    %v7225 = vrot.slane %v7224, 1
    %v7226 = vadd.f32 %v7224, %v7225
    %v7227 = vsel %vm148, %v6937, 0.0
    %v7228 = vrot.slane %v7227, 4
    %v7229 = vadd.f32 %v7227, %v7228
    %v7230 = vrot.slane %v7229, 2
    %v7231 = vadd.f32 %v7229, %v7230
    %v7232 = vrot.slane %v7231, 1
    %v7233 = vadd.f32 %v7231, %v7232
    %v7234 = vsel %vm148, %v6938, 0.0
    %v7235 = vrot.slane %v7234, 4
    %v7236 = vadd.f32 %v7234, %v7235
    %v7237 = vrot.slane %v7236, 2
    %v7238 = vadd.f32 %v7236, %v7237
    %v7239 = vrot.slane %v7238, 1
    %v7240 = vadd.f32 %v7238, %v7239
    %v7241 = vsel %vm148, %v6939, 0.0
    %v7242 = vrot.slane %v7241, 4
    %v7243 = vadd.f32 %v7241, %v7242
    %v7244 = vrot.slane %v7243, 2
    %v7245 = vadd.f32 %v7243, %v7244
    %v7246 = vrot.slane %v7245, 1
    %v7247 = vadd.f32 %v7245, %v7246
    %v7248 = vsel %vm148, %v6940, 0.0
    %v7249 = vrot.slane %v7248, 4
    %v7250 = vadd.f32 %v7248, %v7249
    %v7251 = vrot.slane %v7250, 2
    %v7252 = vadd.f32 %v7250, %v7251
    %v7253 = vrot.slane %v7252, 1
    %v7254 = vadd.f32 %v7252, %v7253
    %v7255 = vsel %vm148, %v6941, 0.0
    %v7256 = vrot.slane %v7255, 4
    %v7257 = vadd.f32 %v7255, %v7256
    %v7258 = vrot.slane %v7257, 2
    %v7259 = vadd.f32 %v7257, %v7258
    %v7260 = vrot.slane %v7259, 1
    %v7261 = vadd.f32 %v7259, %v7260
    %v7262 = vsel %vm148, %v6942, 0.0
    %v7263 = vrot.slane %v7262, 4
    %v7264 = vadd.f32 %v7262, %v7263
    %v7265 = vrot.slane %v7264, 2
    %v7266 = vadd.f32 %v7264, %v7265
    %v7267 = vrot.slane %v7266, 1
    %v7268 = vadd.f32 %v7266, %v7267
    %v7269 = vsel %vm148, %v6943, 0.0
    %v7270 = vrot.slane %v7269, 4
    %v7271 = vadd.f32 %v7269, %v7270
    %v7272 = vrot.slane %v7271, 2
    %v7273 = vadd.f32 %v7271, %v7272
    %v7274 = vrot.slane %v7273, 1
    %v7275 = vadd.f32 %v7273, %v7274
    %v7276 = vsel %vm148, %v6944, 0.0
    %v7277 = vrot.slane %v7276, 4
    %v7278 = vadd.f32 %v7276, %v7277
    %v7279 = vrot.slane %v7278, 2
    %v7280 = vadd.f32 %v7278, %v7279
    %v7281 = vrot.slane %v7280, 1
    %v7282 = vadd.f32 %v7280, %v7281
    %v7283 = vsel %vm148, %v6945, 0.0
    %v7284 = vrot.slane %v7283, 4
    %v7285 = vadd.f32 %v7283, %v7284
    %v7286 = vrot.slane %v7285, 2
    %v7287 = vadd.f32 %v7285, %v7286
    %v7288 = vrot.slane %v7287, 1
    %v7289 = vadd.f32 %v7287, %v7288
    %v7290 = vsel %vm148, %v6946, 0.0
    %v7291 = vrot.slane %v7290, 4
    %v7292 = vadd.f32 %v7290, %v7291
    %v7293 = vrot.slane %v7292, 2
    %v7294 = vadd.f32 %v7292, %v7293
    %v7295 = vrot.slane %v7294, 1
    %v7296 = vadd.f32 %v7294, %v7295
    %v7297 = vsel %vm148, %v6947, 0.0
    %v7298 = vrot.slane %v7297, 4
    %v7299 = vadd.f32 %v7297, %v7298
    %v7300 = vrot.slane %v7299, 2
    %v7301 = vadd.f32 %v7299, %v7300
    %v7302 = vrot.slane %v7301, 1
    %v7303 = vadd.f32 %v7301, %v7302
    %v7304 = vsel %vm148, %v6948, 0.0
    %v7305 = vrot.slane %v7304, 4
    %v7306 = vadd.f32 %v7304, %v7305
    %v7307 = vrot.slane %v7306, 2
    %v7308 = vadd.f32 %v7306, %v7307
    %v7309 = vrot.slane %v7308, 1
    %v7310 = vadd.f32 %v7308, %v7309
    %v7311 = vsel %vm148, %v6949, 0.0
    %v7312 = vrot.slane %v7311, 4
    %v7313 = vadd.f32 %v7311, %v7312
    %v7314 = vrot.slane %v7313, 2
    %v7315 = vadd.f32 %v7313, %v7314
    %v7316 = vrot.slane %v7315, 1
    %v7317 = vadd.f32 %v7315, %v7316
    %v7318 = vsel %vm148, %v6950, 0.0
    %v7319 = vrot.slane %v7318, 4
    %v7320 = vadd.f32 %v7318, %v7319
    %v7321 = vrot.slane %v7320, 2
    %v7322 = vadd.f32 %v7320, %v7321
    %v7323 = vrot.slane %v7322, 1
    %v7324 = vadd.f32 %v7322, %v7323
    %v7325 = vsel %vm148, %v6951, 0.0
    %v7326 = vrot.slane %v7325, 4
    %v7327 = vadd.f32 %v7325, %v7326
    %v7328 = vrot.slane %v7327, 2
    %v7329 = vadd.f32 %v7327, %v7328
    %v7330 = vrot.slane %v7329, 1
    %v7331 = vadd.f32 %v7329, %v7330
    %v7332 = vsel %vm148, %v6952, 0.0
    %v7333 = vrot.slane %v7332, 4
    %v7334 = vadd.f32 %v7332, %v7333
    %v7335 = vrot.slane %v7334, 2
    %v7336 = vadd.f32 %v7334, %v7335
    %v7337 = vrot.slane %v7336, 1
    %v7338 = vadd.f32 %v7336, %v7337
    %v7339 = vsel %vm148, %v6953, 0.0
    %v7340 = vrot.slane %v7339, 4
    %v7341 = vadd.f32 %v7339, %v7340
    %v7342 = vrot.slane %v7341, 2
    %v7343 = vadd.f32 %v7341, %v7342
    %v7344 = vrot.slane %v7343, 1
    %v7345 = vadd.f32 %v7343, %v7344
    %v7346 = vsel %vm148, %v6954, 0.0
    %v7347 = vrot.slane %v7346, 4
    %v7348 = vadd.f32 %v7346, %v7347
    %v7349 = vrot.slane %v7348, 2
    %v7350 = vadd.f32 %v7348, %v7349
    %v7351 = vrot.slane %v7350, 1
    %v7352 = vadd.f32 %v7350, %v7351
    %v7353 = vsel %vm148, %v6955, 0.0
    %v7354 = vrot.slane %v7353, 4
    %v7355 = vadd.f32 %v7353, %v7354
    %v7356 = vrot.slane %v7355, 2
    %v7357 = vadd.f32 %v7355, %v7356
    %v7358 = vrot.slane %v7357, 1
    %v7359 = vadd.f32 %v7357, %v7358
    %v7360 = vsel %vm148, %v6956, 0.0
    %v7361 = vrot.slane %v7360, 4
    %v7362 = vadd.f32 %v7360, %v7361
    %v7363 = vrot.slane %v7362, 2
    %v7364 = vadd.f32 %v7362, %v7363
    %v7365 = vrot.slane %v7364, 1
    %v7366 = vadd.f32 %v7364, %v7365
    %v7367 = vsel %vm148, %v6957, 0.0
    %v7368 = vrot.slane %v7367, 4
    %v7369 = vadd.f32 %v7367, %v7368
    %v7370 = vrot.slane %v7369, 2
    %v7371 = vadd.f32 %v7369, %v7370
    %v7372 = vrot.slane %v7371, 1
    %v7373 = vadd.f32 %v7371, %v7372
    %v7374 = vsel %vm148, %v6958, 0.0
    %v7375 = vrot.slane %v7374, 4
    %v7376 = vadd.f32 %v7374, %v7375
    %v7377 = vrot.slane %v7376, 2
    %v7378 = vadd.f32 %v7376, %v7377
    %v7379 = vrot.slane %v7378, 1
    %v7380 = vadd.f32 %v7378, %v7379
    %v7381 = vsel %vm148, %v6959, 0.0
    %v7382 = vrot.slane %v7381, 4
    %v7383 = vadd.f32 %v7381, %v7382
    %v7384 = vrot.slane %v7383, 2
    %v7385 = vadd.f32 %v7383, %v7384
    %v7386 = vrot.slane %v7385, 1
    %v7387 = vadd.f32 %v7385, %v7386
    %v7388 = vsel %vm148, %v6960, 0.0
    %v7389 = vrot.slane %v7388, 4
    %v7390 = vadd.f32 %v7388, %v7389
    %v7391 = vrot.slane %v7390, 2
    %v7392 = vadd.f32 %v7390, %v7391
    %v7393 = vrot.slane %v7392, 1
    %v7394 = vadd.f32 %v7392, %v7393
    %v7395 = vsel %vm148, %v6961, 0.0
    %v7396 = vrot.slane %v7395, 4
    %v7397 = vadd.f32 %v7395, %v7396
    %v7398 = vrot.slane %v7397, 2
    %v7399 = vadd.f32 %v7397, %v7398
    %v7400 = vrot.slane %v7399, 1
    %v7401 = vadd.f32 %v7399, %v7400
    %v7402 = vsel %vm148, %v6962, 0.0
    %v7403 = vrot.slane %v7402, 4
    %v7404 = vadd.f32 %v7402, %v7403
    %v7405 = vrot.slane %v7404, 2
    %v7406 = vadd.f32 %v7404, %v7405
    %v7407 = vrot.slane %v7406, 1
    %v7408 = vadd.f32 %v7406, %v7407
    %v7409 = vsel %vm148, %v6963, 0.0
    %v7410 = vrot.slane %v7409, 4
    %v7411 = vadd.f32 %v7409, %v7410
    %v7412 = vrot.slane %v7411, 2
    %v7413 = vadd.f32 %v7411, %v7412
    %v7414 = vrot.slane %v7413, 1
    %v7415 = vadd.f32 %v7413, %v7414
    %v7416 = vsel %vm148, %v6964, 0.0
    %v7417 = vrot.slane %v7416, 4
    %v7418 = vadd.f32 %v7416, %v7417
    %v7419 = vrot.slane %v7418, 2
    %v7420 = vadd.f32 %v7418, %v7419
    %v7421 = vrot.slane %v7420, 1
    %v7422 = vadd.f32 %v7420, %v7421
    %v7423 = vsel %vm148, %v6965, 0.0
    %v7424 = vrot.slane %v7423, 4
    %v7425 = vadd.f32 %v7423, %v7424
    %v7426 = vrot.slane %v7425, 2
    %v7427 = vadd.f32 %v7425, %v7426
    %v7428 = vrot.slane %v7427, 1
    %v7429 = vadd.f32 %v7427, %v7428
    %v7430 = vsel %vm148, %v6966, 0.0
    %v7431 = vrot.slane %v7430, 4
    %v7432 = vadd.f32 %v7430, %v7431
    %v7433 = vrot.slane %v7432, 2
    %v7434 = vadd.f32 %v7432, %v7433
    %v7435 = vrot.slane %v7434, 1
    %v7436 = vadd.f32 %v7434, %v7435
    %v7437 = vsel %vm148, %v6967, 0.0
    %v7438 = vrot.slane %v7437, 4
    %v7439 = vadd.f32 %v7437, %v7438
    %v7440 = vrot.slane %v7439, 2
    %v7441 = vadd.f32 %v7439, %v7440
    %v7442 = vrot.slane %v7441, 1
    %v7443 = vadd.f32 %v7441, %v7442
    %v7444 = vsel %vm148, %v6968, 0.0
    %v7445 = vrot.slane %v7444, 4
    %v7446 = vadd.f32 %v7444, %v7445
    %v7447 = vrot.slane %v7446, 2
    %v7448 = vadd.f32 %v7446, %v7447
    %v7449 = vrot.slane %v7448, 1
    %v7450 = vadd.f32 %v7448, %v7449
    %v7451 = vsel %vm148, %v6969, 0.0
    %v7452 = vrot.slane %v7451, 4
    %v7453 = vadd.f32 %v7451, %v7452
    %v7454 = vrot.slane %v7453, 2
    %v7455 = vadd.f32 %v7453, %v7454
    %v7456 = vrot.slane %v7455, 1
    %v7457 = vadd.f32 %v7455, %v7456
    %v7458 = vsel %vm148, %v6970, 0.0
    %v7459 = vrot.slane %v7458, 4
    %v7460 = vadd.f32 %v7458, %v7459
    %v7461 = vrot.slane %v7460, 2
    %v7462 = vadd.f32 %v7460, %v7461
    %v7463 = vrot.slane %v7462, 1
    %v7464 = vadd.f32 %v7462, %v7463
    %v7465 = vsel %vm148, %v6971, 0.0
    %v7466 = vrot.slane %v7465, 4
    %v7467 = vadd.f32 %v7465, %v7466
    %v7468 = vrot.slane %v7467, 2
    %v7469 = vadd.f32 %v7467, %v7468
    %v7470 = vrot.slane %v7469, 1
    %v7471 = vadd.f32 %v7469, %v7470
    %v7472 = vsel %vm148, %v6972, 0.0
    %v7473 = vrot.slane %v7472, 4
    %v7474 = vadd.f32 %v7472, %v7473
    %v7475 = vrot.slane %v7474, 2
    %v7476 = vadd.f32 %v7474, %v7475
    %v7477 = vrot.slane %v7476, 1
    %v7478 = vadd.f32 %v7476, %v7477
    %v7479 = vsel %vm148, %v6973, 0.0
    %v7480 = vrot.slane %v7479, 4
    %v7481 = vadd.f32 %v7479, %v7480
    %v7482 = vrot.slane %v7481, 2
    %v7483 = vadd.f32 %v7481, %v7482
    %v7484 = vrot.slane %v7483, 1
    %v7485 = vadd.f32 %v7483, %v7484
    %v7486 = vsel %vm148, %v6974, 0.0
    %v7487 = vrot.slane %v7486, 4
    %v7488 = vadd.f32 %v7486, %v7487
    %v7489 = vrot.slane %v7488, 2
    %v7490 = vadd.f32 %v7488, %v7489
    %v7491 = vrot.slane %v7490, 1
    %v7492 = vadd.f32 %v7490, %v7491
    %v7493 = vsel %vm148, %v6975, 0.0
    %v7494 = vrot.slane %v7493, 4
    %v7495 = vadd.f32 %v7493, %v7494
    %v7496 = vrot.slane %v7495, 2
    %v7497 = vadd.f32 %v7495, %v7496
    %v7498 = vrot.slane %v7497, 1
    %v7499 = vadd.f32 %v7497, %v7498
    %v7500 = vsel %vm148, %v6976, 0.0
    %v7501 = vrot.slane %v7500, 4
    %v7502 = vadd.f32 %v7500, %v7501
    %v7503 = vrot.slane %v7502, 2
    %v7504 = vadd.f32 %v7502, %v7503
    %v7505 = vrot.slane %v7504, 1
    %v7506 = vadd.f32 %v7504, %v7505
    %v7507 = vsel %vm148, %v6977, 0.0
    %v7508 = vrot.slane %v7507, 4
    %v7509 = vadd.f32 %v7507, %v7508
    %v7510 = vrot.slane %v7509, 2
    %v7511 = vadd.f32 %v7509, %v7510
    %v7512 = vrot.slane %v7511, 1
    %v7513 = vadd.f32 %v7511, %v7512
    %v7514 = vsel %vm148, %v6978, 0.0
    %v7515 = vrot.slane %v7514, 4
    %v7516 = vadd.f32 %v7514, %v7515
    %v7517 = vrot.slane %v7516, 2
    %v7518 = vadd.f32 %v7516, %v7517
    %v7519 = vrot.slane %v7518, 1
    %v7520 = vadd.f32 %v7518, %v7519
    %v7521 = vsel %vm148, %v6979, 0.0
    %v7522 = vrot.slane %v7521, 4
    %v7523 = vadd.f32 %v7521, %v7522
    %v7524 = vrot.slane %v7523, 2
    %v7525 = vadd.f32 %v7523, %v7524
    %v7526 = vrot.slane %v7525, 1
    %v7527 = vadd.f32 %v7525, %v7526
    %v7528 = vsel %vm148, %v6980, 0.0
    %v7529 = vrot.slane %v7528, 4
    %v7530 = vadd.f32 %v7528, %v7529
    %v7531 = vrot.slane %v7530, 2
    %v7532 = vadd.f32 %v7530, %v7531
    %v7533 = vrot.slane %v7532, 1
    %v7534 = vadd.f32 %v7532, %v7533
    %v7535 = vsel %vm148, %v6981, 0.0
    %v7536 = vrot.slane %v7535, 4
    %v7537 = vadd.f32 %v7535, %v7536
    %v7538 = vrot.slane %v7537, 2
    %v7539 = vadd.f32 %v7537, %v7538
    %v7540 = vrot.slane %v7539, 1
    %v7541 = vadd.f32 %v7539, %v7540
    %v7542 = vsel %vm148, %v6982, 0.0
    %v7543 = vrot.slane %v7542, 4
    %v7544 = vadd.f32 %v7542, %v7543
    %v7545 = vrot.slane %v7544, 2
    %v7546 = vadd.f32 %v7544, %v7545
    %v7547 = vrot.slane %v7546, 1
    %v7548 = vadd.f32 %v7546, %v7547
    %v7549 = vsel %vm148, %v6983, 0.0
    %v7550 = vrot.slane %v7549, 4
    %v7551 = vadd.f32 %v7549, %v7550
    %v7552 = vrot.slane %v7551, 2
    %v7553 = vadd.f32 %v7551, %v7552
    %v7554 = vrot.slane %v7553, 1
    %v7555 = vadd.f32 %v7553, %v7554
    %v7556 = vsel %vm148, %v6984, 0.0
    %v7557 = vrot.slane %v7556, 4
    %v7558 = vadd.f32 %v7556, %v7557
    %v7559 = vrot.slane %v7558, 2
    %v7560 = vadd.f32 %v7558, %v7559
    %v7561 = vrot.slane %v7560, 1
    %v7562 = vadd.f32 %v7560, %v7561
    %v7563 = vsel %vm148, %v6985, 0.0
    %v7564 = vrot.slane %v7563, 4
    %v7565 = vadd.f32 %v7563, %v7564
    %v7566 = vrot.slane %v7565, 2
    %v7567 = vadd.f32 %v7565, %v7566
    %v7568 = vrot.slane %v7567, 1
    %v7569 = vadd.f32 %v7567, %v7568
    %v7570 = vsel %vm148, %v6986, 0.0
    %v7571 = vrot.slane %v7570, 4
    %v7572 = vadd.f32 %v7570, %v7571
    %v7573 = vrot.slane %v7572, 2
    %v7574 = vadd.f32 %v7572, %v7573
    %v7575 = vrot.slane %v7574, 1
    %v7576 = vadd.f32 %v7574, %v7575
    %v7577 = vsel %vm148, %v6987, 0.0
    %v7578 = vrot.slane %v7577, 4
    %v7579 = vadd.f32 %v7577, %v7578
    %v7580 = vrot.slane %v7579, 2
    %v7581 = vadd.f32 %v7579, %v7580
    %v7582 = vrot.slane %v7581, 1
    %v7583 = vadd.f32 %v7581, %v7582
    %v7584 = vsel %vm148, %v6988, 0.0
    %v7585 = vrot.slane %v7584, 4
    %v7586 = vadd.f32 %v7584, %v7585
    %v7587 = vrot.slane %v7586, 2
    %v7588 = vadd.f32 %v7586, %v7587
    %v7589 = vrot.slane %v7588, 1
    %v7590 = vadd.f32 %v7588, %v7589
    %v7591 = vsel %vm148, %v6989, 0.0
    %v7592 = vrot.slane %v7591, 4
    %v7593 = vadd.f32 %v7591, %v7592
    %v7594 = vrot.slane %v7593, 2
    %v7595 = vadd.f32 %v7593, %v7594
    %v7596 = vrot.slane %v7595, 1
    %v7597 = vadd.f32 %v7595, %v7596
    %v7598 = vsel %vm148, %v6990, 0.0
    %v7599 = vrot.slane %v7598, 4
    %v7600 = vadd.f32 %v7598, %v7599
    %v7601 = vrot.slane %v7600, 2
    %v7602 = vadd.f32 %v7600, %v7601
    %v7603 = vrot.slane %v7602, 1
    %v7604 = vadd.f32 %v7602, %v7603
    %v7605 = vsel %vm148, %v6991, 0.0
    %v7606 = vrot.slane %v7605, 4
    %v7607 = vadd.f32 %v7605, %v7606
    %v7608 = vrot.slane %v7607, 2
    %v7609 = vadd.f32 %v7607, %v7608
    %v7610 = vrot.slane %v7609, 1
    %v7611 = vadd.f32 %v7609, %v7610
    %v7612 = vsel %vm148, %v6992, 0.0
    %v7613 = vrot.slane %v7612, 4
    %v7614 = vadd.f32 %v7612, %v7613
    %v7615 = vrot.slane %v7614, 2
    %v7616 = vadd.f32 %v7614, %v7615
    %v7617 = vrot.slane %v7616, 1
    %v7618 = vadd.f32 %v7616, %v7617
    %v7619 = vsel %vm148, %v6993, 0.0
    %v7620 = vrot.slane %v7619, 4
    %v7621 = vadd.f32 %v7619, %v7620
    %v7622 = vrot.slane %v7621, 2
    %v7623 = vadd.f32 %v7621, %v7622
    %v7624 = vrot.slane %v7623, 1
    %v7625 = vadd.f32 %v7623, %v7624
    %v7626 = vsel %vm148, %v6994, 0.0
    %v7627 = vrot.slane %v7626, 4
    %v7628 = vadd.f32 %v7626, %v7627
    %v7629 = vrot.slane %v7628, 2
    %v7630 = vadd.f32 %v7628, %v7629
    %v7631 = vrot.slane %v7630, 1
    %v7632 = vadd.f32 %v7630, %v7631
    %v7633 = vsel %vm148, %v6995, 0.0
    %v7634 = vrot.slane %v7633, 4
    %v7635 = vadd.f32 %v7633, %v7634
    %v7636 = vrot.slane %v7635, 2
    %v7637 = vadd.f32 %v7635, %v7636
    %v7638 = vrot.slane %v7637, 1
    %v7639 = vadd.f32 %v7637, %v7638
    %v7640 = vsel %vm148, %v6996, 0.0
    %v7641 = vrot.slane %v7640, 4
    %v7642 = vadd.f32 %v7640, %v7641
    %v7643 = vrot.slane %v7642, 2
    %v7644 = vadd.f32 %v7642, %v7643
    %v7645 = vrot.slane %v7644, 1
    %v7646 = vadd.f32 %v7644, %v7645
    %v7647 = vsel %vm148, %v6997, 0.0
    %v7648 = vrot.slane %v7647, 4
    %v7649 = vadd.f32 %v7647, %v7648
    %v7650 = vrot.slane %v7649, 2
    %v7651 = vadd.f32 %v7649, %v7650
    %v7652 = vrot.slane %v7651, 1
    %v7653 = vadd.f32 %v7651, %v7652
    %v7654 = vsel %vm148, %v6998, 0.0
    %v7655 = vrot.slane %v7654, 4
    %v7656 = vadd.f32 %v7654, %v7655
    %v7657 = vrot.slane %v7656, 2
    %v7658 = vadd.f32 %v7656, %v7657
    %v7659 = vrot.slane %v7658, 1
    %v7660 = vadd.f32 %v7658, %v7659
    %v7661 = vsel %vm148, %v6999, 0.0
    %v7662 = vrot.slane %v7661, 4
    %v7663 = vadd.f32 %v7661, %v7662
    %v7664 = vrot.slane %v7663, 2
    %v7665 = vadd.f32 %v7663, %v7664
    %v7666 = vrot.slane %v7665, 1
    %v7667 = vadd.f32 %v7665, %v7666
    %v7668 = vsel %vm148, %v7000, 0.0
    %v7669 = vrot.slane %v7668, 4
    %v7670 = vadd.f32 %v7668, %v7669
    %v7671 = vrot.slane %v7670, 2
    %v7672 = vadd.f32 %v7670, %v7671
    %v7673 = vrot.slane %v7672, 1
    %v7674 = vadd.f32 %v7672, %v7673
    %v7675 = vsel %vm148, %v7001, 0.0
    %v7676 = vrot.slane %v7675, 4
    %v7677 = vadd.f32 %v7675, %v7676
    %v7678 = vrot.slane %v7677, 2
    %v7679 = vadd.f32 %v7677, %v7678
    %v7680 = vrot.slane %v7679, 1
    %v7681 = vadd.f32 %v7679, %v7680
    %v7682 = vsel %vm148, %v7002, 0.0
    %v7683 = vrot.slane %v7682, 4
    %v7684 = vadd.f32 %v7682, %v7683
    %v7685 = vrot.slane %v7684, 2
    %v7686 = vadd.f32 %v7684, %v7685
    %v7687 = vrot.slane %v7686, 1
    %v7688 = vadd.f32 %v7686, %v7687
    %v7689 = vsel %vm148, %v7003, 0.0
    %v7690 = vrot.slane %v7689, 4
    %v7691 = vadd.f32 %v7689, %v7690
    %v7692 = vrot.slane %v7691, 2
    %v7693 = vadd.f32 %v7691, %v7692
    %v7694 = vrot.slane %v7693, 1
    %v7695 = vadd.f32 %v7693, %v7694
    %v7696 = vsel %vm148, %v7004, 0.0
    %v7697 = vrot.slane %v7696, 4
    %v7698 = vadd.f32 %v7696, %v7697
    %v7699 = vrot.slane %v7698, 2
    %v7700 = vadd.f32 %v7698, %v7699
    %v7701 = vrot.slane %v7700, 1
    %v7702 = vadd.f32 %v7700, %v7701
    %v7703 = vsel %vm148, %v7005, 0.0
    %v7704 = vrot.slane %v7703, 4
    %v7705 = vadd.f32 %v7703, %v7704
    %v7706 = vrot.slane %v7705, 2
    %v7707 = vadd.f32 %v7705, %v7706
    %v7708 = vrot.slane %v7707, 1
    %v7709 = vadd.f32 %v7707, %v7708
    %v7710 = vsel %vm148, %v7006, 0.0
    %v7711 = vrot.slane %v7710, 4
    %v7712 = vadd.f32 %v7710, %v7711
    %v7713 = vrot.slane %v7712, 2
    %v7714 = vadd.f32 %v7712, %v7713
    %v7715 = vrot.slane %v7714, 1
    %v7716 = vadd.f32 %v7714, %v7715
    %v7717 = vsel %vm148, %v7007, 0.0
    %v7718 = vrot.slane %v7717, 4
    %v7719 = vadd.f32 %v7717, %v7718
    %v7720 = vrot.slane %v7719, 2
    %v7721 = vadd.f32 %v7719, %v7720
    %v7722 = vrot.slane %v7721, 1
    %v7723 = vadd.f32 %v7721, %v7722
    %v7724 = vsel %vm148, %v7008, 0.0
    %v7725 = vrot.slane %v7724, 4
    %v7726 = vadd.f32 %v7724, %v7725
    %v7727 = vrot.slane %v7726, 2
    %v7728 = vadd.f32 %v7726, %v7727
    %v7729 = vrot.slane %v7728, 1
    %v7730 = vadd.f32 %v7728, %v7729
    %v7731 = vsel %vm148, %v7009, 0.0
    %v7732 = vrot.slane %v7731, 4
    %v7733 = vadd.f32 %v7731, %v7732
    %v7734 = vrot.slane %v7733, 2
    %v7735 = vadd.f32 %v7733, %v7734
    %v7736 = vrot.slane %v7735, 1
    %v7737 = vadd.f32 %v7735, %v7736
    %v7738 = vsel %vm148, %v7010, 0.0
    %v7739 = vrot.slane %v7738, 4
    %v7740 = vadd.f32 %v7738, %v7739
    %v7741 = vrot.slane %v7740, 2
    %v7742 = vadd.f32 %v7740, %v7741
    %v7743 = vrot.slane %v7742, 1
    %v7744 = vadd.f32 %v7742, %v7743
    %v7745 = vsel %vm148, %v7011, 0.0
    %v7746 = vrot.slane %v7745, 4
    %v7747 = vadd.f32 %v7745, %v7746
    %v7748 = vrot.slane %v7747, 2
    %v7749 = vadd.f32 %v7747, %v7748
    %v7750 = vrot.slane %v7749, 1
    %v7751 = vadd.f32 %v7749, %v7750
    %v7752 = vsel %vm148, %v7012, 0.0
    %v7753 = vrot.slane %v7752, 4
    %v7754 = vadd.f32 %v7752, %v7753
    %v7755 = vrot.slane %v7754, 2
    %v7756 = vadd.f32 %v7754, %v7755
    %v7757 = vrot.slane %v7756, 1
    %v7758 = vadd.f32 %v7756, %v7757
    %v7759 = vsel %vm148, %v7013, 0.0
    %v7760 = vrot.slane %v7759, 4
    %v7761 = vadd.f32 %v7759, %v7760
    %v7762 = vrot.slane %v7761, 2
    %v7763 = vadd.f32 %v7761, %v7762
    %v7764 = vrot.slane %v7763, 1
    %v7765 = vadd.f32 %v7763, %v7764
    %v7766 = vsel %vm148, %v7014, 0.0
    %v7767 = vrot.slane %v7766, 4
    %v7768 = vadd.f32 %v7766, %v7767
    %v7769 = vrot.slane %v7768, 2
    %v7770 = vadd.f32 %v7768, %v7769
    %v7771 = vrot.slane %v7770, 1
    %v7772 = vadd.f32 %v7770, %v7771
    %v7773 = vsel %vm148, %v7015, 0.0
    %v7774 = vrot.slane %v7773, 4
    %v7775 = vadd.f32 %v7773, %v7774
    %v7776 = vrot.slane %v7775, 2
    %v7777 = vadd.f32 %v7775, %v7776
    %v7778 = vrot.slane %v7777, 1
    %v7779 = vadd.f32 %v7777, %v7778
    %v7780 = vsel %vm148, %v7016, 0.0
    %v7781 = vrot.slane %v7780, 4
    %v7782 = vadd.f32 %v7780, %v7781
    %v7783 = vrot.slane %v7782, 2
    %v7784 = vadd.f32 %v7782, %v7783
    %v7785 = vrot.slane %v7784, 1
    %v7786 = vadd.f32 %v7784, %v7785
    %v7787 = vsel %vm148, %v7017, 0.0
    %v7788 = vrot.slane %v7787, 4
    %v7789 = vadd.f32 %v7787, %v7788
    %v7790 = vrot.slane %v7789, 2
    %v7791 = vadd.f32 %v7789, %v7790
    %v7792 = vrot.slane %v7791, 1
    %v7793 = vadd.f32 %v7791, %v7792
    %v7794 = vsel %vm148, %v7018, 0.0
    %v7795 = vrot.slane %v7794, 4
    %v7796 = vadd.f32 %v7794, %v7795
    %v7797 = vrot.slane %v7796, 2
    %v7798 = vadd.f32 %v7796, %v7797
    %v7799 = vrot.slane %v7798, 1
    %v7800 = vadd.f32 %v7798, %v7799
    %v7801 = vsel %vm148, %v7019, 0.0
    %v7802 = vrot.slane %v7801, 4
    %v7803 = vadd.f32 %v7801, %v7802
    %v7804 = vrot.slane %v7803, 2
    %v7805 = vadd.f32 %v7803, %v7804
    %v7806 = vrot.slane %v7805, 1
    %v7807 = vadd.f32 %v7805, %v7806
    %v7808 = vsel %vm148, %v7020, 0.0
    %v7809 = vrot.slane %v7808, 4
    %v7810 = vadd.f32 %v7808, %v7809
    %v7811 = vrot.slane %v7810, 2
    %v7812 = vadd.f32 %v7810, %v7811
    %v7813 = vrot.slane %v7812, 1
    %v7814 = vadd.f32 %v7812, %v7813
    %v7815 = vsel %vm148, %v7021, 0.0
    %v7816 = vrot.slane %v7815, 4
    %v7817 = vadd.f32 %v7815, %v7816
    %v7818 = vrot.slane %v7817, 2
    %v7819 = vadd.f32 %v7817, %v7818
    %v7820 = vrot.slane %v7819, 1
    %v7821 = vadd.f32 %v7819, %v7820
    %v7822 = vsel %vm148, %v7022, 0.0
    %v7823 = vrot.slane %v7822, 4
    %v7824 = vadd.f32 %v7822, %v7823
    %v7825 = vrot.slane %v7824, 2
    %v7826 = vadd.f32 %v7824, %v7825
    %v7827 = vrot.slane %v7826, 1
    %v7828 = vadd.f32 %v7826, %v7827
    %v7829 = vsel %vm148, %v7023, 0.0
    %v7830 = vrot.slane %v7829, 4
    %v7831 = vadd.f32 %v7829, %v7830
    %v7832 = vrot.slane %v7831, 2
    %v7833 = vadd.f32 %v7831, %v7832
    %v7834 = vrot.slane %v7833, 1
    %v7835 = vadd.f32 %v7833, %v7834
    %v7836 = vsel %vm148, %v7024, 0.0
    %v7837 = vrot.slane %v7836, 4
    %v7838 = vadd.f32 %v7836, %v7837
    %v7839 = vrot.slane %v7838, 2
    %v7840 = vadd.f32 %v7838, %v7839
    %v7841 = vrot.slane %v7840, 1
    %v7842 = vadd.f32 %v7840, %v7841
    %v7843 = vsel %vm148, %v7025, 0.0
    %v7844 = vrot.slane %v7843, 4
    %v7845 = vadd.f32 %v7843, %v7844
    %v7846 = vrot.slane %v7845, 2
    %v7847 = vadd.f32 %v7845, %v7846
    %v7848 = vrot.slane %v7847, 1
    %v7849 = vadd.f32 %v7847, %v7848
    %v7850 = vsel %vm148, %v7026, 0.0
    %v7851 = vrot.slane %v7850, 4
    %v7852 = vadd.f32 %v7850, %v7851
    %v7853 = vrot.slane %v7852, 2
    %v7854 = vadd.f32 %v7852, %v7853
    %v7855 = vrot.slane %v7854, 1
    %v7856 = vadd.f32 %v7854, %v7855
    %v7857 = vsel %vm148, %v7027, 0.0
    %v7858 = vrot.slane %v7857, 4
    %v7859 = vadd.f32 %v7857, %v7858
    %v7860 = vrot.slane %v7859, 2
    %v7861 = vadd.f32 %v7859, %v7860
    %v7862 = vrot.slane %v7861, 1
    %v7863 = vadd.f32 %v7861, %v7862
    %v7864 = vsel %vm148, %v7028, 0.0
    %v7865 = vrot.slane %v7864, 4
    %v7866 = vadd.f32 %v7864, %v7865
    %v7867 = vrot.slane %v7866, 2
    %v7868 = vadd.f32 %v7866, %v7867
    %v7869 = vrot.slane %v7868, 1
    %v7870 = vadd.f32 %v7868, %v7869
    %v7871 = vsel %vm148, %v7029, 0.0
    %v7872 = vrot.slane %v7871, 4
    %v7873 = vadd.f32 %v7871, %v7872
    %v7874 = vrot.slane %v7873, 2
    %v7875 = vadd.f32 %v7873, %v7874
    %v7876 = vrot.slane %v7875, 1
    %v7877 = vadd.f32 %v7875, %v7876
    %v7878 = vsel %vm148, %v7030, 0.0
    %v7879 = vrot.slane %v7878, 4
    %v7880 = vadd.f32 %v7878, %v7879
    %v7881 = vrot.slane %v7880, 2
    %v7882 = vadd.f32 %v7880, %v7881
    %v7883 = vrot.slane %v7882, 1
    %v7884 = vadd.f32 %v7882, %v7883
    %v7885 = vsel %vm148, %v7031, 0.0
    %v7886 = vrot.slane %v7885, 4
    %v7887 = vadd.f32 %v7885, %v7886
    %v7888 = vrot.slane %v7887, 2
    %v7889 = vadd.f32 %v7887, %v7888
    %v7890 = vrot.slane %v7889, 1
    %v7891 = vadd.f32 %v7889, %v7890
    %v7892 = vsel %vm148, %v7032, 0.0
    %v7893 = vrot.slane %v7892, 4
    %v7894 = vadd.f32 %v7892, %v7893
    %v7895 = vrot.slane %v7894, 2
    %v7896 = vadd.f32 %v7894, %v7895
    %v7897 = vrot.slane %v7896, 1
    %v7898 = vadd.f32 %v7896, %v7897
    %v7899 = vsel %vm148, %v7033, 0.0
    %v7900 = vrot.slane %v7899, 4
    %v7901 = vadd.f32 %v7899, %v7900
    %v7902 = vrot.slane %v7901, 2
    %v7903 = vadd.f32 %v7901, %v7902
    %v7904 = vrot.slane %v7903, 1
    %v7905 = vadd.f32 %v7903, %v7904
    %v7906 = vsel %vm148, %v7034, 0.0
    %v7907 = vrot.slane %v7906, 4
    %v7908 = vadd.f32 %v7906, %v7907
    %v7909 = vrot.slane %v7908, 2
    %v7910 = vadd.f32 %v7908, %v7909
    %v7911 = vrot.slane %v7910, 1
    %v7912 = vadd.f32 %v7910, %v7911
    %v7913 = vsel %vm148, %v7035, 0.0
    %v7914 = vrot.slane %v7913, 4
    %v7915 = vadd.f32 %v7913, %v7914
    %v7916 = vrot.slane %v7915, 2
    %v7917 = vadd.f32 %v7915, %v7916
    %v7918 = vrot.slane %v7917, 1
    %v7919 = vadd.f32 %v7917, %v7918
    %v7920 = vsel %vm148, %v7036, 0.0
    %v7921 = vrot.slane %v7920, 4
    %v7922 = vadd.f32 %v7920, %v7921
    %v7923 = vrot.slane %v7922, 2
    %v7924 = vadd.f32 %v7922, %v7923
    %v7925 = vrot.slane %v7924, 1
    %v7926 = vadd.f32 %v7924, %v7925
    %v7927 = vsel %vm148, %v7037, 0.0
    %v7928 = vrot.slane %v7927, 4
    %v7929 = vadd.f32 %v7927, %v7928
    %v7930 = vrot.slane %v7929, 2
    %v7931 = vadd.f32 %v7929, %v7930
    %v7932 = vrot.slane %v7931, 1
    %v7933 = vadd.f32 %v7931, %v7932
    %v7934 = vpack.c.bf16 %v7044, %v7044
    %v7935 = vpack.c.bf16 %v7051, %v7051
    %v7936 = vpack.c.bf16 %v7058, %v7058
    %v7937 = vpack.c.bf16 %v7065, %v7065
    %v7938 = vpack.c.bf16 %v7072, %v7072
    %v7939 = vpack.c.bf16 %v7079, %v7079
    %v7940 = vpack.c.bf16 %v7086, %v7086
    %v7941 = vpack.c.bf16 %v7093, %v7093
    %v7942 = vpack.c.bf16 %v7100, %v7100
    %v7943 = vpack.c.bf16 %v7107, %v7107
    %v7944 = vpack.c.bf16 %v7114, %v7114
    %v7945 = vpack.c.bf16 %v7121, %v7121
    %v7946 = vpack.c.bf16 %v7128, %v7128
    %v7947 = vpack.c.bf16 %v7135, %v7135
    %v7948 = vpack.c.bf16 %v7142, %v7142
    %v7949 = vpack.c.bf16 %v7149, %v7149
    %v7950 = vpack.c.bf16 %v7156, %v7156
    %v7951 = vpack.c.bf16 %v7163, %v7163
    %v7952 = vpack.c.bf16 %v7170, %v7170
    %v7953 = vpack.c.bf16 %v7177, %v7177
    %v7954 = vpack.c.bf16 %v7184, %v7184
    %v7955 = vpack.c.bf16 %v7191, %v7191
    %v7956 = vpack.c.bf16 %v7198, %v7198
    %v7957 = vpack.c.bf16 %v7205, %v7205
    %v7958 = vpack.c.bf16 %v7212, %v7212
    %v7959 = vpack.c.bf16 %v7219, %v7219
    %v7960 = vpack.c.bf16 %v7226, %v7226
    %v7961 = vpack.c.bf16 %v7233, %v7233
    %v7962 = vpack.c.bf16 %v7240, %v7240
    %v7963 = vpack.c.bf16 %v7247, %v7247
    %v7964 = vpack.c.bf16 %v7254, %v7254
    %v7965 = vpack.c.bf16 %v7261, %v7261
    %v7966 = vpack.c.bf16 %v7268, %v7268
    %v7967 = vpack.c.bf16 %v7275, %v7275
    %v7968 = vpack.c.bf16 %v7282, %v7282
    %v7969 = vpack.c.bf16 %v7289, %v7289
    %v7970 = vpack.c.bf16 %v7296, %v7296
    %v7971 = vpack.c.bf16 %v7303, %v7303
    %v7972 = vpack.c.bf16 %v7310, %v7310
    %v7973 = vpack.c.bf16 %v7317, %v7317
    %v7974 = vpack.c.bf16 %v7324, %v7324
    %v7975 = vpack.c.bf16 %v7331, %v7331
    %v7976 = vpack.c.bf16 %v7338, %v7338
    %v7977 = vpack.c.bf16 %v7345, %v7345
    %v7978 = vpack.c.bf16 %v7352, %v7352
    %v7979 = vpack.c.bf16 %v7359, %v7359
    %v7980 = vpack.c.bf16 %v7366, %v7366
    %v7981 = vpack.c.bf16 %v7373, %v7373
    %v7982 = vpack.c.bf16 %v7380, %v7380
    %v7983 = vpack.c.bf16 %v7387, %v7387
    %v7984 = vpack.c.bf16 %v7394, %v7394
    %v7985 = vpack.c.bf16 %v7401, %v7401
    %v7986 = vpack.c.bf16 %v7408, %v7408
    %v7987 = vpack.c.bf16 %v7415, %v7415
    %v7988 = vpack.c.bf16 %v7422, %v7422
    %v7989 = vpack.c.bf16 %v7429, %v7429
    %v7990 = vpack.c.bf16 %v7436, %v7436
    %v7991 = vpack.c.bf16 %v7443, %v7443
    %v7992 = vpack.c.bf16 %v7450, %v7450
    %v7993 = vpack.c.bf16 %v7457, %v7457
    %v7994 = vpack.c.bf16 %v7464, %v7464
    %v7995 = vpack.c.bf16 %v7471, %v7471
    %v7996 = vpack.c.bf16 %v7478, %v7478
    %v7997 = vpack.c.bf16 %v7485, %v7485
    %v7998 = vpack.c.bf16 %v7492, %v7492
    %v7999 = vpack.c.bf16 %v7499, %v7499
    %v8000 = vpack.c.bf16 %v7506, %v7506
    %v8001 = vpack.c.bf16 %v7513, %v7513
    %v8002 = vpack.c.bf16 %v7520, %v7520
    %v8003 = vpack.c.bf16 %v7527, %v7527
    %v8004 = vpack.c.bf16 %v7534, %v7534
    %v8005 = vpack.c.bf16 %v7541, %v7541
    %v8006 = vpack.c.bf16 %v7548, %v7548
    %v8007 = vpack.c.bf16 %v7555, %v7555
    %v8008 = vpack.c.bf16 %v7562, %v7562
    %v8009 = vpack.c.bf16 %v7569, %v7569
    %v8010 = vpack.c.bf16 %v7576, %v7576
    %v8011 = vpack.c.bf16 %v7583, %v7583
    %v8012 = vpack.c.bf16 %v7590, %v7590
    %v8013 = vpack.c.bf16 %v7597, %v7597
    %v8014 = vpack.c.bf16 %v7604, %v7604
    %v8015 = vpack.c.bf16 %v7611, %v7611
    %v8016 = vpack.c.bf16 %v7618, %v7618
    %v8017 = vpack.c.bf16 %v7625, %v7625
    %v8018 = vpack.c.bf16 %v7632, %v7632
    %v8019 = vpack.c.bf16 %v7639, %v7639
    %v8020 = vpack.c.bf16 %v7646, %v7646
    %v8021 = vpack.c.bf16 %v7653, %v7653
    %v8022 = vpack.c.bf16 %v7660, %v7660
    %v8023 = vpack.c.bf16 %v7667, %v7667
    %v8024 = vpack.c.bf16 %v7674, %v7674
    %v8025 = vpack.c.bf16 %v7681, %v7681
    %v8026 = vpack.c.bf16 %v7688, %v7688
    %v8027 = vpack.c.bf16 %v7695, %v7695
    %v8028 = vpack.c.bf16 %v7702, %v7702
    %v8029 = vpack.c.bf16 %v7709, %v7709
    %v8030 = vpack.c.bf16 %v7716, %v7716
    %v8031 = vpack.c.bf16 %v7723, %v7723
    %v8032 = vpack.c.bf16 %v7730, %v7730
    %v8033 = vpack.c.bf16 %v7737, %v7737
    %v8034 = vpack.c.bf16 %v7744, %v7744
    %v8035 = vpack.c.bf16 %v7751, %v7751
    %v8036 = vpack.c.bf16 %v7758, %v7758
    %v8037 = vpack.c.bf16 %v7765, %v7765
    %v8038 = vpack.c.bf16 %v7772, %v7772
    %v8039 = vpack.c.bf16 %v7779, %v7779
    %v8040 = vpack.c.bf16 %v7786, %v7786
    %v8041 = vpack.c.bf16 %v7793, %v7793
    %v8042 = vpack.c.bf16 %v7800, %v7800
    %v8043 = vpack.c.bf16 %v7807, %v7807
    %v8044 = vpack.c.bf16 %v7814, %v7814
    %v8045 = vpack.c.bf16 %v7821, %v7821
    %v8046 = vpack.c.bf16 %v7828, %v7828
    %v8047 = vpack.c.bf16 %v7835, %v7835
    %v8048 = vpack.c.bf16 %v7842, %v7842
    %v8049 = vpack.c.bf16 %v7849, %v7849
    %v8050 = vpack.c.bf16 %v7856, %v7856
    %v8051 = vpack.c.bf16 %v7863, %v7863
    %v8052 = vpack.c.bf16 %v7870, %v7870
    %v8053 = vpack.c.bf16 %v7877, %v7877
    %v8054 = vpack.c.bf16 %v7884, %v7884
    %v8055 = vpack.c.bf16 %v7891, %v7891
    %v8056 = vpack.c.bf16 %v7898, %v7898
    %v8057 = vpack.c.bf16 %v7905, %v7905
    %v8058 = vpack.c.bf16 %v7912, %v7912
    %v8059 = vpack.c.bf16 %v7919, %v7919
    %v8060 = vpack.c.bf16 %v7926, %v7926
    %v8061 = vpack.c.bf16 %v7933, %v7933
    %v8062 = vld [vmem:[#allocation2 + $0xc] sm:$0xf]
    %v8063 = vld [vmem:[#allocation2 + $0x28] sm:$0xf]
    %v8064 = vld [vmem:[#allocation2 + $0x44] sm:$0xf]
    %v8065 = vld [vmem:[#allocation2 + $0x60] sm:$0xf]
    %v8066 = vld [vmem:[%s4 + $0x3] sm:$0x1]
    %v8068 = vlaneseq
    %v8069 = vshrl.u32 %v8068, 7
    %v8070 = vsub.s32 0, %v8069
    %v8071 = vrot.slane %v8066, %v8070
    %v8201 = vunpack.c.l.b16 %v7934
    %v8202 = vunpack.c.l.b16 %v7935
    %v8203 = vunpack.c.l.b16 %v7936
    %v8204 = vunpack.c.l.b16 %v7937
    %v8205 = vunpack.c.l.b16 %v7938
    %v8206 = vunpack.c.l.b16 %v7939
    %v8207 = vunpack.c.l.b16 %v7940
    %v8208 = vunpack.c.l.b16 %v7941
    %v8209 = vunpack.c.l.b16 %v7942
    %v8210 = vunpack.c.l.b16 %v7943
    %v8211 = vunpack.c.l.b16 %v7944
    %v8212 = vunpack.c.l.b16 %v7945
    %v8213 = vunpack.c.l.b16 %v7946
    %v8214 = vunpack.c.l.b16 %v7947
    %v8215 = vunpack.c.l.b16 %v7948
    %v8216 = vunpack.c.l.b16 %v7949
    %v8217 = vunpack.c.l.b16 %v7950
    %v8218 = vunpack.c.l.b16 %v7951
    %v8219 = vunpack.c.l.b16 %v7952
    %v8220 = vunpack.c.l.b16 %v7953
    %v8221 = vunpack.c.l.b16 %v7954
    %v8222 = vunpack.c.l.b16 %v7955
    %v8223 = vunpack.c.l.b16 %v7956
    %v8224 = vunpack.c.l.b16 %v7957
    %v8225 = vunpack.c.l.b16 %v7958
    %v8226 = vunpack.c.l.b16 %v7959
    %v8227 = vunpack.c.l.b16 %v7960
    %v8228 = vunpack.c.l.b16 %v7961
    %v8229 = vunpack.c.l.b16 %v7962
    %v8230 = vunpack.c.l.b16 %v7963
    %v8231 = vunpack.c.l.b16 %v7964
    %v8232 = vunpack.c.l.b16 %v7965
    %v8233 = vunpack.c.l.b16 %v7966
    %v8234 = vunpack.c.l.b16 %v7967
    %v8235 = vunpack.c.l.b16 %v7968
    %v8236 = vunpack.c.l.b16 %v7969
    %v8237 = vunpack.c.l.b16 %v7970
    %v8238 = vunpack.c.l.b16 %v7971
    %v8239 = vunpack.c.l.b16 %v7972
    %v8240 = vunpack.c.l.b16 %v7973
    %v8241 = vunpack.c.l.b16 %v7974
    %v8242 = vunpack.c.l.b16 %v7975
    %v8243 = vunpack.c.l.b16 %v7976
    %v8244 = vunpack.c.l.b16 %v7977
    %v8245 = vunpack.c.l.b16 %v7978
    %v8246 = vunpack.c.l.b16 %v7979
    %v8247 = vunpack.c.l.b16 %v7980
    %v8248 = vunpack.c.l.b16 %v7981
    %v8249 = vunpack.c.l.b16 %v7982
    %v8250 = vunpack.c.l.b16 %v7983
    %v8251 = vunpack.c.l.b16 %v7984
    %v8252 = vunpack.c.l.b16 %v7985
    %v8253 = vunpack.c.l.b16 %v7986
    %v8254 = vunpack.c.l.b16 %v7987
    %v8255 = vunpack.c.l.b16 %v7988
    %v8256 = vunpack.c.l.b16 %v7989
    %v8257 = vunpack.c.l.b16 %v7990
    %v8258 = vunpack.c.l.b16 %v7991
    %v8259 = vunpack.c.l.b16 %v7992
    %v8260 = vunpack.c.l.b16 %v7993
    %v8261 = vunpack.c.l.b16 %v7994
    %v8262 = vunpack.c.l.b16 %v7995
    %v8263 = vunpack.c.l.b16 %v7996
    %v8264 = vunpack.c.l.b16 %v7997
    %v8265 = vunpack.c.l.b16 %v7998
    %v8266 = vunpack.c.l.b16 %v7999
    %v8267 = vunpack.c.l.b16 %v8000
    %v8268 = vunpack.c.l.b16 %v8001
    %v8269 = vunpack.c.l.b16 %v8002
    %v8270 = vunpack.c.l.b16 %v8003
    %v8271 = vunpack.c.l.b16 %v8004
    %v8272 = vunpack.c.l.b16 %v8005
    %v8273 = vunpack.c.l.b16 %v8006
    %v8274 = vunpack.c.l.b16 %v8007
    %v8275 = vunpack.c.l.b16 %v8008
    %v8276 = vunpack.c.l.b16 %v8009
    %v8277 = vunpack.c.l.b16 %v8010
    %v8278 = vunpack.c.l.b16 %v8011
    %v8279 = vunpack.c.l.b16 %v8012
    %v8280 = vunpack.c.l.b16 %v8013
    %v8281 = vunpack.c.l.b16 %v8014
    %v8282 = vunpack.c.l.b16 %v8015
    %v8283 = vunpack.c.l.b16 %v8016
    %v8284 = vunpack.c.l.b16 %v8017
    %v8285 = vunpack.c.l.b16 %v8018
    %v8286 = vunpack.c.l.b16 %v8019
    %v8287 = vunpack.c.l.b16 %v8020
    %v8288 = vunpack.c.l.b16 %v8021
    %v8289 = vunpack.c.l.b16 %v8022
    %v8290 = vunpack.c.l.b16 %v8023
    %v8291 = vunpack.c.l.b16 %v8024
    %v8292 = vunpack.c.l.b16 %v8025
    %v8293 = vunpack.c.l.b16 %v8026
    %v8294 = vunpack.c.l.b16 %v8027
    %v8295 = vunpack.c.l.b16 %v8028
    %v8296 = vunpack.c.l.b16 %v8029
    %v8297 = vunpack.c.l.b16 %v8030
    %v8298 = vunpack.c.l.b16 %v8031
    %v8299 = vunpack.c.l.b16 %v8032
    %v8300 = vunpack.c.l.b16 %v8033
    %v8301 = vunpack.c.l.b16 %v8034
    %v8302 = vunpack.c.l.b16 %v8035
    %v8303 = vunpack.c.l.b16 %v8036
    %v8304 = vunpack.c.l.b16 %v8037
    %v8305 = vunpack.c.l.b16 %v8038
    %v8306 = vunpack.c.l.b16 %v8039
    %v8307 = vunpack.c.l.b16 %v8040
    %v8308 = vunpack.c.l.b16 %v8041
    %v8309 = vunpack.c.l.b16 %v8042
    %v8310 = vunpack.c.l.b16 %v8043
    %v8311 = vunpack.c.l.b16 %v8044
    %v8312 = vunpack.c.l.b16 %v8045
    %v8313 = vunpack.c.l.b16 %v8046
    %v8314 = vunpack.c.l.b16 %v8047
    %v8315 = vunpack.c.l.b16 %v8048
    %v8316 = vunpack.c.l.b16 %v8049
    %v8317 = vunpack.c.l.b16 %v8050
    %v8318 = vunpack.c.l.b16 %v8051
    %v8319 = vunpack.c.l.b16 %v8052
    %v8320 = vunpack.c.l.b16 %v8053
    %v8321 = vunpack.c.l.b16 %v8054
    %v8322 = vunpack.c.l.b16 %v8055
    %v8323 = vunpack.c.l.b16 %v8056
    %v8324 = vunpack.c.l.b16 %v8057
    %v8325 = vunpack.c.l.b16 %v8058
    %v8326 = vunpack.c.l.b16 %v8059
    %v8327 = vunpack.c.l.b16 %v8060
    %v8328 = vunpack.c.l.b16 %v8061
    %v8329 = vsel %vm3046, %v8202, %v8201
    %v8330 = vsel %vm3048, %v8203, %v8329
    %v8331 = vsel %vm3050, %v8204, %v8330
    %v8332 = vsel %vm3052, %v8205, %v8331
    %v8333 = vsel %vm3054, %v8206, %v8332
    %v8334 = vsel %vm3056, %v8207, %v8333
    %v8335 = vsel %vm3058, %v8208, %v8334
    %v8336 = vsel %vm3046, %v8210, %v8209
    %v8337 = vsel %vm3048, %v8211, %v8336
    %v8338 = vsel %vm3050, %v8212, %v8337
    %v8339 = vsel %vm3052, %v8213, %v8338
    %v8340 = vsel %vm3054, %v8214, %v8339
    %v8341 = vsel %vm3056, %v8215, %v8340
    %v8342 = vsel %vm3058, %v8216, %v8341
    %v8343 = vsel %vm3046, %v8218, %v8217
    %v8344 = vsel %vm3048, %v8219, %v8343
    %v8345 = vsel %vm3050, %v8220, %v8344
    %v8346 = vsel %vm3052, %v8221, %v8345
    %v8347 = vsel %vm3054, %v8222, %v8346
    %v8348 = vsel %vm3056, %v8223, %v8347
    %v8349 = vsel %vm3058, %v8224, %v8348
    %v8350 = vsel %vm3046, %v8226, %v8225
    %v8351 = vsel %vm3048, %v8227, %v8350
    %v8352 = vsel %vm3050, %v8228, %v8351
    %v8353 = vsel %vm3052, %v8229, %v8352
    %v8354 = vsel %vm3054, %v8230, %v8353
    %v8355 = vsel %vm3056, %v8231, %v8354
    %v8356 = vsel %vm3058, %v8232, %v8355
    %v8357 = vsel %vm3046, %v8234, %v8233
    %v8358 = vsel %vm3048, %v8235, %v8357
    %v8359 = vsel %vm3050, %v8236, %v8358
    %v8360 = vsel %vm3052, %v8237, %v8359
    %v8361 = vsel %vm3054, %v8238, %v8360
    %v8362 = vsel %vm3056, %v8239, %v8361
    %v8363 = vsel %vm3058, %v8240, %v8362
    %v8364 = vsel %vm3046, %v8242, %v8241
    %v8365 = vsel %vm3048, %v8243, %v8364
    %v8366 = vsel %vm3050, %v8244, %v8365
    %v8367 = vsel %vm3052, %v8245, %v8366
    %v8368 = vsel %vm3054, %v8246, %v8367
    %v8369 = vsel %vm3056, %v8247, %v8368
    %v8370 = vsel %vm3058, %v8248, %v8369
    %v8371 = vsel %vm3046, %v8250, %v8249
    %v8372 = vsel %vm3048, %v8251, %v8371
    %v8373 = vsel %vm3050, %v8252, %v8372
    %v8374 = vsel %vm3052, %v8253, %v8373
    %v8375 = vsel %vm3054, %v8254, %v8374
    %v8376 = vsel %vm3056, %v8255, %v8375
    %v8377 = vsel %vm3058, %v8256, %v8376
    %v8378 = vsel %vm3046, %v8258, %v8257
    %v8379 = vsel %vm3048, %v8259, %v8378
    %v8380 = vsel %vm3050, %v8260, %v8379
    %v8381 = vsel %vm3052, %v8261, %v8380
    %v8382 = vsel %vm3054, %v8262, %v8381
    %v8383 = vsel %vm3056, %v8263, %v8382
    %v8384 = vsel %vm3058, %v8264, %v8383
    %v8385 = vsel %vm3046, %v8266, %v8265
    %v8386 = vsel %vm3048, %v8267, %v8385
    %v8387 = vsel %vm3050, %v8268, %v8386
    %v8388 = vsel %vm3052, %v8269, %v8387
    %v8389 = vsel %vm3054, %v8270, %v8388
    %v8390 = vsel %vm3056, %v8271, %v8389
    %v8391 = vsel %vm3058, %v8272, %v8390
    %v8392 = vsel %vm3046, %v8274, %v8273
    %v8393 = vsel %vm3048, %v8275, %v8392
    %v8394 = vsel %vm3050, %v8276, %v8393
    %v8395 = vsel %vm3052, %v8277, %v8394
    %v8396 = vsel %vm3054, %v8278, %v8395
    %v8397 = vsel %vm3056, %v8279, %v8396
    %v8398 = vsel %vm3058, %v8280, %v8397
    %v8399 = vsel %vm3046, %v8282, %v8281
    %v8400 = vsel %vm3048, %v8283, %v8399
    %v8401 = vsel %vm3050, %v8284, %v8400
    %v8402 = vsel %vm3052, %v8285, %v8401
    %v8403 = vsel %vm3054, %v8286, %v8402
    %v8404 = vsel %vm3056, %v8287, %v8403
    %v8405 = vsel %vm3058, %v8288, %v8404
    %v8406 = vsel %vm3046, %v8290, %v8289
    %v8407 = vsel %vm3048, %v8291, %v8406
    %v8408 = vsel %vm3050, %v8292, %v8407
    %v8409 = vsel %vm3052, %v8293, %v8408
    %v8410 = vsel %vm3054, %v8294, %v8409
    %v8411 = vsel %vm3056, %v8295, %v8410
    %v8412 = vsel %vm3058, %v8296, %v8411
    %v8413 = vsel %vm3046, %v8298, %v8297
    %v8414 = vsel %vm3048, %v8299, %v8413
    %v8415 = vsel %vm3050, %v8300, %v8414
    %v8416 = vsel %vm3052, %v8301, %v8415
    %v8417 = vsel %vm3054, %v8302, %v8416
    %v8418 = vsel %vm3056, %v8303, %v8417
    %v8419 = vsel %vm3058, %v8304, %v8418
    %v8420 = vsel %vm3046, %v8306, %v8305
    %v8421 = vsel %vm3048, %v8307, %v8420
    %v8422 = vsel %vm3050, %v8308, %v8421
    %v8423 = vsel %vm3052, %v8309, %v8422
    %v8424 = vsel %vm3054, %v8310, %v8423
    %v8425 = vsel %vm3056, %v8311, %v8424
    %v8426 = vsel %vm3058, %v8312, %v8425
    %v8427 = vsel %vm3046, %v8314, %v8313
    %v8428 = vsel %vm3048, %v8315, %v8427
    %v8429 = vsel %vm3050, %v8316, %v8428
    %v8430 = vsel %vm3052, %v8317, %v8429
    %v8431 = vsel %vm3054, %v8318, %v8430
    %v8432 = vsel %vm3056, %v8319, %v8431
    %v8433 = vsel %vm3058, %v8320, %v8432
    %v8434 = vsel %vm3046, %v8322, %v8321
    %v8435 = vsel %vm3048, %v8323, %v8434
    %v8436 = vsel %vm3050, %v8324, %v8435
    %v8437 = vsel %vm3052, %v8325, %v8436
    %v8438 = vsel %vm3054, %v8326, %v8437
    %v8439 = vsel %vm3056, %v8327, %v8438
    %v8440 = vsel %vm3058, %v8328, %v8439
    %v8441 = vpack.c.b16 %v8342, %v8335
    %v8442 = vpack.c.b16 %v8356, %v8349
    %v8443 = vpack.c.b16 %v8370, %v8363
    %v8444 = vpack.c.b16 %v8384, %v8377
    %v8445 = vpack.c.b16 %v8398, %v8391
    %v8446 = vpack.c.b16 %v8412, %v8405
    %v8447 = vpack.c.b16 %v8426, %v8419
    %v8448 = vpack.c.b16 %v8440, %v8433
    %v8453 = vunpack.c.l.b16 %v8062
    %v8454 = vunpack.c.l.b16 %v8063
    %v8455 = vunpack.c.l.b16 %v8064
    %v8456 = vunpack.c.l.b16 %v8065
    %v8457 = vpack.c.b16 %v8454, %v8453
    %v8458 = vpack.c.b16 %v8456, %v8455
    %v8462 = vsel %vm148, %v8441, 0
    %v8465 = vsel %vm148, %v8442, 0
    %v8468 = vsel %vm148, %v8443, 0
    %v8471 = vsel %vm148, %v8444, 0
    %v8474 = vsel %vm148, %v8445, 0
    %v8477 = vsel %vm148, %v8446, 0
    %v8480 = vsel %vm148, %v8447, 0
    %v8483 = vsel %vm148, %v8448, 0
    %8485 = vmatprep.subr.bf16.mxu0 0
    %8486 = vmatpush1.bf16.msra.mxu0 %v8457
    %8487 = vmatprep.subr.bf16.mxu0 0
    %8488 = vmatpush1.bf16.msra.mxu0 %v8458
    %8489 = vmatprep.subr.bf16.mxu0 0
    %8490 = vmatpush1.bf16.msra.mxu0 0
    %8491 = vmatprep.subr.bf16.mxu0 0
    %8492 = vmatpush1.bf16.msra.mxu0 0
    %8493 = vmatprep.subr.bf16.mxu0 0
    %8494 = vmatpush1.bf16.msra.mxu0 0
    %8495 = vmatprep.subr.bf16.mxu0 0
    %8496 = vmatpush1.bf16.msra.mxu0 0
    %8497 = vmatprep.subr.bf16.mxu0 0
    %8498 = vmatpush1.bf16.msra.mxu0 0
    %8499 = vmatprep.subr.bf16.mxu0 0
    %8500 = vmatpush1.bf16.msra.mxu0 0
    %8501 = vmatprep.subr.bf16.mxu0 0
    %8502 = vmatpush1.bf16.msra.mxu0 0
    %8503 = vmatprep.subr.bf16.mxu0 0
    %8504 = vmatpush1.bf16.msra.mxu0 0
    %8505 = vmatprep.subr.bf16.mxu0 0
    %8506 = vmatpush1.bf16.msra.mxu0 0
    %8507 = vmatprep.subr.bf16.mxu0 0
    %8508 = vmatpush1.bf16.msra.mxu0 0
    %8509 = vmatprep.subr.bf16.mxu0 0
    %8510 = vmatpush1.bf16.msra.mxu0 0
    %8511 = vmatprep.subr.bf16.mxu0 0
    %8512 = vmatpush1.bf16.msra.mxu0 0
    %8513 = vmatprep.subr.bf16.mxu0 0
    %8514 = vmatpush1.bf16.msra.mxu0 0
    %8515 = vmatprep.subr.bf16.mxu0 0
    %8516 = vmatpush1.bf16.msra.mxu0 0
    %8517 = vmatprep.mubr.bf16.mxu0 0
    %8518 = vmatmul.mubr.bf16.gmra.mrb[0].mxu0 %v8462
    %v8519 = vpop.f32.mrb[0].mxu0
    %v8520 = vadd.f32 %v8071, %v8519
    %v8521 = vpop.f32.mrb[0].mxu0
    %v8522 = vpop.f32.mrb[0].mxu0
    %v8523 = vadd.f32 %v8071, %v8522
    %v8524 = vpop.f32.mrb[0].mxu0
    %8525 = vmatprep.mubr.bf16.mxu0 0
    %8526 = vmatmul.mubr.bf16.gmra.mrb[0].mxu0 %v8465
    %v8527 = vpop.f32.mrb[0].mxu0
    %v8528 = vadd.f32 %v8071, %v8527
    %v8529 = vpop.f32.mrb[0].mxu0
    %v8530 = vpop.f32.mrb[0].mxu0
    %v8531 = vadd.f32 %v8071, %v8530
    %v8532 = vpop.f32.mrb[0].mxu0
    %8533 = vmatprep.mubr.bf16.mxu0 0
    %8534 = vmatmul.mubr.bf16.gmra.mrb[0].mxu0 %v8468
    %v8535 = vpop.f32.mrb[0].mxu0
    %v8536 = vadd.f32 %v8071, %v8535
    %v8537 = vpop.f32.mrb[0].mxu0
    %v8538 = vpop.f32.mrb[0].mxu0
    %v8539 = vadd.f32 %v8071, %v8538
    %v8540 = vpop.f32.mrb[0].mxu0
    %8541 = vmatprep.mubr.bf16.mxu0 0
    %8542 = vmatmul.mubr.bf16.gmra.mrb[0].mxu0 %v8471
    %v8543 = vpop.f32.mrb[0].mxu0
    %v8544 = vadd.f32 %v8071, %v8543
    %v8545 = vpop.f32.mrb[0].mxu0
    %v8546 = vpop.f32.mrb[0].mxu0
    %v8547 = vadd.f32 %v8071, %v8546
    %v8548 = vpop.f32.mrb[0].mxu0
    %8549 = vmatprep.mubr.bf16.mxu0 0
    %8550 = vmatmul.mubr.bf16.gmra.mrb[0].mxu0 %v8474
    %v8551 = vpop.f32.mrb[0].mxu0
    %v8552 = vadd.f32 %v8071, %v8551
    %v8553 = vpop.f32.mrb[0].mxu0
    %v8554 = vpop.f32.mrb[0].mxu0
    %v8555 = vadd.f32 %v8071, %v8554
    %v8556 = vpop.f32.mrb[0].mxu0
    %8557 = vmatprep.mubr.bf16.mxu0 0
    %8558 = vmatmul.mubr.bf16.gmra.mrb[0].mxu0 %v8477
    %v8559 = vpop.f32.mrb[0].mxu0
    %v8560 = vadd.f32 %v8071, %v8559
    %v8561 = vpop.f32.mrb[0].mxu0
    %v8562 = vpop.f32.mrb[0].mxu0
    %v8563 = vadd.f32 %v8071, %v8562
    %v8564 = vpop.f32.mrb[0].mxu0
    %8565 = vmatprep.mubr.bf16.mxu0 0
    %8566 = vmatmul.mubr.bf16.gmra.mrb[0].mxu0 %v8480
    %v8567 = vpop.f32.mrb[0].mxu0
    %v8568 = vadd.f32 %v8071, %v8567
    %v8569 = vpop.f32.mrb[0].mxu0
    %v8570 = vpop.f32.mrb[0].mxu0
    %v8571 = vadd.f32 %v8071, %v8570
    %v8572 = vpop.f32.mrb[0].mxu0
    %8573 = vmatprep.mubr.bf16.mxu0 0
    %8574 = vmatmul.mubr.bf16.gmra.mrb[0].mxu0 %v8483
    %v8575 = vpop.f32.mrb[0].mxu0
    %v8576 = vadd.f32 %v8071, %v8575
    %v8577 = vpop.f32.mrb[0].mxu0
    %v8578 = vpop.f32.mrb[0].mxu0
    %v8579 = vadd.f32 %v8071, %v8578
    %v8580 = vpop.f32.mrb[0].mxu0
    %8581 = vdwg.mxu0
    %v8582 = vadd.f32 %v52, %v8520
    %v8583 = vadd.f32 %v53, %v8523
    %v8584 = vadd.f32 %v54, %v8528
    %v8585 = vadd.f32 %v55, %v8531
    %v8586 = vadd.f32 %v56, %v8536
    %v8587 = vadd.f32 %v57, %v8539
    %v8588 = vadd.f32 %v58, %v8544
    %v8589 = vadd.f32 %v59, %v8547
    %v8590 = vadd.f32 %v60, %v8552
    %v8591 = vadd.f32 %v61, %v8555
    %v8592 = vadd.f32 %v62, %v8560
    %v8593 = vadd.f32 %v63, %v8563
    %v8594 = vadd.f32 %v64, %v8568
    %v8595 = vadd.f32 %v65, %v8571
    %v8596 = vadd.f32 %v66, %v8576
    %v8597 = vadd.f32 %v67, %v8579
    %v8598 = vld [vmem:[%s4 + $0x6] sm:$0x1]
    %v8599 = vld [vmem:[%s4 + $0x7] sm:$0x1]
    %v8600 = vsel %vm148, %v8582, 0.0
    %8601 = vadd.xlane.f32.xlu0 %v8600
    %v8602 = vpop.xlane.xlu0 %8601
    %v8603 = vsel %vm148, %v8583, 0.0
    %8604 = vadd.xlane.f32.xlu0 %v8603
    %v8605 = vpop.xlane.xlu0 %8604
    %v8606 = vsel %vm148, %v8584, 0.0
    %8607 = vadd.xlane.f32.xlu0 %v8606
    %v8608 = vpop.xlane.xlu0 %8607
    %v8609 = vsel %vm148, %v8585, 0.0
    %8610 = vadd.xlane.f32.xlu0 %v8609
    %v8611 = vpop.xlane.xlu0 %8610
    %v8612 = vsel %vm148, %v8586, 0.0
    %8613 = vadd.xlane.f32.xlu0 %v8612
    %v8614 = vpop.xlane.xlu0 %8613
    %v8615 = vsel %vm148, %v8587, 0.0
    %8616 = vadd.xlane.f32.xlu0 %v8615
    %v8617 = vpop.xlane.xlu0 %8616
    %v8618 = vsel %vm148, %v8588, 0.0
    %8619 = vadd.xlane.f32.xlu0 %v8618
    %v8620 = vpop.xlane.xlu0 %8619
    %v8621 = vsel %vm148, %v8589, 0.0
    %8622 = vadd.xlane.f32.xlu0 %v8621
    %v8623 = vpop.xlane.xlu0 %8622
    %v8624 = vsel %vm148, %v8590, 0.0
    %8625 = vadd.xlane.f32.xlu0 %v8624
    %v8626 = vpop.xlane.xlu0 %8625
    %v8627 = vsel %vm148, %v8591, 0.0
    %8628 = vadd.xlane.f32.xlu0 %v8627
    %v8629 = vpop.xlane.xlu0 %8628
    %v8630 = vsel %vm148, %v8592, 0.0
    %8631 = vadd.xlane.f32.xlu0 %v8630
    %v8632 = vpop.xlane.xlu0 %8631
    %v8633 = vsel %vm148, %v8593, 0.0
    %8634 = vadd.xlane.f32.xlu0 %v8633
    %v8635 = vpop.xlane.xlu0 %8634
    %v8636 = vsel %vm148, %v8594, 0.0
    %8637 = vadd.xlane.f32.xlu0 %v8636
    %v8638 = vpop.xlane.xlu0 %8637
    %v8639 = vsel %vm148, %v8595, 0.0
    %8640 = vadd.xlane.f32.xlu0 %v8639
    %v8641 = vpop.xlane.xlu0 %8640
    %v8642 = vsel %vm148, %v8596, 0.0
    %8643 = vadd.xlane.f32.xlu0 %v8642
    %v8644 = vpop.xlane.xlu0 %8643
    %v8645 = vsel %vm148, %v8597, 0.0
    %8646 = vadd.xlane.f32.xlu0 %v8645
    %v8647 = vpop.xlane.xlu0 %8646
    %v8648 = vrcp.pop 32.0
    %v8649 = vmul.f32 %v8602, %v8648
    %v8650 = vmul.f32 %v8605, %v8648
    %v8651 = vmul.f32 %v8608, %v8648
    %v8652 = vmul.f32 %v8611, %v8648
    %v8653 = vmul.f32 %v8614, %v8648
    %v8654 = vmul.f32 %v8617, %v8648
    %v8655 = vmul.f32 %v8620, %v8648
    %v8656 = vmul.f32 %v8623, %v8648
    %v8657 = vmul.f32 %v8626, %v8648
    %v8658 = vmul.f32 %v8629, %v8648
    %v8659 = vmul.f32 %v8632, %v8648
    %v8660 = vmul.f32 %v8635, %v8648
    %v8661 = vmul.f32 %v8638, %v8648
    %v8662 = vmul.f32 %v8641, %v8648
    %v8663 = vmul.f32 %v8644, %v8648
    %v8664 = vmul.f32 %v8647, %v8648
    %v8665 = vmul.f32 %v8582, %v8582
    %v8666 = vmul.f32 %v8583, %v8583
    %v8667 = vmul.f32 %v8584, %v8584
    %v8668 = vmul.f32 %v8585, %v8585
    %v8669 = vmul.f32 %v8586, %v8586
    %v8670 = vmul.f32 %v8587, %v8587
    %v8671 = vmul.f32 %v8588, %v8588
    %v8672 = vmul.f32 %v8589, %v8589
    %v8673 = vmul.f32 %v8590, %v8590
    %v8674 = vmul.f32 %v8591, %v8591
    %v8675 = vmul.f32 %v8592, %v8592
    %v8676 = vmul.f32 %v8593, %v8593
    %v8677 = vmul.f32 %v8594, %v8594
    %v8678 = vmul.f32 %v8595, %v8595
    %v8679 = vmul.f32 %v8596, %v8596
    %v8680 = vmul.f32 %v8597, %v8597
    %v8681 = vsel %vm148, %v8665, 0.0
    %8682 = vadd.xlane.f32.xlu0 %v8681
    %v8683 = vpop.xlane.xlu0 %8682
    %v8684 = vsel %vm148, %v8666, 0.0
    %8685 = vadd.xlane.f32.xlu0 %v8684
    %v8686 = vpop.xlane.xlu0 %8685
    %v8687 = vsel %vm148, %v8667, 0.0
    %8688 = vadd.xlane.f32.xlu0 %v8687
    %v8689 = vpop.xlane.xlu0 %8688
    %v8690 = vsel %vm148, %v8668, 0.0
    %8691 = vadd.xlane.f32.xlu0 %v8690
    %v8692 = vpop.xlane.xlu0 %8691
    %v8693 = vsel %vm148, %v8669, 0.0
    %8694 = vadd.xlane.f32.xlu0 %v8693
    %v8695 = vpop.xlane.xlu0 %8694
    %v8696 = vsel %vm148, %v8670, 0.0
    %8697 = vadd.xlane.f32.xlu0 %v8696
    %v8698 = vpop.xlane.xlu0 %8697
    %v8699 = vsel %vm148, %v8671, 0.0
    %8700 = vadd.xlane.f32.xlu0 %v8699
    %v8701 = vpop.xlane.xlu0 %8700
    %v8702 = vsel %vm148, %v8672, 0.0
    %8703 = vadd.xlane.f32.xlu0 %v8702
    %v8704 = vpop.xlane.xlu0 %8703
    %v8705 = vsel %vm148, %v8673, 0.0
    %8706 = vadd.xlane.f32.xlu0 %v8705
    %v8707 = vpop.xlane.xlu0 %8706
    %v8708 = vsel %vm148, %v8674, 0.0
    %8709 = vadd.xlane.f32.xlu0 %v8708
    %v8710 = vpop.xlane.xlu0 %8709
    %v8711 = vsel %vm148, %v8675, 0.0
    %8712 = vadd.xlane.f32.xlu0 %v8711
    %v8713 = vpop.xlane.xlu0 %8712
    %v8714 = vsel %vm148, %v8676, 0.0
    %8715 = vadd.xlane.f32.xlu0 %v8714
    %v8716 = vpop.xlane.xlu0 %8715
    %v8717 = vsel %vm148, %v8677, 0.0
    %8718 = vadd.xlane.f32.xlu0 %v8717
    %v8719 = vpop.xlane.xlu0 %8718
    %v8720 = vsel %vm148, %v8678, 0.0
    %8721 = vadd.xlane.f32.xlu0 %v8720
    %v8722 = vpop.xlane.xlu0 %8721
    %v8723 = vsel %vm148, %v8679, 0.0
    %8724 = vadd.xlane.f32.xlu0 %v8723
    %v8725 = vpop.xlane.xlu0 %8724
    %v8726 = vsel %vm148, %v8680, 0.0
    %8727 = vadd.xlane.f32.xlu0 %v8726
    %v8728 = vpop.xlane.xlu0 %8727
    %v8729 = vmul.f32 %v8683, %v8648
    %v8730 = vmul.f32 %v8686, %v8648
    %v8731 = vmul.f32 %v8689, %v8648
    %v8732 = vmul.f32 %v8692, %v8648
    %v8733 = vmul.f32 %v8695, %v8648
    %v8734 = vmul.f32 %v8698, %v8648
    %v8735 = vmul.f32 %v8701, %v8648
    %v8736 = vmul.f32 %v8704, %v8648
    %v8737 = vmul.f32 %v8707, %v8648
    %v8738 = vmul.f32 %v8710, %v8648
    %v8739 = vmul.f32 %v8713, %v8648
    %v8740 = vmul.f32 %v8716, %v8648
    %v8741 = vmul.f32 %v8719, %v8648
    %v8742 = vmul.f32 %v8722, %v8648
    %v8743 = vmul.f32 %v8725, %v8648
    %v8744 = vmul.f32 %v8728, %v8648
    %v8745 = vmul.f32 %v8649, %v8649
    %v8746 = vmul.f32 %v8650, %v8650
    %v8747 = vmul.f32 %v8651, %v8651
    %v8748 = vmul.f32 %v8652, %v8652
    %v8749 = vmul.f32 %v8653, %v8653
    %v8750 = vmul.f32 %v8654, %v8654
    %v8751 = vmul.f32 %v8655, %v8655
    %v8752 = vmul.f32 %v8656, %v8656
    %v8753 = vmul.f32 %v8657, %v8657
    %v8754 = vmul.f32 %v8658, %v8658
    %v8755 = vmul.f32 %v8659, %v8659
    %v8756 = vmul.f32 %v8660, %v8660
    %v8757 = vmul.f32 %v8661, %v8661
    %v8758 = vmul.f32 %v8662, %v8662
    %v8759 = vmul.f32 %v8663, %v8663
    %v8760 = vmul.f32 %v8664, %v8664
    %v8761 = vsub.f32 %v8729, %v8745
    %v8762 = vsub.f32 %v8730, %v8746
    %v8763 = vsub.f32 %v8731, %v8747
    %v8764 = vsub.f32 %v8732, %v8748
    %v8765 = vsub.f32 %v8733, %v8749
    %v8766 = vsub.f32 %v8734, %v8750
    %v8767 = vsub.f32 %v8735, %v8751
    %v8768 = vsub.f32 %v8736, %v8752
    %v8769 = vsub.f32 %v8737, %v8753
    %v8770 = vsub.f32 %v8738, %v8754
    %v8771 = vsub.f32 %v8739, %v8755
    %v8772 = vsub.f32 %v8740, %v8756
    %v8773 = vsub.f32 %v8741, %v8757
    %v8774 = vsub.f32 %v8742, %v8758
    %v8775 = vsub.f32 %v8743, %v8759
    %v8776 = vsub.f32 %v8744, %v8760
    %v8777 = vsub.f32 %v8582, %v8649
    %v8778 = vsub.f32 %v8583, %v8650
    %v8779 = vsub.f32 %v8584, %v8651
    %v8780 = vsub.f32 %v8585, %v8652
    %v8781 = vsub.f32 %v8586, %v8653
    %v8782 = vsub.f32 %v8587, %v8654
    %v8783 = vsub.f32 %v8588, %v8655
    %v8784 = vsub.f32 %v8589, %v8656
    %v8785 = vsub.f32 %v8590, %v8657
    %v8786 = vsub.f32 %v8591, %v8658
    %v8787 = vsub.f32 %v8592, %v8659
    %v8788 = vsub.f32 %v8593, %v8660
    %v8789 = vsub.f32 %v8594, %v8661
    %v8790 = vsub.f32 %v8595, %v8662
    %v8791 = vsub.f32 %v8596, %v8663
    %v8792 = vsub.f32 %v8597, %v8664
    %v8793 = vadd.f32 %v8761, 1e-05
    %v8794 = vadd.f32 %v8762, 1e-05
    %v8795 = vadd.f32 %v8763, 1e-05
    %v8796 = vadd.f32 %v8764, 1e-05
    %v8797 = vadd.f32 %v8765, 1e-05
    %v8798 = vadd.f32 %v8766, 1e-05
    %v8799 = vadd.f32 %v8767, 1e-05
    %v8800 = vadd.f32 %v8768, 1e-05
    %v8801 = vadd.f32 %v8769, 1e-05
    %v8802 = vadd.f32 %v8770, 1e-05
    %v8803 = vadd.f32 %v8771, 1e-05
    %v8804 = vadd.f32 %v8772, 1e-05
    %v8805 = vadd.f32 %v8773, 1e-05
    %v8806 = vadd.f32 %v8774, 1e-05
    %v8807 = vadd.f32 %v8775, 1e-05
    %v8808 = vadd.f32 %v8776, 1e-05
    %v8809 = vrsqrt.pop %v8793
    %v8810 = vrsqrt.pop %v8794
    %v8811 = vrsqrt.pop %v8795
    %v8812 = vrsqrt.pop %v8796
    %v8813 = vrsqrt.pop %v8797
    %v8814 = vrsqrt.pop %v8798
    %v8815 = vrsqrt.pop %v8799
    %v8816 = vrsqrt.pop %v8800
    %v8817 = vrsqrt.pop %v8801
    %v8818 = vrsqrt.pop %v8802
    %v8819 = vrsqrt.pop %v8803
    %v8820 = vrsqrt.pop %v8804
    %v8821 = vrsqrt.pop %v8805
    %v8822 = vrsqrt.pop %v8806
    %v8823 = vrsqrt.pop %v8807
    %v8824 = vrsqrt.pop %v8808
    %v8825 = vmul.f32 %v8777, %v8809
    %v8826 = vmul.f32 %v8778, %v8810
    %v8827 = vmul.f32 %v8779, %v8811
    %v8828 = vmul.f32 %v8780, %v8812
    %v8829 = vmul.f32 %v8781, %v8813
    %v8830 = vmul.f32 %v8782, %v8814
    %v8831 = vmul.f32 %v8783, %v8815
    %v8832 = vmul.f32 %v8784, %v8816
    %v8833 = vmul.f32 %v8785, %v8817
    %v8834 = vmul.f32 %v8786, %v8818
    %v8835 = vmul.f32 %v8787, %v8819
    %v8836 = vmul.f32 %v8788, %v8820
    %v8837 = vmul.f32 %v8789, %v8821
    %v8838 = vmul.f32 %v8790, %v8822
    %v8839 = vmul.f32 %v8791, %v8823
    %v8840 = vmul.f32 %v8792, %v8824
    %v8842 = vlaneseq
    %v8843 = vshrl.u32 %v8842, 7
    %v8844 = vsub.s32 0, %v8843
    %v8845 = vrot.slane %v8598, %v8844
    %v8847 = vmul.f32 %v8825, %v8845
    %v8848 = vmul.f32 %v8826, %v8845
    %v8849 = vmul.f32 %v8827, %v8845
    %v8850 = vmul.f32 %v8828, %v8845
    %v8851 = vmul.f32 %v8829, %v8845
    %v8852 = vmul.f32 %v8830, %v8845
    %v8853 = vmul.f32 %v8831, %v8845
    %v8854 = vmul.f32 %v8832, %v8845
    %v8855 = vmul.f32 %v8833, %v8845
    %v8856 = vmul.f32 %v8834, %v8845
    %v8857 = vmul.f32 %v8835, %v8845
    %v8858 = vmul.f32 %v8836, %v8845
    %v8859 = vmul.f32 %v8837, %v8845
    %v8860 = vmul.f32 %v8838, %v8845
    %v8861 = vmul.f32 %v8839, %v8845
    %v8862 = vmul.f32 %v8840, %v8845
    %v8864 = vlaneseq
    %v8865 = vshrl.u32 %v8864, 7
    %v8866 = vsub.s32 0, %v8865
    %v8867 = vrot.slane %v8599, %v8866
    %v8869 = vadd.f32 %v8847, %v8867
    %v8870 = vadd.f32 %v8848, %v8867
    %v8871 = vadd.f32 %v8849, %v8867
    %v8872 = vadd.f32 %v8850, %v8867
    %v8873 = vadd.f32 %v8851, %v8867
    %v8874 = vadd.f32 %v8852, %v8867
    %v8875 = vadd.f32 %v8853, %v8867
    %v8876 = vadd.f32 %v8854, %v8867
    %v8877 = vadd.f32 %v8855, %v8867
    %v8878 = vadd.f32 %v8856, %v8867
    %v8879 = vadd.f32 %v8857, %v8867
    %v8880 = vadd.f32 %v8858, %v8867
    %v8881 = vadd.f32 %v8859, %v8867
    %v8882 = vadd.f32 %v8860, %v8867
    %v8883 = vadd.f32 %v8861, %v8867
    %v8884 = vadd.f32 %v8862, %v8867
    %v8885 = vpack.c.bf16 %v8870, %v8869
    %v8886 = vpack.c.bf16 %v8872, %v8871
    %v8887 = vpack.c.bf16 %v8874, %v8873
    %v8888 = vpack.c.bf16 %v8876, %v8875
    %v8889 = vpack.c.bf16 %v8878, %v8877
    %v8890 = vpack.c.bf16 %v8880, %v8879
    %v8891 = vpack.c.bf16 %v8882, %v8881
    %v8892 = vpack.c.bf16 %v8884, %v8883
    %v8893 = vld [vmem:[#allocation2 + $0x10] sm:$0xf]
    %v8894 = vld [vmem:[#allocation2 + $0x2c] sm:$0xf]
    %v8895 = vld [vmem:[#allocation2 + $0x48] sm:$0xf]
    %v8896 = vld [vmem:[#allocation2 + $0x64] sm:$0xf]
    %v8897 = vld [vmem:[%s4 + $0x4] sm:$0x1]
    %v8899 = vlaneseq
    %v8900 = vshrl.u32 %v8899, 7
    %v8901 = vsub.s32 0, %v8900
    %v8902 = vrot.slane %v8897, %v8901
    %v8908 = vunpack.c.l.b16 %v8893
    %v8909 = vunpack.c.l.b16 %v8894
    %v8910 = vunpack.c.l.b16 %v8895
    %v8911 = vunpack.c.l.b16 %v8896
    %v8912 = vpack.c.b16 %v8909, %v8908
    %v8913 = vpack.c.b16 %v8911, %v8910
    %v8917 = vsel %vm148, %v8885, 0
    %v8920 = vsel %vm148, %v8886, 0
    %v8923 = vsel %vm148, %v8887, 0
    %v8926 = vsel %vm148, %v8888, 0
    %v8929 = vsel %vm148, %v8889, 0
    %v8932 = vsel %vm148, %v8890, 0
    %v8935 = vsel %vm148, %v8891, 0
    %v8938 = vsel %vm148, %v8892, 0
    %8940 = vmatprep.subr.bf16.mxu0 0
    %8941 = vmatpush1.bf16.msra.mxu0 %v8912
    %8942 = vmatprep.subr.bf16.mxu0 0
    %8943 = vmatpush1.bf16.msra.mxu0 %v8913
    %8944 = vmatprep.subr.bf16.mxu0 0
    %8945 = vmatpush1.bf16.msra.mxu0 0
    %8946 = vmatprep.subr.bf16.mxu0 0
    %8947 = vmatpush1.bf16.msra.mxu0 0
    %8948 = vmatprep.subr.bf16.mxu0 0
    %8949 = vmatpush1.bf16.msra.mxu0 0
    %8950 = vmatprep.subr.bf16.mxu0 0
    %8951 = vmatpush1.bf16.msra.mxu0 0
    %8952 = vmatprep.subr.bf16.mxu0 0
    %8953 = vmatpush1.bf16.msra.mxu0 0
    %8954 = vmatprep.subr.bf16.mxu0 0
    %8955 = vmatpush1.bf16.msra.mxu0 0
    %8956 = vmatprep.subr.bf16.mxu0 0
    %8957 = vmatpush1.bf16.msra.mxu0 0
    %8958 = vmatprep.subr.bf16.mxu0 0
    %8959 = vmatpush1.bf16.msra.mxu0 0
    %8960 = vmatprep.subr.bf16.mxu0 0
    %8961 = vmatpush1.bf16.msra.mxu0 0
    %8962 = vmatprep.subr.bf16.mxu0 0
    %8963 = vmatpush1.bf16.msra.mxu0 0
    %8964 = vmatprep.subr.bf16.mxu0 0
    %8965 = vmatpush1.bf16.msra.mxu0 0
    %8966 = vmatprep.subr.bf16.mxu0 0
    %8967 = vmatpush1.bf16.msra.mxu0 0
    %8968 = vmatprep.subr.bf16.mxu0 0
    %8969 = vmatpush1.bf16.msra.mxu0 0
    %8970 = vmatprep.subr.bf16.mxu0 0
    %8971 = vmatpush1.bf16.msra.mxu0 0
    %8972 = vmatprep.mubr.bf16.mxu0 0
    %8973 = vmatmul.mubr.bf16.gmra.mrb[0].mxu0 %v8917
    %v8974 = vpop.f32.mrb[0].mxu0
    %v8975 = vadd.f32 %v8902, %v8974
    %v8976 = vpop.f32.mrb[0].mxu0
    %v8977 = vpop.f32.mrb[0].mxu0
    %v8978 = vadd.f32 %v8902, %v8977
    %v8979 = vpop.f32.mrb[0].mxu0
    %8980 = vmatprep.mubr.bf16.mxu0 0
    %8981 = vmatmul.mubr.bf16.gmra.mrb[0].mxu0 %v8920
    %v8982 = vpop.f32.mrb[0].mxu0
    %v8983 = vadd.f32 %v8902, %v8982
    %v8984 = vpop.f32.mrb[0].mxu0
    %v8985 = vpop.f32.mrb[0].mxu0
    %v8986 = vadd.f32 %v8902, %v8985
    %v8987 = vpop.f32.mrb[0].mxu0
    %8988 = vmatprep.mubr.bf16.mxu0 0
    %8989 = vmatmul.mubr.bf16.gmra.mrb[0].mxu0 %v8923
    %v8990 = vpop.f32.mrb[0].mxu0
    %v8991 = vadd.f32 %v8902, %v8990
    %v8992 = vpop.f32.mrb[0].mxu0
    %v8993 = vpop.f32.mrb[0].mxu0
    %v8994 = vadd.f32 %v8902, %v8993
    %v8995 = vpop.f32.mrb[0].mxu0
    %8996 = vmatprep.mubr.bf16.mxu0 0
    %8997 = vmatmul.mubr.bf16.gmra.mrb[0].mxu0 %v8926
    %v8998 = vpop.f32.mrb[0].mxu0
    %v8999 = vadd.f32 %v8902, %v8998
    %v9000 = vpop.f32.mrb[0].mxu0
    %v9001 = vpop.f32.mrb[0].mxu0
    %v9002 = vadd.f32 %v8902, %v9001
    %v9003 = vpop.f32.mrb[0].mxu0
    %9004 = vmatprep.mubr.bf16.mxu0 0
    %9005 = vmatmul.mubr.bf16.gmra.mrb[0].mxu0 %v8929
    %v9006 = vpop.f32.mrb[0].mxu0
    %v9007 = vadd.f32 %v8902, %v9006
    %v9008 = vpop.f32.mrb[0].mxu0
    %v9009 = vpop.f32.mrb[0].mxu0
    %v9010 = vadd.f32 %v8902, %v9009
    %v9011 = vpop.f32.mrb[0].mxu0
    %9012 = vmatprep.mubr.bf16.mxu0 0
    %9013 = vmatmul.mubr.bf16.gmra.mrb[0].mxu0 %v8932
    %v9014 = vpop.f32.mrb[0].mxu0
    %v9015 = vadd.f32 %v8902, %v9014
    %v9016 = vpop.f32.mrb[0].mxu0
    %v9017 = vpop.f32.mrb[0].mxu0
    %v9018 = vadd.f32 %v8902, %v9017
    %v9019 = vpop.f32.mrb[0].mxu0
    %9020 = vmatprep.mubr.bf16.mxu0 0
    %9021 = vmatmul.mubr.bf16.gmra.mrb[0].mxu0 %v8935
    %v9022 = vpop.f32.mrb[0].mxu0
    %v9023 = vadd.f32 %v8902, %v9022
    %v9024 = vpop.f32.mrb[0].mxu0
    %v9025 = vpop.f32.mrb[0].mxu0
    %v9026 = vadd.f32 %v8902, %v9025
    %v9027 = vpop.f32.mrb[0].mxu0
    %9028 = vmatprep.mubr.bf16.mxu0 0
    %9029 = vmatmul.mubr.bf16.gmra.mrb[0].mxu0 %v8938
    %v9030 = vpop.f32.mrb[0].mxu0
    %v9031 = vadd.f32 %v8902, %v9030
    %v9032 = vpop.f32.mrb[0].mxu0
    %v9033 = vpop.f32.mrb[0].mxu0
    %v9034 = vadd.f32 %v8902, %v9033
    %v9035 = vpop.f32.mrb[0].mxu0
    %9036 = vdwg.mxu0
    %v9037 = vmax.f32 %v8975, 0.0
    %v9038 = vmax.f32 %v8978, 0.0
    %v9039 = vmax.f32 %v8983, 0.0
    %v9040 = vmax.f32 %v8986, 0.0
    %v9041 = vmax.f32 %v8991, 0.0
    %v9042 = vmax.f32 %v8994, 0.0
    %v9043 = vmax.f32 %v8999, 0.0
    %v9044 = vmax.f32 %v9002, 0.0
    %v9045 = vmax.f32 %v9007, 0.0
    %v9046 = vmax.f32 %v9010, 0.0
    %v9047 = vmax.f32 %v9015, 0.0
    %v9048 = vmax.f32 %v9018, 0.0
    %v9049 = vmax.f32 %v9023, 0.0
    %v9050 = vmax.f32 %v9026, 0.0
    %v9051 = vmax.f32 %v9031, 0.0
    %v9052 = vmax.f32 %v9034, 0.0
    %v9053 = vpack.c.bf16 %v9038, %v9037
    %v9054 = vpack.c.bf16 %v9040, %v9039
    %v9055 = vpack.c.bf16 %v9042, %v9041
    %v9056 = vpack.c.bf16 %v9044, %v9043
    %v9057 = vpack.c.bf16 %v9046, %v9045
    %v9058 = vpack.c.bf16 %v9048, %v9047
    %v9059 = vpack.c.bf16 %v9050, %v9049
    %v9060 = vpack.c.bf16 %v9052, %v9051
    %v9061 = vld [vmem:[%s3] sm:$0xf]
    %v9062 = vld [vmem:[%s3 + $0x4] sm:$0xf]
    %v9063 = vld [vmem:[%s3 + $0x8] sm:$0xf]
    %v9064 = vld [vmem:[%s3 + $0xc] sm:$0xf]
    %v9065 = vld [vmem:[%s3 + $0x10] sm:$0xf]
    %v9066 = vld [vmem:[%s3 + $0x14] sm:$0xf]
    %v9067 = vld [vmem:[%s3 + $0x18] sm:$0xf]
    %v9068 = vld [vmem:[%s3 + $0x1c] sm:$0xf]
    %v9069 = vld [vmem:[%s3 + $0x20] sm:$0xf]
    %v9070 = vld [vmem:[%s3 + $0x24] sm:$0xf]
    %v9071 = vld [vmem:[%s3 + $0x28] sm:$0xf]
    %v9072 = vld [vmem:[%s3 + $0x2c] sm:$0xf]
    %v9073 = vld [vmem:[%s3 + $0x30] sm:$0xf]
    %v9074 = vld [vmem:[%s3 + $0x34] sm:$0xf]
    %v9075 = vld [vmem:[%s3 + $0x38] sm:$0xf]
    %v9076 = vld [vmem:[%s3 + $0x3c] sm:$0xf]
    %v9077 = vld [vmem:[%s4 + $0x5] sm:$0x1]
    %v9079 = vlaneseq
    %v9080 = vshrl.u32 %v9079, 7
    %v9081 = vsub.s32 0, %v9080
    %v9082 = vrot.slane %v9077, %v9081
    %v9100 = vunpack.c.l.b16 %v9061
    %v9101 = vunpack.c.l.b16 %v9062
    %v9102 = vunpack.c.l.b16 %v9063
    %v9103 = vunpack.c.l.b16 %v9064
    %v9104 = vunpack.c.l.b16 %v9065
    %v9105 = vunpack.c.l.b16 %v9066
    %v9106 = vunpack.c.l.b16 %v9067
    %v9107 = vunpack.c.l.b16 %v9068
    %v9108 = vunpack.c.l.b16 %v9069
    %v9109 = vunpack.c.l.b16 %v9070
    %v9110 = vunpack.c.l.b16 %v9071
    %v9111 = vunpack.c.l.b16 %v9072
    %v9112 = vunpack.c.l.b16 %v9073
    %v9113 = vunpack.c.l.b16 %v9074
    %v9114 = vunpack.c.l.b16 %v9075
    %v9115 = vunpack.c.l.b16 %v9076
    %v9116 = vpack.c.b16 %v9101, %v9100
    %v9117 = vpack.c.b16 %v9103, %v9102
    %v9118 = vpack.c.b16 %v9105, %v9104
    %v9119 = vpack.c.b16 %v9107, %v9106
    %v9120 = vpack.c.b16 %v9109, %v9108
    %v9121 = vpack.c.b16 %v9111, %v9110
    %v9122 = vpack.c.b16 %v9113, %v9112
    %v9123 = vpack.c.b16 %v9115, %v9114
    %9132 = vmatprep.subr.bf16.mxu0 0
    %9133 = vmatpush1.bf16.msra.mxu0 %v9116
    %9134 = vmatprep.subr.bf16.mxu0 0
    %9135 = vmatpush1.bf16.msra.mxu0 %v9117
    %9136 = vmatprep.subr.bf16.mxu0 0
    %9137 = vmatpush1.bf16.msra.mxu0 %v9118
    %9138 = vmatprep.subr.bf16.mxu0 0
    %9139 = vmatpush1.bf16.msra.mxu0 %v9119
    %9140 = vmatprep.subr.bf16.mxu0 0
    %9141 = vmatpush1.bf16.msra.mxu0 %v9120
    %9142 = vmatprep.subr.bf16.mxu0 0
    %9143 = vmatpush1.bf16.msra.mxu0 %v9121
    %9144 = vmatprep.subr.bf16.mxu0 0
    %9145 = vmatpush1.bf16.msra.mxu0 %v9122
    %9146 = vmatprep.subr.bf16.mxu0 0
    %9147 = vmatpush1.bf16.msra.mxu0 %v9123
    %9148 = vmatprep.subr.bf16.mxu0 0
    %9149 = vmatpush1.bf16.msra.mxu0 0
    %9150 = vmatprep.subr.bf16.mxu0 0
    %9151 = vmatpush1.bf16.msra.mxu0 0
    %9152 = vmatprep.subr.bf16.mxu0 0
    %9153 = vmatpush1.bf16.msra.mxu0 0
    %9154 = vmatprep.subr.bf16.mxu0 0
    %9155 = vmatpush1.bf16.msra.mxu0 0
    %9156 = vmatprep.subr.bf16.mxu0 0
    %9157 = vmatpush1.bf16.msra.mxu0 0
    %9158 = vmatprep.subr.bf16.mxu0 0
    %9159 = vmatpush1.bf16.msra.mxu0 0
    %9160 = vmatprep.subr.bf16.mxu0 0
    %9161 = vmatpush1.bf16.msra.mxu0 0
    %9162 = vmatprep.subr.bf16.mxu0 0
    %9163 = vmatpush1.bf16.msra.mxu0 0
    %9164 = vmatprep.mubr.bf16.mxu0 0
    %9165 = vmatmul.mubr.bf16.gmra.mrb[0].mxu0 %v9053
    %v9166 = vpop.f32.mrb[0].mxu0
    %v9167 = vadd.f32 %v9082, %v9166
    %v9168 = vpop.f32.mrb[0].mxu0
    %v9169 = vpop.f32.mrb[0].mxu0
    %v9170 = vadd.f32 %v9082, %v9169
    %v9171 = vpop.f32.mrb[0].mxu0
    %9172 = vmatprep.mubr.bf16.mxu0 0
    %9173 = vmatmul.mubr.bf16.gmra.mrb[0].mxu0 %v9054
    %v9174 = vpop.f32.mrb[0].mxu0
    %v9175 = vadd.f32 %v9082, %v9174
    %v9176 = vpop.f32.mrb[0].mxu0
    %v9177 = vpop.f32.mrb[0].mxu0
    %v9178 = vadd.f32 %v9082, %v9177
    %v9179 = vpop.f32.mrb[0].mxu0
    %9180 = vmatprep.mubr.bf16.mxu0 0
    %9181 = vmatmul.mubr.bf16.gmra.mrb[0].mxu0 %v9055
    %v9182 = vpop.f32.mrb[0].mxu0
    %v9183 = vadd.f32 %v9082, %v9182
    %v9184 = vpop.f32.mrb[0].mxu0
    %v9185 = vpop.f32.mrb[0].mxu0
    %v9186 = vadd.f32 %v9082, %v9185
    %v9187 = vpop.f32.mrb[0].mxu0
    %9188 = vmatprep.mubr.bf16.mxu0 0
    %9189 = vmatmul.mubr.bf16.gmra.mrb[0].mxu0 %v9056
    %v9190 = vpop.f32.mrb[0].mxu0
    %v9191 = vadd.f32 %v9082, %v9190
    %v9192 = vpop.f32.mrb[0].mxu0
    %v9193 = vpop.f32.mrb[0].mxu0
    %v9194 = vadd.f32 %v9082, %v9193
    %v9195 = vpop.f32.mrb[0].mxu0
    %9196 = vmatprep.mubr.bf16.mxu0 0
    %9197 = vmatmul.mubr.bf16.gmra.mrb[0].mxu0 %v9057
    %v9198 = vpop.f32.mrb[0].mxu0
    %v9199 = vadd.f32 %v9082, %v9198
    %v9200 = vpop.f32.mrb[0].mxu0
    %v9201 = vpop.f32.mrb[0].mxu0
    %v9202 = vadd.f32 %v9082, %v9201
    %v9203 = vpop.f32.mrb[0].mxu0
    %9204 = vmatprep.mubr.bf16.mxu0 0
    %9205 = vmatmul.mubr.bf16.gmra.mrb[0].mxu0 %v9058
    %v9206 = vpop.f32.mrb[0].mxu0
    %v9207 = vadd.f32 %v9082, %v9206
    %v9208 = vpop.f32.mrb[0].mxu0
    %v9209 = vpop.f32.mrb[0].mxu0
    %v9210 = vadd.f32 %v9082, %v9209
    %v9211 = vpop.f32.mrb[0].mxu0
    %9212 = vmatprep.mubr.bf16.mxu0 0
    %9213 = vmatmul.mubr.bf16.gmra.mrb[0].mxu0 %v9059
    %v9214 = vpop.f32.mrb[0].mxu0
    %v9215 = vadd.f32 %v9082, %v9214
    %v9216 = vpop.f32.mrb[0].mxu0
    %v9217 = vpop.f32.mrb[0].mxu0
    %v9218 = vadd.f32 %v9082, %v9217
    %v9219 = vpop.f32.mrb[0].mxu0
    %9220 = vmatprep.mubr.bf16.mxu0 0
    %9221 = vmatmul.mubr.bf16.gmra.mrb[0].mxu0 %v9060
    %v9222 = vpop.f32.mrb[0].mxu0
    %v9223 = vadd.f32 %v9082, %v9222
    %v9224 = vpop.f32.mrb[0].mxu0
    %v9225 = vpop.f32.mrb[0].mxu0
    %v9226 = vadd.f32 %v9082, %v9225
    %v9227 = vpop.f32.mrb[0].mxu0
    %9228 = vdwg.mxu0
    %v9229 = vadd.f32 %v8869, %v9167
    %v9230 = vadd.f32 %v8870, %v9170
    %v9231 = vadd.f32 %v8871, %v9175
    %v9232 = vadd.f32 %v8872, %v9178
    %v9233 = vadd.f32 %v8873, %v9183
    %v9234 = vadd.f32 %v8874, %v9186
    %v9235 = vadd.f32 %v8875, %v9191
    %v9236 = vadd.f32 %v8876, %v9194
    %v9237 = vadd.f32 %v8877, %v9199
    %v9238 = vadd.f32 %v8878, %v9202
    %v9239 = vadd.f32 %v8879, %v9207
    %v9240 = vadd.f32 %v8880, %v9210
    %v9241 = vadd.f32 %v8881, %v9215
    %v9242 = vadd.f32 %v8882, %v9218
    %v9243 = vadd.f32 %v8883, %v9223
    %v9244 = vadd.f32 %v8884, %v9226
    %v9245 = vld [vmem:[%s4 + $0x8] sm:$0x1]
    %v9246 = vld [vmem:[%s4 + $0x9] sm:$0x1]
    %v9247 = vsel %vm148, %v9229, 0.0
    %9248 = vadd.xlane.f32.xlu0 %v9247
    %v9249 = vpop.xlane.xlu0 %9248
    %v9250 = vsel %vm148, %v9230, 0.0
    %9251 = vadd.xlane.f32.xlu0 %v9250
    %v9252 = vpop.xlane.xlu0 %9251
    %v9253 = vsel %vm148, %v9231, 0.0
    %9254 = vadd.xlane.f32.xlu0 %v9253
    %v9255 = vpop.xlane.xlu0 %9254
    %v9256 = vsel %vm148, %v9232, 0.0
    %9257 = vadd.xlane.f32.xlu0 %v9256
    %v9258 = vpop.xlane.xlu0 %9257
    %v9259 = vsel %vm148, %v9233, 0.0
    %9260 = vadd.xlane.f32.xlu0 %v9259
    %v9261 = vpop.xlane.xlu0 %9260
    %v9262 = vsel %vm148, %v9234, 0.0
    %9263 = vadd.xlane.f32.xlu0 %v9262
    %v9264 = vpop.xlane.xlu0 %9263
    %v9265 = vsel %vm148, %v9235, 0.0
    %9266 = vadd.xlane.f32.xlu0 %v9265
    %v9267 = vpop.xlane.xlu0 %9266
    %v9268 = vsel %vm148, %v9236, 0.0
    %9269 = vadd.xlane.f32.xlu0 %v9268
    %v9270 = vpop.xlane.xlu0 %9269
    %v9271 = vsel %vm148, %v9237, 0.0
    %9272 = vadd.xlane.f32.xlu0 %v9271
    %v9273 = vpop.xlane.xlu0 %9272
    %v9274 = vsel %vm148, %v9238, 0.0
    %9275 = vadd.xlane.f32.xlu0 %v9274
    %v9276 = vpop.xlane.xlu0 %9275
    %v9277 = vsel %vm148, %v9239, 0.0
    %9278 = vadd.xlane.f32.xlu0 %v9277
    %v9279 = vpop.xlane.xlu0 %9278
    %v9280 = vsel %vm148, %v9240, 0.0
    %9281 = vadd.xlane.f32.xlu0 %v9280
    %v9282 = vpop.xlane.xlu0 %9281
    %v9283 = vsel %vm148, %v9241, 0.0
    %9284 = vadd.xlane.f32.xlu0 %v9283
    %v9285 = vpop.xlane.xlu0 %9284
    %v9286 = vsel %vm148, %v9242, 0.0
    %9287 = vadd.xlane.f32.xlu0 %v9286
    %v9288 = vpop.xlane.xlu0 %9287
    %v9289 = vsel %vm148, %v9243, 0.0
    %9290 = vadd.xlane.f32.xlu0 %v9289
    %v9291 = vpop.xlane.xlu0 %9290
    %v9292 = vsel %vm148, %v9244, 0.0
    %9293 = vadd.xlane.f32.xlu0 %v9292
    %v9294 = vpop.xlane.xlu0 %9293
    %v9295 = vmul.f32 %v9249, %v8648
    %v9296 = vmul.f32 %v9252, %v8648
    %v9297 = vmul.f32 %v9255, %v8648
    %v9298 = vmul.f32 %v9258, %v8648
    %v9299 = vmul.f32 %v9261, %v8648
    %v9300 = vmul.f32 %v9264, %v8648
    %v9301 = vmul.f32 %v9267, %v8648
    %v9302 = vmul.f32 %v9270, %v8648
    %v9303 = vmul.f32 %v9273, %v8648
    %v9304 = vmul.f32 %v9276, %v8648
    %v9305 = vmul.f32 %v9279, %v8648
    %v9306 = vmul.f32 %v9282, %v8648
    %v9307 = vmul.f32 %v9285, %v8648
    %v9308 = vmul.f32 %v9288, %v8648
    %v9309 = vmul.f32 %v9291, %v8648
    %v9310 = vmul.f32 %v9294, %v8648
    %v9311 = vmul.f32 %v9229, %v9229
    %v9312 = vmul.f32 %v9230, %v9230
    %v9313 = vmul.f32 %v9231, %v9231
    %v9314 = vmul.f32 %v9232, %v9232
    %v9315 = vmul.f32 %v9233, %v9233
    %v9316 = vmul.f32 %v9234, %v9234
    %v9317 = vmul.f32 %v9235, %v9235
    %v9318 = vmul.f32 %v9236, %v9236
    %v9319 = vmul.f32 %v9237, %v9237
    %v9320 = vmul.f32 %v9238, %v9238
    %v9321 = vmul.f32 %v9239, %v9239
    %v9322 = vmul.f32 %v9240, %v9240
    %v9323 = vmul.f32 %v9241, %v9241
    %v9324 = vmul.f32 %v9242, %v9242
    %v9325 = vmul.f32 %v9243, %v9243
    %v9326 = vmul.f32 %v9244, %v9244
    %v9327 = vsel %vm148, %v9311, 0.0
    %9328 = vadd.xlane.f32.xlu0 %v9327
    %v9329 = vpop.xlane.xlu0 %9328
    %v9330 = vsel %vm148, %v9312, 0.0
    %9331 = vadd.xlane.f32.xlu0 %v9330
    %v9332 = vpop.xlane.xlu0 %9331
    %v9333 = vsel %vm148, %v9313, 0.0
    %9334 = vadd.xlane.f32.xlu0 %v9333
    %v9335 = vpop.xlane.xlu0 %9334
    %v9336 = vsel %vm148, %v9314, 0.0
    %9337 = vadd.xlane.f32.xlu0 %v9336
    %v9338 = vpop.xlane.xlu0 %9337
    %v9339 = vsel %vm148, %v9315, 0.0
    %9340 = vadd.xlane.f32.xlu0 %v9339
    %v9341 = vpop.xlane.xlu0 %9340
    %v9342 = vsel %vm148, %v9316, 0.0
    %9343 = vadd.xlane.f32.xlu0 %v9342
    %v9344 = vpop.xlane.xlu0 %9343
    %v9345 = vsel %vm148, %v9317, 0.0
    %9346 = vadd.xlane.f32.xlu0 %v9345
    %v9347 = vpop.xlane.xlu0 %9346
    %v9348 = vsel %vm148, %v9318, 0.0
    %9349 = vadd.xlane.f32.xlu0 %v9348
    %v9350 = vpop.xlane.xlu0 %9349
    %v9351 = vsel %vm148, %v9319, 0.0
    %9352 = vadd.xlane.f32.xlu0 %v9351
    %v9353 = vpop.xlane.xlu0 %9352
    %v9354 = vsel %vm148, %v9320, 0.0
    %9355 = vadd.xlane.f32.xlu0 %v9354
    %v9356 = vpop.xlane.xlu0 %9355
    %v9357 = vsel %vm148, %v9321, 0.0
    %9358 = vadd.xlane.f32.xlu0 %v9357
    %v9359 = vpop.xlane.xlu0 %9358
    %v9360 = vsel %vm148, %v9322, 0.0
    %9361 = vadd.xlane.f32.xlu0 %v9360
    %v9362 = vpop.xlane.xlu0 %9361
    %v9363 = vsel %vm148, %v9323, 0.0
    %9364 = vadd.xlane.f32.xlu0 %v9363
    %v9365 = vpop.xlane.xlu0 %9364
    %v9366 = vsel %vm148, %v9324, 0.0
    %9367 = vadd.xlane.f32.xlu0 %v9366
    %v9368 = vpop.xlane.xlu0 %9367
    %v9369 = vsel %vm148, %v9325, 0.0
    %9370 = vadd.xlane.f32.xlu0 %v9369
    %v9371 = vpop.xlane.xlu0 %9370
    %v9372 = vsel %vm148, %v9326, 0.0
    %9373 = vadd.xlane.f32.xlu0 %v9372
    %v9374 = vpop.xlane.xlu0 %9373
    %v9375 = vmul.f32 %v9329, %v8648
    %v9376 = vmul.f32 %v9332, %v8648
    %v9377 = vmul.f32 %v9335, %v8648
    %v9378 = vmul.f32 %v9338, %v8648
    %v9379 = vmul.f32 %v9341, %v8648
    %v9380 = vmul.f32 %v9344, %v8648
    %v9381 = vmul.f32 %v9347, %v8648
    %v9382 = vmul.f32 %v9350, %v8648
    %v9383 = vmul.f32 %v9353, %v8648
    %v9384 = vmul.f32 %v9356, %v8648
    %v9385 = vmul.f32 %v9359, %v8648
    %v9386 = vmul.f32 %v9362, %v8648
    %v9387 = vmul.f32 %v9365, %v8648
    %v9388 = vmul.f32 %v9368, %v8648
    %v9389 = vmul.f32 %v9371, %v8648
    %v9390 = vmul.f32 %v9374, %v8648
    %v9391 = vmul.f32 %v9295, %v9295
    %v9392 = vmul.f32 %v9296, %v9296
    %v9393 = vmul.f32 %v9297, %v9297
    %v9394 = vmul.f32 %v9298, %v9298
    %v9395 = vmul.f32 %v9299, %v9299
    %v9396 = vmul.f32 %v9300, %v9300
    %v9397 = vmul.f32 %v9301, %v9301
    %v9398 = vmul.f32 %v9302, %v9302
    %v9399 = vmul.f32 %v9303, %v9303
    %v9400 = vmul.f32 %v9304, %v9304
    %v9401 = vmul.f32 %v9305, %v9305
    %v9402 = vmul.f32 %v9306, %v9306
    %v9403 = vmul.f32 %v9307, %v9307
    %v9404 = vmul.f32 %v9308, %v9308
    %v9405 = vmul.f32 %v9309, %v9309
    %v9406 = vmul.f32 %v9310, %v9310
    %v9407 = vsub.f32 %v9375, %v9391
    %v9408 = vsub.f32 %v9376, %v9392
    %v9409 = vsub.f32 %v9377, %v9393
    %v9410 = vsub.f32 %v9378, %v9394
    %v9411 = vsub.f32 %v9379, %v9395
    %v9412 = vsub.f32 %v9380, %v9396
    %v9413 = vsub.f32 %v9381, %v9397
    %v9414 = vsub.f32 %v9382, %v9398
    %v9415 = vsub.f32 %v9383, %v9399
    %v9416 = vsub.f32 %v9384, %v9400
    %v9417 = vsub.f32 %v9385, %v9401
    %v9418 = vsub.f32 %v9386, %v9402
    %v9419 = vsub.f32 %v9387, %v9403
    %v9420 = vsub.f32 %v9388, %v9404
    %v9421 = vsub.f32 %v9389, %v9405
    %v9422 = vsub.f32 %v9390, %v9406
    %v9423 = vsub.f32 %v9229, %v9295
    %v9424 = vsub.f32 %v9230, %v9296
    %v9425 = vsub.f32 %v9231, %v9297
    %v9426 = vsub.f32 %v9232, %v9298
    %v9427 = vsub.f32 %v9233, %v9299
    %v9428 = vsub.f32 %v9234, %v9300
    %v9429 = vsub.f32 %v9235, %v9301
    %v9430 = vsub.f32 %v9236, %v9302
    %v9431 = vsub.f32 %v9237, %v9303
    %v9432 = vsub.f32 %v9238, %v9304
    %v9433 = vsub.f32 %v9239, %v9305
    %v9434 = vsub.f32 %v9240, %v9306
    %v9435 = vsub.f32 %v9241, %v9307
    %v9436 = vsub.f32 %v9242, %v9308
    %v9437 = vsub.f32 %v9243, %v9309
    %v9438 = vsub.f32 %v9244, %v9310
    %v9439 = vadd.f32 %v9407, 1e-05
    %v9440 = vadd.f32 %v9408, 1e-05
    %v9441 = vadd.f32 %v9409, 1e-05
    %v9442 = vadd.f32 %v9410, 1e-05
    %v9443 = vadd.f32 %v9411, 1e-05
    %v9444 = vadd.f32 %v9412, 1e-05
    %v9445 = vadd.f32 %v9413, 1e-05
    %v9446 = vadd.f32 %v9414, 1e-05
    %v9447 = vadd.f32 %v9415, 1e-05
    %v9448 = vadd.f32 %v9416, 1e-05
    %v9449 = vadd.f32 %v9417, 1e-05
    %v9450 = vadd.f32 %v9418, 1e-05
    %v9451 = vadd.f32 %v9419, 1e-05
    %v9452 = vadd.f32 %v9420, 1e-05
    %v9453 = vadd.f32 %v9421, 1e-05
    %v9454 = vadd.f32 %v9422, 1e-05
    %v9455 = vrsqrt.pop %v9439
    %v9456 = vrsqrt.pop %v9440
    %v9457 = vrsqrt.pop %v9441
    %v9458 = vrsqrt.pop %v9442
    %v9459 = vrsqrt.pop %v9443
    %v9460 = vrsqrt.pop %v9444
    %v9461 = vrsqrt.pop %v9445
    %v9462 = vrsqrt.pop %v9446
    %v9463 = vrsqrt.pop %v9447
    %v9464 = vrsqrt.pop %v9448
    %v9465 = vrsqrt.pop %v9449
    %v9466 = vrsqrt.pop %v9450
    %v9467 = vrsqrt.pop %v9451
    %v9468 = vrsqrt.pop %v9452
    %v9469 = vrsqrt.pop %v9453
    %v9470 = vrsqrt.pop %v9454
    %v9471 = vmul.f32 %v9423, %v9455
    %v9472 = vmul.f32 %v9424, %v9456
    %v9473 = vmul.f32 %v9425, %v9457
    %v9474 = vmul.f32 %v9426, %v9458
    %v9475 = vmul.f32 %v9427, %v9459
    %v9476 = vmul.f32 %v9428, %v9460
    %v9477 = vmul.f32 %v9429, %v9461
    %v9478 = vmul.f32 %v9430, %v9462
    %v9479 = vmul.f32 %v9431, %v9463
    %v9480 = vmul.f32 %v9432, %v9464
    %v9481 = vmul.f32 %v9433, %v9465
    %v9482 = vmul.f32 %v9434, %v9466
    %v9483 = vmul.f32 %v9435, %v9467
    %v9484 = vmul.f32 %v9436, %v9468
    %v9485 = vmul.f32 %v9437, %v9469
    %v9486 = vmul.f32 %v9438, %v9470
    %v9488 = vlaneseq
    %v9489 = vshrl.u32 %v9488, 7
    %v9490 = vsub.s32 0, %v9489
    %v9491 = vrot.slane %v9245, %v9490
    %v9493 = vmul.f32 %v9471, %v9491
    %v9494 = vmul.f32 %v9472, %v9491
    %v9495 = vmul.f32 %v9473, %v9491
    %v9496 = vmul.f32 %v9474, %v9491
    %v9497 = vmul.f32 %v9475, %v9491
    %v9498 = vmul.f32 %v9476, %v9491
    %v9499 = vmul.f32 %v9477, %v9491
    %v9500 = vmul.f32 %v9478, %v9491
    %v9501 = vmul.f32 %v9479, %v9491
    %v9502 = vmul.f32 %v9480, %v9491
    %v9503 = vmul.f32 %v9481, %v9491
    %v9504 = vmul.f32 %v9482, %v9491
    %v9505 = vmul.f32 %v9483, %v9491
    %v9506 = vmul.f32 %v9484, %v9491
    %v9507 = vmul.f32 %v9485, %v9491
    %v9508 = vmul.f32 %v9486, %v9491
    %v9510 = vlaneseq
    %v9511 = vshrl.u32 %v9510, 7
    %v9512 = vsub.s32 0, %v9511
    %v9513 = vrot.slane %v9246, %v9512
    %v9515 = vadd.f32 %v9493, %v9513
    %v9516 = vadd.f32 %v9494, %v9513
    %v9517 = vadd.f32 %v9495, %v9513
    %v9518 = vadd.f32 %v9496, %v9513
    %v9519 = vadd.f32 %v9497, %v9513
    %v9520 = vadd.f32 %v9498, %v9513
    %v9521 = vadd.f32 %v9499, %v9513
    %v9522 = vadd.f32 %v9500, %v9513
    %v9523 = vadd.f32 %v9501, %v9513
    %v9524 = vadd.f32 %v9502, %v9513
    %v9525 = vadd.f32 %v9503, %v9513
    %v9526 = vadd.f32 %v9504, %v9513
    %v9527 = vadd.f32 %v9505, %v9513
    %v9528 = vadd.f32 %v9506, %v9513
    %v9529 = vadd.f32 %v9507, %v9513
    %v9530 = vadd.f32 %v9508, %v9513
    %v9531 = vld [vmem:[%s4 + $0xa] sm:$0x1]
    %v9533 = vlaneseq
    %v9534 = vshrl.u32 %v9533, 7
    %v9535 = vsub.s32 0, %v9534
    %v9536 = vrot.slane %v9531, %v9535
    %v9538 = vmul.f32 %v9515, %v9536
    %v9539 = vmul.f32 %v9516, %v9536
    %v9540 = vmul.f32 %v9517, %v9536
    %v9541 = vmul.f32 %v9518, %v9536
    %v9542 = vmul.f32 %v9519, %v9536
    %v9543 = vmul.f32 %v9520, %v9536
    %v9544 = vmul.f32 %v9521, %v9536
    %v9545 = vmul.f32 %v9522, %v9536
    %v9546 = vmul.f32 %v9523, %v9536
    %v9547 = vmul.f32 %v9524, %v9536
    %v9548 = vmul.f32 %v9525, %v9536
    %v9549 = vmul.f32 %v9526, %v9536
    %v9550 = vmul.f32 %v9527, %v9536
    %v9551 = vmul.f32 %v9528, %v9536
    %v9552 = vmul.f32 %v9529, %v9536
    %v9553 = vmul.f32 %v9530, %v9536
    %v9554 = vsel %vm148, %v9538, 0.0
    %9555 = vadd.xlane.f32.xlu0 %v9554
    %v9556 = vpop.xlane.xlu0 %9555
    %v9557 = vsel %vm148, %v9539, 0.0
    %9558 = vadd.xlane.f32.xlu0 %v9557
    %v9559 = vpop.xlane.xlu0 %9558
    %v9560 = vsel %vm148, %v9540, 0.0
    %9561 = vadd.xlane.f32.xlu0 %v9560
    %v9562 = vpop.xlane.xlu0 %9561
    %v9563 = vsel %vm148, %v9541, 0.0
    %9564 = vadd.xlane.f32.xlu0 %v9563
    %v9565 = vpop.xlane.xlu0 %9564
    %v9566 = vsel %vm148, %v9542, 0.0
    %9567 = vadd.xlane.f32.xlu0 %v9566
    %v9568 = vpop.xlane.xlu0 %9567
    %v9569 = vsel %vm148, %v9543, 0.0
    %9570 = vadd.xlane.f32.xlu0 %v9569
    %v9571 = vpop.xlane.xlu0 %9570
    %v9572 = vsel %vm148, %v9544, 0.0
    %9573 = vadd.xlane.f32.xlu0 %v9572
    %v9574 = vpop.xlane.xlu0 %9573
    %v9575 = vsel %vm148, %v9545, 0.0
    %9576 = vadd.xlane.f32.xlu0 %v9575
    %v9577 = vpop.xlane.xlu0 %9576
    %v9578 = vsel %vm148, %v9546, 0.0
    %9579 = vadd.xlane.f32.xlu0 %v9578
    %v9580 = vpop.xlane.xlu0 %9579
    %v9581 = vsel %vm148, %v9547, 0.0
    %9582 = vadd.xlane.f32.xlu0 %v9581
    %v9583 = vpop.xlane.xlu0 %9582
    %v9584 = vsel %vm148, %v9548, 0.0
    %9585 = vadd.xlane.f32.xlu0 %v9584
    %v9586 = vpop.xlane.xlu0 %9585
    %v9587 = vsel %vm148, %v9549, 0.0
    %9588 = vadd.xlane.f32.xlu0 %v9587
    %v9589 = vpop.xlane.xlu0 %9588
    %v9590 = vsel %vm148, %v9550, 0.0
    %9591 = vadd.xlane.f32.xlu0 %v9590
    %v9592 = vpop.xlane.xlu0 %9591
    %v9593 = vsel %vm148, %v9551, 0.0
    %9594 = vadd.xlane.f32.xlu0 %v9593
    %v9595 = vpop.xlane.xlu0 %9594
    %v9596 = vsel %vm148, %v9552, 0.0
    %9597 = vadd.xlane.f32.xlu0 %v9596
    %v9598 = vpop.xlane.xlu0 %9597
    %v9599 = vsel %vm148, %v9553, 0.0
    %9600 = vadd.xlane.f32.xlu0 %v9599
    %v9601 = vpop.xlane.xlu0 %9600
    %v9602 = vrot.slane %v9556, 4
    %v9603 = vmax.f32 %v9556, %v9602
    %v9604 = vrot.slane %v9603, 2
    %v9605 = vmax.f32 %v9603, %v9604
    %v9606 = vrot.slane %v9605, 1
    %v9607 = vmax.f32 %v9605, %v9606
    %v9608 = vrot.slane %v9559, 4
    %v9609 = vmax.f32 %v9559, %v9608
    %v9610 = vrot.slane %v9609, 2
    %v9611 = vmax.f32 %v9609, %v9610
    %v9612 = vrot.slane %v9611, 1
    %v9613 = vmax.f32 %v9611, %v9612
    %v9614 = vrot.slane %v9562, 4
    %v9615 = vmax.f32 %v9562, %v9614
    %v9616 = vrot.slane %v9615, 2
    %v9617 = vmax.f32 %v9615, %v9616
    %v9618 = vrot.slane %v9617, 1
    %v9619 = vmax.f32 %v9617, %v9618
    %v9620 = vrot.slane %v9565, 4
    %v9621 = vmax.f32 %v9565, %v9620
    %v9622 = vrot.slane %v9621, 2
    %v9623 = vmax.f32 %v9621, %v9622
    %v9624 = vrot.slane %v9623, 1
    %v9625 = vmax.f32 %v9623, %v9624
    %v9626 = vrot.slane %v9568, 4
    %v9627 = vmax.f32 %v9568, %v9626
    %v9628 = vrot.slane %v9627, 2
    %v9629 = vmax.f32 %v9627, %v9628
    %v9630 = vrot.slane %v9629, 1
    %v9631 = vmax.f32 %v9629, %v9630
    %v9632 = vrot.slane %v9571, 4
    %v9633 = vmax.f32 %v9571, %v9632
    %v9634 = vrot.slane %v9633, 2
    %v9635 = vmax.f32 %v9633, %v9634
    %v9636 = vrot.slane %v9635, 1
    %v9637 = vmax.f32 %v9635, %v9636
    %v9638 = vrot.slane %v9574, 4
    %v9639 = vmax.f32 %v9574, %v9638
    %v9640 = vrot.slane %v9639, 2
    %v9641 = vmax.f32 %v9639, %v9640
    %v9642 = vrot.slane %v9641, 1
    %v9643 = vmax.f32 %v9641, %v9642
    %v9644 = vrot.slane %v9577, 4
    %v9645 = vmax.f32 %v9577, %v9644
    %v9646 = vrot.slane %v9645, 2
    %v9647 = vmax.f32 %v9645, %v9646
    %v9648 = vrot.slane %v9647, 1
    %v9649 = vmax.f32 %v9647, %v9648
    %v9650 = vrot.slane %v9580, 4
    %v9651 = vmax.f32 %v9580, %v9650
    %v9652 = vrot.slane %v9651, 2
    %v9653 = vmax.f32 %v9651, %v9652
    %v9654 = vrot.slane %v9653, 1
    %v9655 = vmax.f32 %v9653, %v9654
    %v9656 = vrot.slane %v9583, 4
    %v9657 = vmax.f32 %v9583, %v9656
    %v9658 = vrot.slane %v9657, 2
    %v9659 = vmax.f32 %v9657, %v9658
    %v9660 = vrot.slane %v9659, 1
    %v9661 = vmax.f32 %v9659, %v9660
    %v9662 = vrot.slane %v9586, 4
    %v9663 = vmax.f32 %v9586, %v9662
    %v9664 = vrot.slane %v9663, 2
    %v9665 = vmax.f32 %v9663, %v9664
    %v9666 = vrot.slane %v9665, 1
    %v9667 = vmax.f32 %v9665, %v9666
    %v9668 = vrot.slane %v9589, 4
    %v9669 = vmax.f32 %v9589, %v9668
    %v9670 = vrot.slane %v9669, 2
    %v9671 = vmax.f32 %v9669, %v9670
    %v9672 = vrot.slane %v9671, 1
    %v9673 = vmax.f32 %v9671, %v9672
    %v9674 = vrot.slane %v9592, 4
    %v9675 = vmax.f32 %v9592, %v9674
    %v9676 = vrot.slane %v9675, 2
    %v9677 = vmax.f32 %v9675, %v9676
    %v9678 = vrot.slane %v9677, 1
    %v9679 = vmax.f32 %v9677, %v9678
    %v9680 = vrot.slane %v9595, 4
    %v9681 = vmax.f32 %v9595, %v9680
    %v9682 = vrot.slane %v9681, 2
    %v9683 = vmax.f32 %v9681, %v9682
    %v9684 = vrot.slane %v9683, 1
    %v9685 = vmax.f32 %v9683, %v9684
    %v9686 = vrot.slane %v9598, 4
    %v9687 = vmax.f32 %v9598, %v9686
    %v9688 = vrot.slane %v9687, 2
    %v9689 = vmax.f32 %v9687, %v9688
    %v9690 = vrot.slane %v9689, 1
    %v9691 = vmax.f32 %v9689, %v9690
    %v9692 = vrot.slane %v9601, 4
    %v9693 = vmax.f32 %v9601, %v9692
    %v9694 = vrot.slane %v9693, 2
    %v9695 = vmax.f32 %v9693, %v9694
    %v9696 = vrot.slane %v9695, 1
    %v9697 = vmax.f32 %v9695, %v9696
    %v9698 = vsub.f32 %v9556, %v9607
    %v9699 = vsub.f32 %v9559, %v9613
    %v9700 = vsub.f32 %v9562, %v9619
    %v9701 = vsub.f32 %v9565, %v9625
    %v9702 = vsub.f32 %v9568, %v9631
    %v9703 = vsub.f32 %v9571, %v9637
    %v9704 = vsub.f32 %v9574, %v9643
    %v9705 = vsub.f32 %v9577, %v9649
    %v9706 = vsub.f32 %v9580, %v9655
    %v9707 = vsub.f32 %v9583, %v9661
    %v9708 = vsub.f32 %v9586, %v9667
    %v9709 = vsub.f32 %v9589, %v9673
    %v9710 = vsub.f32 %v9592, %v9679
    %v9711 = vsub.f32 %v9595, %v9685
    %v9712 = vsub.f32 %v9598, %v9691
    %v9713 = vsub.f32 %v9601, %v9697
    %v9714 = vmul.f32 %v9698, 1.442695
    %v9715 = vpow.pop %v9714
    %v9716 = vmul.f32 %v9699, 1.442695
    %v9717 = vpow.pop %v9716
    %v9718 = vmul.f32 %v9700, 1.442695
    %v9719 = vpow.pop %v9718
    %v9720 = vmul.f32 %v9701, 1.442695
    %v9721 = vpow.pop %v9720
    %v9722 = vmul.f32 %v9702, 1.442695
    %v9723 = vpow.pop %v9722
    %v9724 = vmul.f32 %v9703, 1.442695
    %v9725 = vpow.pop %v9724
    %v9726 = vmul.f32 %v9704, 1.442695
    %v9727 = vpow.pop %v9726
    %v9728 = vmul.f32 %v9705, 1.442695
    %v9729 = vpow.pop %v9728
    %v9730 = vmul.f32 %v9706, 1.442695
    %v9731 = vpow.pop %v9730
    %v9732 = vmul.f32 %v9707, 1.442695
    %v9733 = vpow.pop %v9732
    %v9734 = vmul.f32 %v9708, 1.442695
    %v9735 = vpow.pop %v9734
    %v9736 = vmul.f32 %v9709, 1.442695
    %v9737 = vpow.pop %v9736
    %v9738 = vmul.f32 %v9710, 1.442695
    %v9739 = vpow.pop %v9738
    %v9740 = vmul.f32 %v9711, 1.442695
    %v9741 = vpow.pop %v9740
    %v9742 = vmul.f32 %v9712, 1.442695
    %v9743 = vpow.pop %v9742
    %v9744 = vmul.f32 %v9713, 1.442695
    %v9745 = vpow.pop %v9744
    %v9746 = vrot.slane %v9715, 4
    %v9747 = vadd.f32 %v9715, %v9746
    %v9748 = vrot.slane %v9747, 2
    %v9749 = vadd.f32 %v9747, %v9748
    %v9750 = vrot.slane %v9749, 1
    %v9751 = vadd.f32 %v9749, %v9750
    %v9752 = vrot.slane %v9717, 4
    %v9753 = vadd.f32 %v9717, %v9752
    %v9754 = vrot.slane %v9753, 2
    %v9755 = vadd.f32 %v9753, %v9754
    %v9756 = vrot.slane %v9755, 1
    %v9757 = vadd.f32 %v9755, %v9756
    %v9758 = vrot.slane %v9719, 4
    %v9759 = vadd.f32 %v9719, %v9758
    %v9760 = vrot.slane %v9759, 2
    %v9761 = vadd.f32 %v9759, %v9760
    %v9762 = vrot.slane %v9761, 1
    %v9763 = vadd.f32 %v9761, %v9762
    %v9764 = vrot.slane %v9721, 4
    %v9765 = vadd.f32 %v9721, %v9764
    %v9766 = vrot.slane %v9765, 2
    %v9767 = vadd.f32 %v9765, %v9766
    %v9768 = vrot.slane %v9767, 1
    %v9769 = vadd.f32 %v9767, %v9768
    %v9770 = vrot.slane %v9723, 4
    %v9771 = vadd.f32 %v9723, %v9770
    %v9772 = vrot.slane %v9771, 2
    %v9773 = vadd.f32 %v9771, %v9772
    %v9774 = vrot.slane %v9773, 1
    %v9775 = vadd.f32 %v9773, %v9774
    %v9776 = vrot.slane %v9725, 4
    %v9777 = vadd.f32 %v9725, %v9776
    %v9778 = vrot.slane %v9777, 2
    %v9779 = vadd.f32 %v9777, %v9778
    %v9780 = vrot.slane %v9779, 1
    %v9781 = vadd.f32 %v9779, %v9780
    %v9782 = vrot.slane %v9727, 4
    %v9783 = vadd.f32 %v9727, %v9782
    %v9784 = vrot.slane %v9783, 2
    %v9785 = vadd.f32 %v9783, %v9784
    %v9786 = vrot.slane %v9785, 1
    %v9787 = vadd.f32 %v9785, %v9786
    %v9788 = vrot.slane %v9729, 4
    %v9789 = vadd.f32 %v9729, %v9788
    %v9790 = vrot.slane %v9789, 2
    %v9791 = vadd.f32 %v9789, %v9790
    %v9792 = vrot.slane %v9791, 1
    %v9793 = vadd.f32 %v9791, %v9792
    %v9794 = vrot.slane %v9731, 4
    %v9795 = vadd.f32 %v9731, %v9794
    %v9796 = vrot.slane %v9795, 2
    %v9797 = vadd.f32 %v9795, %v9796
    %v9798 = vrot.slane %v9797, 1
    %v9799 = vadd.f32 %v9797, %v9798
    %v9800 = vrot.slane %v9733, 4
    %v9801 = vadd.f32 %v9733, %v9800
    %v9802 = vrot.slane %v9801, 2
    %v9803 = vadd.f32 %v9801, %v9802
    %v9804 = vrot.slane %v9803, 1
    %v9805 = vadd.f32 %v9803, %v9804
    %v9806 = vrot.slane %v9735, 4
    %v9807 = vadd.f32 %v9735, %v9806
    %v9808 = vrot.slane %v9807, 2
    %v9809 = vadd.f32 %v9807, %v9808
    %v9810 = vrot.slane %v9809, 1
    %v9811 = vadd.f32 %v9809, %v9810
    %v9812 = vrot.slane %v9737, 4
    %v9813 = vadd.f32 %v9737, %v9812
    %v9814 = vrot.slane %v9813, 2
    %v9815 = vadd.f32 %v9813, %v9814
    %v9816 = vrot.slane %v9815, 1
    %v9817 = vadd.f32 %v9815, %v9816
    %v9818 = vrot.slane %v9739, 4
    %v9819 = vadd.f32 %v9739, %v9818
    %v9820 = vrot.slane %v9819, 2
    %v9821 = vadd.f32 %v9819, %v9820
    %v9822 = vrot.slane %v9821, 1
    %v9823 = vadd.f32 %v9821, %v9822
    %v9824 = vrot.slane %v9741, 4
    %v9825 = vadd.f32 %v9741, %v9824
    %v9826 = vrot.slane %v9825, 2
    %v9827 = vadd.f32 %v9825, %v9826
    %v9828 = vrot.slane %v9827, 1
    %v9829 = vadd.f32 %v9827, %v9828
    %v9830 = vrot.slane %v9743, 4
    %v9831 = vadd.f32 %v9743, %v9830
    %v9832 = vrot.slane %v9831, 2
    %v9833 = vadd.f32 %v9831, %v9832
    %v9834 = vrot.slane %v9833, 1
    %v9835 = vadd.f32 %v9833, %v9834
    %v9836 = vrot.slane %v9745, 4
    %v9837 = vadd.f32 %v9745, %v9836
    %v9838 = vrot.slane %v9837, 2
    %v9839 = vadd.f32 %v9837, %v9838
    %v9840 = vrot.slane %v9839, 1
    %v9841 = vadd.f32 %v9839, %v9840
    %v9842 = vrcp.pop %v9751
    %v9843 = vrcp.pop %v9757
    %v9844 = vrcp.pop %v9763
    %v9845 = vrcp.pop %v9769
    %v9846 = vrcp.pop %v9775
    %v9847 = vrcp.pop %v9781
    %v9848 = vrcp.pop %v9787
    %v9849 = vrcp.pop %v9793
    %v9850 = vrcp.pop %v9799
    %v9851 = vrcp.pop %v9805
    %v9852 = vrcp.pop %v9811
    %v9853 = vrcp.pop %v9817
    %v9854 = vrcp.pop %v9823
    %v9855 = vrcp.pop %v9829
    %v9856 = vrcp.pop %v9835
    %v9857 = vrcp.pop %v9841
    %v9858 = vmul.f32 %v9715, %v9842
    %v9859 = vmul.f32 %v9717, %v9843
    %v9860 = vmul.f32 %v9719, %v9844
    %v9861 = vmul.f32 %v9721, %v9845
    %v9862 = vmul.f32 %v9723, %v9846
    %v9863 = vmul.f32 %v9725, %v9847
    %v9864 = vmul.f32 %v9727, %v9848
    %v9865 = vmul.f32 %v9729, %v9849
    %v9866 = vmul.f32 %v9731, %v9850
    %v9867 = vmul.f32 %v9733, %v9851
    %v9868 = vmul.f32 %v9735, %v9852
    %v9869 = vmul.f32 %v9737, %v9853
    %v9870 = vmul.f32 %v9739, %v9854
    %v9871 = vmul.f32 %v9741, %v9855
    %v9872 = vmul.f32 %v9743, %v9856
    %v9873 = vmul.f32 %v9745, %v9857
    %v9874 = vmul.f32 %v9858, %v9515
    %v9875 = vmul.f32 %v9859, %v9516
    %v9876 = vmul.f32 %v9860, %v9517
    %v9877 = vmul.f32 %v9861, %v9518
    %v9878 = vmul.f32 %v9862, %v9519
    %v9879 = vmul.f32 %v9863, %v9520
    %v9880 = vmul.f32 %v9864, %v9521
    %v9881 = vmul.f32 %v9865, %v9522
    %v9882 = vmul.f32 %v9866, %v9523
    %v9883 = vmul.f32 %v9867, %v9524
    %v9884 = vmul.f32 %v9868, %v9525
    %v9885 = vmul.f32 %v9869, %v9526
    %v9886 = vmul.f32 %v9870, %v9527
    %v9887 = vmul.f32 %v9871, %v9528
    %v9888 = vmul.f32 %v9872, %v9529
    %v9889 = vmul.f32 %v9873, %v9530
    %v9890 = vsel %vm148, %v9874, 0.0
    %v9891 = vrot.slane %v9890, 4
    %v9892 = vadd.f32 %v9890, %v9891
    %v9893 = vrot.slane %v9892, 2
    %v9894 = vadd.f32 %v9892, %v9893
    %v9895 = vrot.slane %v9894, 1
    %v9896 = vadd.f32 %v9894, %v9895
    %v9897 = vsel %vm148, %v9875, 0.0
    %v9898 = vrot.slane %v9897, 4
    %v9899 = vadd.f32 %v9897, %v9898
    %v9900 = vrot.slane %v9899, 2
    %v9901 = vadd.f32 %v9899, %v9900
    %v9902 = vrot.slane %v9901, 1
    %v9903 = vadd.f32 %v9901, %v9902
    %v9904 = vsel %vm148, %v9876, 0.0
    %v9905 = vrot.slane %v9904, 4
    %v9906 = vadd.f32 %v9904, %v9905
    %v9907 = vrot.slane %v9906, 2
    %v9908 = vadd.f32 %v9906, %v9907
    %v9909 = vrot.slane %v9908, 1
    %v9910 = vadd.f32 %v9908, %v9909
    %v9911 = vsel %vm148, %v9877, 0.0
    %v9912 = vrot.slane %v9911, 4
    %v9913 = vadd.f32 %v9911, %v9912
    %v9914 = vrot.slane %v9913, 2
    %v9915 = vadd.f32 %v9913, %v9914
    %v9916 = vrot.slane %v9915, 1
    %v9917 = vadd.f32 %v9915, %v9916
    %v9918 = vsel %vm148, %v9878, 0.0
    %v9919 = vrot.slane %v9918, 4
    %v9920 = vadd.f32 %v9918, %v9919
    %v9921 = vrot.slane %v9920, 2
    %v9922 = vadd.f32 %v9920, %v9921
    %v9923 = vrot.slane %v9922, 1
    %v9924 = vadd.f32 %v9922, %v9923
    %v9925 = vsel %vm148, %v9879, 0.0
    %v9926 = vrot.slane %v9925, 4
    %v9927 = vadd.f32 %v9925, %v9926
    %v9928 = vrot.slane %v9927, 2
    %v9929 = vadd.f32 %v9927, %v9928
    %v9930 = vrot.slane %v9929, 1
    %v9931 = vadd.f32 %v9929, %v9930
    %v9932 = vsel %vm148, %v9880, 0.0
    %v9933 = vrot.slane %v9932, 4
    %v9934 = vadd.f32 %v9932, %v9933
    %v9935 = vrot.slane %v9934, 2
    %v9936 = vadd.f32 %v9934, %v9935
    %v9937 = vrot.slane %v9936, 1
    %v9938 = vadd.f32 %v9936, %v9937
    %v9939 = vsel %vm148, %v9881, 0.0
    %v9940 = vrot.slane %v9939, 4
    %v9941 = vadd.f32 %v9939, %v9940
    %v9942 = vrot.slane %v9941, 2
    %v9943 = vadd.f32 %v9941, %v9942
    %v9944 = vrot.slane %v9943, 1
    %v9945 = vadd.f32 %v9943, %v9944
    %v9946 = vsel %vm148, %v9882, 0.0
    %v9947 = vrot.slane %v9946, 4
    %v9948 = vadd.f32 %v9946, %v9947
    %v9949 = vrot.slane %v9948, 2
    %v9950 = vadd.f32 %v9948, %v9949
    %v9951 = vrot.slane %v9950, 1
    %v9952 = vadd.f32 %v9950, %v9951
    %v9953 = vsel %vm148, %v9883, 0.0
    %v9954 = vrot.slane %v9953, 4
    %v9955 = vadd.f32 %v9953, %v9954
    %v9956 = vrot.slane %v9955, 2
    %v9957 = vadd.f32 %v9955, %v9956
    %v9958 = vrot.slane %v9957, 1
    %v9959 = vadd.f32 %v9957, %v9958
    %v9960 = vsel %vm148, %v9884, 0.0
    %v9961 = vrot.slane %v9960, 4
    %v9962 = vadd.f32 %v9960, %v9961
    %v9963 = vrot.slane %v9962, 2
    %v9964 = vadd.f32 %v9962, %v9963
    %v9965 = vrot.slane %v9964, 1
    %v9966 = vadd.f32 %v9964, %v9965
    %v9967 = vsel %vm148, %v9885, 0.0
    %v9968 = vrot.slane %v9967, 4
    %v9969 = vadd.f32 %v9967, %v9968
    %v9970 = vrot.slane %v9969, 2
    %v9971 = vadd.f32 %v9969, %v9970
    %v9972 = vrot.slane %v9971, 1
    %v9973 = vadd.f32 %v9971, %v9972
    %v9974 = vsel %vm148, %v9886, 0.0
    %v9975 = vrot.slane %v9974, 4
    %v9976 = vadd.f32 %v9974, %v9975
    %v9977 = vrot.slane %v9976, 2
    %v9978 = vadd.f32 %v9976, %v9977
    %v9979 = vrot.slane %v9978, 1
    %v9980 = vadd.f32 %v9978, %v9979
    %v9981 = vsel %vm148, %v9887, 0.0
    %v9982 = vrot.slane %v9981, 4
    %v9983 = vadd.f32 %v9981, %v9982
    %v9984 = vrot.slane %v9983, 2
    %v9985 = vadd.f32 %v9983, %v9984
    %v9986 = vrot.slane %v9985, 1
    %v9987 = vadd.f32 %v9985, %v9986
    %v9988 = vsel %vm148, %v9888, 0.0
    %v9989 = vrot.slane %v9988, 4
    %v9990 = vadd.f32 %v9988, %v9989
    %v9991 = vrot.slane %v9990, 2
    %v9992 = vadd.f32 %v9990, %v9991
    %v9993 = vrot.slane %v9992, 1
    %v9994 = vadd.f32 %v9992, %v9993
    %v9995 = vsel %vm148, %v9889, 0.0
    %v9996 = vrot.slane %v9995, 4
    %v9997 = vadd.f32 %v9995, %v9996
    %v9998 = vrot.slane %v9997, 2
    %v9999 = vadd.f32 %v9997, %v9998
    %v10000 = vrot.slane %v9999, 1
    %v10001 = vadd.f32 %v9999, %v10000
    %v10002 = vld [vmem:[%s0] sm:$0x1]
    %v10003 = vld [vmem:[%s0 + $0x1] sm:$0x1]
    %v10004 = vld [vmem:[%s0 + $0x2] sm:$0x1]
    %v10005 = vld [vmem:[%s0 + $0x3] sm:$0x1]
    %v10006 = vld [vmem:[%s0 + $0x4] sm:$0x1]
    %v10007 = vld [vmem:[%s0 + $0x5] sm:$0x1]
    %v10008 = vld [vmem:[%s0 + $0x6] sm:$0x1]
    %v10009 = vld [vmem:[%s0 + $0x7] sm:$0x1]
    %v10010 = vld [vmem:[#allocation2 + $0x14] sm:$0xf]
    %v10011 = vld [vmem:[#allocation2 + $0x30] sm:$0xf]
    %v10012 = vld [vmem:[#allocation2 + $0x4c] sm:$0xf]
    %v10013 = vld [vmem:[#allocation2 + $0x68] sm:$0xf]
    %v10014 = vpack.c.bf16 %v9896, %v9896
    %v10015 = vpack.c.bf16 %v9903, %v9903
    %v10016 = vpack.c.bf16 %v9910, %v9910
    %v10017 = vpack.c.bf16 %v9917, %v9917
    %v10018 = vpack.c.bf16 %v9924, %v9924
    %v10019 = vpack.c.bf16 %v9931, %v9931
    %v10020 = vpack.c.bf16 %v9938, %v9938
    %v10021 = vpack.c.bf16 %v9945, %v9945
    %v10022 = vpack.c.bf16 %v9952, %v9952
    %v10023 = vpack.c.bf16 %v9959, %v9959
    %v10024 = vpack.c.bf16 %v9966, %v9966
    %v10025 = vpack.c.bf16 %v9973, %v9973
    %v10026 = vpack.c.bf16 %v9980, %v9980
    %v10027 = vpack.c.bf16 %v9987, %v9987
    %v10028 = vpack.c.bf16 %v9994, %v9994
    %v10029 = vpack.c.bf16 %v10001, %v10001
    %v10030 = vld [vmem:[#allocation2 + $0x18] sm:$0xf]
    %v10031 = vld [vmem:[#allocation2 + $0x34] sm:$0xf]
    %v10032 = vld [vmem:[#allocation2 + $0x50] sm:$0xf]
    %v10033 = vld [vmem:[#allocation2 + $0x6c] sm:$0xf]
    %v10050 = vunpack.c.l.b16 %v10014
    %v10051 = vunpack.c.l.b16 %v10015
    %v10052 = vunpack.c.l.b16 %v10016
    %v10053 = vunpack.c.l.b16 %v10017
    %v10054 = vunpack.c.l.b16 %v10018
    %v10055 = vunpack.c.l.b16 %v10019
    %v10056 = vunpack.c.l.b16 %v10020
    %v10057 = vunpack.c.l.b16 %v10021
    %v10058 = vunpack.c.l.b16 %v10022
    %v10059 = vunpack.c.l.b16 %v10023
    %v10060 = vunpack.c.l.b16 %v10024
    %v10061 = vunpack.c.l.b16 %v10025
    %v10062 = vunpack.c.l.b16 %v10026
    %v10063 = vunpack.c.l.b16 %v10027
    %v10064 = vunpack.c.l.b16 %v10028
    %v10065 = vunpack.c.l.b16 %v10029
    %v10066 = vsel %vm3046, %v10051, %v10050
    %v10067 = vsel %vm3048, %v10052, %v10066
    %v10068 = vsel %vm3050, %v10053, %v10067
    %v10069 = vsel %vm3052, %v10054, %v10068
    %v10070 = vsel %vm3054, %v10055, %v10069
    %v10071 = vsel %vm3056, %v10056, %v10070
    %v10072 = vsel %vm3058, %v10057, %v10071
    %v10073 = vsel %vm3046, %v10059, %v10058
    %v10074 = vsel %vm3048, %v10060, %v10073
    %v10075 = vsel %vm3050, %v10061, %v10074
    %v10076 = vsel %vm3052, %v10062, %v10075
    %v10077 = vsel %vm3054, %v10063, %v10076
    %v10078 = vsel %vm3056, %v10064, %v10077
    %v10079 = vsel %vm3058, %v10065, %v10078
    %v10080 = vpack.c.b16 %v10079, %v10072
    %v10085 = vunpack.c.l.b16 %v10030
    %v10086 = vunpack.c.l.b16 %v10031
    %v10087 = vunpack.c.l.b16 %v10032
    %v10088 = vunpack.c.l.b16 %v10033
    %v10089 = vpack.c.b16 %v10086, %v10085
    %v10090 = vpack.c.b16 %v10088, %v10087
    %v10094 = vsel %vm148, %v10080, 0
    %10096 = vmatprep.subr.bf16.mxu0 0
    %10097 = vmatpush1.bf16.msra.mxu0 %v10089
    %10098 = vmatprep.subr.bf16.mxu0 0
    %10099 = vmatpush1.bf16.msra.mxu0 %v10090
    %10100 = vmatprep.subr.bf16.mxu0 0
    %10101 = vmatpush1.bf16.msra.mxu0 0
    %10102 = vmatprep.subr.bf16.mxu0 0
    %10103 = vmatpush1.bf16.msra.mxu0 0
    %10104 = vmatprep.subr.bf16.mxu0 0
    %10105 = vmatpush1.bf16.msra.mxu0 0
    %10106 = vmatprep.subr.bf16.mxu0 0
    %10107 = vmatpush1.bf16.msra.mxu0 0
    %10108 = vmatprep.subr.bf16.mxu0 0
    %10109 = vmatpush1.bf16.msra.mxu0 0
    %10110 = vmatprep.subr.bf16.mxu0 0
    %10111 = vmatpush1.bf16.msra.mxu0 0
    %10112 = vmatprep.subr.bf16.mxu0 0
    %10113 = vmatpush1.bf16.msra.mxu0 0
    %10114 = vmatprep.subr.bf16.mxu0 0
    %10115 = vmatpush1.bf16.msra.mxu0 0
    %10116 = vmatprep.subr.bf16.mxu0 0
    %10117 = vmatpush1.bf16.msra.mxu0 0
    %10118 = vmatprep.subr.bf16.mxu0 0
    %10119 = vmatpush1.bf16.msra.mxu0 0
    %10120 = vmatprep.subr.bf16.mxu0 0
    %10121 = vmatpush1.bf16.msra.mxu0 0
    %10122 = vmatprep.subr.bf16.mxu0 0
    %10123 = vmatpush1.bf16.msra.mxu0 0
    %10124 = vmatprep.subr.bf16.mxu0 0
    %10125 = vmatpush1.bf16.msra.mxu0 0
    %10126 = vmatprep.subr.bf16.mxu0 0
    %10127 = vmatpush1.bf16.msra.mxu0 0
    %10128 = vmatprep.mubr.bf16.mxu0 0
    %10129 = vmatmul.mubr.bf16.gmra.mrb[0].mxu0 %v10094
    %v10130 = vpop.f32.mrb[0].mxu0
    %v10131 = vadd.f32 0.0, %v10130
    %v10132 = vpop.f32.mrb[0].mxu0
    %v10133 = vpop.f32.mrb[0].mxu0
    %v10134 = vadd.f32 0.0, %v10133
    %v10135 = vpop.f32.mrb[0].mxu0
    %10136 = vdwg.mxu0
    %v10145 = vcombine.low %v10002, %v10003
    %v10146 = vcombine.low %v10004, %v10005
    %v10147 = vcombine.low %v10006, %v10007
    %v10148 = vcombine.low %v10008, %v10009
    %v10150 = vunpack.c.l.s4 1966171168
    %v10151 = vunpack.c.0.s8 %v10150
    %v10152 = vlaneseq
    %v10153 = vshrl.u32 %v10152, 7
    %v10154 = vsub.s32 %v10151, %v10153
    %v10155 = vrot.slane %v10145, %v10154
    %v10157 = vunpack.c.l.s4 1966171168
    %v10158 = vunpack.c.0.s8 %v10157
    %v10159 = vlaneseq
    %v10160 = vshrl.u32 %v10159, 7
    %v10161 = vsub.s32 %v10158, %v10160
    %v10162 = vrot.slane %v10146, %v10161
    %v10164 = vunpack.c.l.s4 1966171168
    %v10165 = vunpack.c.0.s8 %v10164
    %v10166 = vlaneseq
    %v10167 = vshrl.u32 %v10166, 7
    %v10168 = vsub.s32 %v10165, %v10167
    %v10169 = vrot.slane %v10147, %v10168
    %v10171 = vunpack.c.l.s4 1966171168
    %v10172 = vunpack.c.0.s8 %v10171
    %v10173 = vlaneseq
    %v10174 = vshrl.u32 %v10173, 7
    %v10175 = vsub.s32 %v10172, %v10174
    %v10176 = vrot.slane %v10148, %v10175
    %v10177 = vcombine.low %v10155, %v10162
    %v10178 = vcombine.low %v10169, %v10176
    %v10180 = vunpack.c.l.s4 1966171168
    %v10181 = vunpack.c.0.s8 %v10180
    %v10182 = vlaneseq
    %v10183 = vshrl.u32 %v10182, 7
    %v10184 = vsub.s32 %v10181, %v10183
    %v10185 = vrot.slane %v10177, %v10184
    %v10187 = vunpack.c.l.s4 1966171168
    %v10188 = vunpack.c.0.s8 %v10187
    %v10189 = vlaneseq
    %v10190 = vshrl.u32 %v10189, 7
    %v10191 = vsub.s32 %v10188, %v10190
    %v10192 = vrot.slane %v10178, %v10191
    %v10193 = vcombine.low %v10185, %v10192
    %v10198 = vunpack.c.l.b16 %v10010
    %v10199 = vunpack.c.l.b16 %v10011
    %v10200 = vunpack.c.l.b16 %v10012
    %v10201 = vunpack.c.l.b16 %v10013
    %v10202 = vpack.c.b16 %v10199, %v10198
    %v10203 = vpack.c.b16 %v10201, %v10200
    %v10207 = vsel %vm148, %v10193, 0
    %10209 = vmatprep.subr.bf16.mxu0 0
    %10210 = vmatpush1.bf16.msra.mxu0 %v10202
    %10211 = vmatprep.subr.bf16.mxu0 0
    %10212 = vmatpush1.bf16.msra.mxu0 %v10203
    %10213 = vmatprep.subr.bf16.mxu0 0
    %10214 = vmatpush1.bf16.msra.mxu0 0
    %10215 = vmatprep.subr.bf16.mxu0 0
    %10216 = vmatpush1.bf16.msra.mxu0 0
    %10217 = vmatprep.subr.bf16.mxu0 0
    %10218 = vmatpush1.bf16.msra.mxu0 0
    %10219 = vmatprep.subr.bf16.mxu0 0
    %10220 = vmatpush1.bf16.msra.mxu0 0
    %10221 = vmatprep.subr.bf16.mxu0 0
    %10222 = vmatpush1.bf16.msra.mxu0 0
    %10223 = vmatprep.subr.bf16.mxu0 0
    %10224 = vmatpush1.bf16.msra.mxu0 0
    %10225 = vmatprep.subr.bf16.mxu0 0
    %10226 = vmatpush1.bf16.msra.mxu0 0
    %10227 = vmatprep.subr.bf16.mxu0 0
    %10228 = vmatpush1.bf16.msra.mxu0 0
    %10229 = vmatprep.subr.bf16.mxu0 0
    %10230 = vmatpush1.bf16.msra.mxu0 0
    %10231 = vmatprep.subr.bf16.mxu0 0
    %10232 = vmatpush1.bf16.msra.mxu0 0
    %10233 = vmatprep.subr.bf16.mxu0 0
    %10234 = vmatpush1.bf16.msra.mxu0 0
    %10235 = vmatprep.subr.bf16.mxu0 0
    %10236 = vmatpush1.bf16.msra.mxu0 0
    %10237 = vmatprep.subr.bf16.mxu0 0
    %10238 = vmatpush1.bf16.msra.mxu0 0
    %10239 = vmatprep.subr.bf16.mxu0 0
    %10240 = vmatpush1.bf16.msra.mxu0 0
    %10241 = vmatprep.mubr.bf16.mxu0 0
    %10242 = vmatmul.mubr.bf16.gmra.mrb[0].mxu0 %v10207
    %v10243 = vpop.f32.mrb[0].mxu0
    %v10244 = vadd.f32 %v10131, %v10243
    %v10245 = vpop.f32.mrb[0].mxu0
    %v10246 = vpop.f32.mrb[0].mxu0
    %v10247 = vadd.f32 %v10134, %v10246
    %v10248 = vpop.f32.mrb[0].mxu0
    %10249 = vdwg.mxu0
    %v10250 = vld [vmem:[%s4 + $0xb] sm:$0x1]
    %v10252 = vlaneseq
    %v10253 = vshrl.u32 %v10252, 7
    %v10254 = vsub.s32 0, %v10253
    %v10255 = vrot.slane %v10250, %v10254
    %v10257 = vadd.f32 %v10244, %v10255
    %v10258 = vadd.f32 %v10247, %v10255
    %v10259 = vmax.f32 %v10257, 0.0
    %v10260 = vmax.f32 %v10258, 0.0
    %v10261 = vld [vmem:[%s4 + $0xc] sm:$0x1]
    %v10262 = vpack.c.bf16 %v10261, %v10261
    %v10263 = vpack.c.bf16 %v10260, %v10259
    %v10264 = vld [vmem:[%s4 + $0xd] sm:$0x1]
    %10266 = vset.pattern.permute.xlu0 0
    %10267 = vperm.xlu0 %10266, %v10264
    %v10268 = vpop.permute.xlu0 %10267
    %v10270 = vlaneseq
    %v10271 = vshrl.u32 %v10270, 7
    %v10272 = vsub.s32 0, %v10271
    %v10273 = vrot.slane %v10268, %v10272
    %v10275 = vsel %vm148, %v10262, 0
    %v10278 = vsel %vm148, %v10263, 0
    %10280 = vmatprep.subr.bf16.mxu0 0
    %10281 = vmatpush1.bf16.xpose.msra.mxu0 %v10278
    %10282 = vmatprep.subr.bf16.mxu0 0
    %10283 = vmatpush1.bf16.xpose.msra.mxu0 0
    %10284 = vmatprep.subr.bf16.mxu0 0
    %10285 = vmatpush1.bf16.xpose.msra.mxu0 0
    %10286 = vmatprep.subr.bf16.mxu0 0
    %10287 = vmatpush1.bf16.xpose.msra.mxu0 0
    %10288 = vmatprep.subr.bf16.mxu0 0
    %10289 = vmatpush1.bf16.xpose.msra.mxu0 0
    %10290 = vmatprep.subr.bf16.mxu0 0
    %10291 = vmatpush1.bf16.xpose.msra.mxu0 0
    %10292 = vmatprep.subr.bf16.mxu0 0
    %10293 = vmatpush1.bf16.xpose.msra.mxu0 0
    %10294 = vmatprep.subr.bf16.mxu0 0
    %10295 = vmatpush1.bf16.xpose.msra.mxu0 0
    %10296 = vmatprep.subr.bf16.mxu0 0
    %10297 = vmatpush1.bf16.xpose.msra.mxu0 0
    %10298 = vmatprep.subr.bf16.mxu0 0
    %10299 = vmatpush1.bf16.xpose.msra.mxu0 0
    %10300 = vmatprep.subr.bf16.mxu0 0
    %10301 = vmatpush1.bf16.xpose.msra.mxu0 0
    %10302 = vmatprep.subr.bf16.mxu0 0
    %10303 = vmatpush1.bf16.xpose.msra.mxu0 0
    %10304 = vmatprep.subr.bf16.mxu0 0
    %10305 = vmatpush1.bf16.xpose.msra.mxu0 0
    %10306 = vmatprep.subr.bf16.mxu0 0
    %10307 = vmatpush1.bf16.xpose.msra.mxu0 0
    %10308 = vmatprep.subr.bf16.mxu0 0
    %10309 = vmatpush1.bf16.xpose.msra.mxu0 0
    %10310 = vmatprep.subr.bf16.mxu0 0
    %10311 = vmatpush1.bf16.xpose.msra.mxu0 0
    %10312 = vmatprep.mubr.bf16.mxu0 0
    %10313 = vmatmul.mubr.bf16.gmra.mrb[0].mxu0 %v10275
    %v10314 = vpop.f32.mrb[0].mxu0
    %v10315 = vadd.f32 %v10273, %v10314
    %v10316 = vpop.f32.mrb[0].mxu0
    %v10317 = vpop.f32.mrb[0].mxu0
    %v10318 = vpop.f32.mrb[0].mxu0
    %10319 = vdwg.mxu0
    %v10320 = vxor.u32 %v10315, 2147483648
    %v10321 = vmul.f32 %v10320, 1.442695
    %v10322 = vpow.pop %v10321
    %v10323 = vadd.f32 %v10322, 1.0
    %v10324 = vrcp.pop %v10323
    %v10325 = vmul.f32 1.0, %v10324
    %vm10326 = vcmask 122880
    %10327 = vst.msk [vmem:[#allocation5] sm:$0x1] %vm10326, %v10325
    // Predicated region
    $region26: #{tpu_custom_call.1} parent=1 // pred_check
      _
    $region27: #{tpu_custom_call.1} parent=1 // pred_check_branch
      %10329 = sbr.rel (0) target = $region29
    $region28: #{tpu_custom_call.1} parent=1 // pred_region
      %s10331 = ssub.s32 16, 16
      %10332 = vsyncadd [#allocation4], %s10331
      %s10334 = sshll.u32 [#allocation5], 4
      %s10335 = int_to_ptr.vmem [resolvable:$true] %s10334
      %10337 = dma.vmem_to_hbm [thread:$0]  %s10335, 16, %s5, [#allocation4]
    $region29: #{tpu_custom_call.1} parent=1 // pred_fallthru
      _
    // Predicated region
    $region30: #{tpu_custom_call.1} parent=1 // pred_check
      _
    $region31: #{tpu_custom_call.1} parent=1 // pred_check_branch
      %10339 = sbr.rel (0) target = $region33
    $region32: #{tpu_custom_call.1} parent=1 // pred_region
      %10340 = dma.done [#allocation4], 16
    $region33: #{tpu_custom_call.1} parent=1 // pred_fallthru
      _
    %10341 = vsyncpa [#allocation3], 1
    %10342 = vsyncpa [#allocation4], 1

</llo_original>
